<compile_context>
chip_gen: v7x
topology: tpu7x:2x2x1
jax: 0.10.0
libtpu: 0.0.40
codegen_flags: <defaults>
</compile_context>

<pallas_src>
import functools

import jax
import jax.numpy as jnp
import numpy as np
from jax.experimental import pallas as pl
from jax.experimental.pallas import tpu as pltpu

FP = 128  # padded lane width for every feature/channel dimension


# --------------------------------------------------------------------------
# Fused forward kernel (single invocation, everything resident in VMEM)
# --------------------------------------------------------------------------
def _fused_forward_kernel(x_ref, p0_ref, p1_ref,
                          w0_ref, b0_ref, w1_ref, b1_ref,
                          we_ref, be_ref, es_ref,
                          wd_ref, bd_ref, ds_ref,
                          wd0_ref, bd0_ref, wd1_ref, bd1_ref,
                          d0_ref, d1_ref, u1_ref, u0_ref, mask_ref,
                          out_ref, z_ref,
                          *, B, N2, S0, S1):
    f32 = jnp.float32

    def mxu(a, b):
        return jnp.dot(a, b, preferred_element_type=f32)

    def elu(y):
        # alpha=1 ELU; clamp the exp argument so the discarded branch stays finite
        return jnp.where(y > 0, y, jnp.exp(jnp.minimum(y, 0.0)) - 1.0)

    def identity(y):
        return y

    def spiral_conv(h, p_ref, w_ref, b_ref, S, act):
        # y = act(b + sum_s (P_s @ h) @ W_s)   (gather matrices precomputed)
        acc = jnp.zeros((h.shape[0], FP), f32) + b_ref[...]
        for s in range(S):                       # S is small & static -> unrolled
            g = mxu(p_ref[s], h)                 # gather for spiral offset s
            acc = acc + mxu(g, w_ref[s])
        return act(acc)

    # ---------------- encoder ----------------
    h = x_ref[...]                                       # (B*N0, FP)
    h = spiral_conv(h, p0_ref, w0_ref, b0_ref, S0, elu)  # conv0 @ level 0
    h = mxu(d0_ref[...], h)                              # pool D0 (dummy mask folded)
    h = spiral_conv(h, p1_ref, w1_ref, b1_ref, S1, elu)  # conv1 @ level 1
    h = mxu(d1_ref[...], h)                              # pool D1 (dummy mask folded)

    # latent encode: flatten over (vertex, channel) expressed as per-vertex matmuls
    z = jnp.zeros((B, FP), f32) + be_ref[...]
    for n in range(N2):
        hv = mxu(es_ref[n], h)                           # (B, FP): rows of vertex n
        z = z + mxu(hv, we_ref[n])
    z_ref[...] = z.astype(z_ref.dtype)
    # TODO(synk): VAE reparameterization branch (randn_like) not implemented
    # since VAE_flag=False in this configuration.

    # ---------------- decoder ----------------
    d = bd_ref[...] + jnp.zeros((B * N2, FP), f32)       # precomputed bias image
    for n in range(N2):
        dv = mxu(z, wd_ref[n])                           # (B, FP) vertex n features
        d = d + mxu(ds_ref[n], dv)                       # scatter into rows b*N2+n
    d = mxu(u1_ref[...], d)                              # unpool U1 -> level 1
    d = spiral_conv(d, p1_ref, wd0_ref, bd0_ref, S1, elu)
    d = mxu(u0_ref[...], d)                              # unpool U0 (dummy mask folded)
    d = spiral_conv(d, p0_ref, wd1_ref, bd1_ref, S0, identity)
    out_ref[...] = (d * mask_ref[...]).astype(out_ref.dtype)


# --------------------------------------------------------------------------
# Static precomputation helpers (model topology / weight re-layout, runs once)
# --------------------------------------------------------------------------
def _np(a):
    return np.asarray(jax.device_get(a), np.float32)


def _gather_mats(idx, B, N, S):
    # idx: (N, S) -> (S, B*N, B*N) one-hot gather matrices, block-diag over batch
    idx = np.asarray(jax.device_get(idx)).reshape(N, S)
    P = np.zeros((S, B * N, B * N), np.float32)
    for s in range(S):
        for b in range(B):
            P[s, b * N + np.arange(N), b * N + idx[:, s]] = 1.0
    return jnp.asarray(P)


def _conv_w(w, b, S, Fin, Cout):
    # torch Linear layout (Cout, S*Fin) -> (S, FP, FP) zero-padded, bias (1, FP)
    w = _np(w).reshape(Cout, S, Fin)
    wp = np.zeros((S, FP, FP), np.float32)
    wp[:, :Fin, :Cout] = np.transpose(w, (1, 2, 0))
    bp = np.zeros((1, FP), np.float32)
    bp[0, :Cout] = _np(b)
    return jnp.asarray(wp), jnp.asarray(bp)


def _enc_w(w, b, N2, C, L):
    # torch (L, N2*C): z = flatten(h) @ w.T + b, flatten order (vertex, channel)
    w = _np(w).reshape(L, N2, C)
    wp = np.zeros((N2, FP, FP), np.float32)
    wp[:, :C, :L] = np.transpose(w, (1, 2, 0))           # (N2, C, L)
    bp = np.zeros((1, FP), np.float32)
    bp[0, :L] = _np(b)
    return jnp.asarray(wp), jnp.asarray(bp)


def _dec_w(w, b, N2, C, L, B):
    # torch (N2*C, L): d = z @ w.T + b, then view(B, N2, C)
    w = _np(w).reshape(N2, C, L)
    wp = np.zeros((N2, FP, FP), np.float32)
    wp[:, :L, :C] = np.transpose(w, (0, 2, 1))           # (N2, L, C)
    # bias as a full (B*N2, FP) row image -> no in-kernel reshape/broadcast logic
    bimg = np.zeros((B * N2, FP), np.float32)
    b2 = _np(b).reshape(N2, C)
    for bb in range(B):
        bimg[bb * N2:(bb + 1) * N2, :C] = b2
    return jnp.asarray(wp), jnp.asarray(bimg)


def _blockdiag(m, B, zero_col=None):
    # batch block-diagonal pooling matrix; optionally fold the preceding
    # SpiralConv's dummy-vertex mask by zeroing the corresponding column.
    m = _np(m).copy()
    if zero_col is not None:
        m[:, zero_col] = 0.0
    No, Ni = m.shape
    out = np.zeros((B * No, B * Ni), np.float32)
    for b in range(B):
        out[b * No:(b + 1) * No, b * Ni:(b + 1) * Ni] = m
    return jnp.asarray(out)


def _selectors(B, N2):
    # E[n]  : (B, B*N2)  picks row b*N2+n for each batch b   (flatten for enc FC)
    # Et[n] : (B*N2, B)  scatters a (B, FP) block back into rows b*N2+n (dec FC)
    E = np.zeros((N2, B, B * N2), np.float32)
    Et = np.zeros((N2, B * N2, B), np.float32)
    for n in range(N2):
        for b in range(B):
            E[n, b, b * N2 + n] = 1.0
            Et[n, b * N2 + n, b] = 1.0
    return jnp.asarray(E), jnp.asarray(Et)


# --------------------------------------------------------------------------
# Wrapper: precompute static operands once, return a jitted forward fn
# --------------------------------------------------------------------------
def build_forward(params, cfg, B):
    sizes, sp = cfg["sizes"], cfg["spiral_sizes"]
    N0, N1, N2 = sizes[0] + 1, sizes[1] + 1, sizes[2] + 1
    S0, S1 = sp[0], sp[1]
    F0, C0, C1 = cfg["filters_enc"][0]
    Dc0, Dc1, Dc2 = cfg["filters_dec"][0]
    lat = cfg["latent_size"]
    # TODO(synk): optional extra conv layers (filters_enc[1]/filters_dec[1]) are
    # disabled (all zero) in this configuration and not implemented.

    p0 = _gather_mats(params["S"][0][0], B, N0, S0)
    p1 = _gather_mats(params["S"][1][0], B, N1, S1)
    w0, b0 = _conv_w(params["conv0_w"], params["conv0_b"], S0, F0, C0)
    w1, b1 = _conv_w(params["conv1_w"], params["conv1_b"], S1, C0, C1)
    wd0, bd0 = _conv_w(params["dconv0_w"], params["dconv0_b"], S1, Dc0, Dc1)
    wd1, bd1 = _conv_w(params["dconv1_w"], params["dconv1_b"], S0, Dc1, Dc2)
    we, be = _enc_w(params["enc_w"], params["enc_b"], N2, C1, lat)
    wd, bd = _dec_w(params["dec_w"], params["dec_b"], N2, Dc0, lat, B)
    es, ds = _selectors(B, N2)
    d0m = _blockdiag(params["D"][0], B, zero_col=N0 - 1)   # fold level-0 dummy mask
    d1m = _blockdiag(params["D"][1], B, zero_col=N1 - 1)   # fold level-1 dummy mask
    u1b = _blockdiag(params["U"][1], B)
    u0m = _blockdiag(params["U"][0], B, zero_col=N1 - 1)   # fold level-1 dummy mask
    mask0 = np.ones((B * N0, 1), np.float32)
    mask0[np.arange(B) * N0 + N0 - 1, 0] = 0.0             # final output dummy mask
    mask0 = jnp.asarray(mask0)

    consts = (p0, p1, w0, b0, w1, b1, we, be, es, wd, bd, ds,
              wd0, bd0, wd1, bd1, d0m, d1m, u1b, u0m, mask0)

    kernel = functools.partial(_fused_forward_kernel, B=B, N2=N2, S0=S0, S1=S1)
    call = pl.pallas_call(
        kernel,
        out_shape=(jax.ShapeDtypeStruct((B * N0, FP), jnp.float32),
                   jax.ShapeDtypeStruct((B, FP), jnp.float32)),
        compiler_params=pltpu.CompilerParams(vmem_limit_bytes=32 * 1024 * 1024),
    )

    def fwd(x):
        # lane-pad input features to 128 (layout plumbing outside the kernel)
        x_pad = jnp.zeros((B * N0, FP), jnp.float32)
        x_pad = x_pad.at[:, :F0].set(x.reshape(B * N0, F0).astype(jnp.float32))
        out_pad, z_pad = call(x_pad, *consts)
        out = out_pad[:, :Dc2].reshape(B, N0, Dc2).astype(x.dtype)
        z = z_pad[:, :lat].astype(x.dtype)
        return out, z

    return jax.jit(fwd)


# --------------------------------------------------------------------------
# Pure-JAX reference (mirrors the PyTorch semantics exactly) for verification
# --------------------------------------------------------------------------
def _spiral_conv_ref(x, idx, w, b, activation):
    B, N, F = x.shape
    S = idx.shape[-1]
    g = jnp.take(x, idx[0].reshape(-1), axis=1).reshape(B, N, S * F)
    y = jnp.einsum("bnk,ck->bnc", g, w) + b
    if activation == "elu":
        y = jnp.where(y > 0, y, jnp.exp(jnp.minimum(y, 0.0)) - 1.0)
    mask = jnp.ones((N,), x.dtype).at[N - 1].set(0.0)
    return y * mask[None, :, None]


def forward_ref(params, x, cfg):
    B = x.shape[0]
    S, D, U = params["S"], params["D"], params["U"]
    h = x
    h = _spiral_conv_ref(h, S[0], params["conv0_w"], params["conv0_b"], "elu")
    h = jnp.einsum("mn,bnf->bmf", D[0], h)
    h = _spiral_conv_ref(h, S[1], params["conv1_w"], params["conv1_b"], "elu")
    h = jnp.einsum("mn,bnf->bmf", D[1], h)
    h = h.reshape(B, -1)
    z = h @ params["enc_w"].T + params["enc_b"]
    d = z @ params["dec_w"].T + params["dec_b"]
    d = d.reshape(B, cfg["sizes"][-1] + 1, -1)
    d = jnp.einsum("mn,bnf->bmf", U[1], d)
    d = _spiral_conv_ref(d, S[1], params["dconv0_w"], params["dconv0_b"], "elu")
    d = jnp.einsum("mn,bnf->bmf", U[0], d)
    d = _spiral_conv_ref(d, S[0], params["dconv1_w"], params["dconv1_b"], "identity")
    return d, z


# --------------------------------------------------------------------------
# Main
# --------------------------------------------------------------------------
if __name__ == "__main__":
    cfg = {
        "sizes": [16, 8, 4],                 # vertices per level (without dummy vertex)
        "spiral_sizes": [6, 6, 6],
        "filters_enc": [[3, 16, 32], [0, 0]],
        "filters_dec": [[32, 16, 3], [0, 0, 0]],
        "latent_size": 16,
    }
    B = 2
    Ns = [s + 1 for s in cfg["sizes"]]       # 17, 9, 5 (include dummy vertex)
    sp = cfg["spiral_sizes"]
    lat = cfg["latent_size"]

    key = jax.random.PRNGKey(0)
    ks = list(jax.random.split(key, 24))

    def w_init(k, shape, scale=0.2):
        return jax.random.normal(k, shape, jnp.float32) * scale

    params = {}
    params["S"] = [
        jax.random.randint(ks[0], (1, Ns[0], sp[0]), 0, Ns[0], dtype=jnp.int32),
        jax.random.randint(ks[1], (1, Ns[1], sp[1]), 0, Ns[1], dtype=jnp.int32),
    ]
    params["D"] = [w_init(ks[2], (Ns[1], Ns[0]), 0.3), w_init(ks[3], (Ns[2], Ns[1]), 0.3)]
    params["U"] = [w_init(ks[4], (Ns[0], Ns[1]), 0.3), w_init(ks[5], (Ns[1], Ns[2]), 0.3)]

    params["conv0_w"] = w_init(ks[6], (16, 3 * sp[0]))
    params["conv0_b"] = w_init(ks[7], (16,), 0.05)
    params["conv1_w"] = w_init(ks[8], (32, 16 * sp[1]))
    params["conv1_b"] = w_init(ks[9], (32,), 0.05)

    params["enc_w"] = w_init(ks[10], (lat, Ns[2] * 32), 0.1)
    params["enc_b"] = w_init(ks[11], (lat,), 0.05)
    params["dec_w"] = w_init(ks[12], (Ns[2] * 32, lat), 0.1)
    params["dec_b"] = w_init(ks[13], (Ns[2] * 32,), 0.05)

    params["dconv0_w"] = w_init(ks[14], (16, 32 * sp[1]))
    params["dconv0_b"] = w_init(ks[15], (16,), 0.05)
    params["dconv1_w"] = w_init(ks[16], (3, 16 * sp[0]))
    params["dconv1_b"] = w_init(ks[17], (3,), 0.05)

    x = jax.random.normal(ks[18], (B, Ns[0], 3), jnp.float32)

    fwd = build_forward(params, cfg, B)
    out, z = fwd(x)
    out, z = jax.block_until_ready((out, z))

    out_ref, z_ref = forward_ref(params, x, cfg)
    np.testing.assert_allclose(np.asarray(z), np.asarray(z_ref), rtol=2e-2, atol=2e-2)
    np.testing.assert_allclose(np.asarray(out), np.asarray(out_ref), rtol=2e-2, atol=2e-2)

    print("KERNEL_OK")
</pallas_src>

<mosaic_0001>
module attributes {stable_mosaic.version = 11 : i64} {
  func.func @_fused_forward_kernel(%arg0: memref<34x128xf32, #tpu.memory_space<vmem>>, %arg1: memref<6x34x34xf32, #tpu.memory_space<vmem>>, %arg2: memref<6x18x18xf32, #tpu.memory_space<vmem>>, %arg3: memref<6x128x128xf32, #tpu.memory_space<vmem>>, %arg4: memref<1x128xf32, #tpu.memory_space<vmem>>, %arg5: memref<6x128x128xf32, #tpu.memory_space<vmem>>, %arg6: memref<1x128xf32, #tpu.memory_space<vmem>>, %arg7: memref<5x128x128xf32, #tpu.memory_space<vmem>>, %arg8: memref<1x128xf32, #tpu.memory_space<vmem>>, %arg9: memref<5x2x10xf32, #tpu.memory_space<vmem>>, %arg10: memref<5x128x128xf32, #tpu.memory_space<vmem>>, %arg11: memref<10x128xf32, #tpu.memory_space<vmem>>, %arg12: memref<5x10x2xf32, #tpu.memory_space<vmem>>, %arg13: memref<6x128x128xf32, #tpu.memory_space<vmem>>, %arg14: memref<1x128xf32, #tpu.memory_space<vmem>>, %arg15: memref<6x128x128xf32, #tpu.memory_space<vmem>>, %arg16: memref<1x128xf32, #tpu.memory_space<vmem>>, %arg17: memref<18x34xf32, #tpu.memory_space<vmem>>, %arg18: memref<10x18xf32, #tpu.memory_space<vmem>>, %arg19: memref<18x10xf32, #tpu.memory_space<vmem>>, %arg20: memref<34x18xf32, #tpu.memory_space<vmem>>, %arg21: memref<34x1xf32, #tpu.memory_space<vmem>>, %arg22: memref<34x128xf32, #tpu.memory_space<vmem>>, %arg23: memref<2x128xf32, #tpu.memory_space<vmem>>) attributes {dimension_semantics = [], scalar_prefetch = 0 : i64, scratch_operands = 0 : i64, tpu.core_type = #tpu.core_type<tc>} {
    %c0 = arith.constant 0 : index
    %c0_0 = arith.constant 0 : index
    %0 = vector.load %arg0[%c0, %c0_0] : memref<34x128xf32, #tpu.memory_space<vmem>>, vector<34x128xf32>
    %cst = arith.constant 0.000000e+00 : f32
    %1 = vector.broadcast %cst : f32 to vector<34x128xf32>
    %c0_1 = arith.constant 0 : index
    %c0_2 = arith.constant 0 : index
    %2 = vector.load %arg4[%c0_1, %c0_2] : memref<1x128xf32, #tpu.memory_space<vmem>>, vector<1x128xf32>
    %3 = vector.broadcast %2 : vector<1x128xf32> to vector<34x128xf32>
    %4 = arith.addf %1, %3 : vector<34x128xf32>
    %c0_3 = arith.constant 0 : index
    %c0_4 = arith.constant 0 : index
    %c0_5 = arith.constant 0 : index
    %5 = vector.load %arg1[%c0_3, %c0_4, %c0_5] : memref<6x34x34xf32, #tpu.memory_space<vmem>>, vector<1x34x34xf32>
    %6 = vector.shape_cast %5 : vector<1x34x34xf32> to vector<34x34xf32>
    %cst_6 = arith.constant dense<0.000000e+00> : vector<34x128xf32>
    %7 = tpu.matmul %6, %0, %cst_6 {dimension_numbers = #tpu.dot_dimension_numbers<[1], [0], [0], [1], [0, 0, 1, 1], [], []>} : vector<34x34xf32>, vector<34x128xf32>, vector<34x128xf32> -> vector<34x128xf32>
    %c0_7 = arith.constant 0 : index
    %c0_8 = arith.constant 0 : index
    %c0_9 = arith.constant 0 : index
    %8 = vector.load %arg3[%c0_7, %c0_8, %c0_9] : memref<6x128x128xf32, #tpu.memory_space<vmem>>, vector<1x128x128xf32>
    %9 = vector.shape_cast %8 : vector<1x128x128xf32> to vector<128x128xf32>
    %cst_10 = arith.constant dense<0.000000e+00> : vector<34x128xf32>
    %10 = tpu.matmul %7, %9, %cst_10 {dimension_numbers = #tpu.dot_dimension_numbers<[1], [0], [0], [1], [0, 0, 1, 1], [], []>} : vector<34x128xf32>, vector<128x128xf32>, vector<34x128xf32> -> vector<34x128xf32>
    %11 = arith.addf %4, %10 : vector<34x128xf32>
    %c1 = arith.constant 1 : index
    %c0_11 = arith.constant 0 : index
    %c0_12 = arith.constant 0 : index
    %12 = vector.load %arg1[%c1, %c0_11, %c0_12] : memref<6x34x34xf32, #tpu.memory_space<vmem>>, vector<1x34x34xf32>
    %13 = vector.shape_cast %12 : vector<1x34x34xf32> to vector<34x34xf32>
    %cst_13 = arith.constant dense<0.000000e+00> : vector<34x128xf32>
    %14 = tpu.matmul %13, %0, %cst_13 {dimension_numbers = #tpu.dot_dimension_numbers<[1], [0], [0], [1], [0, 0, 1, 1], [], []>} : vector<34x34xf32>, vector<34x128xf32>, vector<34x128xf32> -> vector<34x128xf32>
    %c1_14 = arith.constant 1 : index
    %c0_15 = arith.constant 0 : index
    %c0_16 = arith.constant 0 : index
    %15 = vector.load %arg3[%c1_14, %c0_15, %c0_16] : memref<6x128x128xf32, #tpu.memory_space<vmem>>, vector<1x128x128xf32>
    %16 = vector.shape_cast %15 : vector<1x128x128xf32> to vector<128x128xf32>
    %cst_17 = arith.constant dense<0.000000e+00> : vector<34x128xf32>
    %17 = tpu.matmul %14, %16, %cst_17 {dimension_numbers = #tpu.dot_dimension_numbers<[1], [0], [0], [1], [0, 0, 1, 1], [], []>} : vector<34x128xf32>, vector<128x128xf32>, vector<34x128xf32> -> vector<34x128xf32>
    %18 = arith.addf %11, %17 : vector<34x128xf32>
    %c2 = arith.constant 2 : index
    %c0_18 = arith.constant 0 : index
    %c0_19 = arith.constant 0 : index
    %19 = vector.load %arg1[%c2, %c0_18, %c0_19] : memref<6x34x34xf32, #tpu.memory_space<vmem>>, vector<1x34x34xf32>
    %20 = vector.shape_cast %19 : vector<1x34x34xf32> to vector<34x34xf32>
    %cst_20 = arith.constant dense<0.000000e+00> : vector<34x128xf32>
    %21 = tpu.matmul %20, %0, %cst_20 {dimension_numbers = #tpu.dot_dimension_numbers<[1], [0], [0], [1], [0, 0, 1, 1], [], []>} : vector<34x34xf32>, vector<34x128xf32>, vector<34x128xf32> -> vector<34x128xf32>
    %c2_21 = arith.constant 2 : index
    %c0_22 = arith.constant 0 : index
    %c0_23 = arith.constant 0 : index
    %22 = vector.load %arg3[%c2_21, %c0_22, %c0_23] : memref<6x128x128xf32, #tpu.memory_space<vmem>>, vector<1x128x128xf32>
    %23 = vector.shape_cast %22 : vector<1x128x128xf32> to vector<128x128xf32>
    %cst_24 = arith.constant dense<0.000000e+00> : vector<34x128xf32>
    %24 = tpu.matmul %21, %23, %cst_24 {dimension_numbers = #tpu.dot_dimension_numbers<[1], [0], [0], [1], [0, 0, 1, 1], [], []>} : vector<34x128xf32>, vector<128x128xf32>, vector<34x128xf32> -> vector<34x128xf32>
    %25 = arith.addf %18, %24 : vector<34x128xf32>
    %c3 = arith.constant 3 : index
    %c0_25 = arith.constant 0 : index
    %c0_26 = arith.constant 0 : index
    %26 = vector.load %arg1[%c3, %c0_25, %c0_26] : memref<6x34x34xf32, #tpu.memory_space<vmem>>, vector<1x34x34xf32>
    %27 = vector.shape_cast %26 : vector<1x34x34xf32> to vector<34x34xf32>
    %cst_27 = arith.constant dense<0.000000e+00> : vector<34x128xf32>
    %28 = tpu.matmul %27, %0, %cst_27 {dimension_numbers = #tpu.dot_dimension_numbers<[1], [0], [0], [1], [0, 0, 1, 1], [], []>} : vector<34x34xf32>, vector<34x128xf32>, vector<34x128xf32> -> vector<34x128xf32>
    %c3_28 = arith.constant 3 : index
    %c0_29 = arith.constant 0 : index
    %c0_30 = arith.constant 0 : index
    %29 = vector.load %arg3[%c3_28, %c0_29, %c0_30] : memref<6x128x128xf32, #tpu.memory_space<vmem>>, vector<1x128x128xf32>
    %30 = vector.shape_cast %29 : vector<1x128x128xf32> to vector<128x128xf32>
    %cst_31 = arith.constant dense<0.000000e+00> : vector<34x128xf32>
    %31 = tpu.matmul %28, %30, %cst_31 {dimension_numbers = #tpu.dot_dimension_numbers<[1], [0], [0], [1], [0, 0, 1, 1], [], []>} : vector<34x128xf32>, vector<128x128xf32>, vector<34x128xf32> -> vector<34x128xf32>
    %32 = arith.addf %25, %31 : vector<34x128xf32>
    %c4 = arith.constant 4 : index
    %c0_32 = arith.constant 0 : index
    %c0_33 = arith.constant 0 : index
    %33 = vector.load %arg1[%c4, %c0_32, %c0_33] : memref<6x34x34xf32, #tpu.memory_space<vmem>>, vector<1x34x34xf32>
    %34 = vector.shape_cast %33 : vector<1x34x34xf32> to vector<34x34xf32>
    %cst_34 = arith.constant dense<0.000000e+00> : vector<34x128xf32>
    %35 = tpu.matmul %34, %0, %cst_34 {dimension_numbers = #tpu.dot_dimension_numbers<[1], [0], [0], [1], [0, 0, 1, 1], [], []>} : vector<34x34xf32>, vector<34x128xf32>, vector<34x128xf32> -> vector<34x128xf32>
    %c4_35 = arith.constant 4 : index
    %c0_36 = arith.constant 0 : index
    %c0_37 = arith.constant 0 : index
    %36 = vector.load %arg3[%c4_35, %c0_36, %c0_37] : memref<6x128x128xf32, #tpu.memory_space<vmem>>, vector<1x128x128xf32>
    %37 = vector.shape_cast %36 : vector<1x128x128xf32> to vector<128x128xf32>
    %cst_38 = arith.constant dense<0.000000e+00> : vector<34x128xf32>
    %38 = tpu.matmul %35, %37, %cst_38 {dimension_numbers = #tpu.dot_dimension_numbers<[1], [0], [0], [1], [0, 0, 1, 1], [], []>} : vector<34x128xf32>, vector<128x128xf32>, vector<34x128xf32> -> vector<34x128xf32>
    %39 = arith.addf %32, %38 : vector<34x128xf32>
    %c5 = arith.constant 5 : index
    %c0_39 = arith.constant 0 : index
    %c0_40 = arith.constant 0 : index
    %40 = vector.load %arg1[%c5, %c0_39, %c0_40] : memref<6x34x34xf32, #tpu.memory_space<vmem>>, vector<1x34x34xf32>
    %41 = vector.shape_cast %40 : vector<1x34x34xf32> to vector<34x34xf32>
    %cst_41 = arith.constant dense<0.000000e+00> : vector<34x128xf32>
    %42 = tpu.matmul %41, %0, %cst_41 {dimension_numbers = #tpu.dot_dimension_numbers<[1], [0], [0], [1], [0, 0, 1, 1], [], []>} : vector<34x34xf32>, vector<34x128xf32>, vector<34x128xf32> -> vector<34x128xf32>
    %c5_42 = arith.constant 5 : index
    %c0_43 = arith.constant 0 : index
    %c0_44 = arith.constant 0 : index
    %43 = vector.load %arg3[%c5_42, %c0_43, %c0_44] : memref<6x128x128xf32, #tpu.memory_space<vmem>>, vector<1x128x128xf32>
    %44 = vector.shape_cast %43 : vector<1x128x128xf32> to vector<128x128xf32>
    %cst_45 = arith.constant dense<0.000000e+00> : vector<34x128xf32>
    %45 = tpu.matmul %42, %44, %cst_45 {dimension_numbers = #tpu.dot_dimension_numbers<[1], [0], [0], [1], [0, 0, 1, 1], [], []>} : vector<34x128xf32>, vector<128x128xf32>, vector<34x128xf32> -> vector<34x128xf32>
    %46 = arith.addf %39, %45 : vector<34x128xf32>
    %cst_46 = arith.constant 0.000000e+00 : f32
    %47 = vector.broadcast %cst_46 : f32 to vector<34x128xf32>
    %48 = arith.cmpf ogt, %46, %47 : vector<34x128xf32>
    %cst_47 = arith.constant 0.000000e+00 : f32
    %49 = vector.broadcast %cst_47 : f32 to vector<34x128xf32>
    %50 = arith.minimumf %46, %49 : vector<34x128xf32>
    %51 = math.exp %50 : vector<34x128xf32>
    %cst_48 = arith.constant 1.000000e+00 : f32
    %52 = vector.broadcast %cst_48 : f32 to vector<34x128xf32>
    %53 = arith.subf %51, %52 : vector<34x128xf32>
    %54 = arith.select %48, %46, %53 : vector<34x128xi1>, vector<34x128xf32>
    %c0_49 = arith.constant 0 : index
    %c0_50 = arith.constant 0 : index
    %55 = vector.load %arg17[%c0_49, %c0_50] : memref<18x34xf32, #tpu.memory_space<vmem>>, vector<18x34xf32>
    %cst_51 = arith.constant dense<0.000000e+00> : vector<18x128xf32>
    %56 = tpu.matmul %55, %54, %cst_51 {dimension_numbers = #tpu.dot_dimension_numbers<[1], [0], [0], [1], [0, 0, 1, 1], [], []>} : vector<18x34xf32>, vector<34x128xf32>, vector<18x128xf32> -> vector<18x128xf32>
    %cst_52 = arith.constant 0.000000e+00 : f32
    %57 = vector.broadcast %cst_52 : f32 to vector<18x128xf32>
    %c0_53 = arith.constant 0 : index
    %c0_54 = arith.constant 0 : index
    %58 = vector.load %arg6[%c0_53, %c0_54] : memref<1x128xf32, #tpu.memory_space<vmem>>, vector<1x128xf32>
    %59 = vector.broadcast %58 : vector<1x128xf32> to vector<18x128xf32>
    %60 = arith.addf %57, %59 : vector<18x128xf32>
    %c0_55 = arith.constant 0 : index
    %c0_56 = arith.constant 0 : index
    %c0_57 = arith.constant 0 : index
    %61 = vector.load %arg2[%c0_55, %c0_56, %c0_57] : memref<6x18x18xf32, #tpu.memory_space<vmem>>, vector<1x18x18xf32>
    %62 = vector.shape_cast %61 : vector<1x18x18xf32> to vector<18x18xf32>
    %cst_58 = arith.constant dense<0.000000e+00> : vector<18x128xf32>
    %63 = tpu.matmul %62, %56, %cst_58 {dimension_numbers = #tpu.dot_dimension_numbers<[1], [0], [0], [1], [0, 0, 1, 1], [], []>} : vector<18x18xf32>, vector<18x128xf32>, vector<18x128xf32> -> vector<18x128xf32>
    %c0_59 = arith.constant 0 : index
    %c0_60 = arith.constant 0 : index
    %c0_61 = arith.constant 0 : index
    %64 = vector.load %arg5[%c0_59, %c0_60, %c0_61] : memref<6x128x128xf32, #tpu.memory_space<vmem>>, vector<1x128x128xf32>
    %65 = vector.shape_cast %64 : vector<1x128x128xf32> to vector<128x128xf32>
    %cst_62 = arith.constant dense<0.000000e+00> : vector<18x128xf32>
    %66 = tpu.matmul %63, %65, %cst_62 {dimension_numbers = #tpu.dot_dimension_numbers<[1], [0], [0], [1], [0, 0, 1, 1], [], []>} : vector<18x128xf32>, vector<128x128xf32>, vector<18x128xf32> -> vector<18x128xf32>
    %67 = arith.addf %60, %66 : vector<18x128xf32>
    %c1_63 = arith.constant 1 : index
    %c0_64 = arith.constant 0 : index
    %c0_65 = arith.constant 0 : index
    %68 = vector.load %arg2[%c1_63, %c0_64, %c0_65] : memref<6x18x18xf32, #tpu.memory_space<vmem>>, vector<1x18x18xf32>
    %69 = vector.shape_cast %68 : vector<1x18x18xf32> to vector<18x18xf32>
    %cst_66 = arith.constant dense<0.000000e+00> : vector<18x128xf32>
    %70 = tpu.matmul %69, %56, %cst_66 {dimension_numbers = #tpu.dot_dimension_numbers<[1], [0], [0], [1], [0, 0, 1, 1], [], []>} : vector<18x18xf32>, vector<18x128xf32>, vector<18x128xf32> -> vector<18x128xf32>
    %c1_67 = arith.constant 1 : index
    %c0_68 = arith.constant 0 : index
    %c0_69 = arith.constant 0 : index
    %71 = vector.load %arg5[%c1_67, %c0_68, %c0_69] : memref<6x128x128xf32, #tpu.memory_space<vmem>>, vector<1x128x128xf32>
    %72 = vector.shape_cast %71 : vector<1x128x128xf32> to vector<128x128xf32>
    %cst_70 = arith.constant dense<0.000000e+00> : vector<18x128xf32>
    %73 = tpu.matmul %70, %72, %cst_70 {dimension_numbers = #tpu.dot_dimension_numbers<[1], [0], [0], [1], [0, 0, 1, 1], [], []>} : vector<18x128xf32>, vector<128x128xf32>, vector<18x128xf32> -> vector<18x128xf32>
    %74 = arith.addf %67, %73 : vector<18x128xf32>
    %c2_71 = arith.constant 2 : index
    %c0_72 = arith.constant 0 : index
    %c0_73 = arith.constant 0 : index
    %75 = vector.load %arg2[%c2_71, %c0_72, %c0_73] : memref<6x18x18xf32, #tpu.memory_space<vmem>>, vector<1x18x18xf32>
    %76 = vector.shape_cast %75 : vector<1x18x18xf32> to vector<18x18xf32>
    %cst_74 = arith.constant dense<0.000000e+00> : vector<18x128xf32>
    %77 = tpu.matmul %76, %56, %cst_74 {dimension_numbers = #tpu.dot_dimension_numbers<[1], [0], [0], [1], [0, 0, 1, 1], [], []>} : vector<18x18xf32>, vector<18x128xf32>, vector<18x128xf32> -> vector<18x128xf32>
    %c2_75 = arith.constant 2 : index
    %c0_76 = arith.constant 0 : index
    %c0_77 = arith.constant 0 : index
    %78 = vector.load %arg5[%c2_75, %c0_76, %c0_77] : memref<6x128x128xf32, #tpu.memory_space<vmem>>, vector<1x128x128xf32>
    %79 = vector.shape_cast %78 : vector<1x128x128xf32> to vector<128x128xf32>
    %cst_78 = arith.constant dense<0.000000e+00> : vector<18x128xf32>
    %80 = tpu.matmul %77, %79, %cst_78 {dimension_numbers = #tpu.dot_dimension_numbers<[1], [0], [0], [1], [0, 0, 1, 1], [], []>} : vector<18x128xf32>, vector<128x128xf32>, vector<18x128xf32> -> vector<18x128xf32>
    %81 = arith.addf %74, %80 : vector<18x128xf32>
    %c3_79 = arith.constant 3 : index
    %c0_80 = arith.constant 0 : index
    %c0_81 = arith.constant 0 : index
    %82 = vector.load %arg2[%c3_79, %c0_80, %c0_81] : memref<6x18x18xf32, #tpu.memory_space<vmem>>, vector<1x18x18xf32>
    %83 = vector.shape_cast %82 : vector<1x18x18xf32> to vector<18x18xf32>
    %cst_82 = arith.constant dense<0.000000e+00> : vector<18x128xf32>
    %84 = tpu.matmul %83, %56, %cst_82 {dimension_numbers = #tpu.dot_dimension_numbers<[1], [0], [0], [1], [0, 0, 1, 1], [], []>} : vector<18x18xf32>, vector<18x128xf32>, vector<18x128xf32> -> vector<18x128xf32>
    %c3_83 = arith.constant 3 : index
    %c0_84 = arith.constant 0 : index
    %c0_85 = arith.constant 0 : index
    %85 = vector.load %arg5[%c3_83, %c0_84, %c0_85] : memref<6x128x128xf32, #tpu.memory_space<vmem>>, vector<1x128x128xf32>
    %86 = vector.shape_cast %85 : vector<1x128x128xf32> to vector<128x128xf32>
    %cst_86 = arith.constant dense<0.000000e+00> : vector<18x128xf32>
    %87 = tpu.matmul %84, %86, %cst_86 {dimension_numbers = #tpu.dot_dimension_numbers<[1], [0], [0], [1], [0, 0, 1, 1], [], []>} : vector<18x128xf32>, vector<128x128xf32>, vector<18x128xf32> -> vector<18x128xf32>
    %88 = arith.addf %81, %87 : vector<18x128xf32>
    %c4_87 = arith.constant 4 : index
    %c0_88 = arith.constant 0 : index
    %c0_89 = arith.constant 0 : index
    %89 = vector.load %arg2[%c4_87, %c0_88, %c0_89] : memref<6x18x18xf32, #tpu.memory_space<vmem>>, vector<1x18x18xf32>
    %90 = vector.shape_cast %89 : vector<1x18x18xf32> to vector<18x18xf32>
    %cst_90 = arith.constant dense<0.000000e+00> : vector<18x128xf32>
    %91 = tpu.matmul %90, %56, %cst_90 {dimension_numbers = #tpu.dot_dimension_numbers<[1], [0], [0], [1], [0, 0, 1, 1], [], []>} : vector<18x18xf32>, vector<18x128xf32>, vector<18x128xf32> -> vector<18x128xf32>
    %c4_91 = arith.constant 4 : index
    %c0_92 = arith.constant 0 : index
    %c0_93 = arith.constant 0 : index
    %92 = vector.load %arg5[%c4_91, %c0_92, %c0_93] : memref<6x128x128xf32, #tpu.memory_space<vmem>>, vector<1x128x128xf32>
    %93 = vector.shape_cast %92 : vector<1x128x128xf32> to vector<128x128xf32>
    %cst_94 = arith.constant dense<0.000000e+00> : vector<18x128xf32>
    %94 = tpu.matmul %91, %93, %cst_94 {dimension_numbers = #tpu.dot_dimension_numbers<[1], [0], [0], [1], [0, 0, 1, 1], [], []>} : vector<18x128xf32>, vector<128x128xf32>, vector<18x128xf32> -> vector<18x128xf32>
    %95 = arith.addf %88, %94 : vector<18x128xf32>
    %c5_95 = arith.constant 5 : index
    %c0_96 = arith.constant 0 : index
    %c0_97 = arith.constant 0 : index
    %96 = vector.load %arg2[%c5_95, %c0_96, %c0_97] : memref<6x18x18xf32, #tpu.memory_space<vmem>>, vector<1x18x18xf32>
    %97 = vector.shape_cast %96 : vector<1x18x18xf32> to vector<18x18xf32>
    %cst_98 = arith.constant dense<0.000000e+00> : vector<18x128xf32>
    %98 = tpu.matmul %97, %56, %cst_98 {dimension_numbers = #tpu.dot_dimension_numbers<[1], [0], [0], [1], [0, 0, 1, 1], [], []>} : vector<18x18xf32>, vector<18x128xf32>, vector<18x128xf32> -> vector<18x128xf32>
    %c5_99 = arith.constant 5 : index
    %c0_100 = arith.constant 0 : index
    %c0_101 = arith.constant 0 : index
    %99 = vector.load %arg5[%c5_99, %c0_100, %c0_101] : memref<6x128x128xf32, #tpu.memory_space<vmem>>, vector<1x128x128xf32>
    %100 = vector.shape_cast %99 : vector<1x128x128xf32> to vector<128x128xf32>
    %cst_102 = arith.constant dense<0.000000e+00> : vector<18x128xf32>
    %101 = tpu.matmul %98, %100, %cst_102 {dimension_numbers = #tpu.dot_dimension_numbers<[1], [0], [0], [1], [0, 0, 1, 1], [], []>} : vector<18x128xf32>, vector<128x128xf32>, vector<18x128xf32> -> vector<18x128xf32>
    %102 = arith.addf %95, %101 : vector<18x128xf32>
    %cst_103 = arith.constant 0.000000e+00 : f32
    %103 = vector.broadcast %cst_103 : f32 to vector<18x128xf32>
    %104 = arith.cmpf ogt, %102, %103 : vector<18x128xf32>
    %cst_104 = arith.constant 0.000000e+00 : f32
    %105 = vector.broadcast %cst_104 : f32 to vector<18x128xf32>
    %106 = arith.minimumf %102, %105 : vector<18x128xf32>
    %107 = math.exp %106 : vector<18x128xf32>
    %cst_105 = arith.constant 1.000000e+00 : f32
    %108 = vector.broadcast %cst_105 : f32 to vector<18x128xf32>
    %109 = arith.subf %107, %108 : vector<18x128xf32>
    %110 = arith.select %104, %102, %109 : vector<18x128xi1>, vector<18x128xf32>
    %c0_106 = arith.constant 0 : index
    %c0_107 = arith.constant 0 : index
    %111 = vector.load %arg18[%c0_106, %c0_107] : memref<10x18xf32, #tpu.memory_space<vmem>>, vector<10x18xf32>
    %cst_108 = arith.constant dense<0.000000e+00> : vector<10x128xf32>
    %112 = tpu.matmul %111, %110, %cst_108 {dimension_numbers = #tpu.dot_dimension_numbers<[1], [0], [0], [1], [0, 0, 1, 1], [], []>} : vector<10x18xf32>, vector<18x128xf32>, vector<10x128xf32> -> vector<10x128xf32>
    %cst_109 = arith.constant 0.000000e+00 : f32
    %113 = vector.broadcast %cst_109 : f32 to vector<2x128xf32>
    %c0_110 = arith.constant 0 : index
    %c0_111 = arith.constant 0 : index
    %114 = vector.load %arg8[%c0_110, %c0_111] : memref<1x128xf32, #tpu.memory_space<vmem>>, vector<1x128xf32>
    %115 = vector.broadcast %114 : vector<1x128xf32> to vector<2x128xf32>
    %116 = arith.addf %113, %115 : vector<2x128xf32>
    %c0_112 = arith.constant 0 : index
    %c0_113 = arith.constant 0 : index
    %c0_114 = arith.constant 0 : index
    %117 = vector.load %arg9[%c0_112, %c0_113, %c0_114] : memref<5x2x10xf32, #tpu.memory_space<vmem>>, vector<1x2x10xf32>
    %118 = vector.shape_cast %117 : vector<1x2x10xf32> to vector<2x10xf32>
    %cst_115 = arith.constant dense<0.000000e+00> : vector<2x128xf32>
    %119 = tpu.matmul %118, %112, %cst_115 {dimension_numbers = #tpu.dot_dimension_numbers<[1], [0], [0], [1], [0, 0, 1, 1], [], []>} : vector<2x10xf32>, vector<10x128xf32>, vector<2x128xf32> -> vector<2x128xf32>
    %c0_116 = arith.constant 0 : index
    %c0_117 = arith.constant 0 : index
    %c0_118 = arith.constant 0 : index
    %120 = vector.load %arg7[%c0_116, %c0_117, %c0_118] : memref<5x128x128xf32, #tpu.memory_space<vmem>>, vector<1x128x128xf32>
    %121 = vector.shape_cast %120 : vector<1x128x128xf32> to vector<128x128xf32>
    %cst_119 = arith.constant dense<0.000000e+00> : vector<2x128xf32>
    %122 = tpu.matmul %119, %121, %cst_119 {dimension_numbers = #tpu.dot_dimension_numbers<[1], [0], [0], [1], [0, 0, 1, 1], [], []>} : vector<2x128xf32>, vector<128x128xf32>, vector<2x128xf32> -> vector<2x128xf32>
    %123 = arith.addf %116, %122 : vector<2x128xf32>
    %c1_120 = arith.constant 1 : index
    %c0_121 = arith.constant 0 : index
    %c0_122 = arith.constant 0 : index
    %124 = vector.load %arg9[%c1_120, %c0_121, %c0_122] : memref<5x2x10xf32, #tpu.memory_space<vmem>>, vector<1x2x10xf32>
    %125 = vector.shape_cast %124 : vector<1x2x10xf32> to vector<2x10xf32>
    %cst_123 = arith.constant dense<0.000000e+00> : vector<2x128xf32>
    %126 = tpu.matmul %125, %112, %cst_123 {dimension_numbers = #tpu.dot_dimension_numbers<[1], [0], [0], [1], [0, 0, 1, 1], [], []>} : vector<2x10xf32>, vector<10x128xf32>, vector<2x128xf32> -> vector<2x128xf32>
    %c1_124 = arith.constant 1 : index
    %c0_125 = arith.constant 0 : index
    %c0_126 = arith.constant 0 : index
    %127 = vector.load %arg7[%c1_124, %c0_125, %c0_126] : memref<5x128x128xf32, #tpu.memory_space<vmem>>, vector<1x128x128xf32>
    %128 = vector.shape_cast %127 : vector<1x128x128xf32> to vector<128x128xf32>
    %cst_127 = arith.constant dense<0.000000e+00> : vector<2x128xf32>
    %129 = tpu.matmul %126, %128, %cst_127 {dimension_numbers = #tpu.dot_dimension_numbers<[1], [0], [0], [1], [0, 0, 1, 1], [], []>} : vector<2x128xf32>, vector<128x128xf32>, vector<2x128xf32> -> vector<2x128xf32>
    %130 = arith.addf %123, %129 : vector<2x128xf32>
    %c2_128 = arith.constant 2 : index
    %c0_129 = arith.constant 0 : index
    %c0_130 = arith.constant 0 : index
    %131 = vector.load %arg9[%c2_128, %c0_129, %c0_130] : memref<5x2x10xf32, #tpu.memory_space<vmem>>, vector<1x2x10xf32>
    %132 = vector.shape_cast %131 : vector<1x2x10xf32> to vector<2x10xf32>
    %cst_131 = arith.constant dense<0.000000e+00> : vector<2x128xf32>
    %133 = tpu.matmul %132, %112, %cst_131 {dimension_numbers = #tpu.dot_dimension_numbers<[1], [0], [0], [1], [0, 0, 1, 1], [], []>} : vector<2x10xf32>, vector<10x128xf32>, vector<2x128xf32> -> vector<2x128xf32>
    %c2_132 = arith.constant 2 : index
    %c0_133 = arith.constant 0 : index
    %c0_134 = arith.constant 0 : index
    %134 = vector.load %arg7[%c2_132, %c0_133, %c0_134] : memref<5x128x128xf32, #tpu.memory_space<vmem>>, vector<1x128x128xf32>
    %135 = vector.shape_cast %134 : vector<1x128x128xf32> to vector<128x128xf32>
    %cst_135 = arith.constant dense<0.000000e+00> : vector<2x128xf32>
    %136 = tpu.matmul %133, %135, %cst_135 {dimension_numbers = #tpu.dot_dimension_numbers<[1], [0], [0], [1], [0, 0, 1, 1], [], []>} : vector<2x128xf32>, vector<128x128xf32>, vector<2x128xf32> -> vector<2x128xf32>
    %137 = arith.addf %130, %136 : vector<2x128xf32>
    %c3_136 = arith.constant 3 : index
    %c0_137 = arith.constant 0 : index
    %c0_138 = arith.constant 0 : index
    %138 = vector.load %arg9[%c3_136, %c0_137, %c0_138] : memref<5x2x10xf32, #tpu.memory_space<vmem>>, vector<1x2x10xf32>
    %139 = vector.shape_cast %138 : vector<1x2x10xf32> to vector<2x10xf32>
    %cst_139 = arith.constant dense<0.000000e+00> : vector<2x128xf32>
    %140 = tpu.matmul %139, %112, %cst_139 {dimension_numbers = #tpu.dot_dimension_numbers<[1], [0], [0], [1], [0, 0, 1, 1], [], []>} : vector<2x10xf32>, vector<10x128xf32>, vector<2x128xf32> -> vector<2x128xf32>
    %c3_140 = arith.constant 3 : index
    %c0_141 = arith.constant 0 : index
    %c0_142 = arith.constant 0 : index
    %141 = vector.load %arg7[%c3_140, %c0_141, %c0_142] : memref<5x128x128xf32, #tpu.memory_space<vmem>>, vector<1x128x128xf32>
    %142 = vector.shape_cast %141 : vector<1x128x128xf32> to vector<128x128xf32>
    %cst_143 = arith.constant dense<0.000000e+00> : vector<2x128xf32>
    %143 = tpu.matmul %140, %142, %cst_143 {dimension_numbers = #tpu.dot_dimension_numbers<[1], [0], [0], [1], [0, 0, 1, 1], [], []>} : vector<2x128xf32>, vector<128x128xf32>, vector<2x128xf32> -> vector<2x128xf32>
    %144 = arith.addf %137, %143 : vector<2x128xf32>
    %c4_144 = arith.constant 4 : index
    %c0_145 = arith.constant 0 : index
    %c0_146 = arith.constant 0 : index
    %145 = vector.load %arg9[%c4_144, %c0_145, %c0_146] : memref<5x2x10xf32, #tpu.memory_space<vmem>>, vector<1x2x10xf32>
    %146 = vector.shape_cast %145 : vector<1x2x10xf32> to vector<2x10xf32>
    %cst_147 = arith.constant dense<0.000000e+00> : vector<2x128xf32>
    %147 = tpu.matmul %146, %112, %cst_147 {dimension_numbers = #tpu.dot_dimension_numbers<[1], [0], [0], [1], [0, 0, 1, 1], [], []>} : vector<2x10xf32>, vector<10x128xf32>, vector<2x128xf32> -> vector<2x128xf32>
    %c4_148 = arith.constant 4 : index
    %c0_149 = arith.constant 0 : index
    %c0_150 = arith.constant 0 : index
    %148 = vector.load %arg7[%c4_148, %c0_149, %c0_150] : memref<5x128x128xf32, #tpu.memory_space<vmem>>, vector<1x128x128xf32>
    %149 = vector.shape_cast %148 : vector<1x128x128xf32> to vector<128x128xf32>
    %cst_151 = arith.constant dense<0.000000e+00> : vector<2x128xf32>
    %150 = tpu.matmul %147, %149, %cst_151 {dimension_numbers = #tpu.dot_dimension_numbers<[1], [0], [0], [1], [0, 0, 1, 1], [], []>} : vector<2x128xf32>, vector<128x128xf32>, vector<2x128xf32> -> vector<2x128xf32>
    %151 = arith.addf %144, %150 : vector<2x128xf32>
    %c0_152 = arith.constant 0 : index
    %c0_153 = arith.constant 0 : index
    %152 = vector.load %arg23[%c0_152, %c0_153] : memref<2x128xf32, #tpu.memory_space<vmem>>, vector<2x128xf32>
    tpu.vector_store %arg23[%c0_152, %c0_153], %151 {strides = array<i32>} : memref<2x128xf32, #tpu.memory_space<vmem>>, vector<2x128xf32>,
    %c0_154 = arith.constant 0 : index
    %c0_155 = arith.constant 0 : index
    %153 = vector.load %arg11[%c0_154, %c0_155] : memref<10x128xf32, #tpu.memory_space<vmem>>, vector<10x128xf32>
    %cst_156 = arith.constant 0.000000e+00 : f32
    %154 = vector.broadcast %cst_156 : f32 to vector<10x128xf32>
    %155 = arith.addf %153, %154 : vector<10x128xf32>
    %c0_157 = arith.constant 0 : index
    %c0_158 = arith.constant 0 : index
    %c0_159 = arith.constant 0 : index
    %156 = vector.load %arg10[%c0_157, %c0_158, %c0_159] : memref<5x128x128xf32, #tpu.memory_space<vmem>>, vector<1x128x128xf32>
    %157 = vector.shape_cast %156 : vector<1x128x128xf32> to vector<128x128xf32>
    %cst_160 = arith.constant dense<0.000000e+00> : vector<2x128xf32>
    %158 = tpu.matmul %151, %157, %cst_160 {dimension_numbers = #tpu.dot_dimension_numbers<[1], [0], [0], [1], [0, 0, 1, 1], [], []>} : vector<2x128xf32>, vector<128x128xf32>, vector<2x128xf32> -> vector<2x128xf32>
    %c0_161 = arith.constant 0 : index
    %c0_162 = arith.constant 0 : index
    %c0_163 = arith.constant 0 : index
    %159 = vector.load %arg12[%c0_161, %c0_162, %c0_163] : memref<5x10x2xf32, #tpu.memory_space<vmem>>, vector<1x10x2xf32>
    %160 = vector.shape_cast %159 : vector<1x10x2xf32> to vector<10x2xf32>
    %cst_164 = arith.constant dense<0.000000e+00> : vector<10x128xf32>
    %161 = tpu.matmul %160, %158, %cst_164 {dimension_numbers = #tpu.dot_dimension_numbers<[1], [0], [0], [1], [0, 0, 1, 1], [], []>} : vector<10x2xf32>, vector<2x128xf32>, vector<10x128xf32> -> vector<10x128xf32>
    %162 = arith.addf %155, %161 : vector<10x128xf32>
    %c1_165 = arith.constant 1 : index
    %c0_166 = arith.constant 0 : index
    %c0_167 = arith.constant 0 : index
    %163 = vector.load %arg10[%c1_165, %c0_166, %c0_167] : memref<5x128x128xf32, #tpu.memory_space<vmem>>, vector<1x128x128xf32>
    %164 = vector.shape_cast %163 : vector<1x128x128xf32> to vector<128x128xf32>
    %cst_168 = arith.constant dense<0.000000e+00> : vector<2x128xf32>
    %165 = tpu.matmul %151, %164, %cst_168 {dimension_numbers = #tpu.dot_dimension_numbers<[1], [0], [0], [1], [0, 0, 1, 1], [], []>} : vector<2x128xf32>, vector<128x128xf32>, vector<2x128xf32> -> vector<2x128xf32>
    %c1_169 = arith.constant 1 : index
    %c0_170 = arith.constant 0 : index
    %c0_171 = arith.constant 0 : index
    %166 = vector.load %arg12[%c1_169, %c0_170, %c0_171] : memref<5x10x2xf32, #tpu.memory_space<vmem>>, vector<1x10x2xf32>
    %167 = vector.shape_cast %166 : vector<1x10x2xf32> to vector<10x2xf32>
    %cst_172 = arith.constant dense<0.000000e+00> : vector<10x128xf32>
    %168 = tpu.matmul %167, %165, %cst_172 {dimension_numbers = #tpu.dot_dimension_numbers<[1], [0], [0], [1], [0, 0, 1, 1], [], []>} : vector<10x2xf32>, vector<2x128xf32>, vector<10x128xf32> -> vector<10x128xf32>
    %169 = arith.addf %162, %168 : vector<10x128xf32>
    %c2_173 = arith.constant 2 : index
    %c0_174 = arith.constant 0 : index
    %c0_175 = arith.constant 0 : index
    %170 = vector.load %arg10[%c2_173, %c0_174, %c0_175] : memref<5x128x128xf32, #tpu.memory_space<vmem>>, vector<1x128x128xf32>
    %171 = vector.shape_cast %170 : vector<1x128x128xf32> to vector<128x128xf32>
    %cst_176 = arith.constant dense<0.000000e+00> : vector<2x128xf32>
    %172 = tpu.matmul %151, %171, %cst_176 {dimension_numbers = #tpu.dot_dimension_numbers<[1], [0], [0], [1], [0, 0, 1, 1], [], []>} : vector<2x128xf32>, vector<128x128xf32>, vector<2x128xf32> -> vector<2x128xf32>
    %c2_177 = arith.constant 2 : index
    %c0_178 = arith.constant 0 : index
    %c0_179 = arith.constant 0 : index
    %173 = vector.load %arg12[%c2_177, %c0_178, %c0_179] : memref<5x10x2xf32, #tpu.memory_space<vmem>>, vector<1x10x2xf32>
    %174 = vector.shape_cast %173 : vector<1x10x2xf32> to vector<10x2xf32>
    %cst_180 = arith.constant dense<0.000000e+00> : vector<10x128xf32>
    %175 = tpu.matmul %174, %172, %cst_180 {dimension_numbers = #tpu.dot_dimension_numbers<[1], [0], [0], [1], [0, 0, 1, 1], [], []>} : vector<10x2xf32>, vector<2x128xf32>, vector<10x128xf32> -> vector<10x128xf32>
    %176 = arith.addf %169, %175 : vector<10x128xf32>
    %c3_181 = arith.constant 3 : index
    %c0_182 = arith.constant 0 : index
    %c0_183 = arith.constant 0 : index
    %177 = vector.load %arg10[%c3_181, %c0_182, %c0_183] : memref<5x128x128xf32, #tpu.memory_space<vmem>>, vector<1x128x128xf32>
    %178 = vector.shape_cast %177 : vector<1x128x128xf32> to vector<128x128xf32>
    %cst_184 = arith.constant dense<0.000000e+00> : vector<2x128xf32>
    %179 = tpu.matmul %151, %178, %cst_184 {dimension_numbers = #tpu.dot_dimension_numbers<[1], [0], [0], [1], [0, 0, 1, 1], [], []>} : vector<2x128xf32>, vector<128x128xf32>, vector<2x128xf32> -> vector<2x128xf32>
    %c3_185 = arith.constant 3 : index
    %c0_186 = arith.constant 0 : index
    %c0_187 = arith.constant 0 : index
    %180 = vector.load %arg12[%c3_185, %c0_186, %c0_187] : memref<5x10x2xf32, #tpu.memory_space<vmem>>, vector<1x10x2xf32>
    %181 = vector.shape_cast %180 : vector<1x10x2xf32> to vector<10x2xf32>
    %cst_188 = arith.constant dense<0.000000e+00> : vector<10x128xf32>
    %182 = tpu.matmul %181, %179, %cst_188 {dimension_numbers = #tpu.dot_dimension_numbers<[1], [0], [0], [1], [0, 0, 1, 1], [], []>} : vector<10x2xf32>, vector<2x128xf32>, vector<10x128xf32> -> vector<10x128xf32>
    %183 = arith.addf %176, %182 : vector<10x128xf32>
    %c4_189 = arith.constant 4 : index
    %c0_190 = arith.constant 0 : index
    %c0_191 = arith.constant 0 : index
    %184 = vector.load %arg10[%c4_189, %c0_190, %c0_191] : memref<5x128x128xf32, #tpu.memory_space<vmem>>, vector<1x128x128xf32>
    %185 = vector.shape_cast %184 : vector<1x128x128xf32> to vector<128x128xf32>
    %cst_192 = arith.constant dense<0.000000e+00> : vector<2x128xf32>
    %186 = tpu.matmul %151, %185, %cst_192 {dimension_numbers = #tpu.dot_dimension_numbers<[1], [0], [0], [1], [0, 0, 1, 1], [], []>} : vector<2x128xf32>, vector<128x128xf32>, vector<2x128xf32> -> vector<2x128xf32>
    %c4_193 = arith.constant 4 : index
    %c0_194 = arith.constant 0 : index
    %c0_195 = arith.constant 0 : index
    %187 = vector.load %arg12[%c4_193, %c0_194, %c0_195] : memref<5x10x2xf32, #tpu.memory_space<vmem>>, vector<1x10x2xf32>
    %188 = vector.shape_cast %187 : vector<1x10x2xf32> to vector<10x2xf32>
    %cst_196 = arith.constant dense<0.000000e+00> : vector<10x128xf32>
    %189 = tpu.matmul %188, %186, %cst_196 {dimension_numbers = #tpu.dot_dimension_numbers<[1], [0], [0], [1], [0, 0, 1, 1], [], []>} : vector<10x2xf32>, vector<2x128xf32>, vector<10x128xf32> -> vector<10x128xf32>
    %190 = arith.addf %183, %189 : vector<10x128xf32>
    %c0_197 = arith.constant 0 : index
    %c0_198 = arith.constant 0 : index
    %191 = vector.load %arg19[%c0_197, %c0_198] : memref<18x10xf32, #tpu.memory_space<vmem>>, vector<18x10xf32>
    %cst_199 = arith.constant dense<0.000000e+00> : vector<18x128xf32>
    %192 = tpu.matmul %191, %190, %cst_199 {dimension_numbers = #tpu.dot_dimension_numbers<[1], [0], [0], [1], [0, 0, 1, 1], [], []>} : vector<18x10xf32>, vector<10x128xf32>, vector<18x128xf32> -> vector<18x128xf32>
    %cst_200 = arith.constant 0.000000e+00 : f32
    %193 = vector.broadcast %cst_200 : f32 to vector<18x128xf32>
    %c0_201 = arith.constant 0 : index
    %c0_202 = arith.constant 0 : index
    %194 = vector.load %arg14[%c0_201, %c0_202] : memref<1x128xf32, #tpu.memory_space<vmem>>, vector<1x128xf32>
    %195 = vector.broadcast %194 : vector<1x128xf32> to vector<18x128xf32>
    %196 = arith.addf %193, %195 : vector<18x128xf32>
    %c0_203 = arith.constant 0 : index
    %c0_204 = arith.constant 0 : index
    %c0_205 = arith.constant 0 : index
    %197 = vector.load %arg2[%c0_203, %c0_204, %c0_205] : memref<6x18x18xf32, #tpu.memory_space<vmem>>, vector<1x18x18xf32>
    %198 = vector.shape_cast %197 : vector<1x18x18xf32> to vector<18x18xf32>
    %cst_206 = arith.constant dense<0.000000e+00> : vector<18x128xf32>
    %199 = tpu.matmul %198, %192, %cst_206 {dimension_numbers = #tpu.dot_dimension_numbers<[1], [0], [0], [1], [0, 0, 1, 1], [], []>} : vector<18x18xf32>, vector<18x128xf32>, vector<18x128xf32> -> vector<18x128xf32>
    %c0_207 = arith.constant 0 : index
    %c0_208 = arith.constant 0 : index
    %c0_209 = arith.constant 0 : index
    %200 = vector.load %arg13[%c0_207, %c0_208, %c0_209] : memref<6x128x128xf32, #tpu.memory_space<vmem>>, vector<1x128x128xf32>
    %201 = vector.shape_cast %200 : vector<1x128x128xf32> to vector<128x128xf32>
    %cst_210 = arith.constant dense<0.000000e+00> : vector<18x128xf32>
    %202 = tpu.matmul %199, %201, %cst_210 {dimension_numbers = #tpu.dot_dimension_numbers<[1], [0], [0], [1], [0, 0, 1, 1], [], []>} : vector<18x128xf32>, vector<128x128xf32>, vector<18x128xf32> -> vector<18x128xf32>
    %203 = arith.addf %196, %202 : vector<18x128xf32>
    %c1_211 = arith.constant 1 : index
    %c0_212 = arith.constant 0 : index
    %c0_213 = arith.constant 0 : index
    %204 = vector.load %arg2[%c1_211, %c0_212, %c0_213] : memref<6x18x18xf32, #tpu.memory_space<vmem>>, vector<1x18x18xf32>
    %205 = vector.shape_cast %204 : vector<1x18x18xf32> to vector<18x18xf32>
    %cst_214 = arith.constant dense<0.000000e+00> : vector<18x128xf32>
    %206 = tpu.matmul %205, %192, %cst_214 {dimension_numbers = #tpu.dot_dimension_numbers<[1], [0], [0], [1], [0, 0, 1, 1], [], []>} : vector<18x18xf32>, vector<18x128xf32>, vector<18x128xf32> -> vector<18x128xf32>
    %c1_215 = arith.constant 1 : index
    %c0_216 = arith.constant 0 : index
    %c0_217 = arith.constant 0 : index
    %207 = vector.load %arg13[%c1_215, %c0_216, %c0_217] : memref<6x128x128xf32, #tpu.memory_space<vmem>>, vector<1x128x128xf32>
    %208 = vector.shape_cast %207 : vector<1x128x128xf32> to vector<128x128xf32>
    %cst_218 = arith.constant dense<0.000000e+00> : vector<18x128xf32>
    %209 = tpu.matmul %206, %208, %cst_218 {dimension_numbers = #tpu.dot_dimension_numbers<[1], [0], [0], [1], [0, 0, 1, 1], [], []>} : vector<18x128xf32>, vector<128x128xf32>, vector<18x128xf32> -> vector<18x128xf32>
    %210 = arith.addf %203, %209 : vector<18x128xf32>
    %c2_219 = arith.constant 2 : index
    %c0_220 = arith.constant 0 : index
    %c0_221 = arith.constant 0 : index
    %211 = vector.load %arg2[%c2_219, %c0_220, %c0_221] : memref<6x18x18xf32, #tpu.memory_space<vmem>>, vector<1x18x18xf32>
    %212 = vector.shape_cast %211 : vector<1x18x18xf32> to vector<18x18xf32>
    %cst_222 = arith.constant dense<0.000000e+00> : vector<18x128xf32>
    %213 = tpu.matmul %212, %192, %cst_222 {dimension_numbers = #tpu.dot_dimension_numbers<[1], [0], [0], [1], [0, 0, 1, 1], [], []>} : vector<18x18xf32>, vector<18x128xf32>, vector<18x128xf32> -> vector<18x128xf32>
    %c2_223 = arith.constant 2 : index
    %c0_224 = arith.constant 0 : index
    %c0_225 = arith.constant 0 : index
    %214 = vector.load %arg13[%c2_223, %c0_224, %c0_225] : memref<6x128x128xf32, #tpu.memory_space<vmem>>, vector<1x128x128xf32>
    %215 = vector.shape_cast %214 : vector<1x128x128xf32> to vector<128x128xf32>
    %cst_226 = arith.constant dense<0.000000e+00> : vector<18x128xf32>
    %216 = tpu.matmul %213, %215, %cst_226 {dimension_numbers = #tpu.dot_dimension_numbers<[1], [0], [0], [1], [0, 0, 1, 1], [], []>} : vector<18x128xf32>, vector<128x128xf32>, vector<18x128xf32> -> vector<18x128xf32>
    %217 = arith.addf %210, %216 : vector<18x128xf32>
    %c3_227 = arith.constant 3 : index
    %c0_228 = arith.constant 0 : index
    %c0_229 = arith.constant 0 : index
    %218 = vector.load %arg2[%c3_227, %c0_228, %c0_229] : memref<6x18x18xf32, #tpu.memory_space<vmem>>, vector<1x18x18xf32>
    %219 = vector.shape_cast %218 : vector<1x18x18xf32> to vector<18x18xf32>
    %cst_230 = arith.constant dense<0.000000e+00> : vector<18x128xf32>
    %220 = tpu.matmul %219, %192, %cst_230 {dimension_numbers = #tpu.dot_dimension_numbers<[1], [0], [0], [1], [0, 0, 1, 1], [], []>} : vector<18x18xf32>, vector<18x128xf32>, vector<18x128xf32> -> vector<18x128xf32>
    %c3_231 = arith.constant 3 : index
    %c0_232 = arith.constant 0 : index
    %c0_233 = arith.constant 0 : index
    %221 = vector.load %arg13[%c3_231, %c0_232, %c0_233] : memref<6x128x128xf32, #tpu.memory_space<vmem>>, vector<1x128x128xf32>
    %222 = vector.shape_cast %221 : vector<1x128x128xf32> to vector<128x128xf32>
    %cst_234 = arith.constant dense<0.000000e+00> : vector<18x128xf32>
    %223 = tpu.matmul %220, %222, %cst_234 {dimension_numbers = #tpu.dot_dimension_numbers<[1], [0], [0], [1], [0, 0, 1, 1], [], []>} : vector<18x128xf32>, vector<128x128xf32>, vector<18x128xf32> -> vector<18x128xf32>
    %224 = arith.addf %217, %223 : vector<18x128xf32>
    %c4_235 = arith.constant 4 : index
    %c0_236 = arith.constant 0 : index
    %c0_237 = arith.constant 0 : index
    %225 = vector.load %arg2[%c4_235, %c0_236, %c0_237] : memref<6x18x18xf32, #tpu.memory_space<vmem>>, vector<1x18x18xf32>
    %226 = vector.shape_cast %225 : vector<1x18x18xf32> to vector<18x18xf32>
    %cst_238 = arith.constant dense<0.000000e+00> : vector<18x128xf32>
    %227 = tpu.matmul %226, %192, %cst_238 {dimension_numbers = #tpu.dot_dimension_numbers<[1], [0], [0], [1], [0, 0, 1, 1], [], []>} : vector<18x18xf32>, vector<18x128xf32>, vector<18x128xf32> -> vector<18x128xf32>
    %c4_239 = arith.constant 4 : index
    %c0_240 = arith.constant 0 : index
    %c0_241 = arith.constant 0 : index
    %228 = vector.load %arg13[%c4_239, %c0_240, %c0_241] : memref<6x128x128xf32, #tpu.memory_space<vmem>>, vector<1x128x128xf32>
    %229 = vector.shape_cast %228 : vector<1x128x128xf32> to vector<128x128xf32>
    %cst_242 = arith.constant dense<0.000000e+00> : vector<18x128xf32>
    %230 = tpu.matmul %227, %229, %cst_242 {dimension_numbers = #tpu.dot_dimension_numbers<[1], [0], [0], [1], [0, 0, 1, 1], [], []>} : vector<18x128xf32>, vector<128x128xf32>, vector<18x128xf32> -> vector<18x128xf32>
    %231 = arith.addf %224, %230 : vector<18x128xf32>
    %c5_243 = arith.constant 5 : index
    %c0_244 = arith.constant 0 : index
    %c0_245 = arith.constant 0 : index
    %232 = vector.load %arg2[%c5_243, %c0_244, %c0_245] : memref<6x18x18xf32, #tpu.memory_space<vmem>>, vector<1x18x18xf32>
    %233 = vector.shape_cast %232 : vector<1x18x18xf32> to vector<18x18xf32>
    %cst_246 = arith.constant dense<0.000000e+00> : vector<18x128xf32>
    %234 = tpu.matmul %233, %192, %cst_246 {dimension_numbers = #tpu.dot_dimension_numbers<[1], [0], [0], [1], [0, 0, 1, 1], [], []>} : vector<18x18xf32>, vector<18x128xf32>, vector<18x128xf32> -> vector<18x128xf32>
    %c5_247 = arith.constant 5 : index
    %c0_248 = arith.constant 0 : index
    %c0_249 = arith.constant 0 : index
    %235 = vector.load %arg13[%c5_247, %c0_248, %c0_249] : memref<6x128x128xf32, #tpu.memory_space<vmem>>, vector<1x128x128xf32>
    %236 = vector.shape_cast %235 : vector<1x128x128xf32> to vector<128x128xf32>
    %cst_250 = arith.constant dense<0.000000e+00> : vector<18x128xf32>
    %237 = tpu.matmul %234, %236, %cst_250 {dimension_numbers = #tpu.dot_dimension_numbers<[1], [0], [0], [1], [0, 0, 1, 1], [], []>} : vector<18x128xf32>, vector<128x128xf32>, vector<18x128xf32> -> vector<18x128xf32>
    %238 = arith.addf %231, %237 : vector<18x128xf32>
    %cst_251 = arith.constant 0.000000e+00 : f32
    %239 = vector.broadcast %cst_251 : f32 to vector<18x128xf32>
    %240 = arith.cmpf ogt, %238, %239 : vector<18x128xf32>
    %cst_252 = arith.constant 0.000000e+00 : f32
    %241 = vector.broadcast %cst_252 : f32 to vector<18x128xf32>
    %242 = arith.minimumf %238, %241 : vector<18x128xf32>
    %243 = math.exp %242 : vector<18x128xf32>
    %cst_253 = arith.constant 1.000000e+00 : f32
    %244 = vector.broadcast %cst_253 : f32 to vector<18x128xf32>
    %245 = arith.subf %243, %244 : vector<18x128xf32>
    %246 = arith.select %240, %238, %245 : vector<18x128xi1>, vector<18x128xf32>
    %c0_254 = arith.constant 0 : index
    %c0_255 = arith.constant 0 : index
    %247 = vector.load %arg20[%c0_254, %c0_255] : memref<34x18xf32, #tpu.memory_space<vmem>>, vector<34x18xf32>
    %cst_256 = arith.constant dense<0.000000e+00> : vector<34x128xf32>
    %248 = tpu.matmul %247, %246, %cst_256 {dimension_numbers = #tpu.dot_dimension_numbers<[1], [0], [0], [1], [0, 0, 1, 1], [], []>} : vector<34x18xf32>, vector<18x128xf32>, vector<34x128xf32> -> vector<34x128xf32>
    %cst_257 = arith.constant 0.000000e+00 : f32
    %249 = vector.broadcast %cst_257 : f32 to vector<34x128xf32>
    %c0_258 = arith.constant 0 : index
    %c0_259 = arith.constant 0 : index
    %250 = vector.load %arg16[%c0_258, %c0_259] : memref<1x128xf32, #tpu.memory_space<vmem>>, vector<1x128xf32>
    %251 = vector.broadcast %250 : vector<1x128xf32> to vector<34x128xf32>
    %252 = arith.addf %249, %251 : vector<34x128xf32>
    %c0_260 = arith.constant 0 : index
    %c0_261 = arith.constant 0 : index
    %c0_262 = arith.constant 0 : index
    %253 = vector.load %arg1[%c0_260, %c0_261, %c0_262] : memref<6x34x34xf32, #tpu.memory_space<vmem>>, vector<1x34x34xf32>
    %254 = vector.shape_cast %253 : vector<1x34x34xf32> to vector<34x34xf32>
    %cst_263 = arith.constant dense<0.000000e+00> : vector<34x128xf32>
    %255 = tpu.matmul %254, %248, %cst_263 {dimension_numbers = #tpu.dot_dimension_numbers<[1], [0], [0], [1], [0, 0, 1, 1], [], []>} : vector<34x34xf32>, vector<34x128xf32>, vector<34x128xf32> -> vector<34x128xf32>
    %c0_264 = arith.constant 0 : index
    %c0_265 = arith.constant 0 : index
    %c0_266 = arith.constant 0 : index
    %256 = vector.load %arg15[%c0_264, %c0_265, %c0_266] : memref<6x128x128xf32, #tpu.memory_space<vmem>>, vector<1x128x128xf32>
    %257 = vector.shape_cast %256 : vector<1x128x128xf32> to vector<128x128xf32>
    %cst_267 = arith.constant dense<0.000000e+00> : vector<34x128xf32>
    %258 = tpu.matmul %255, %257, %cst_267 {dimension_numbers = #tpu.dot_dimension_numbers<[1], [0], [0], [1], [0, 0, 1, 1], [], []>} : vector<34x128xf32>, vector<128x128xf32>, vector<34x128xf32> -> vector<34x128xf32>
    %259 = arith.addf %252, %258 : vector<34x128xf32>
    %c1_268 = arith.constant 1 : index
    %c0_269 = arith.constant 0 : index
    %c0_270 = arith.constant 0 : index
    %260 = vector.load %arg1[%c1_268, %c0_269, %c0_270] : memref<6x34x34xf32, #tpu.memory_space<vmem>>, vector<1x34x34xf32>
    %261 = vector.shape_cast %260 : vector<1x34x34xf32> to vector<34x34xf32>
    %cst_271 = arith.constant dense<0.000000e+00> : vector<34x128xf32>
    %262 = tpu.matmul %261, %248, %cst_271 {dimension_numbers = #tpu.dot_dimension_numbers<[1], [0], [0], [1], [0, 0, 1, 1], [], []>} : vector<34x34xf32>, vector<34x128xf32>, vector<34x128xf32> -> vector<34x128xf32>
    %c1_272 = arith.constant 1 : index
    %c0_273 = arith.constant 0 : index
    %c0_274 = arith.constant 0 : index
    %263 = vector.load %arg15[%c1_272, %c0_273, %c0_274] : memref<6x128x128xf32, #tpu.memory_space<vmem>>, vector<1x128x128xf32>
    %264 = vector.shape_cast %263 : vector<1x128x128xf32> to vector<128x128xf32>
    %cst_275 = arith.constant dense<0.000000e+00> : vector<34x128xf32>
    %265 = tpu.matmul %262, %264, %cst_275 {dimension_numbers = #tpu.dot_dimension_numbers<[1], [0], [0], [1], [0, 0, 1, 1], [], []>} : vector<34x128xf32>, vector<128x128xf32>, vector<34x128xf32> -> vector<34x128xf32>
    %266 = arith.addf %259, %265 : vector<34x128xf32>
    %c2_276 = arith.constant 2 : index
    %c0_277 = arith.constant 0 : index
    %c0_278 = arith.constant 0 : index
    %267 = vector.load %arg1[%c2_276, %c0_277, %c0_278] : memref<6x34x34xf32, #tpu.memory_space<vmem>>, vector<1x34x34xf32>
    %268 = vector.shape_cast %267 : vector<1x34x34xf32> to vector<34x34xf32>
    %cst_279 = arith.constant dense<0.000000e+00> : vector<34x128xf32>
    %269 = tpu.matmul %268, %248, %cst_279 {dimension_numbers = #tpu.dot_dimension_numbers<[1], [0], [0], [1], [0, 0, 1, 1], [], []>} : vector<34x34xf32>, vector<34x128xf32>, vector<34x128xf32> -> vector<34x128xf32>
    %c2_280 = arith.constant 2 : index
    %c0_281 = arith.constant 0 : index
    %c0_282 = arith.constant 0 : index
    %270 = vector.load %arg15[%c2_280, %c0_281, %c0_282] : memref<6x128x128xf32, #tpu.memory_space<vmem>>, vector<1x128x128xf32>
    %271 = vector.shape_cast %270 : vector<1x128x128xf32> to vector<128x128xf32>
    %cst_283 = arith.constant dense<0.000000e+00> : vector<34x128xf32>
    %272 = tpu.matmul %269, %271, %cst_283 {dimension_numbers = #tpu.dot_dimension_numbers<[1], [0], [0], [1], [0, 0, 1, 1], [], []>} : vector<34x128xf32>, vector<128x128xf32>, vector<34x128xf32> -> vector<34x128xf32>
    %273 = arith.addf %266, %272 : vector<34x128xf32>
    %c3_284 = arith.constant 3 : index
    %c0_285 = arith.constant 0 : index
    %c0_286 = arith.constant 0 : index
    %274 = vector.load %arg1[%c3_284, %c0_285, %c0_286] : memref<6x34x34xf32, #tpu.memory_space<vmem>>, vector<1x34x34xf32>
    %275 = vector.shape_cast %274 : vector<1x34x34xf32> to vector<34x34xf32>
    %cst_287 = arith.constant dense<0.000000e+00> : vector<34x128xf32>
    %276 = tpu.matmul %275, %248, %cst_287 {dimension_numbers = #tpu.dot_dimension_numbers<[1], [0], [0], [1], [0, 0, 1, 1], [], []>} : vector<34x34xf32>, vector<34x128xf32>, vector<34x128xf32> -> vector<34x128xf32>
    %c3_288 = arith.constant 3 : index
    %c0_289 = arith.constant 0 : index
    %c0_290 = arith.constant 0 : index
    %277 = vector.load %arg15[%c3_288, %c0_289, %c0_290] : memref<6x128x128xf32, #tpu.memory_space<vmem>>, vector<1x128x128xf32>
    %278 = vector.shape_cast %277 : vector<1x128x128xf32> to vector<128x128xf32>
    %cst_291 = arith.constant dense<0.000000e+00> : vector<34x128xf32>
    %279 = tpu.matmul %276, %278, %cst_291 {dimension_numbers = #tpu.dot_dimension_numbers<[1], [0], [0], [1], [0, 0, 1, 1], [], []>} : vector<34x128xf32>, vector<128x128xf32>, vector<34x128xf32> -> vector<34x128xf32>
    %280 = arith.addf %273, %279 : vector<34x128xf32>
    %c4_292 = arith.constant 4 : index
    %c0_293 = arith.constant 0 : index
    %c0_294 = arith.constant 0 : index
    %281 = vector.load %arg1[%c4_292, %c0_293, %c0_294] : memref<6x34x34xf32, #tpu.memory_space<vmem>>, vector<1x34x34xf32>
    %282 = vector.shape_cast %281 : vector<1x34x34xf32> to vector<34x34xf32>
    %cst_295 = arith.constant dense<0.000000e+00> : vector<34x128xf32>
    %283 = tpu.matmul %282, %248, %cst_295 {dimension_numbers = #tpu.dot_dimension_numbers<[1], [0], [0], [1], [0, 0, 1, 1], [], []>} : vector<34x34xf32>, vector<34x128xf32>, vector<34x128xf32> -> vector<34x128xf32>
    %c4_296 = arith.constant 4 : index
    %c0_297 = arith.constant 0 : index
    %c0_298 = arith.constant 0 : index
    %284 = vector.load %arg15[%c4_296, %c0_297, %c0_298] : memref<6x128x128xf32, #tpu.memory_space<vmem>>, vector<1x128x128xf32>
    %285 = vector.shape_cast %284 : vector<1x128x128xf32> to vector<128x128xf32>
    %cst_299 = arith.constant dense<0.000000e+00> : vector<34x128xf32>
    %286 = tpu.matmul %283, %285, %cst_299 {dimension_numbers = #tpu.dot_dimension_numbers<[1], [0], [0], [1], [0, 0, 1, 1], [], []>} : vector<34x128xf32>, vector<128x128xf32>, vector<34x128xf32> -> vector<34x128xf32>
    %287 = arith.addf %280, %286 : vector<34x128xf32>
    %c5_300 = arith.constant 5 : index
    %c0_301 = arith.constant 0 : index
    %c0_302 = arith.constant 0 : index
    %288 = vector.load %arg1[%c5_300, %c0_301, %c0_302] : memref<6x34x34xf32, #tpu.memory_space<vmem>>, vector<1x34x34xf32>
    %289 = vector.shape_cast %288 : vector<1x34x34xf32> to vector<34x34xf32>
    %cst_303 = arith.constant dense<0.000000e+00> : vector<34x128xf32>
    %290 = tpu.matmul %289, %248, %cst_303 {dimension_numbers = #tpu.dot_dimension_numbers<[1], [0], [0], [1], [0, 0, 1, 1], [], []>} : vector<34x34xf32>, vector<34x128xf32>, vector<34x128xf32> -> vector<34x128xf32>
    %c5_304 = arith.constant 5 : index
    %c0_305 = arith.constant 0 : index
    %c0_306 = arith.constant 0 : index
    %291 = vector.load %arg15[%c5_304, %c0_305, %c0_306] : memref<6x128x128xf32, #tpu.memory_space<vmem>>, vector<1x128x128xf32>
    %292 = vector.shape_cast %291 : vector<1x128x128xf32> to vector<128x128xf32>
    %cst_307 = arith.constant dense<0.000000e+00> : vector<34x128xf32>
    %293 = tpu.matmul %290, %292, %cst_307 {dimension_numbers = #tpu.dot_dimension_numbers<[1], [0], [0], [1], [0, 0, 1, 1], [], []>} : vector<34x128xf32>, vector<128x128xf32>, vector<34x128xf32> -> vector<34x128xf32>
    %294 = arith.addf %287, %293 : vector<34x128xf32>
    %c0_308 = arith.constant 0 : index
    %c0_309 = arith.constant 0 : index
    %295 = vector.load %arg21[%c0_308, %c0_309] : memref<34x1xf32, #tpu.memory_space<vmem>>, vector<34x1xf32>
    %296 = vector.broadcast %295 : vector<34x1xf32> to vector<34x128xf32>
    %297 = arith.mulf %294, %296 : vector<34x128xf32>
    %c0_310 = arith.constant 0 : index
    %c0_311 = arith.constant 0 : index
    %298 = vector.load %arg22[%c0_310, %c0_311] : memref<34x128xf32, #tpu.memory_space<vmem>>, vector<34x128xf32>
    tpu.vector_store %arg22[%c0_310, %c0_311], %297 {strides = array<i32>} : memref<34x128xf32, #tpu.memory_space<vmem>>, vector<34x128xf32>,
    return
  }
}

</mosaic_0001>

<llo_original>
// kernel: fwd.1
$region0: #{fwd.1}
  #allocation0 [shape = 'u32[]', space=smem, size = 0x4, offset = 0x4, fixed_abs, tag = 'smem constant byte address 0x4 - core index']
  #allocation1 [shape = 'u32[144,128]{1,0:T(1,128)}', space=vmem, size = 0x12000, scoped, tag = 'internal scratch']
  %s0 = inlined_call_operand.vmem [shape: f32[34,128], index: 0, kind: input, shape index: {}]
  %s1 = inlined_call_operand.hbm [shape: f32[6,34,34], index: 1, kind: input, shape index: {}]
  %s2 = inlined_call_operand.vmem [shape: f32[6,18,18], index: 2, kind: input, shape index: {}]
  %s3 = inlined_call_operand.hbm [shape: f32[6,128,128], index: 3, kind: input, shape index: {}]
  %s4 = inlined_call_operand.hbm [shape: f32[1,128], index: 4, kind: input, shape index: {}]
  %s5 = inlined_call_operand.hbm [shape: f32[6,128,128], index: 5, kind: input, shape index: {}]
  %s6 = inlined_call_operand.hbm [shape: f32[1,128], index: 6, kind: input, shape index: {}]
  %s7 = inlined_call_operand.hbm [shape: f32[5,128,128], index: 7, kind: input, shape index: {}]
  %s8 = inlined_call_operand.hbm [shape: f32[1,128], index: 8, kind: input, shape index: {}]
  %s9 = inlined_call_operand.hbm [shape: f32[5,2,10], index: 9, kind: input, shape index: {}]
  %s10 = inlined_call_operand.hbm [shape: f32[5,128,128], index: 10, kind: input, shape index: {}]
  %s11 = inlined_call_operand.hbm [shape: f32[10,128], index: 11, kind: input, shape index: {}]
  %s12 = inlined_call_operand.hbm [shape: f32[5,10,2], index: 12, kind: input, shape index: {}]
  %s13 = inlined_call_operand.hbm [shape: f32[6,128,128], index: 13, kind: input, shape index: {}]
  %s14 = inlined_call_operand.vmem [shape: f32[1,128], index: 14, kind: input, shape index: {}]
  %s15 = inlined_call_operand.hbm [shape: f32[6,128,128], index: 15, kind: input, shape index: {}]
  %s16 = inlined_call_operand.vmem [shape: f32[1,128], index: 16, kind: input, shape index: {}]
  %s17 = inlined_call_operand.hbm [shape: f32[18,34], index: 17, kind: input, shape index: {}]
  %s18 = inlined_call_operand.hbm [shape: f32[10,18], index: 18, kind: input, shape index: {}]
  %s19 = inlined_call_operand.hbm [shape: f32[18,10], index: 19, kind: input, shape index: {}]
  %s20 = inlined_call_operand.vmem [shape: f32[34,18], index: 20, kind: input, shape index: {}]
  %s21 = inlined_call_operand.vmem [shape: f32[34,1], index: 21, kind: input, shape index: {}]
  %s22 = inlined_call_operand.vmem [shape: f32[34,128], index: 22, kind: output, shape index: {0}]
  %s23 = inlined_call_operand.hbm [shape: f32[2,128], index: 23, kind: output, shape index: {1}]
  %24 = xla_tuple %s22, %s23
  %s25 = sld [smem:[#allocation0]]
  $region170: #{fwd.1} parent=0
    _
  %s27 = ssub.s32 1, %s25
  %s28 = scalar_select 0, %s27, %s25
  $region1: #{fwd.1} parent=0
    #allocation2 [shape = 'u8[122880]{0}', space=vmem, size = 0x1e000, scoped, tag = 'input window, operand 1, single buffered']
    #allocation3 [shape = 's32[1]{0}', space=sflag, size = 0x4, scoped, tag = 'scoped memory for fwd.1']
    #allocation4 [shape = 's32[1]{0}', space=sflag, size = 0x4, scoped, tag = 'scoped memory for fwd.1']
    #allocation5 [shape = 'u8[393216]{0}', space=vmem, size = 0x60000, scoped, tag = 'input window, operand 3, single buffered']
    #allocation6 [shape = 's32[1]{0}', space=sflag, size = 0x4, scoped, tag = 'scoped memory for fwd.1']
    #allocation7 [shape = 'u8[512]{0}', space=vmem, size = 0x400, scoped, tag = 'input window, operand 4, single buffered']
    #allocation8 [shape = 'u8[393216]{0}', space=vmem, size = 0x60000, scoped, tag = 'input window, operand 5, single buffered']
    #allocation9 [shape = 's32[1]{0}', space=sflag, size = 0x4, scoped, tag = 'scoped memory for fwd.1']
    #allocation10 [shape = 'u8[512]{0}', space=vmem, size = 0x400, scoped, tag = 'input window, operand 6, single buffered']
    #allocation11 [shape = 'u8[327680]{0}', space=vmem, size = 0x50000, scoped, tag = 'input window, operand 7, single buffered']
    #allocation12 [shape = 's32[1]{0}', space=sflag, size = 0x4, scoped, tag = 'scoped memory for fwd.1']
    #allocation13 [shape = 'u8[512]{0}', space=vmem, size = 0x400, scoped, tag = 'input window, operand 8, single buffered']
    #allocation14 [shape = 'u8[5120]{0}', space=vmem, size = 0x1400, scoped, tag = 'input window, operand 9, single buffered']
    #allocation15 [shape = 's32[1]{0}', space=sflag, size = 0x4, scoped, tag = 'scoped memory for fwd.1']
    #allocation16 [shape = 'u8[327680]{0}', space=vmem, size = 0x50000, scoped, tag = 'input window, operand 10, single buffered']
    #allocation17 [shape = 'u8[8192]{0}', space=vmem, size = 0x2000, scoped, tag = 'input window, operand 11, single buffered']
    #allocation18 [shape = 's32[1]{0}', space=sflag, size = 0x4, scoped, tag = 'scoped memory for fwd.1']
    #allocation19 [shape = 'u8[40960]{0}', space=vmem, size = 0xa000, scoped, tag = 'input window, operand 12, single buffered']
    #allocation20 [shape = 'u8[393216]{0}', space=vmem, size = 0x60000, scoped, tag = 'input window, operand 13, single buffered']
    #allocation21 [shape = 's32[1]{0}', space=sflag, size = 0x4, scoped, tag = 'scoped memory for fwd.1']
    #allocation22 [shape = 'u8[393216]{0}', space=vmem, size = 0x60000, scoped, tag = 'input window, operand 15, single buffered']
    #allocation23 [shape = 'u8[12288]{0}', space=vmem, size = 0x3000, scoped, tag = 'input window, operand 17, single buffered']
    #allocation24 [shape = 's32[1]{0}', space=sflag, size = 0x4, scoped, tag = 'scoped memory for fwd.1']
    #allocation25 [shape = 'u8[8192]{0}', space=vmem, size = 0x2000, scoped, tag = 'input window, operand 18, single buffered']
    #allocation26 [shape = 'u8[12288]{0}', space=vmem, size = 0x3000, scoped, tag = 'input window, operand 19, single buffered']
    #allocation27 [shape = 's32[1]{0}', space=sflag, size = 0x4, scoped, tag = 'scoped memory for fwd.1']
    #allocation28 [shape = 'u8[1024]{0}', space=vmem, size = 0x400, scoped, tag = 'output window, operand 1, single buffered']
    %29 = vsyncpa [#allocation3], 0
    %30 = vsyncpa [#allocation6], 0
    %31 = vsyncpa [#allocation9], 0
    %32 = vsyncpa [#allocation12], 0
    %33 = vsyncpa [#allocation15], 0
    %34 = vsyncpa [#allocation18], 0
    %35 = vsyncpa [#allocation21], 0
    %36 = vsyncpa [#allocation24], 0
    %37 = vsyncpa [#allocation27], 0
    %38 = vsyncpa [#allocation4], 0
    // Predicated region
    $region2: #{fwd.1} parent=1 // pred_check
      _
    $region3: #{fwd.1} parent=1 // pred_check_branch
      %40 = sbr.rel (0) target = $region5
    $region4: #{fwd.1} parent=1 // pred_region
      _
    $region5: #{fwd.1} parent=1 // pred_fallthru
      _
    // Predicated region
    $region6: #{fwd.1} parent=1 // pred_check
      _
    $region7: #{fwd.1} parent=1 // pred_check_branch
      %42 = sbr.rel (0) target = $region9
    $region8: #{fwd.1} parent=1 // pred_region
      %s44 = ssub.s32 3840, 3840
      %45 = vsyncadd [#allocation3], %s44
      %s46 = sshll.u32 [#allocation2], 4
      %s47 = int_to_ptr.vmem [resolvable:$true] %s46
      %52 = dma.hbm_to_vmem [thread:$0]  %s1, 3840, %s47, [#allocation3], 128, 128, 8
    $region9: #{fwd.1} parent=1 // pred_fallthru
      _
    // Predicated region
    $region10: #{fwd.1} parent=1 // pred_check
      _
    $region11: #{fwd.1} parent=1 // pred_check_branch
      %54 = sbr.rel (0) target = $region13
    $region12: #{fwd.1} parent=1 // pred_region
      _
    $region13: #{fwd.1} parent=1 // pred_fallthru
      _
    // Predicated region
    $region14: #{fwd.1} parent=1 // pred_check
      _
    $region15: #{fwd.1} parent=1 // pred_check_branch
      %56 = sbr.rel (0) target = $region17
    $region16: #{fwd.1} parent=1 // pred_region
      %s58 = ssub.s32 12288, 12288
      %59 = vsyncadd [#allocation6], %s58
      %s60 = sshll.u32 [#allocation5], 4
      %s61 = int_to_ptr.vmem [resolvable:$true] %s60
      %66 = dma.hbm_to_vmem [thread:$0]  %s3, 12288, %s61, [#allocation6], 128, 128, 8
    $region17: #{fwd.1} parent=1 // pred_fallthru
      _
    // Predicated region
    $region18: #{fwd.1} parent=1 // pred_check
      _
    $region19: #{fwd.1} parent=1 // pred_check_branch
      %68 = sbr.rel (0) target = $region21
    $region20: #{fwd.1} parent=1 // pred_region
      %s70 = ssub.s32 16, 16
      %71 = vsyncadd [#allocation6], %s70
      %s73 = sshll.u32 [#allocation7], 4
      %s74 = int_to_ptr.vmem [resolvable:$true] %s73
      %76 = dma.hbm_to_vmem [thread:$0]  %s4, 16, %s74, [#allocation6]
    $region21: #{fwd.1} parent=1 // pred_fallthru
      _
    // Predicated region
    $region22: #{fwd.1} parent=1 // pred_check
      _
    $region23: #{fwd.1} parent=1 // pred_check_branch
      %78 = sbr.rel (0) target = $region25
    $region24: #{fwd.1} parent=1 // pred_region
      %s80 = ssub.s32 12288, 12288
      %81 = vsyncadd [#allocation9], %s80
      %s82 = sshll.u32 [#allocation8], 4
      %s83 = int_to_ptr.vmem [resolvable:$true] %s82
      %88 = dma.hbm_to_vmem [thread:$0]  %s5, 12288, %s83, [#allocation9], 128, 128, 8
    $region25: #{fwd.1} parent=1 // pred_fallthru
      _
    // Predicated region
    $region26: #{fwd.1} parent=1 // pred_check
      _
    $region27: #{fwd.1} parent=1 // pred_check_branch
      %90 = sbr.rel (0) target = $region29
    $region28: #{fwd.1} parent=1 // pred_region
      %s92 = ssub.s32 16, 16
      %93 = vsyncadd [#allocation9], %s92
      %s95 = sshll.u32 [#allocation10], 4
      %s96 = int_to_ptr.vmem [resolvable:$true] %s95
      %98 = dma.hbm_to_vmem [thread:$0]  %s6, 16, %s96, [#allocation9]
    $region29: #{fwd.1} parent=1 // pred_fallthru
      _
    // Predicated region
    $region30: #{fwd.1} parent=1 // pred_check
      _
    $region31: #{fwd.1} parent=1 // pred_check_branch
      %100 = sbr.rel (0) target = $region33
    $region32: #{fwd.1} parent=1 // pred_region
      %s102 = ssub.s32 10240, 10240
      %103 = vsyncadd [#allocation12], %s102
      %s104 = sshll.u32 [#allocation11], 4
      %s105 = int_to_ptr.vmem [resolvable:$true] %s104
      %110 = dma.hbm_to_vmem [thread:$0]  %s7, 10240, %s105, [#allocation12], 128, 128, 8
    $region33: #{fwd.1} parent=1 // pred_fallthru
      _
    // Predicated region
    $region34: #{fwd.1} parent=1 // pred_check
      _
    $region35: #{fwd.1} parent=1 // pred_check_branch
      %112 = sbr.rel (0) target = $region37
    $region36: #{fwd.1} parent=1 // pred_region
      %s114 = ssub.s32 16, 16
      %115 = vsyncadd [#allocation12], %s114
      %s117 = sshll.u32 [#allocation13], 4
      %s118 = int_to_ptr.vmem [resolvable:$true] %s117
      %120 = dma.hbm_to_vmem [thread:$0]  %s8, 16, %s118, [#allocation12]
    $region37: #{fwd.1} parent=1 // pred_fallthru
      _
    // Predicated region
    $region38: #{fwd.1} parent=1 // pred_check
      _
    $region39: #{fwd.1} parent=1 // pred_check_branch
      %122 = sbr.rel (0) target = $region41
    $region40: #{fwd.1} parent=1 // pred_region
      %s124 = ssub.s32 160, 160
      %125 = vsyncadd [#allocation15], %s124
      %s126 = sshll.u32 [#allocation14], 4
      %s127 = int_to_ptr.vmem [resolvable:$true] %s126
      %132 = dma.hbm_to_vmem [thread:$0]  %s9, 160, %s127, [#allocation15], 32, 32, 2
    $region41: #{fwd.1} parent=1 // pred_fallthru
      _
    // Predicated region
    $region42: #{fwd.1} parent=1 // pred_check
      _
    $region43: #{fwd.1} parent=1 // pred_check_branch
      %134 = sbr.rel (0) target = $region45
    $region44: #{fwd.1} parent=1 // pred_region
      %s136 = ssub.s32 10240, 10240
      %137 = vsyncadd [#allocation15], %s136
      %s138 = sshll.u32 [#allocation16], 4
      %s139 = int_to_ptr.vmem [resolvable:$true] %s138
      %144 = dma.hbm_to_vmem [thread:$0]  %s10, 10240, %s139, [#allocation15], 128, 128, 8
    $region45: #{fwd.1} parent=1 // pred_fallthru
      _
    // Predicated region
    $region46: #{fwd.1} parent=1 // pred_check
      _
    $region47: #{fwd.1} parent=1 // pred_check_branch
      %146 = sbr.rel (0) target = $region49
    $region48: #{fwd.1} parent=1 // pred_region
      %s148 = ssub.s32 256, 256
      %149 = vsyncadd [#allocation18], %s148
      %s150 = sshll.u32 [#allocation17], 4
      %s151 = int_to_ptr.vmem [resolvable:$true] %s150
      %156 = dma.hbm_to_vmem [thread:$0]  %s11, 256, %s151, [#allocation18], 128, 128, 8
    $region49: #{fwd.1} parent=1 // pred_fallthru
      _
    // Predicated region
    $region50: #{fwd.1} parent=1 // pred_check
      _
    $region51: #{fwd.1} parent=1 // pred_check_branch
      %158 = sbr.rel (0) target = $region53
    $region52: #{fwd.1} parent=1 // pred_region
      %s160 = ssub.s32 1280, 1280
      %161 = vsyncadd [#allocation18], %s160
      %s162 = sshll.u32 [#allocation19], 4
      %s163 = int_to_ptr.vmem [resolvable:$true] %s162
      %168 = dma.hbm_to_vmem [thread:$0]  %s12, 1280, %s163, [#allocation18], 128, 128, 8
    $region53: #{fwd.1} parent=1 // pred_fallthru
      _
    // Predicated region
    $region54: #{fwd.1} parent=1 // pred_check
      _
    $region55: #{fwd.1} parent=1 // pred_check_branch
      %170 = sbr.rel (0) target = $region57
    $region56: #{fwd.1} parent=1 // pred_region
      %s172 = ssub.s32 12288, 12288
      %173 = vsyncadd [#allocation21], %s172
      %s174 = sshll.u32 [#allocation20], 4
      %s175 = int_to_ptr.vmem [resolvable:$true] %s174
      %180 = dma.hbm_to_vmem [thread:$0]  %s13, 12288, %s175, [#allocation21], 128, 128, 8
    $region57: #{fwd.1} parent=1 // pred_fallthru
      _
    // Predicated region
    $region58: #{fwd.1} parent=1 // pred_check
      _
    $region59: #{fwd.1} parent=1 // pred_check_branch
      %182 = sbr.rel (0) target = $region61
    $region60: #{fwd.1} parent=1 // pred_region
      _
    $region61: #{fwd.1} parent=1 // pred_fallthru
      _
    // Predicated region
    $region62: #{fwd.1} parent=1 // pred_check
      _
    $region63: #{fwd.1} parent=1 // pred_check_branch
      %184 = sbr.rel (0) target = $region65
    $region64: #{fwd.1} parent=1 // pred_region
      %s186 = ssub.s32 12288, 12288
      %187 = vsyncadd [#allocation21], %s186
      %s188 = sshll.u32 [#allocation22], 4
      %s189 = int_to_ptr.vmem [resolvable:$true] %s188
      %194 = dma.hbm_to_vmem [thread:$0]  %s15, 12288, %s189, [#allocation21], 128, 128, 8
    $region65: #{fwd.1} parent=1 // pred_fallthru
      _
    // Predicated region
    $region66: #{fwd.1} parent=1 // pred_check
      _
    $region67: #{fwd.1} parent=1 // pred_check_branch
      %196 = sbr.rel (0) target = $region69
    $region68: #{fwd.1} parent=1 // pred_region
      _
    $region69: #{fwd.1} parent=1 // pred_fallthru
      _
    // Predicated region
    $region70: #{fwd.1} parent=1 // pred_check
      _
    $region71: #{fwd.1} parent=1 // pred_check_branch
      %198 = sbr.rel (0) target = $region73
    $region72: #{fwd.1} parent=1 // pred_region
      %s200 = ssub.s32 384, 384
      %201 = vsyncadd [#allocation24], %s200
      %s202 = sshll.u32 [#allocation23], 4
      %s203 = int_to_ptr.vmem [resolvable:$true] %s202
      %208 = dma.hbm_to_vmem [thread:$0]  %s17, 384, %s203, [#allocation24], 128, 128, 8
    $region73: #{fwd.1} parent=1 // pred_fallthru
      _
    // Predicated region
    $region74: #{fwd.1} parent=1 // pred_check
      _
    $region75: #{fwd.1} parent=1 // pred_check_branch
      %210 = sbr.rel (0) target = $region77
    $region76: #{fwd.1} parent=1 // pred_region
      %s212 = ssub.s32 256, 256
      %213 = vsyncadd [#allocation24], %s212
      %s214 = sshll.u32 [#allocation25], 4
      %s215 = int_to_ptr.vmem [resolvable:$true] %s214
      %220 = dma.hbm_to_vmem [thread:$0]  %s18, 256, %s215, [#allocation24], 128, 128, 8
    $region77: #{fwd.1} parent=1 // pred_fallthru
      _
    // Predicated region
    $region78: #{fwd.1} parent=1 // pred_check
      _
    $region79: #{fwd.1} parent=1 // pred_check_branch
      %222 = sbr.rel (0) target = $region81
    $region80: #{fwd.1} parent=1 // pred_region
      %s224 = ssub.s32 384, 384
      %225 = vsyncadd [#allocation27], %s224
      %s226 = sshll.u32 [#allocation26], 4
      %s227 = int_to_ptr.vmem [resolvable:$true] %s226
      %232 = dma.hbm_to_vmem [thread:$0]  %s19, 384, %s227, [#allocation27], 128, 128, 8
    $region81: #{fwd.1} parent=1 // pred_fallthru
      _
    // Predicated region
    $region82: #{fwd.1} parent=1 // pred_check
      _
    $region83: #{fwd.1} parent=1 // pred_check_branch
      %234 = sbr.rel (0) target = $region85
    $region84: #{fwd.1} parent=1 // pred_region
      _
    $region85: #{fwd.1} parent=1 // pred_fallthru
      _
    // Predicated region
    $region86: #{fwd.1} parent=1 // pred_check
      _
    $region87: #{fwd.1} parent=1 // pred_check_branch
      %236 = sbr.rel (0) target = $region89
    $region88: #{fwd.1} parent=1 // pred_region
      _
    $region89: #{fwd.1} parent=1 // pred_fallthru
      _
    // Predicated region
    $region90: #{fwd.1} parent=1 // pred_check
      _
    $region91: #{fwd.1} parent=1 // pred_check_branch
      %238 = sbr.rel (0) target = $region93
    $region92: #{fwd.1} parent=1 // pred_region
      %239 = dma.done [#allocation3], 3840
    $region93: #{fwd.1} parent=1 // pred_fallthru
      _
    // Predicated region
    $region94: #{fwd.1} parent=1 // pred_check
      _
    $region95: #{fwd.1} parent=1 // pred_check_branch
      %241 = sbr.rel (0) target = $region97
    $region96: #{fwd.1} parent=1 // pred_region
      %242 = dma.done [#allocation6], 12288
    $region97: #{fwd.1} parent=1 // pred_fallthru
      _
    // Predicated region
    $region98: #{fwd.1} parent=1 // pred_check
      _
    $region99: #{fwd.1} parent=1 // pred_check_branch
      %244 = sbr.rel (0) target = $region101
    $region100: #{fwd.1} parent=1 // pred_region
      %245 = dma.done [#allocation6], 16
    $region101: #{fwd.1} parent=1 // pred_fallthru
      _
    // Predicated region
    $region102: #{fwd.1} parent=1 // pred_check
      _
    $region103: #{fwd.1} parent=1 // pred_check_branch
      %247 = sbr.rel (0) target = $region105
    $region104: #{fwd.1} parent=1 // pred_region
      %248 = dma.done [#allocation9], 12288
    $region105: #{fwd.1} parent=1 // pred_fallthru
      _
    // Predicated region
    $region106: #{fwd.1} parent=1 // pred_check
      _
    $region107: #{fwd.1} parent=1 // pred_check_branch
      %250 = sbr.rel (0) target = $region109
    $region108: #{fwd.1} parent=1 // pred_region
      %251 = dma.done [#allocation9], 16
    $region109: #{fwd.1} parent=1 // pred_fallthru
      _
    // Predicated region
    $region110: #{fwd.1} parent=1 // pred_check
      _
    $region111: #{fwd.1} parent=1 // pred_check_branch
      %253 = sbr.rel (0) target = $region113
    $region112: #{fwd.1} parent=1 // pred_region
      %254 = dma.done [#allocation12], 10240
    $region113: #{fwd.1} parent=1 // pred_fallthru
      _
    // Predicated region
    $region114: #{fwd.1} parent=1 // pred_check
      _
    $region115: #{fwd.1} parent=1 // pred_check_branch
      %256 = sbr.rel (0) target = $region117
    $region116: #{fwd.1} parent=1 // pred_region
      %257 = dma.done [#allocation12], 16
    $region117: #{fwd.1} parent=1 // pred_fallthru
      _
    // Predicated region
    $region118: #{fwd.1} parent=1 // pred_check
      _
    $region119: #{fwd.1} parent=1 // pred_check_branch
      %259 = sbr.rel (0) target = $region121
    $region120: #{fwd.1} parent=1 // pred_region
      %260 = dma.done [#allocation15], 160
    $region121: #{fwd.1} parent=1 // pred_fallthru
      _
    // Predicated region
    $region122: #{fwd.1} parent=1 // pred_check
      _
    $region123: #{fwd.1} parent=1 // pred_check_branch
      %262 = sbr.rel (0) target = $region125
    $region124: #{fwd.1} parent=1 // pred_region
      %263 = dma.done [#allocation15], 10240
    $region125: #{fwd.1} parent=1 // pred_fallthru
      _
    // Predicated region
    $region126: #{fwd.1} parent=1 // pred_check
      _
    $region127: #{fwd.1} parent=1 // pred_check_branch
      %265 = sbr.rel (0) target = $region129
    $region128: #{fwd.1} parent=1 // pred_region
      %266 = dma.done [#allocation18], 256
    $region129: #{fwd.1} parent=1 // pred_fallthru
      _
    // Predicated region
    $region130: #{fwd.1} parent=1 // pred_check
      _
    $region131: #{fwd.1} parent=1 // pred_check_branch
      %268 = sbr.rel (0) target = $region133
    $region132: #{fwd.1} parent=1 // pred_region
      %269 = dma.done [#allocation18], 1280
    $region133: #{fwd.1} parent=1 // pred_fallthru
      _
    // Predicated region
    $region134: #{fwd.1} parent=1 // pred_check
      _
    $region135: #{fwd.1} parent=1 // pred_check_branch
      %271 = sbr.rel (0) target = $region137
    $region136: #{fwd.1} parent=1 // pred_region
      %272 = dma.done [#allocation21], 12288
    $region137: #{fwd.1} parent=1 // pred_fallthru
      _
    // Predicated region
    $region138: #{fwd.1} parent=1 // pred_check
      _
    $region139: #{fwd.1} parent=1 // pred_check_branch
      %274 = sbr.rel (0) target = $region141
    $region140: #{fwd.1} parent=1 // pred_region
      %275 = dma.done [#allocation21], 12288
    $region141: #{fwd.1} parent=1 // pred_fallthru
      _
    // Predicated region
    $region142: #{fwd.1} parent=1 // pred_check
      _
    $region143: #{fwd.1} parent=1 // pred_check_branch
      %277 = sbr.rel (0) target = $region145
    $region144: #{fwd.1} parent=1 // pred_region
      %278 = dma.done [#allocation24], 384
    $region145: #{fwd.1} parent=1 // pred_fallthru
      _
    // Predicated region
    $region146: #{fwd.1} parent=1 // pred_check
      _
    $region147: #{fwd.1} parent=1 // pred_check_branch
      %280 = sbr.rel (0) target = $region149
    $region148: #{fwd.1} parent=1 // pred_region
      %281 = dma.done [#allocation24], 256
    $region149: #{fwd.1} parent=1 // pred_fallthru
      _
    // Predicated region
    $region150: #{fwd.1} parent=1 // pred_check
      _
    $region151: #{fwd.1} parent=1 // pred_check_branch
      %283 = sbr.rel (0) target = $region153
    $region152: #{fwd.1} parent=1 // pred_region
      %284 = dma.done [#allocation27], 384
    $region153: #{fwd.1} parent=1 // pred_fallthru
      _
    %v285 = vld [vmem:[%s0] sm:$0xff]
    %v286 = vld [vmem:[%s0 + $0x8] sm:$0xff]
    %v287 = vld [vmem:[%s0 + $0x10] sm:$0xff]
    %v288 = vld [vmem:[%s0 + $0x18] sm:$0xff]
    %v289 = vld [vmem:[%s0 + $0x20] sm:$0x3]
    %v290 = vld [vmem:[#allocation7] sm:$0x1]
    %v292 = vlaneseq
    %v293 = vshrl.u32 %v292, 7
    %v294 = vsub.s32 0, %v293
    %v295 = vrot.slane %v290, %v294
    %v297 = vadd.f32 %v295, 0.0
    %v298 = vld [vmem:[#allocation2] sm:$0xff]
    %v299 = vld [vmem:[#allocation2 + $0x8] sm:$0xff]
    %v300 = vld [vmem:[#allocation2 + $0x10] sm:$0xff]
    %v301 = vld [vmem:[#allocation2 + $0x18] sm:$0xff]
    %v302 = vld [vmem:[#allocation2 + $0x20] sm:$0x3]
    %vm303 = vcmask 277504
    %v305 = vsel %vm303, %v298, 0
    %v308 = vsel %vm303, %v299, 0
    %v311 = vsel %vm303, %v300, 0
    %v314 = vsel %vm303, %v301, 0
    %v317 = vsel %vm303, %v302, 0
    %vm319 = vcmask 1041408
    %v321 = vsel %vm319, %v289, 0
    %323 = vmatprep.subr.mxu0 0.0
    %324 = vmatpush1.msra.mxu0 %v285
    %325 = vmatprep.subr.mxu0 0.0
    %326 = vmatpush1.msra.mxu0 %v286
    %327 = vmatprep.subr.mxu0 0.0
    %328 = vmatpush1.msra.mxu0 %v287
    %329 = vmatprep.subr.mxu0 0.0
    %330 = vmatpush1.msra.mxu0 %v288
    %331 = vmatprep.subr.mxu0 0.0
    %332 = vmatpush1.msra.mxu0 %v321
    %333 = vmatprep.subr.mxu0 0.0
    %334 = vmatpush1.msra.mxu0 0.0
    %335 = vmatprep.subr.mxu0 0.0
    %336 = vmatpush1.msra.mxu0 0.0
    %337 = vmatprep.subr.mxu0 0.0
    %338 = vmatpush1.msra.mxu0 0.0
    %339 = vmatprep.subr.mxu0 0.0
    %340 = vmatpush1.msra.mxu0 0.0
    %341 = vmatprep.subr.mxu0 0.0
    %342 = vmatpush1.msra.mxu0 0.0
    %343 = vmatprep.subr.mxu0 0.0
    %344 = vmatpush1.msra.mxu0 0.0
    %345 = vmatprep.subr.mxu0 0.0
    %346 = vmatpush1.msra.mxu0 0.0
    %347 = vmatprep.subr.mxu0 0.0
    %348 = vmatpush1.msra.mxu0 0.0
    %349 = vmatprep.subr.mxu0 0.0
    %350 = vmatpush1.msra.mxu0 0.0
    %351 = vmatprep.subr.mxu0 0.0
    %352 = vmatpush1.msra.mxu0 0.0
    %353 = vmatprep.subr.mxu0 0.0
    %354 = vmatpush1.msra.mxu0 0.0
    %355 = vmatprep.subr.mxu0 0.0
    %356 = vmatpush1.msra.mxu0 0.0
    %357 = vmatprep.subr.mxu0 0.0
    %358 = vmatpush1.msra.mxu0 0.0
    %359 = vmatprep.subr.mxu0 0.0
    %360 = vmatpush1.msra.mxu0 0.0
    %361 = vmatprep.subr.mxu0 0.0
    %362 = vmatpush1.msra.mxu0 0.0
    %363 = vmatprep.subr.mxu0 0.0
    %364 = vmatpush1.msra.mxu0 0.0
    %365 = vmatprep.subr.mxu0 0.0
    %366 = vmatpush1.msra.mxu0 0.0
    %367 = vmatprep.subr.mxu0 0.0
    %368 = vmatpush1.msra.mxu0 0.0
    %369 = vmatprep.subr.mxu0 0.0
    %370 = vmatpush1.msra.mxu0 0.0
    %371 = vmatprep.subr.mxu0 0.0
    %372 = vmatpush1.msra.mxu0 0.0
    %373 = vmatprep.subr.mxu0 0.0
    %374 = vmatpush1.msra.mxu0 0.0
    %375 = vmatprep.subr.mxu0 0.0
    %376 = vmatpush1.msra.mxu0 0.0
    %377 = vmatprep.subr.mxu0 0.0
    %378 = vmatpush1.msra.mxu0 0.0
    %379 = vmatprep.subr.mxu0 0.0
    %380 = vmatpush1.msra.mxu0 0.0
    %381 = vmatprep.subr.mxu0 0.0
    %382 = vmatpush1.msra.mxu0 0.0
    %383 = vmatprep.subr.mxu0 0.0
    %384 = vmatpush1.msra.mxu0 0.0
    %385 = vmatprep.subr.mxu0 0.0
    %386 = vmatpush1.msra.mxu0 0.0
    %387 = vmatprep.mubr.f32.mxu0 0.0
    %388 = vmatmul.mubr.f32.gmra.mrb[0].mxu0 %v305
    %v389 = vpop.f32.mrb[0].mxu0
    %v390 = vadd.f32 0.0, %v389
    %v391 = vpop.f32.mrb[0].mxu0
    %392 = vmatprep.mubr.f32.mxu0 0.0
    %393 = vmatmul.mubr.f32.gmra.mrb[0].mxu0 %v308
    %v394 = vpop.f32.mrb[0].mxu0
    %v395 = vadd.f32 0.0, %v394
    %v396 = vpop.f32.mrb[0].mxu0
    %397 = vmatprep.mubr.f32.mxu0 0.0
    %398 = vmatmul.mubr.f32.gmra.mrb[0].mxu0 %v311
    %v399 = vpop.f32.mrb[0].mxu0
    %v400 = vadd.f32 0.0, %v399
    %v401 = vpop.f32.mrb[0].mxu0
    %402 = vmatprep.mubr.f32.mxu0 0.0
    %403 = vmatmul.mubr.f32.gmra.mrb[0].mxu0 %v314
    %v404 = vpop.f32.mrb[0].mxu0
    %v405 = vadd.f32 0.0, %v404
    %v406 = vpop.f32.mrb[0].mxu0
    %407 = vmatprep.mubr.f32.mxu0 0.0
    %408 = vmatmul.mubr.f32.gmra.mrb[0].mxu0 %v317
    %v409 = vpop.f32.mrb[0].mxu0
    %v410 = vadd.f32 0.0, %v409
    %v411 = vpop.f32.mrb[0].mxu0
    %412 = vdwg.mxu0
    %v413 = vld [vmem:[#allocation5] sm:$0xff]
    %v414 = vld [vmem:[#allocation5 + $0x8] sm:$0xff]
    %v415 = vld [vmem:[#allocation5 + $0x10] sm:$0xff]
    %v416 = vld [vmem:[#allocation5 + $0x18] sm:$0xff]
    %v417 = vld [vmem:[#allocation5 + $0x20] sm:$0xff]
    %v418 = vld [vmem:[#allocation5 + $0x28] sm:$0xff]
    %v419 = vld [vmem:[#allocation5 + $0x30] sm:$0xff]
    %v420 = vld [vmem:[#allocation5 + $0x38] sm:$0xff]
    %v421 = vld [vmem:[#allocation5 + $0x40] sm:$0xff]
    %v422 = vld [vmem:[#allocation5 + $0x48] sm:$0xff]
    %v423 = vld [vmem:[#allocation5 + $0x50] sm:$0xff]
    %v424 = vld [vmem:[#allocation5 + $0x58] sm:$0xff]
    %v425 = vld [vmem:[#allocation5 + $0x60] sm:$0xff]
    %v426 = vld [vmem:[#allocation5 + $0x68] sm:$0xff]
    %v427 = vld [vmem:[#allocation5 + $0x70] sm:$0xff]
    %v428 = vld [vmem:[#allocation5 + $0x78] sm:$0xff]
    %429 = vmatprep.subr.mxu0 0.0
    %430 = vmatpush1.msra.mxu0 %v413
    %431 = vmatprep.subr.mxu0 0.0
    %432 = vmatpush1.msra.mxu0 %v414
    %433 = vmatprep.subr.mxu0 0.0
    %434 = vmatpush1.msra.mxu0 %v415
    %435 = vmatprep.subr.mxu0 0.0
    %436 = vmatpush1.msra.mxu0 %v416
    %437 = vmatprep.subr.mxu0 0.0
    %438 = vmatpush1.msra.mxu0 %v417
    %439 = vmatprep.subr.mxu0 0.0
    %440 = vmatpush1.msra.mxu0 %v418
    %441 = vmatprep.subr.mxu0 0.0
    %442 = vmatpush1.msra.mxu0 %v419
    %443 = vmatprep.subr.mxu0 0.0
    %444 = vmatpush1.msra.mxu0 %v420
    %445 = vmatprep.subr.mxu0 0.0
    %446 = vmatpush1.msra.mxu0 %v421
    %447 = vmatprep.subr.mxu0 0.0
    %448 = vmatpush1.msra.mxu0 %v422
    %449 = vmatprep.subr.mxu0 0.0
    %450 = vmatpush1.msra.mxu0 %v423
    %451 = vmatprep.subr.mxu0 0.0
    %452 = vmatpush1.msra.mxu0 %v424
    %453 = vmatprep.subr.mxu0 0.0
    %454 = vmatpush1.msra.mxu0 %v425
    %455 = vmatprep.subr.mxu0 0.0
    %456 = vmatpush1.msra.mxu0 %v426
    %457 = vmatprep.subr.mxu0 0.0
    %458 = vmatpush1.msra.mxu0 %v427
    %459 = vmatprep.subr.mxu0 0.0
    %460 = vmatpush1.msra.mxu0 %v428
    %461 = vmatprep.subr.mxu0 0.0
    %462 = vmatpush1.msra.mxu0 0.0
    %463 = vmatprep.subr.mxu0 0.0
    %464 = vmatpush1.msra.mxu0 0.0
    %465 = vmatprep.subr.mxu0 0.0
    %466 = vmatpush1.msra.mxu0 0.0
    %467 = vmatprep.subr.mxu0 0.0
    %468 = vmatpush1.msra.mxu0 0.0
    %469 = vmatprep.subr.mxu0 0.0
    %470 = vmatpush1.msra.mxu0 0.0
    %471 = vmatprep.subr.mxu0 0.0
    %472 = vmatpush1.msra.mxu0 0.0
    %473 = vmatprep.subr.mxu0 0.0
    %474 = vmatpush1.msra.mxu0 0.0
    %475 = vmatprep.subr.mxu0 0.0
    %476 = vmatpush1.msra.mxu0 0.0
    %477 = vmatprep.subr.mxu0 0.0
    %478 = vmatpush1.msra.mxu0 0.0
    %479 = vmatprep.subr.mxu0 0.0
    %480 = vmatpush1.msra.mxu0 0.0
    %481 = vmatprep.subr.mxu0 0.0
    %482 = vmatpush1.msra.mxu0 0.0
    %483 = vmatprep.subr.mxu0 0.0
    %484 = vmatpush1.msra.mxu0 0.0
    %485 = vmatprep.subr.mxu0 0.0
    %486 = vmatpush1.msra.mxu0 0.0
    %487 = vmatprep.subr.mxu0 0.0
    %488 = vmatpush1.msra.mxu0 0.0
    %489 = vmatprep.subr.mxu0 0.0
    %490 = vmatpush1.msra.mxu0 0.0
    %491 = vmatprep.subr.mxu0 0.0
    %492 = vmatpush1.msra.mxu0 0.0
    %493 = vmatprep.mubr.f32.mxu0 0.0
    %494 = vmatmul.mubr.f32.gmra.mrb[0].mxu0 %v390
    %v495 = vpop.f32.mrb[0].mxu0
    %v496 = vadd.f32 0.0, %v495
    %v497 = vpop.f32.mrb[0].mxu0
    %498 = vmatprep.mubr.f32.mxu0 0.0
    %499 = vmatmul.mubr.f32.gmra.mrb[0].mxu0 %v395
    %v500 = vpop.f32.mrb[0].mxu0
    %v501 = vadd.f32 0.0, %v500
    %v502 = vpop.f32.mrb[0].mxu0
    %503 = vmatprep.mubr.f32.mxu0 0.0
    %504 = vmatmul.mubr.f32.gmra.mrb[0].mxu0 %v400
    %v505 = vpop.f32.mrb[0].mxu0
    %v506 = vadd.f32 0.0, %v505
    %v507 = vpop.f32.mrb[0].mxu0
    %508 = vmatprep.mubr.f32.mxu0 0.0
    %509 = vmatmul.mubr.f32.gmra.mrb[0].mxu0 %v405
    %v510 = vpop.f32.mrb[0].mxu0
    %v511 = vadd.f32 0.0, %v510
    %v512 = vpop.f32.mrb[0].mxu0
    %513 = vmatprep.mubr.f32.mxu0 0.0
    %514 = vmatmul.mubr.f32.gmra.mrb[0].mxu0 %v410
    %v515 = vpop.f32.mrb[0].mxu0
    %v516 = vadd.f32 0.0, %v515
    %v517 = vpop.f32.mrb[0].mxu0
    %518 = vdwg.mxu0
    %v519 = vadd.f32 %v297, %v496
    %v520 = vadd.f32 %v297, %v501
    %v521 = vadd.f32 %v297, %v506
    %v522 = vadd.f32 %v297, %v511
    %v523 = vadd.f32 %v297, %v516
    %s524 = scalar_lea.vmem [#allocation2], 40
    %v525 = vld [vmem:[%s524] sm:$0xff]
    %v526 = vld [vmem:[%s524 + $0x8] sm:$0xff]
    %v527 = vld [vmem:[%s524 + $0x10] sm:$0xff]
    %v528 = vld [vmem:[%s524 + $0x18] sm:$0xff]
    %v529 = vld [vmem:[%s524 + $0x20] sm:$0x3]
    %v531 = vsel %vm303, %v525, 0
    %v534 = vsel %vm303, %v526, 0
    %v537 = vsel %vm303, %v527, 0
    %v540 = vsel %vm303, %v528, 0
    %v543 = vsel %vm303, %v529, 0
    %545 = vmatprep.subr.mxu0 0.0
    %546 = vmatpush1.msra.mxu0 %v285
    %547 = vmatprep.subr.mxu0 0.0
    %548 = vmatpush1.msra.mxu0 %v286
    %549 = vmatprep.subr.mxu0 0.0
    %550 = vmatpush1.msra.mxu0 %v287
    %551 = vmatprep.subr.mxu0 0.0
    %552 = vmatpush1.msra.mxu0 %v288
    %553 = vmatprep.subr.mxu0 0.0
    %554 = vmatpush1.msra.mxu0 %v321
    %555 = vmatprep.subr.mxu0 0.0
    %556 = vmatpush1.msra.mxu0 0.0
    %557 = vmatprep.subr.mxu0 0.0
    %558 = vmatpush1.msra.mxu0 0.0
    %559 = vmatprep.subr.mxu0 0.0
    %560 = vmatpush1.msra.mxu0 0.0
    %561 = vmatprep.subr.mxu0 0.0
    %562 = vmatpush1.msra.mxu0 0.0
    %563 = vmatprep.subr.mxu0 0.0
    %564 = vmatpush1.msra.mxu0 0.0
    %565 = vmatprep.subr.mxu0 0.0
    %566 = vmatpush1.msra.mxu0 0.0
    %567 = vmatprep.subr.mxu0 0.0
    %568 = vmatpush1.msra.mxu0 0.0
    %569 = vmatprep.subr.mxu0 0.0
    %570 = vmatpush1.msra.mxu0 0.0
    %571 = vmatprep.subr.mxu0 0.0
    %572 = vmatpush1.msra.mxu0 0.0
    %573 = vmatprep.subr.mxu0 0.0
    %574 = vmatpush1.msra.mxu0 0.0
    %575 = vmatprep.subr.mxu0 0.0
    %576 = vmatpush1.msra.mxu0 0.0
    %577 = vmatprep.subr.mxu0 0.0
    %578 = vmatpush1.msra.mxu0 0.0
    %579 = vmatprep.subr.mxu0 0.0
    %580 = vmatpush1.msra.mxu0 0.0
    %581 = vmatprep.subr.mxu0 0.0
    %582 = vmatpush1.msra.mxu0 0.0
    %583 = vmatprep.subr.mxu0 0.0
    %584 = vmatpush1.msra.mxu0 0.0
    %585 = vmatprep.subr.mxu0 0.0
    %586 = vmatpush1.msra.mxu0 0.0
    %587 = vmatprep.subr.mxu0 0.0
    %588 = vmatpush1.msra.mxu0 0.0
    %589 = vmatprep.subr.mxu0 0.0
    %590 = vmatpush1.msra.mxu0 0.0
    %591 = vmatprep.subr.mxu0 0.0
    %592 = vmatpush1.msra.mxu0 0.0
    %593 = vmatprep.subr.mxu0 0.0
    %594 = vmatpush1.msra.mxu0 0.0
    %595 = vmatprep.subr.mxu0 0.0
    %596 = vmatpush1.msra.mxu0 0.0
    %597 = vmatprep.subr.mxu0 0.0
    %598 = vmatpush1.msra.mxu0 0.0
    %599 = vmatprep.subr.mxu0 0.0
    %600 = vmatpush1.msra.mxu0 0.0
    %601 = vmatprep.subr.mxu0 0.0
    %602 = vmatpush1.msra.mxu0 0.0
    %603 = vmatprep.subr.mxu0 0.0
    %604 = vmatpush1.msra.mxu0 0.0
    %605 = vmatprep.subr.mxu0 0.0
    %606 = vmatpush1.msra.mxu0 0.0
    %607 = vmatprep.subr.mxu0 0.0
    %608 = vmatpush1.msra.mxu0 0.0
    %609 = vmatprep.mubr.f32.mxu0 0.0
    %610 = vmatmul.mubr.f32.gmra.mrb[0].mxu0 %v531
    %v611 = vpop.f32.mrb[0].mxu0
    %v612 = vadd.f32 0.0, %v611
    %v613 = vpop.f32.mrb[0].mxu0
    %614 = vmatprep.mubr.f32.mxu0 0.0
    %615 = vmatmul.mubr.f32.gmra.mrb[0].mxu0 %v534
    %v616 = vpop.f32.mrb[0].mxu0
    %v617 = vadd.f32 0.0, %v616
    %v618 = vpop.f32.mrb[0].mxu0
    %619 = vmatprep.mubr.f32.mxu0 0.0
    %620 = vmatmul.mubr.f32.gmra.mrb[0].mxu0 %v537
    %v621 = vpop.f32.mrb[0].mxu0
    %v622 = vadd.f32 0.0, %v621
    %v623 = vpop.f32.mrb[0].mxu0
    %624 = vmatprep.mubr.f32.mxu0 0.0
    %625 = vmatmul.mubr.f32.gmra.mrb[0].mxu0 %v540
    %v626 = vpop.f32.mrb[0].mxu0
    %v627 = vadd.f32 0.0, %v626
    %v628 = vpop.f32.mrb[0].mxu0
    %629 = vmatprep.mubr.f32.mxu0 0.0
    %630 = vmatmul.mubr.f32.gmra.mrb[0].mxu0 %v543
    %v631 = vpop.f32.mrb[0].mxu0
    %v632 = vadd.f32 0.0, %v631
    %v633 = vpop.f32.mrb[0].mxu0
    %634 = vdwg.mxu0
    %s635 = scalar_lea.vmem [#allocation5], 128
    %v636 = vld [vmem:[%s635] sm:$0xff]
    %v637 = vld [vmem:[%s635 + $0x8] sm:$0xff]
    %v638 = vld [vmem:[%s635 + $0x10] sm:$0xff]
    %v639 = vld [vmem:[%s635 + $0x18] sm:$0xff]
    %v640 = vld [vmem:[%s635 + $0x20] sm:$0xff]
    %v641 = vld [vmem:[%s635 + $0x28] sm:$0xff]
    %v642 = vld [vmem:[%s635 + $0x30] sm:$0xff]
    %v643 = vld [vmem:[%s635 + $0x38] sm:$0xff]
    %v644 = vld [vmem:[%s635 + $0x40] sm:$0xff]
    %v645 = vld [vmem:[%s635 + $0x48] sm:$0xff]
    %v646 = vld [vmem:[%s635 + $0x50] sm:$0xff]
    %v647 = vld [vmem:[%s635 + $0x58] sm:$0xff]
    %v648 = vld [vmem:[%s635 + $0x60] sm:$0xff]
    %v649 = vld [vmem:[%s635 + $0x68] sm:$0xff]
    %v650 = vld [vmem:[%s635 + $0x70] sm:$0xff]
    %v651 = vld [vmem:[%s635 + $0x78] sm:$0xff]
    %652 = vmatprep.subr.mxu0 0.0
    %653 = vmatpush1.msra.mxu0 %v636
    %654 = vmatprep.subr.mxu0 0.0
    %655 = vmatpush1.msra.mxu0 %v637
    %656 = vmatprep.subr.mxu0 0.0
    %657 = vmatpush1.msra.mxu0 %v638
    %658 = vmatprep.subr.mxu0 0.0
    %659 = vmatpush1.msra.mxu0 %v639
    %660 = vmatprep.subr.mxu0 0.0
    %661 = vmatpush1.msra.mxu0 %v640
    %662 = vmatprep.subr.mxu0 0.0
    %663 = vmatpush1.msra.mxu0 %v641
    %664 = vmatprep.subr.mxu0 0.0
    %665 = vmatpush1.msra.mxu0 %v642
    %666 = vmatprep.subr.mxu0 0.0
    %667 = vmatpush1.msra.mxu0 %v643
    %668 = vmatprep.subr.mxu0 0.0
    %669 = vmatpush1.msra.mxu0 %v644
    %670 = vmatprep.subr.mxu0 0.0
    %671 = vmatpush1.msra.mxu0 %v645
    %672 = vmatprep.subr.mxu0 0.0
    %673 = vmatpush1.msra.mxu0 %v646
    %674 = vmatprep.subr.mxu0 0.0
    %675 = vmatpush1.msra.mxu0 %v647
    %676 = vmatprep.subr.mxu0 0.0
    %677 = vmatpush1.msra.mxu0 %v648
    %678 = vmatprep.subr.mxu0 0.0
    %679 = vmatpush1.msra.mxu0 %v649
    %680 = vmatprep.subr.mxu0 0.0
    %681 = vmatpush1.msra.mxu0 %v650
    %682 = vmatprep.subr.mxu0 0.0
    %683 = vmatpush1.msra.mxu0 %v651
    %684 = vmatprep.subr.mxu0 0.0
    %685 = vmatpush1.msra.mxu0 0.0
    %686 = vmatprep.subr.mxu0 0.0
    %687 = vmatpush1.msra.mxu0 0.0
    %688 = vmatprep.subr.mxu0 0.0
    %689 = vmatpush1.msra.mxu0 0.0
    %690 = vmatprep.subr.mxu0 0.0
    %691 = vmatpush1.msra.mxu0 0.0
    %692 = vmatprep.subr.mxu0 0.0
    %693 = vmatpush1.msra.mxu0 0.0
    %694 = vmatprep.subr.mxu0 0.0
    %695 = vmatpush1.msra.mxu0 0.0
    %696 = vmatprep.subr.mxu0 0.0
    %697 = vmatpush1.msra.mxu0 0.0
    %698 = vmatprep.subr.mxu0 0.0
    %699 = vmatpush1.msra.mxu0 0.0
    %700 = vmatprep.subr.mxu0 0.0
    %701 = vmatpush1.msra.mxu0 0.0
    %702 = vmatprep.subr.mxu0 0.0
    %703 = vmatpush1.msra.mxu0 0.0
    %704 = vmatprep.subr.mxu0 0.0
    %705 = vmatpush1.msra.mxu0 0.0
    %706 = vmatprep.subr.mxu0 0.0
    %707 = vmatpush1.msra.mxu0 0.0
    %708 = vmatprep.subr.mxu0 0.0
    %709 = vmatpush1.msra.mxu0 0.0
    %710 = vmatprep.subr.mxu0 0.0
    %711 = vmatpush1.msra.mxu0 0.0
    %712 = vmatprep.subr.mxu0 0.0
    %713 = vmatpush1.msra.mxu0 0.0
    %714 = vmatprep.subr.mxu0 0.0
    %715 = vmatpush1.msra.mxu0 0.0
    %716 = vmatprep.mubr.f32.mxu0 0.0
    %717 = vmatmul.mubr.f32.gmra.mrb[0].mxu0 %v612
    %v718 = vpop.f32.mrb[0].mxu0
    %v719 = vadd.f32 0.0, %v718
    %v720 = vpop.f32.mrb[0].mxu0
    %721 = vmatprep.mubr.f32.mxu0 0.0
    %722 = vmatmul.mubr.f32.gmra.mrb[0].mxu0 %v617
    %v723 = vpop.f32.mrb[0].mxu0
    %v724 = vadd.f32 0.0, %v723
    %v725 = vpop.f32.mrb[0].mxu0
    %726 = vmatprep.mubr.f32.mxu0 0.0
    %727 = vmatmul.mubr.f32.gmra.mrb[0].mxu0 %v622
    %v728 = vpop.f32.mrb[0].mxu0
    %v729 = vadd.f32 0.0, %v728
    %v730 = vpop.f32.mrb[0].mxu0
    %731 = vmatprep.mubr.f32.mxu0 0.0
    %732 = vmatmul.mubr.f32.gmra.mrb[0].mxu0 %v627
    %v733 = vpop.f32.mrb[0].mxu0
    %v734 = vadd.f32 0.0, %v733
    %v735 = vpop.f32.mrb[0].mxu0
    %736 = vmatprep.mubr.f32.mxu0 0.0
    %737 = vmatmul.mubr.f32.gmra.mrb[0].mxu0 %v632
    %v738 = vpop.f32.mrb[0].mxu0
    %v739 = vadd.f32 0.0, %v738
    %v740 = vpop.f32.mrb[0].mxu0
    %741 = vdwg.mxu0
    %v742 = vadd.f32 %v519, %v719
    %v743 = vadd.f32 %v520, %v724
    %v744 = vadd.f32 %v521, %v729
    %v745 = vadd.f32 %v522, %v734
    %v746 = vadd.f32 %v523, %v739
    %s747 = scalar_lea.vmem [#allocation2], 80
    %v748 = vld [vmem:[%s747] sm:$0xff]
    %v749 = vld [vmem:[%s747 + $0x8] sm:$0xff]
    %v750 = vld [vmem:[%s747 + $0x10] sm:$0xff]
    %v751 = vld [vmem:[%s747 + $0x18] sm:$0xff]
    %v752 = vld [vmem:[%s747 + $0x20] sm:$0x3]
    %v754 = vsel %vm303, %v748, 0
    %v757 = vsel %vm303, %v749, 0
    %v760 = vsel %vm303, %v750, 0
    %v763 = vsel %vm303, %v751, 0
    %v766 = vsel %vm303, %v752, 0
    %768 = vmatprep.subr.mxu0 0.0
    %769 = vmatpush1.msra.mxu0 %v285
    %770 = vmatprep.subr.mxu0 0.0
    %771 = vmatpush1.msra.mxu0 %v286
    %772 = vmatprep.subr.mxu0 0.0
    %773 = vmatpush1.msra.mxu0 %v287
    %774 = vmatprep.subr.mxu0 0.0
    %775 = vmatpush1.msra.mxu0 %v288
    %776 = vmatprep.subr.mxu0 0.0
    %777 = vmatpush1.msra.mxu0 %v321
    %778 = vmatprep.subr.mxu0 0.0
    %779 = vmatpush1.msra.mxu0 0.0
    %780 = vmatprep.subr.mxu0 0.0
    %781 = vmatpush1.msra.mxu0 0.0
    %782 = vmatprep.subr.mxu0 0.0
    %783 = vmatpush1.msra.mxu0 0.0
    %784 = vmatprep.subr.mxu0 0.0
    %785 = vmatpush1.msra.mxu0 0.0
    %786 = vmatprep.subr.mxu0 0.0
    %787 = vmatpush1.msra.mxu0 0.0
    %788 = vmatprep.subr.mxu0 0.0
    %789 = vmatpush1.msra.mxu0 0.0
    %790 = vmatprep.subr.mxu0 0.0
    %791 = vmatpush1.msra.mxu0 0.0
    %792 = vmatprep.subr.mxu0 0.0
    %793 = vmatpush1.msra.mxu0 0.0
    %794 = vmatprep.subr.mxu0 0.0
    %795 = vmatpush1.msra.mxu0 0.0
    %796 = vmatprep.subr.mxu0 0.0
    %797 = vmatpush1.msra.mxu0 0.0
    %798 = vmatprep.subr.mxu0 0.0
    %799 = vmatpush1.msra.mxu0 0.0
    %800 = vmatprep.subr.mxu0 0.0
    %801 = vmatpush1.msra.mxu0 0.0
    %802 = vmatprep.subr.mxu0 0.0
    %803 = vmatpush1.msra.mxu0 0.0
    %804 = vmatprep.subr.mxu0 0.0
    %805 = vmatpush1.msra.mxu0 0.0
    %806 = vmatprep.subr.mxu0 0.0
    %807 = vmatpush1.msra.mxu0 0.0
    %808 = vmatprep.subr.mxu0 0.0
    %809 = vmatpush1.msra.mxu0 0.0
    %810 = vmatprep.subr.mxu0 0.0
    %811 = vmatpush1.msra.mxu0 0.0
    %812 = vmatprep.subr.mxu0 0.0
    %813 = vmatpush1.msra.mxu0 0.0
    %814 = vmatprep.subr.mxu0 0.0
    %815 = vmatpush1.msra.mxu0 0.0
    %816 = vmatprep.subr.mxu0 0.0
    %817 = vmatpush1.msra.mxu0 0.0
    %818 = vmatprep.subr.mxu0 0.0
    %819 = vmatpush1.msra.mxu0 0.0
    %820 = vmatprep.subr.mxu0 0.0
    %821 = vmatpush1.msra.mxu0 0.0
    %822 = vmatprep.subr.mxu0 0.0
    %823 = vmatpush1.msra.mxu0 0.0
    %824 = vmatprep.subr.mxu0 0.0
    %825 = vmatpush1.msra.mxu0 0.0
    %826 = vmatprep.subr.mxu0 0.0
    %827 = vmatpush1.msra.mxu0 0.0
    %828 = vmatprep.subr.mxu0 0.0
    %829 = vmatpush1.msra.mxu0 0.0
    %830 = vmatprep.subr.mxu0 0.0
    %831 = vmatpush1.msra.mxu0 0.0
    %832 = vmatprep.mubr.f32.mxu0 0.0
    %833 = vmatmul.mubr.f32.gmra.mrb[0].mxu0 %v754
    %v834 = vpop.f32.mrb[0].mxu0
    %v835 = vadd.f32 0.0, %v834
    %v836 = vpop.f32.mrb[0].mxu0
    %837 = vmatprep.mubr.f32.mxu0 0.0
    %838 = vmatmul.mubr.f32.gmra.mrb[0].mxu0 %v757
    %v839 = vpop.f32.mrb[0].mxu0
    %v840 = vadd.f32 0.0, %v839
    %v841 = vpop.f32.mrb[0].mxu0
    %842 = vmatprep.mubr.f32.mxu0 0.0
    %843 = vmatmul.mubr.f32.gmra.mrb[0].mxu0 %v760
    %v844 = vpop.f32.mrb[0].mxu0
    %v845 = vadd.f32 0.0, %v844
    %v846 = vpop.f32.mrb[0].mxu0
    %847 = vmatprep.mubr.f32.mxu0 0.0
    %848 = vmatmul.mubr.f32.gmra.mrb[0].mxu0 %v763
    %v849 = vpop.f32.mrb[0].mxu0
    %v850 = vadd.f32 0.0, %v849
    %v851 = vpop.f32.mrb[0].mxu0
    %852 = vmatprep.mubr.f32.mxu0 0.0
    %853 = vmatmul.mubr.f32.gmra.mrb[0].mxu0 %v766
    %v854 = vpop.f32.mrb[0].mxu0
    %v855 = vadd.f32 0.0, %v854
    %v856 = vpop.f32.mrb[0].mxu0
    %857 = vdwg.mxu0
    %s858 = scalar_lea.vmem [#allocation5], 256
    %v859 = vld [vmem:[%s858] sm:$0xff]
    %v860 = vld [vmem:[%s858 + $0x8] sm:$0xff]
    %v861 = vld [vmem:[%s858 + $0x10] sm:$0xff]
    %v862 = vld [vmem:[%s858 + $0x18] sm:$0xff]
    %v863 = vld [vmem:[%s858 + $0x20] sm:$0xff]
    %v864 = vld [vmem:[%s858 + $0x28] sm:$0xff]
    %v865 = vld [vmem:[%s858 + $0x30] sm:$0xff]
    %v866 = vld [vmem:[%s858 + $0x38] sm:$0xff]
    %v867 = vld [vmem:[%s858 + $0x40] sm:$0xff]
    %v868 = vld [vmem:[%s858 + $0x48] sm:$0xff]
    %v869 = vld [vmem:[%s858 + $0x50] sm:$0xff]
    %v870 = vld [vmem:[%s858 + $0x58] sm:$0xff]
    %v871 = vld [vmem:[%s858 + $0x60] sm:$0xff]
    %v872 = vld [vmem:[%s858 + $0x68] sm:$0xff]
    %v873 = vld [vmem:[%s858 + $0x70] sm:$0xff]
    %v874 = vld [vmem:[%s858 + $0x78] sm:$0xff]
    %875 = vmatprep.subr.mxu0 0.0
    %876 = vmatpush1.msra.mxu0 %v859
    %877 = vmatprep.subr.mxu0 0.0
    %878 = vmatpush1.msra.mxu0 %v860
    %879 = vmatprep.subr.mxu0 0.0
    %880 = vmatpush1.msra.mxu0 %v861
    %881 = vmatprep.subr.mxu0 0.0
    %882 = vmatpush1.msra.mxu0 %v862
    %883 = vmatprep.subr.mxu0 0.0
    %884 = vmatpush1.msra.mxu0 %v863
    %885 = vmatprep.subr.mxu0 0.0
    %886 = vmatpush1.msra.mxu0 %v864
    %887 = vmatprep.subr.mxu0 0.0
    %888 = vmatpush1.msra.mxu0 %v865
    %889 = vmatprep.subr.mxu0 0.0
    %890 = vmatpush1.msra.mxu0 %v866
    %891 = vmatprep.subr.mxu0 0.0
    %892 = vmatpush1.msra.mxu0 %v867
    %893 = vmatprep.subr.mxu0 0.0
    %894 = vmatpush1.msra.mxu0 %v868
    %895 = vmatprep.subr.mxu0 0.0
    %896 = vmatpush1.msra.mxu0 %v869
    %897 = vmatprep.subr.mxu0 0.0
    %898 = vmatpush1.msra.mxu0 %v870
    %899 = vmatprep.subr.mxu0 0.0
    %900 = vmatpush1.msra.mxu0 %v871
    %901 = vmatprep.subr.mxu0 0.0
    %902 = vmatpush1.msra.mxu0 %v872
    %903 = vmatprep.subr.mxu0 0.0
    %904 = vmatpush1.msra.mxu0 %v873
    %905 = vmatprep.subr.mxu0 0.0
    %906 = vmatpush1.msra.mxu0 %v874
    %907 = vmatprep.subr.mxu0 0.0
    %908 = vmatpush1.msra.mxu0 0.0
    %909 = vmatprep.subr.mxu0 0.0
    %910 = vmatpush1.msra.mxu0 0.0
    %911 = vmatprep.subr.mxu0 0.0
    %912 = vmatpush1.msra.mxu0 0.0
    %913 = vmatprep.subr.mxu0 0.0
    %914 = vmatpush1.msra.mxu0 0.0
    %915 = vmatprep.subr.mxu0 0.0
    %916 = vmatpush1.msra.mxu0 0.0
    %917 = vmatprep.subr.mxu0 0.0
    %918 = vmatpush1.msra.mxu0 0.0
    %919 = vmatprep.subr.mxu0 0.0
    %920 = vmatpush1.msra.mxu0 0.0
    %921 = vmatprep.subr.mxu0 0.0
    %922 = vmatpush1.msra.mxu0 0.0
    %923 = vmatprep.subr.mxu0 0.0
    %924 = vmatpush1.msra.mxu0 0.0
    %925 = vmatprep.subr.mxu0 0.0
    %926 = vmatpush1.msra.mxu0 0.0
    %927 = vmatprep.subr.mxu0 0.0
    %928 = vmatpush1.msra.mxu0 0.0
    %929 = vmatprep.subr.mxu0 0.0
    %930 = vmatpush1.msra.mxu0 0.0
    %931 = vmatprep.subr.mxu0 0.0
    %932 = vmatpush1.msra.mxu0 0.0
    %933 = vmatprep.subr.mxu0 0.0
    %934 = vmatpush1.msra.mxu0 0.0
    %935 = vmatprep.subr.mxu0 0.0
    %936 = vmatpush1.msra.mxu0 0.0
    %937 = vmatprep.subr.mxu0 0.0
    %938 = vmatpush1.msra.mxu0 0.0
    %939 = vmatprep.mubr.f32.mxu0 0.0
    %940 = vmatmul.mubr.f32.gmra.mrb[0].mxu0 %v835
    %v941 = vpop.f32.mrb[0].mxu0
    %v942 = vadd.f32 0.0, %v941
    %v943 = vpop.f32.mrb[0].mxu0
    %944 = vmatprep.mubr.f32.mxu0 0.0
    %945 = vmatmul.mubr.f32.gmra.mrb[0].mxu0 %v840
    %v946 = vpop.f32.mrb[0].mxu0
    %v947 = vadd.f32 0.0, %v946
    %v948 = vpop.f32.mrb[0].mxu0
    %949 = vmatprep.mubr.f32.mxu0 0.0
    %950 = vmatmul.mubr.f32.gmra.mrb[0].mxu0 %v845
    %v951 = vpop.f32.mrb[0].mxu0
    %v952 = vadd.f32 0.0, %v951
    %v953 = vpop.f32.mrb[0].mxu0
    %954 = vmatprep.mubr.f32.mxu0 0.0
    %955 = vmatmul.mubr.f32.gmra.mrb[0].mxu0 %v850
    %v956 = vpop.f32.mrb[0].mxu0
    %v957 = vadd.f32 0.0, %v956
    %v958 = vpop.f32.mrb[0].mxu0
    %959 = vmatprep.mubr.f32.mxu0 0.0
    %960 = vmatmul.mubr.f32.gmra.mrb[0].mxu0 %v855
    %v961 = vpop.f32.mrb[0].mxu0
    %v962 = vadd.f32 0.0, %v961
    %v963 = vpop.f32.mrb[0].mxu0
    %964 = vdwg.mxu0
    %v965 = vadd.f32 %v742, %v942
    %v966 = vadd.f32 %v743, %v947
    %v967 = vadd.f32 %v744, %v952
    %v968 = vadd.f32 %v745, %v957
    %v969 = vadd.f32 %v746, %v962
    %s970 = scalar_lea.vmem [#allocation2], 120
    %v971 = vld [vmem:[%s970] sm:$0xff]
    %v972 = vld [vmem:[%s970 + $0x8] sm:$0xff]
    %v973 = vld [vmem:[%s970 + $0x10] sm:$0xff]
    %v974 = vld [vmem:[%s970 + $0x18] sm:$0xff]
    %v975 = vld [vmem:[%s970 + $0x20] sm:$0x3]
    %v977 = vsel %vm303, %v971, 0
    %v980 = vsel %vm303, %v972, 0
    %v983 = vsel %vm303, %v973, 0
    %v986 = vsel %vm303, %v974, 0
    %v989 = vsel %vm303, %v975, 0
    %991 = vmatprep.subr.mxu0 0.0
    %992 = vmatpush1.msra.mxu0 %v285
    %993 = vmatprep.subr.mxu0 0.0
    %994 = vmatpush1.msra.mxu0 %v286
    %995 = vmatprep.subr.mxu0 0.0
    %996 = vmatpush1.msra.mxu0 %v287
    %997 = vmatprep.subr.mxu0 0.0
    %998 = vmatpush1.msra.mxu0 %v288
    %999 = vmatprep.subr.mxu0 0.0
    %1000 = vmatpush1.msra.mxu0 %v321
    %1001 = vmatprep.subr.mxu0 0.0
    %1002 = vmatpush1.msra.mxu0 0.0
    %1003 = vmatprep.subr.mxu0 0.0
    %1004 = vmatpush1.msra.mxu0 0.0
    %1005 = vmatprep.subr.mxu0 0.0
    %1006 = vmatpush1.msra.mxu0 0.0
    %1007 = vmatprep.subr.mxu0 0.0
    %1008 = vmatpush1.msra.mxu0 0.0
    %1009 = vmatprep.subr.mxu0 0.0
    %1010 = vmatpush1.msra.mxu0 0.0
    %1011 = vmatprep.subr.mxu0 0.0
    %1012 = vmatpush1.msra.mxu0 0.0
    %1013 = vmatprep.subr.mxu0 0.0
    %1014 = vmatpush1.msra.mxu0 0.0
    %1015 = vmatprep.subr.mxu0 0.0
    %1016 = vmatpush1.msra.mxu0 0.0
    %1017 = vmatprep.subr.mxu0 0.0
    %1018 = vmatpush1.msra.mxu0 0.0
    %1019 = vmatprep.subr.mxu0 0.0
    %1020 = vmatpush1.msra.mxu0 0.0
    %1021 = vmatprep.subr.mxu0 0.0
    %1022 = vmatpush1.msra.mxu0 0.0
    %1023 = vmatprep.subr.mxu0 0.0
    %1024 = vmatpush1.msra.mxu0 0.0
    %1025 = vmatprep.subr.mxu0 0.0
    %1026 = vmatpush1.msra.mxu0 0.0
    %1027 = vmatprep.subr.mxu0 0.0
    %1028 = vmatpush1.msra.mxu0 0.0
    %1029 = vmatprep.subr.mxu0 0.0
    %1030 = vmatpush1.msra.mxu0 0.0
    %1031 = vmatprep.subr.mxu0 0.0
    %1032 = vmatpush1.msra.mxu0 0.0
    %1033 = vmatprep.subr.mxu0 0.0
    %1034 = vmatpush1.msra.mxu0 0.0
    %1035 = vmatprep.subr.mxu0 0.0
    %1036 = vmatpush1.msra.mxu0 0.0
    %1037 = vmatprep.subr.mxu0 0.0
    %1038 = vmatpush1.msra.mxu0 0.0
    %1039 = vmatprep.subr.mxu0 0.0
    %1040 = vmatpush1.msra.mxu0 0.0
    %1041 = vmatprep.subr.mxu0 0.0
    %1042 = vmatpush1.msra.mxu0 0.0
    %1043 = vmatprep.subr.mxu0 0.0
    %1044 = vmatpush1.msra.mxu0 0.0
    %1045 = vmatprep.subr.mxu0 0.0
    %1046 = vmatpush1.msra.mxu0 0.0
    %1047 = vmatprep.subr.mxu0 0.0
    %1048 = vmatpush1.msra.mxu0 0.0
    %1049 = vmatprep.subr.mxu0 0.0
    %1050 = vmatpush1.msra.mxu0 0.0
    %1051 = vmatprep.subr.mxu0 0.0
    %1052 = vmatpush1.msra.mxu0 0.0
    %1053 = vmatprep.subr.mxu0 0.0
    %1054 = vmatpush1.msra.mxu0 0.0
    %1055 = vmatprep.mubr.f32.mxu0 0.0
    %1056 = vmatmul.mubr.f32.gmra.mrb[0].mxu0 %v977
    %v1057 = vpop.f32.mrb[0].mxu0
    %v1058 = vadd.f32 0.0, %v1057
    %v1059 = vpop.f32.mrb[0].mxu0
    %1060 = vmatprep.mubr.f32.mxu0 0.0
    %1061 = vmatmul.mubr.f32.gmra.mrb[0].mxu0 %v980
    %v1062 = vpop.f32.mrb[0].mxu0
    %v1063 = vadd.f32 0.0, %v1062
    %v1064 = vpop.f32.mrb[0].mxu0
    %1065 = vmatprep.mubr.f32.mxu0 0.0
    %1066 = vmatmul.mubr.f32.gmra.mrb[0].mxu0 %v983
    %v1067 = vpop.f32.mrb[0].mxu0
    %v1068 = vadd.f32 0.0, %v1067
    %v1069 = vpop.f32.mrb[0].mxu0
    %1070 = vmatprep.mubr.f32.mxu0 0.0
    %1071 = vmatmul.mubr.f32.gmra.mrb[0].mxu0 %v986
    %v1072 = vpop.f32.mrb[0].mxu0
    %v1073 = vadd.f32 0.0, %v1072
    %v1074 = vpop.f32.mrb[0].mxu0
    %1075 = vmatprep.mubr.f32.mxu0 0.0
    %1076 = vmatmul.mubr.f32.gmra.mrb[0].mxu0 %v989
    %v1077 = vpop.f32.mrb[0].mxu0
    %v1078 = vadd.f32 0.0, %v1077
    %v1079 = vpop.f32.mrb[0].mxu0
    %1080 = vdwg.mxu0
    %s1081 = scalar_lea.vmem [#allocation5], 384
    %v1082 = vld [vmem:[%s1081] sm:$0xff]
    %v1083 = vld [vmem:[%s1081 + $0x8] sm:$0xff]
    %v1084 = vld [vmem:[%s1081 + $0x10] sm:$0xff]
    %v1085 = vld [vmem:[%s1081 + $0x18] sm:$0xff]
    %v1086 = vld [vmem:[%s1081 + $0x20] sm:$0xff]
    %v1087 = vld [vmem:[%s1081 + $0x28] sm:$0xff]
    %v1088 = vld [vmem:[%s1081 + $0x30] sm:$0xff]
    %v1089 = vld [vmem:[%s1081 + $0x38] sm:$0xff]
    %v1090 = vld [vmem:[%s1081 + $0x40] sm:$0xff]
    %v1091 = vld [vmem:[%s1081 + $0x48] sm:$0xff]
    %v1092 = vld [vmem:[%s1081 + $0x50] sm:$0xff]
    %v1093 = vld [vmem:[%s1081 + $0x58] sm:$0xff]
    %v1094 = vld [vmem:[%s1081 + $0x60] sm:$0xff]
    %v1095 = vld [vmem:[%s1081 + $0x68] sm:$0xff]
    %v1096 = vld [vmem:[%s1081 + $0x70] sm:$0xff]
    %v1097 = vld [vmem:[%s1081 + $0x78] sm:$0xff]
    %1098 = vmatprep.subr.mxu0 0.0
    %1099 = vmatpush1.msra.mxu0 %v1082
    %1100 = vmatprep.subr.mxu0 0.0
    %1101 = vmatpush1.msra.mxu0 %v1083
    %1102 = vmatprep.subr.mxu0 0.0
    %1103 = vmatpush1.msra.mxu0 %v1084
    %1104 = vmatprep.subr.mxu0 0.0
    %1105 = vmatpush1.msra.mxu0 %v1085
    %1106 = vmatprep.subr.mxu0 0.0
    %1107 = vmatpush1.msra.mxu0 %v1086
    %1108 = vmatprep.subr.mxu0 0.0
    %1109 = vmatpush1.msra.mxu0 %v1087
    %1110 = vmatprep.subr.mxu0 0.0
    %1111 = vmatpush1.msra.mxu0 %v1088
    %1112 = vmatprep.subr.mxu0 0.0
    %1113 = vmatpush1.msra.mxu0 %v1089
    %1114 = vmatprep.subr.mxu0 0.0
    %1115 = vmatpush1.msra.mxu0 %v1090
    %1116 = vmatprep.subr.mxu0 0.0
    %1117 = vmatpush1.msra.mxu0 %v1091
    %1118 = vmatprep.subr.mxu0 0.0
    %1119 = vmatpush1.msra.mxu0 %v1092
    %1120 = vmatprep.subr.mxu0 0.0
    %1121 = vmatpush1.msra.mxu0 %v1093
    %1122 = vmatprep.subr.mxu0 0.0
    %1123 = vmatpush1.msra.mxu0 %v1094
    %1124 = vmatprep.subr.mxu0 0.0
    %1125 = vmatpush1.msra.mxu0 %v1095
    %1126 = vmatprep.subr.mxu0 0.0
    %1127 = vmatpush1.msra.mxu0 %v1096
    %1128 = vmatprep.subr.mxu0 0.0
    %1129 = vmatpush1.msra.mxu0 %v1097
    %1130 = vmatprep.subr.mxu0 0.0
    %1131 = vmatpush1.msra.mxu0 0.0
    %1132 = vmatprep.subr.mxu0 0.0
    %1133 = vmatpush1.msra.mxu0 0.0
    %1134 = vmatprep.subr.mxu0 0.0
    %1135 = vmatpush1.msra.mxu0 0.0
    %1136 = vmatprep.subr.mxu0 0.0
    %1137 = vmatpush1.msra.mxu0 0.0
    %1138 = vmatprep.subr.mxu0 0.0
    %1139 = vmatpush1.msra.mxu0 0.0
    %1140 = vmatprep.subr.mxu0 0.0
    %1141 = vmatpush1.msra.mxu0 0.0
    %1142 = vmatprep.subr.mxu0 0.0
    %1143 = vmatpush1.msra.mxu0 0.0
    %1144 = vmatprep.subr.mxu0 0.0
    %1145 = vmatpush1.msra.mxu0 0.0
    %1146 = vmatprep.subr.mxu0 0.0
    %1147 = vmatpush1.msra.mxu0 0.0
    %1148 = vmatprep.subr.mxu0 0.0
    %1149 = vmatpush1.msra.mxu0 0.0
    %1150 = vmatprep.subr.mxu0 0.0
    %1151 = vmatpush1.msra.mxu0 0.0
    %1152 = vmatprep.subr.mxu0 0.0
    %1153 = vmatpush1.msra.mxu0 0.0
    %1154 = vmatprep.subr.mxu0 0.0
    %1155 = vmatpush1.msra.mxu0 0.0
    %1156 = vmatprep.subr.mxu0 0.0
    %1157 = vmatpush1.msra.mxu0 0.0
    %1158 = vmatprep.subr.mxu0 0.0
    %1159 = vmatpush1.msra.mxu0 0.0
    %1160 = vmatprep.subr.mxu0 0.0
    %1161 = vmatpush1.msra.mxu0 0.0
    %1162 = vmatprep.mubr.f32.mxu0 0.0
    %1163 = vmatmul.mubr.f32.gmra.mrb[0].mxu0 %v1058
    %v1164 = vpop.f32.mrb[0].mxu0
    %v1165 = vadd.f32 0.0, %v1164
    %v1166 = vpop.f32.mrb[0].mxu0
    %1167 = vmatprep.mubr.f32.mxu0 0.0
    %1168 = vmatmul.mubr.f32.gmra.mrb[0].mxu0 %v1063
    %v1169 = vpop.f32.mrb[0].mxu0
    %v1170 = vadd.f32 0.0, %v1169
    %v1171 = vpop.f32.mrb[0].mxu0
    %1172 = vmatprep.mubr.f32.mxu0 0.0
    %1173 = vmatmul.mubr.f32.gmra.mrb[0].mxu0 %v1068
    %v1174 = vpop.f32.mrb[0].mxu0
    %v1175 = vadd.f32 0.0, %v1174
    %v1176 = vpop.f32.mrb[0].mxu0
    %1177 = vmatprep.mubr.f32.mxu0 0.0
    %1178 = vmatmul.mubr.f32.gmra.mrb[0].mxu0 %v1073
    %v1179 = vpop.f32.mrb[0].mxu0
    %v1180 = vadd.f32 0.0, %v1179
    %v1181 = vpop.f32.mrb[0].mxu0
    %1182 = vmatprep.mubr.f32.mxu0 0.0
    %1183 = vmatmul.mubr.f32.gmra.mrb[0].mxu0 %v1078
    %v1184 = vpop.f32.mrb[0].mxu0
    %v1185 = vadd.f32 0.0, %v1184
    %v1186 = vpop.f32.mrb[0].mxu0
    %1187 = vdwg.mxu0
    %v1188 = vadd.f32 %v965, %v1165
    %v1189 = vadd.f32 %v966, %v1170
    %v1190 = vadd.f32 %v967, %v1175
    %v1191 = vadd.f32 %v968, %v1180
    %v1192 = vadd.f32 %v969, %v1185
    %s1193 = scalar_lea.vmem [#allocation2], 160
    %v1194 = vld [vmem:[%s1193] sm:$0xff]
    %v1195 = vld [vmem:[%s1193 + $0x8] sm:$0xff]
    %v1196 = vld [vmem:[%s1193 + $0x10] sm:$0xff]
    %v1197 = vld [vmem:[%s1193 + $0x18] sm:$0xff]
    %v1198 = vld [vmem:[%s1193 + $0x20] sm:$0x3]
    %v1200 = vsel %vm303, %v1194, 0
    %v1203 = vsel %vm303, %v1195, 0
    %v1206 = vsel %vm303, %v1196, 0
    %v1209 = vsel %vm303, %v1197, 0
    %v1212 = vsel %vm303, %v1198, 0
    %1214 = vmatprep.subr.mxu0 0.0
    %1215 = vmatpush1.msra.mxu0 %v285
    %1216 = vmatprep.subr.mxu0 0.0
    %1217 = vmatpush1.msra.mxu0 %v286
    %1218 = vmatprep.subr.mxu0 0.0
    %1219 = vmatpush1.msra.mxu0 %v287
    %1220 = vmatprep.subr.mxu0 0.0
    %1221 = vmatpush1.msra.mxu0 %v288
    %1222 = vmatprep.subr.mxu0 0.0
    %1223 = vmatpush1.msra.mxu0 %v321
    %1224 = vmatprep.subr.mxu0 0.0
    %1225 = vmatpush1.msra.mxu0 0.0
    %1226 = vmatprep.subr.mxu0 0.0
    %1227 = vmatpush1.msra.mxu0 0.0
    %1228 = vmatprep.subr.mxu0 0.0
    %1229 = vmatpush1.msra.mxu0 0.0
    %1230 = vmatprep.subr.mxu0 0.0
    %1231 = vmatpush1.msra.mxu0 0.0
    %1232 = vmatprep.subr.mxu0 0.0
    %1233 = vmatpush1.msra.mxu0 0.0
    %1234 = vmatprep.subr.mxu0 0.0
    %1235 = vmatpush1.msra.mxu0 0.0
    %1236 = vmatprep.subr.mxu0 0.0
    %1237 = vmatpush1.msra.mxu0 0.0
    %1238 = vmatprep.subr.mxu0 0.0
    %1239 = vmatpush1.msra.mxu0 0.0
    %1240 = vmatprep.subr.mxu0 0.0
    %1241 = vmatpush1.msra.mxu0 0.0
    %1242 = vmatprep.subr.mxu0 0.0
    %1243 = vmatpush1.msra.mxu0 0.0
    %1244 = vmatprep.subr.mxu0 0.0
    %1245 = vmatpush1.msra.mxu0 0.0
    %1246 = vmatprep.subr.mxu0 0.0
    %1247 = vmatpush1.msra.mxu0 0.0
    %1248 = vmatprep.subr.mxu0 0.0
    %1249 = vmatpush1.msra.mxu0 0.0
    %1250 = vmatprep.subr.mxu0 0.0
    %1251 = vmatpush1.msra.mxu0 0.0
    %1252 = vmatprep.subr.mxu0 0.0
    %1253 = vmatpush1.msra.mxu0 0.0
    %1254 = vmatprep.subr.mxu0 0.0
    %1255 = vmatpush1.msra.mxu0 0.0
    %1256 = vmatprep.subr.mxu0 0.0
    %1257 = vmatpush1.msra.mxu0 0.0
    %1258 = vmatprep.subr.mxu0 0.0
    %1259 = vmatpush1.msra.mxu0 0.0
    %1260 = vmatprep.subr.mxu0 0.0
    %1261 = vmatpush1.msra.mxu0 0.0
    %1262 = vmatprep.subr.mxu0 0.0
    %1263 = vmatpush1.msra.mxu0 0.0
    %1264 = vmatprep.subr.mxu0 0.0
    %1265 = vmatpush1.msra.mxu0 0.0
    %1266 = vmatprep.subr.mxu0 0.0
    %1267 = vmatpush1.msra.mxu0 0.0
    %1268 = vmatprep.subr.mxu0 0.0
    %1269 = vmatpush1.msra.mxu0 0.0
    %1270 = vmatprep.subr.mxu0 0.0
    %1271 = vmatpush1.msra.mxu0 0.0
    %1272 = vmatprep.subr.mxu0 0.0
    %1273 = vmatpush1.msra.mxu0 0.0
    %1274 = vmatprep.subr.mxu0 0.0
    %1275 = vmatpush1.msra.mxu0 0.0
    %1276 = vmatprep.subr.mxu0 0.0
    %1277 = vmatpush1.msra.mxu0 0.0
    %1278 = vmatprep.mubr.f32.mxu0 0.0
    %1279 = vmatmul.mubr.f32.gmra.mrb[0].mxu0 %v1200
    %v1280 = vpop.f32.mrb[0].mxu0
    %v1281 = vadd.f32 0.0, %v1280
    %v1282 = vpop.f32.mrb[0].mxu0
    %1283 = vmatprep.mubr.f32.mxu0 0.0
    %1284 = vmatmul.mubr.f32.gmra.mrb[0].mxu0 %v1203
    %v1285 = vpop.f32.mrb[0].mxu0
    %v1286 = vadd.f32 0.0, %v1285
    %v1287 = vpop.f32.mrb[0].mxu0
    %1288 = vmatprep.mubr.f32.mxu0 0.0
    %1289 = vmatmul.mubr.f32.gmra.mrb[0].mxu0 %v1206
    %v1290 = vpop.f32.mrb[0].mxu0
    %v1291 = vadd.f32 0.0, %v1290
    %v1292 = vpop.f32.mrb[0].mxu0
    %1293 = vmatprep.mubr.f32.mxu0 0.0
    %1294 = vmatmul.mubr.f32.gmra.mrb[0].mxu0 %v1209
    %v1295 = vpop.f32.mrb[0].mxu0
    %v1296 = vadd.f32 0.0, %v1295
    %v1297 = vpop.f32.mrb[0].mxu0
    %1298 = vmatprep.mubr.f32.mxu0 0.0
    %1299 = vmatmul.mubr.f32.gmra.mrb[0].mxu0 %v1212
    %v1300 = vpop.f32.mrb[0].mxu0
    %v1301 = vadd.f32 0.0, %v1300
    %v1302 = vpop.f32.mrb[0].mxu0
    %1303 = vdwg.mxu0
    %s1304 = scalar_lea.vmem [#allocation5], 512
    %v1305 = vld [vmem:[%s1304] sm:$0xff]
    %v1306 = vld [vmem:[%s1304 + $0x8] sm:$0xff]
    %v1307 = vld [vmem:[%s1304 + $0x10] sm:$0xff]
    %v1308 = vld [vmem:[%s1304 + $0x18] sm:$0xff]
    %v1309 = vld [vmem:[%s1304 + $0x20] sm:$0xff]
    %v1310 = vld [vmem:[%s1304 + $0x28] sm:$0xff]
    %v1311 = vld [vmem:[%s1304 + $0x30] sm:$0xff]
    %v1312 = vld [vmem:[%s1304 + $0x38] sm:$0xff]
    %v1313 = vld [vmem:[%s1304 + $0x40] sm:$0xff]
    %v1314 = vld [vmem:[%s1304 + $0x48] sm:$0xff]
    %v1315 = vld [vmem:[%s1304 + $0x50] sm:$0xff]
    %v1316 = vld [vmem:[%s1304 + $0x58] sm:$0xff]
    %v1317 = vld [vmem:[%s1304 + $0x60] sm:$0xff]
    %v1318 = vld [vmem:[%s1304 + $0x68] sm:$0xff]
    %v1319 = vld [vmem:[%s1304 + $0x70] sm:$0xff]
    %v1320 = vld [vmem:[%s1304 + $0x78] sm:$0xff]
    %1321 = vmatprep.subr.mxu0 0.0
    %1322 = vmatpush1.msra.mxu0 %v1305
    %1323 = vmatprep.subr.mxu0 0.0
    %1324 = vmatpush1.msra.mxu0 %v1306
    %1325 = vmatprep.subr.mxu0 0.0
    %1326 = vmatpush1.msra.mxu0 %v1307
    %1327 = vmatprep.subr.mxu0 0.0
    %1328 = vmatpush1.msra.mxu0 %v1308
    %1329 = vmatprep.subr.mxu0 0.0
    %1330 = vmatpush1.msra.mxu0 %v1309
    %1331 = vmatprep.subr.mxu0 0.0
    %1332 = vmatpush1.msra.mxu0 %v1310
    %1333 = vmatprep.subr.mxu0 0.0
    %1334 = vmatpush1.msra.mxu0 %v1311
    %1335 = vmatprep.subr.mxu0 0.0
    %1336 = vmatpush1.msra.mxu0 %v1312
    %1337 = vmatprep.subr.mxu0 0.0
    %1338 = vmatpush1.msra.mxu0 %v1313
    %1339 = vmatprep.subr.mxu0 0.0
    %1340 = vmatpush1.msra.mxu0 %v1314
    %1341 = vmatprep.subr.mxu0 0.0
    %1342 = vmatpush1.msra.mxu0 %v1315
    %1343 = vmatprep.subr.mxu0 0.0
    %1344 = vmatpush1.msra.mxu0 %v1316
    %1345 = vmatprep.subr.mxu0 0.0
    %1346 = vmatpush1.msra.mxu0 %v1317
    %1347 = vmatprep.subr.mxu0 0.0
    %1348 = vmatpush1.msra.mxu0 %v1318
    %1349 = vmatprep.subr.mxu0 0.0
    %1350 = vmatpush1.msra.mxu0 %v1319
    %1351 = vmatprep.subr.mxu0 0.0
    %1352 = vmatpush1.msra.mxu0 %v1320
    %1353 = vmatprep.subr.mxu0 0.0
    %1354 = vmatpush1.msra.mxu0 0.0
    %1355 = vmatprep.subr.mxu0 0.0
    %1356 = vmatpush1.msra.mxu0 0.0
    %1357 = vmatprep.subr.mxu0 0.0
    %1358 = vmatpush1.msra.mxu0 0.0
    %1359 = vmatprep.subr.mxu0 0.0
    %1360 = vmatpush1.msra.mxu0 0.0
    %1361 = vmatprep.subr.mxu0 0.0
    %1362 = vmatpush1.msra.mxu0 0.0
    %1363 = vmatprep.subr.mxu0 0.0
    %1364 = vmatpush1.msra.mxu0 0.0
    %1365 = vmatprep.subr.mxu0 0.0
    %1366 = vmatpush1.msra.mxu0 0.0
    %1367 = vmatprep.subr.mxu0 0.0
    %1368 = vmatpush1.msra.mxu0 0.0
    %1369 = vmatprep.subr.mxu0 0.0
    %1370 = vmatpush1.msra.mxu0 0.0
    %1371 = vmatprep.subr.mxu0 0.0
    %1372 = vmatpush1.msra.mxu0 0.0
    %1373 = vmatprep.subr.mxu0 0.0
    %1374 = vmatpush1.msra.mxu0 0.0
    %1375 = vmatprep.subr.mxu0 0.0
    %1376 = vmatpush1.msra.mxu0 0.0
    %1377 = vmatprep.subr.mxu0 0.0
    %1378 = vmatpush1.msra.mxu0 0.0
    %1379 = vmatprep.subr.mxu0 0.0
    %1380 = vmatpush1.msra.mxu0 0.0
    %1381 = vmatprep.subr.mxu0 0.0
    %1382 = vmatpush1.msra.mxu0 0.0
    %1383 = vmatprep.subr.mxu0 0.0
    %1384 = vmatpush1.msra.mxu0 0.0
    %1385 = vmatprep.mubr.f32.mxu0 0.0
    %1386 = vmatmul.mubr.f32.gmra.mrb[0].mxu0 %v1281
    %v1387 = vpop.f32.mrb[0].mxu0
    %v1388 = vadd.f32 0.0, %v1387
    %v1389 = vpop.f32.mrb[0].mxu0
    %1390 = vmatprep.mubr.f32.mxu0 0.0
    %1391 = vmatmul.mubr.f32.gmra.mrb[0].mxu0 %v1286
    %v1392 = vpop.f32.mrb[0].mxu0
    %v1393 = vadd.f32 0.0, %v1392
    %v1394 = vpop.f32.mrb[0].mxu0
    %1395 = vmatprep.mubr.f32.mxu0 0.0
    %1396 = vmatmul.mubr.f32.gmra.mrb[0].mxu0 %v1291
    %v1397 = vpop.f32.mrb[0].mxu0
    %v1398 = vadd.f32 0.0, %v1397
    %v1399 = vpop.f32.mrb[0].mxu0
    %1400 = vmatprep.mubr.f32.mxu0 0.0
    %1401 = vmatmul.mubr.f32.gmra.mrb[0].mxu0 %v1296
    %v1402 = vpop.f32.mrb[0].mxu0
    %v1403 = vadd.f32 0.0, %v1402
    %v1404 = vpop.f32.mrb[0].mxu0
    %1405 = vmatprep.mubr.f32.mxu0 0.0
    %1406 = vmatmul.mubr.f32.gmra.mrb[0].mxu0 %v1301
    %v1407 = vpop.f32.mrb[0].mxu0
    %v1408 = vadd.f32 0.0, %v1407
    %v1409 = vpop.f32.mrb[0].mxu0
    %1410 = vdwg.mxu0
    %v1411 = vadd.f32 %v1188, %v1388
    %v1412 = vadd.f32 %v1189, %v1393
    %v1413 = vadd.f32 %v1190, %v1398
    %v1414 = vadd.f32 %v1191, %v1403
    %v1415 = vadd.f32 %v1192, %v1408
    %s1416 = scalar_lea.vmem [#allocation2], 200
    %v1417 = vld [vmem:[%s1416] sm:$0xff]
    %v1418 = vld [vmem:[%s1416 + $0x8] sm:$0xff]
    %v1419 = vld [vmem:[%s1416 + $0x10] sm:$0xff]
    %v1420 = vld [vmem:[%s1416 + $0x18] sm:$0xff]
    %v1421 = vld [vmem:[%s1416 + $0x20] sm:$0x3]
    %v1423 = vsel %vm303, %v1417, 0
    %v1426 = vsel %vm303, %v1418, 0
    %v1429 = vsel %vm303, %v1419, 0
    %v1432 = vsel %vm303, %v1420, 0
    %v1435 = vsel %vm303, %v1421, 0
    %1437 = vmatprep.subr.mxu0 0.0
    %1438 = vmatpush1.msra.mxu0 %v285
    %1439 = vmatprep.subr.mxu0 0.0
    %1440 = vmatpush1.msra.mxu0 %v286
    %1441 = vmatprep.subr.mxu0 0.0
    %1442 = vmatpush1.msra.mxu0 %v287
    %1443 = vmatprep.subr.mxu0 0.0
    %1444 = vmatpush1.msra.mxu0 %v288
    %1445 = vmatprep.subr.mxu0 0.0
    %1446 = vmatpush1.msra.mxu0 %v321
    %1447 = vmatprep.subr.mxu0 0.0
    %1448 = vmatpush1.msra.mxu0 0.0
    %1449 = vmatprep.subr.mxu0 0.0
    %1450 = vmatpush1.msra.mxu0 0.0
    %1451 = vmatprep.subr.mxu0 0.0
    %1452 = vmatpush1.msra.mxu0 0.0
    %1453 = vmatprep.subr.mxu0 0.0
    %1454 = vmatpush1.msra.mxu0 0.0
    %1455 = vmatprep.subr.mxu0 0.0
    %1456 = vmatpush1.msra.mxu0 0.0
    %1457 = vmatprep.subr.mxu0 0.0
    %1458 = vmatpush1.msra.mxu0 0.0
    %1459 = vmatprep.subr.mxu0 0.0
    %1460 = vmatpush1.msra.mxu0 0.0
    %1461 = vmatprep.subr.mxu0 0.0
    %1462 = vmatpush1.msra.mxu0 0.0
    %1463 = vmatprep.subr.mxu0 0.0
    %1464 = vmatpush1.msra.mxu0 0.0
    %1465 = vmatprep.subr.mxu0 0.0
    %1466 = vmatpush1.msra.mxu0 0.0
    %1467 = vmatprep.subr.mxu0 0.0
    %1468 = vmatpush1.msra.mxu0 0.0
    %1469 = vmatprep.subr.mxu0 0.0
    %1470 = vmatpush1.msra.mxu0 0.0
    %1471 = vmatprep.subr.mxu0 0.0
    %1472 = vmatpush1.msra.mxu0 0.0
    %1473 = vmatprep.subr.mxu0 0.0
    %1474 = vmatpush1.msra.mxu0 0.0
    %1475 = vmatprep.subr.mxu0 0.0
    %1476 = vmatpush1.msra.mxu0 0.0
    %1477 = vmatprep.subr.mxu0 0.0
    %1478 = vmatpush1.msra.mxu0 0.0
    %1479 = vmatprep.subr.mxu0 0.0
    %1480 = vmatpush1.msra.mxu0 0.0
    %1481 = vmatprep.subr.mxu0 0.0
    %1482 = vmatpush1.msra.mxu0 0.0
    %1483 = vmatprep.subr.mxu0 0.0
    %1484 = vmatpush1.msra.mxu0 0.0
    %1485 = vmatprep.subr.mxu0 0.0
    %1486 = vmatpush1.msra.mxu0 0.0
    %1487 = vmatprep.subr.mxu0 0.0
    %1488 = vmatpush1.msra.mxu0 0.0
    %1489 = vmatprep.subr.mxu0 0.0
    %1490 = vmatpush1.msra.mxu0 0.0
    %1491 = vmatprep.subr.mxu0 0.0
    %1492 = vmatpush1.msra.mxu0 0.0
    %1493 = vmatprep.subr.mxu0 0.0
    %1494 = vmatpush1.msra.mxu0 0.0
    %1495 = vmatprep.subr.mxu0 0.0
    %1496 = vmatpush1.msra.mxu0 0.0
    %1497 = vmatprep.subr.mxu0 0.0
    %1498 = vmatpush1.msra.mxu0 0.0
    %1499 = vmatprep.subr.mxu0 0.0
    %1500 = vmatpush1.msra.mxu0 0.0
    %1501 = vmatprep.mubr.f32.mxu0 0.0
    %1502 = vmatmul.mubr.f32.gmra.mrb[0].mxu0 %v1423
    %v1503 = vpop.f32.mrb[0].mxu0
    %v1504 = vadd.f32 0.0, %v1503
    %v1505 = vpop.f32.mrb[0].mxu0
    %1506 = vmatprep.mubr.f32.mxu0 0.0
    %1507 = vmatmul.mubr.f32.gmra.mrb[0].mxu0 %v1426
    %v1508 = vpop.f32.mrb[0].mxu0
    %v1509 = vadd.f32 0.0, %v1508
    %v1510 = vpop.f32.mrb[0].mxu0
    %1511 = vmatprep.mubr.f32.mxu0 0.0
    %1512 = vmatmul.mubr.f32.gmra.mrb[0].mxu0 %v1429
    %v1513 = vpop.f32.mrb[0].mxu0
    %v1514 = vadd.f32 0.0, %v1513
    %v1515 = vpop.f32.mrb[0].mxu0
    %1516 = vmatprep.mubr.f32.mxu0 0.0
    %1517 = vmatmul.mubr.f32.gmra.mrb[0].mxu0 %v1432
    %v1518 = vpop.f32.mrb[0].mxu0
    %v1519 = vadd.f32 0.0, %v1518
    %v1520 = vpop.f32.mrb[0].mxu0
    %1521 = vmatprep.mubr.f32.mxu0 0.0
    %1522 = vmatmul.mubr.f32.gmra.mrb[0].mxu0 %v1435
    %v1523 = vpop.f32.mrb[0].mxu0
    %v1524 = vadd.f32 0.0, %v1523
    %v1525 = vpop.f32.mrb[0].mxu0
    %1526 = vdwg.mxu0
    %s1527 = scalar_lea.vmem [#allocation5], 640
    %v1528 = vld [vmem:[%s1527] sm:$0xff]
    %v1529 = vld [vmem:[%s1527 + $0x8] sm:$0xff]
    %v1530 = vld [vmem:[%s1527 + $0x10] sm:$0xff]
    %v1531 = vld [vmem:[%s1527 + $0x18] sm:$0xff]
    %v1532 = vld [vmem:[%s1527 + $0x20] sm:$0xff]
    %v1533 = vld [vmem:[%s1527 + $0x28] sm:$0xff]
    %v1534 = vld [vmem:[%s1527 + $0x30] sm:$0xff]
    %v1535 = vld [vmem:[%s1527 + $0x38] sm:$0xff]
    %v1536 = vld [vmem:[%s1527 + $0x40] sm:$0xff]
    %v1537 = vld [vmem:[%s1527 + $0x48] sm:$0xff]
    %v1538 = vld [vmem:[%s1527 + $0x50] sm:$0xff]
    %v1539 = vld [vmem:[%s1527 + $0x58] sm:$0xff]
    %v1540 = vld [vmem:[%s1527 + $0x60] sm:$0xff]
    %v1541 = vld [vmem:[%s1527 + $0x68] sm:$0xff]
    %v1542 = vld [vmem:[%s1527 + $0x70] sm:$0xff]
    %v1543 = vld [vmem:[%s1527 + $0x78] sm:$0xff]
    %1544 = vmatprep.subr.mxu0 0.0
    %1545 = vmatpush1.msra.mxu0 %v1528
    %1546 = vmatprep.subr.mxu0 0.0
    %1547 = vmatpush1.msra.mxu0 %v1529
    %1548 = vmatprep.subr.mxu0 0.0
    %1549 = vmatpush1.msra.mxu0 %v1530
    %1550 = vmatprep.subr.mxu0 0.0
    %1551 = vmatpush1.msra.mxu0 %v1531
    %1552 = vmatprep.subr.mxu0 0.0
    %1553 = vmatpush1.msra.mxu0 %v1532
    %1554 = vmatprep.subr.mxu0 0.0
    %1555 = vmatpush1.msra.mxu0 %v1533
    %1556 = vmatprep.subr.mxu0 0.0
    %1557 = vmatpush1.msra.mxu0 %v1534
    %1558 = vmatprep.subr.mxu0 0.0
    %1559 = vmatpush1.msra.mxu0 %v1535
    %1560 = vmatprep.subr.mxu0 0.0
    %1561 = vmatpush1.msra.mxu0 %v1536
    %1562 = vmatprep.subr.mxu0 0.0
    %1563 = vmatpush1.msra.mxu0 %v1537
    %1564 = vmatprep.subr.mxu0 0.0
    %1565 = vmatpush1.msra.mxu0 %v1538
    %1566 = vmatprep.subr.mxu0 0.0
    %1567 = vmatpush1.msra.mxu0 %v1539
    %1568 = vmatprep.subr.mxu0 0.0
    %1569 = vmatpush1.msra.mxu0 %v1540
    %1570 = vmatprep.subr.mxu0 0.0
    %1571 = vmatpush1.msra.mxu0 %v1541
    %1572 = vmatprep.subr.mxu0 0.0
    %1573 = vmatpush1.msra.mxu0 %v1542
    %1574 = vmatprep.subr.mxu0 0.0
    %1575 = vmatpush1.msra.mxu0 %v1543
    %1576 = vmatprep.subr.mxu0 0.0
    %1577 = vmatpush1.msra.mxu0 0.0
    %1578 = vmatprep.subr.mxu0 0.0
    %1579 = vmatpush1.msra.mxu0 0.0
    %1580 = vmatprep.subr.mxu0 0.0
    %1581 = vmatpush1.msra.mxu0 0.0
    %1582 = vmatprep.subr.mxu0 0.0
    %1583 = vmatpush1.msra.mxu0 0.0
    %1584 = vmatprep.subr.mxu0 0.0
    %1585 = vmatpush1.msra.mxu0 0.0
    %1586 = vmatprep.subr.mxu0 0.0
    %1587 = vmatpush1.msra.mxu0 0.0
    %1588 = vmatprep.subr.mxu0 0.0
    %1589 = vmatpush1.msra.mxu0 0.0
    %1590 = vmatprep.subr.mxu0 0.0
    %1591 = vmatpush1.msra.mxu0 0.0
    %1592 = vmatprep.subr.mxu0 0.0
    %1593 = vmatpush1.msra.mxu0 0.0
    %1594 = vmatprep.subr.mxu0 0.0
    %1595 = vmatpush1.msra.mxu0 0.0
    %1596 = vmatprep.subr.mxu0 0.0
    %1597 = vmatpush1.msra.mxu0 0.0
    %1598 = vmatprep.subr.mxu0 0.0
    %1599 = vmatpush1.msra.mxu0 0.0
    %1600 = vmatprep.subr.mxu0 0.0
    %1601 = vmatpush1.msra.mxu0 0.0
    %1602 = vmatprep.subr.mxu0 0.0
    %1603 = vmatpush1.msra.mxu0 0.0
    %1604 = vmatprep.subr.mxu0 0.0
    %1605 = vmatpush1.msra.mxu0 0.0
    %1606 = vmatprep.subr.mxu0 0.0
    %1607 = vmatpush1.msra.mxu0 0.0
    %1608 = vmatprep.mubr.f32.mxu0 0.0
    %1609 = vmatmul.mubr.f32.gmra.mrb[0].mxu0 %v1504
    %v1610 = vpop.f32.mrb[0].mxu0
    %v1611 = vadd.f32 0.0, %v1610
    %v1612 = vpop.f32.mrb[0].mxu0
    %1613 = vmatprep.mubr.f32.mxu0 0.0
    %1614 = vmatmul.mubr.f32.gmra.mrb[0].mxu0 %v1509
    %v1615 = vpop.f32.mrb[0].mxu0
    %v1616 = vadd.f32 0.0, %v1615
    %v1617 = vpop.f32.mrb[0].mxu0
    %1618 = vmatprep.mubr.f32.mxu0 0.0
    %1619 = vmatmul.mubr.f32.gmra.mrb[0].mxu0 %v1514
    %v1620 = vpop.f32.mrb[0].mxu0
    %v1621 = vadd.f32 0.0, %v1620
    %v1622 = vpop.f32.mrb[0].mxu0
    %1623 = vmatprep.mubr.f32.mxu0 0.0
    %1624 = vmatmul.mubr.f32.gmra.mrb[0].mxu0 %v1519
    %v1625 = vpop.f32.mrb[0].mxu0
    %v1626 = vadd.f32 0.0, %v1625
    %v1627 = vpop.f32.mrb[0].mxu0
    %1628 = vmatprep.mubr.f32.mxu0 0.0
    %1629 = vmatmul.mubr.f32.gmra.mrb[0].mxu0 %v1524
    %v1630 = vpop.f32.mrb[0].mxu0
    %v1631 = vadd.f32 0.0, %v1630
    %v1632 = vpop.f32.mrb[0].mxu0
    %1633 = vdwg.mxu0
    %v1634 = vadd.f32 %v1411, %v1611
    %v1635 = vadd.f32 %v1412, %v1616
    %v1636 = vadd.f32 %v1413, %v1621
    %v1637 = vadd.f32 %v1414, %v1626
    %v1638 = vadd.f32 %v1415, %v1631
    %vm1639 = vcmp.gt.f32.partialorder %v1634, 0.0
    %vm1640 = vcmp.gt.f32.partialorder %v1635, 0.0
    %vm1641 = vcmp.gt.f32.partialorder %v1636, 0.0
    %vm1642 = vcmp.gt.f32.partialorder %v1637, 0.0
    %vm1643 = vcmp.gt.f32.partialorder %v1638, 0.0
    %v1644 = vmin.f32 %v1634, 0.0
    %v1645 = vmin.f32 %v1635, 0.0
    %v1646 = vmin.f32 %v1636, 0.0
    %v1647 = vmin.f32 %v1637, 0.0
    %v1648 = vmin.f32 %v1638, 0.0
    %v1649 = vmul.f32 %v1644, 1.442695
    %v1650 = vpow.pop %v1649
    %v1651 = vmul.f32 %v1645, 1.442695
    %v1652 = vpow.pop %v1651
    %v1653 = vmul.f32 %v1646, 1.442695
    %v1654 = vpow.pop %v1653
    %v1655 = vmul.f32 %v1647, 1.442695
    %v1656 = vpow.pop %v1655
    %v1657 = vmul.f32 %v1648, 1.442695
    %v1658 = vpow.pop %v1657
    %v1659 = vsub.f32 %v1650, 1.0
    %v1660 = vsub.f32 %v1652, 1.0
    %v1661 = vsub.f32 %v1654, 1.0
    %v1662 = vsub.f32 %v1656, 1.0
    %v1663 = vsub.f32 %v1658, 1.0
    %v1664 = vsel %vm1639, %v1634, %v1659
    %v1665 = vsel %vm1640, %v1635, %v1660
    %v1666 = vsel %vm1641, %v1636, %v1661
    %v1667 = vsel %vm1642, %v1637, %v1662
    %v1668 = vsel %vm1643, %v1638, %v1663
    %v1669 = vld [vmem:[#allocation23] sm:$0xff]
    %v1670 = vld [vmem:[#allocation23 + $0x8] sm:$0xff]
    %v1671 = vld [vmem:[#allocation23 + $0x10] sm:$0x3]
    %v1673 = vsel %vm303, %v1669, 0
    %v1676 = vsel %vm303, %v1670, 0
    %v1679 = vsel %vm303, %v1671, 0
    %v1682 = vsel %vm319, %v1668, 0
    %1684 = vmatprep.subr.mxu0 0.0
    %1685 = vmatpush1.msra.mxu0 %v1664
    %1686 = vmatprep.subr.mxu0 0.0
    %1687 = vmatpush1.msra.mxu0 %v1665
    %1688 = vmatprep.subr.mxu0 0.0
    %1689 = vmatpush1.msra.mxu0 %v1666
    %1690 = vmatprep.subr.mxu0 0.0
    %1691 = vmatpush1.msra.mxu0 %v1667
    %1692 = vmatprep.subr.mxu0 0.0
    %1693 = vmatpush1.msra.mxu0 %v1682
    %1694 = vmatprep.subr.mxu0 0.0
    %1695 = vmatpush1.msra.mxu0 0.0
    %1696 = vmatprep.subr.mxu0 0.0
    %1697 = vmatpush1.msra.mxu0 0.0
    %1698 = vmatprep.subr.mxu0 0.0
    %1699 = vmatpush1.msra.mxu0 0.0
    %1700 = vmatprep.subr.mxu0 0.0
    %1701 = vmatpush1.msra.mxu0 0.0
    %1702 = vmatprep.subr.mxu0 0.0
    %1703 = vmatpush1.msra.mxu0 0.0
    %1704 = vmatprep.subr.mxu0 0.0
    %1705 = vmatpush1.msra.mxu0 0.0
    %1706 = vmatprep.subr.mxu0 0.0
    %1707 = vmatpush1.msra.mxu0 0.0
    %1708 = vmatprep.subr.mxu0 0.0
    %1709 = vmatpush1.msra.mxu0 0.0
    %1710 = vmatprep.subr.mxu0 0.0
    %1711 = vmatpush1.msra.mxu0 0.0
    %1712 = vmatprep.subr.mxu0 0.0
    %1713 = vmatpush1.msra.mxu0 0.0
    %1714 = vmatprep.subr.mxu0 0.0
    %1715 = vmatpush1.msra.mxu0 0.0
    %1716 = vmatprep.subr.mxu0 0.0
    %1717 = vmatpush1.msra.mxu0 0.0
    %1718 = vmatprep.subr.mxu0 0.0
    %1719 = vmatpush1.msra.mxu0 0.0
    %1720 = vmatprep.subr.mxu0 0.0
    %1721 = vmatpush1.msra.mxu0 0.0
    %1722 = vmatprep.subr.mxu0 0.0
    %1723 = vmatpush1.msra.mxu0 0.0
    %1724 = vmatprep.subr.mxu0 0.0
    %1725 = vmatpush1.msra.mxu0 0.0
    %1726 = vmatprep.subr.mxu0 0.0
    %1727 = vmatpush1.msra.mxu0 0.0
    %1728 = vmatprep.subr.mxu0 0.0
    %1729 = vmatpush1.msra.mxu0 0.0
    %1730 = vmatprep.subr.mxu0 0.0
    %1731 = vmatpush1.msra.mxu0 0.0
    %1732 = vmatprep.subr.mxu0 0.0
    %1733 = vmatpush1.msra.mxu0 0.0
    %1734 = vmatprep.subr.mxu0 0.0
    %1735 = vmatpush1.msra.mxu0 0.0
    %1736 = vmatprep.subr.mxu0 0.0
    %1737 = vmatpush1.msra.mxu0 0.0
    %1738 = vmatprep.subr.mxu0 0.0
    %1739 = vmatpush1.msra.mxu0 0.0
    %1740 = vmatprep.subr.mxu0 0.0
    %1741 = vmatpush1.msra.mxu0 0.0
    %1742 = vmatprep.subr.mxu0 0.0
    %1743 = vmatpush1.msra.mxu0 0.0
    %1744 = vmatprep.subr.mxu0 0.0
    %1745 = vmatpush1.msra.mxu0 0.0
    %1746 = vmatprep.subr.mxu0 0.0
    %1747 = vmatpush1.msra.mxu0 0.0
    %1748 = vmatprep.mubr.f32.mxu0 0.0
    %1749 = vmatmul.mubr.f32.gmra.mrb[0].mxu0 %v1673
    %v1750 = vpop.f32.mrb[0].mxu0
    %v1751 = vadd.f32 0.0, %v1750
    %v1752 = vpop.f32.mrb[0].mxu0
    %1753 = vmatprep.mubr.f32.mxu0 0.0
    %1754 = vmatmul.mubr.f32.gmra.mrb[0].mxu0 %v1676
    %v1755 = vpop.f32.mrb[0].mxu0
    %v1756 = vadd.f32 0.0, %v1755
    %v1757 = vpop.f32.mrb[0].mxu0
    %1758 = vmatprep.mubr.f32.mxu0 0.0
    %1759 = vmatmul.mubr.f32.gmra.mrb[0].mxu0 %v1679
    %v1760 = vpop.f32.mrb[0].mxu0
    %v1761 = vadd.f32 0.0, %v1760
    %v1762 = vpop.f32.mrb[0].mxu0
    %1763 = vdwg.mxu0
    %v1764 = vld [vmem:[#allocation10] sm:$0x1]
    %v1766 = vlaneseq
    %v1767 = vshrl.u32 %v1766, 7
    %v1768 = vsub.s32 0, %v1767
    %v1769 = vrot.slane %v1764, %v1768
    %v1771 = vadd.f32 %v1769, 0.0
    %v1772 = vld [vmem:[%s2] sm:$0xff]
    %v1773 = vld [vmem:[%s2 + $0x8] sm:$0xff]
    %v1774 = vld [vmem:[%s2 + $0x10] sm:$0x3]
    %vm1775 = vcmask 146432
    %v1777 = vsel %vm1775, %v1772, 0
    %v1780 = vsel %vm1775, %v1773, 0
    %v1783 = vsel %vm1775, %v1774, 0
    %v1786 = vsel %vm319, %v1761, 0
    %1788 = vmatprep.subr.mxu0 0.0
    %1789 = vmatpush1.msra.mxu0 %v1751
    %1790 = vmatprep.subr.mxu0 0.0
    %1791 = vmatpush1.msra.mxu0 %v1756
    %1792 = vmatprep.subr.mxu0 0.0
    %1793 = vmatpush1.msra.mxu0 %v1786
    %1794 = vmatprep.subr.mxu0 0.0
    %1795 = vmatpush1.msra.mxu0 0.0
    %1796 = vmatprep.subr.mxu0 0.0
    %1797 = vmatpush1.msra.mxu0 0.0
    %1798 = vmatprep.subr.mxu0 0.0
    %1799 = vmatpush1.msra.mxu0 0.0
    %1800 = vmatprep.subr.mxu0 0.0
    %1801 = vmatpush1.msra.mxu0 0.0
    %1802 = vmatprep.subr.mxu0 0.0
    %1803 = vmatpush1.msra.mxu0 0.0
    %1804 = vmatprep.subr.mxu0 0.0
    %1805 = vmatpush1.msra.mxu0 0.0
    %1806 = vmatprep.subr.mxu0 0.0
    %1807 = vmatpush1.msra.mxu0 0.0
    %1808 = vmatprep.subr.mxu0 0.0
    %1809 = vmatpush1.msra.mxu0 0.0
    %1810 = vmatprep.subr.mxu0 0.0
    %1811 = vmatpush1.msra.mxu0 0.0
    %1812 = vmatprep.subr.mxu0 0.0
    %1813 = vmatpush1.msra.mxu0 0.0
    %1814 = vmatprep.subr.mxu0 0.0
    %1815 = vmatpush1.msra.mxu0 0.0
    %1816 = vmatprep.subr.mxu0 0.0
    %1817 = vmatpush1.msra.mxu0 0.0
    %1818 = vmatprep.subr.mxu0 0.0
    %1819 = vmatpush1.msra.mxu0 0.0
    %1820 = vmatprep.subr.mxu0 0.0
    %1821 = vmatpush1.msra.mxu0 0.0
    %1822 = vmatprep.subr.mxu0 0.0
    %1823 = vmatpush1.msra.mxu0 0.0
    %1824 = vmatprep.subr.mxu0 0.0
    %1825 = vmatpush1.msra.mxu0 0.0
    %1826 = vmatprep.subr.mxu0 0.0
    %1827 = vmatpush1.msra.mxu0 0.0
    %1828 = vmatprep.subr.mxu0 0.0
    %1829 = vmatpush1.msra.mxu0 0.0
    %1830 = vmatprep.subr.mxu0 0.0
    %1831 = vmatpush1.msra.mxu0 0.0
    %1832 = vmatprep.subr.mxu0 0.0
    %1833 = vmatpush1.msra.mxu0 0.0
    %1834 = vmatprep.subr.mxu0 0.0
    %1835 = vmatpush1.msra.mxu0 0.0
    %1836 = vmatprep.subr.mxu0 0.0
    %1837 = vmatpush1.msra.mxu0 0.0
    %1838 = vmatprep.subr.mxu0 0.0
    %1839 = vmatpush1.msra.mxu0 0.0
    %1840 = vmatprep.subr.mxu0 0.0
    %1841 = vmatpush1.msra.mxu0 0.0
    %1842 = vmatprep.subr.mxu0 0.0
    %1843 = vmatpush1.msra.mxu0 0.0
    %1844 = vmatprep.subr.mxu0 0.0
    %1845 = vmatpush1.msra.mxu0 0.0
    %1846 = vmatprep.subr.mxu0 0.0
    %1847 = vmatpush1.msra.mxu0 0.0
    %1848 = vmatprep.subr.mxu0 0.0
    %1849 = vmatpush1.msra.mxu0 0.0
    %1850 = vmatprep.subr.mxu0 0.0
    %1851 = vmatpush1.msra.mxu0 0.0
    %1852 = vmatprep.mubr.f32.mxu0 0.0
    %1853 = vmatmul.mubr.f32.gmra.mrb[0].mxu0 %v1777
    %v1854 = vpop.f32.mrb[0].mxu0
    %v1855 = vadd.f32 0.0, %v1854
    %v1856 = vpop.f32.mrb[0].mxu0
    %1857 = vmatprep.mubr.f32.mxu0 0.0
    %1858 = vmatmul.mubr.f32.gmra.mrb[0].mxu0 %v1780
    %v1859 = vpop.f32.mrb[0].mxu0
    %v1860 = vadd.f32 0.0, %v1859
    %v1861 = vpop.f32.mrb[0].mxu0
    %1862 = vmatprep.mubr.f32.mxu0 0.0
    %1863 = vmatmul.mubr.f32.gmra.mrb[0].mxu0 %v1783
    %v1864 = vpop.f32.mrb[0].mxu0
    %v1865 = vadd.f32 0.0, %v1864
    %v1866 = vpop.f32.mrb[0].mxu0
    %1867 = vdwg.mxu0
    %v1868 = vld [vmem:[#allocation8] sm:$0xff]
    %v1869 = vld [vmem:[#allocation8 + $0x8] sm:$0xff]
    %v1870 = vld [vmem:[#allocation8 + $0x10] sm:$0xff]
    %v1871 = vld [vmem:[#allocation8 + $0x18] sm:$0xff]
    %v1872 = vld [vmem:[#allocation8 + $0x20] sm:$0xff]
    %v1873 = vld [vmem:[#allocation8 + $0x28] sm:$0xff]
    %v1874 = vld [vmem:[#allocation8 + $0x30] sm:$0xff]
    %v1875 = vld [vmem:[#allocation8 + $0x38] sm:$0xff]
    %v1876 = vld [vmem:[#allocation8 + $0x40] sm:$0xff]
    %v1877 = vld [vmem:[#allocation8 + $0x48] sm:$0xff]
    %v1878 = vld [vmem:[#allocation8 + $0x50] sm:$0xff]
    %v1879 = vld [vmem:[#allocation8 + $0x58] sm:$0xff]
    %v1880 = vld [vmem:[#allocation8 + $0x60] sm:$0xff]
    %v1881 = vld [vmem:[#allocation8 + $0x68] sm:$0xff]
    %v1882 = vld [vmem:[#allocation8 + $0x70] sm:$0xff]
    %v1883 = vld [vmem:[#allocation8 + $0x78] sm:$0xff]
    %1884 = vmatprep.subr.mxu0 0.0
    %1885 = vmatpush1.msra.mxu0 %v1868
    %1886 = vmatprep.subr.mxu0 0.0
    %1887 = vmatpush1.msra.mxu0 %v1869
    %1888 = vmatprep.subr.mxu0 0.0
    %1889 = vmatpush1.msra.mxu0 %v1870
    %1890 = vmatprep.subr.mxu0 0.0
    %1891 = vmatpush1.msra.mxu0 %v1871
    %1892 = vmatprep.subr.mxu0 0.0
    %1893 = vmatpush1.msra.mxu0 %v1872
    %1894 = vmatprep.subr.mxu0 0.0
    %1895 = vmatpush1.msra.mxu0 %v1873
    %1896 = vmatprep.subr.mxu0 0.0
    %1897 = vmatpush1.msra.mxu0 %v1874
    %1898 = vmatprep.subr.mxu0 0.0
    %1899 = vmatpush1.msra.mxu0 %v1875
    %1900 = vmatprep.subr.mxu0 0.0
    %1901 = vmatpush1.msra.mxu0 %v1876
    %1902 = vmatprep.subr.mxu0 0.0
    %1903 = vmatpush1.msra.mxu0 %v1877
    %1904 = vmatprep.subr.mxu0 0.0
    %1905 = vmatpush1.msra.mxu0 %v1878
    %1906 = vmatprep.subr.mxu0 0.0
    %1907 = vmatpush1.msra.mxu0 %v1879
    %1908 = vmatprep.subr.mxu0 0.0
    %1909 = vmatpush1.msra.mxu0 %v1880
    %1910 = vmatprep.subr.mxu0 0.0
    %1911 = vmatpush1.msra.mxu0 %v1881
    %1912 = vmatprep.subr.mxu0 0.0
    %1913 = vmatpush1.msra.mxu0 %v1882
    %1914 = vmatprep.subr.mxu0 0.0
    %1915 = vmatpush1.msra.mxu0 %v1883
    %1916 = vmatprep.subr.mxu0 0.0
    %1917 = vmatpush1.msra.mxu0 0.0
    %1918 = vmatprep.subr.mxu0 0.0
    %1919 = vmatpush1.msra.mxu0 0.0
    %1920 = vmatprep.subr.mxu0 0.0
    %1921 = vmatpush1.msra.mxu0 0.0
    %1922 = vmatprep.subr.mxu0 0.0
    %1923 = vmatpush1.msra.mxu0 0.0
    %1924 = vmatprep.subr.mxu0 0.0
    %1925 = vmatpush1.msra.mxu0 0.0
    %1926 = vmatprep.subr.mxu0 0.0
    %1927 = vmatpush1.msra.mxu0 0.0
    %1928 = vmatprep.subr.mxu0 0.0
    %1929 = vmatpush1.msra.mxu0 0.0
    %1930 = vmatprep.subr.mxu0 0.0
    %1931 = vmatpush1.msra.mxu0 0.0
    %1932 = vmatprep.subr.mxu0 0.0
    %1933 = vmatpush1.msra.mxu0 0.0
    %1934 = vmatprep.subr.mxu0 0.0
    %1935 = vmatpush1.msra.mxu0 0.0
    %1936 = vmatprep.subr.mxu0 0.0
    %1937 = vmatpush1.msra.mxu0 0.0
    %1938 = vmatprep.subr.mxu0 0.0
    %1939 = vmatpush1.msra.mxu0 0.0
    %1940 = vmatprep.subr.mxu0 0.0
    %1941 = vmatpush1.msra.mxu0 0.0
    %1942 = vmatprep.subr.mxu0 0.0
    %1943 = vmatpush1.msra.mxu0 0.0
    %1944 = vmatprep.subr.mxu0 0.0
    %1945 = vmatpush1.msra.mxu0 0.0
    %1946 = vmatprep.subr.mxu0 0.0
    %1947 = vmatpush1.msra.mxu0 0.0
    %1948 = vmatprep.mubr.f32.mxu0 0.0
    %1949 = vmatmul.mubr.f32.gmra.mrb[0].mxu0 %v1855
    %v1950 = vpop.f32.mrb[0].mxu0
    %v1951 = vadd.f32 0.0, %v1950
    %v1952 = vpop.f32.mrb[0].mxu0
    %1953 = vmatprep.mubr.f32.mxu0 0.0
    %1954 = vmatmul.mubr.f32.gmra.mrb[0].mxu0 %v1860
    %v1955 = vpop.f32.mrb[0].mxu0
    %v1956 = vadd.f32 0.0, %v1955
    %v1957 = vpop.f32.mrb[0].mxu0
    %1958 = vmatprep.mubr.f32.mxu0 0.0
    %1959 = vmatmul.mubr.f32.gmra.mrb[0].mxu0 %v1865
    %v1960 = vpop.f32.mrb[0].mxu0
    %v1961 = vadd.f32 0.0, %v1960
    %v1962 = vpop.f32.mrb[0].mxu0
    %1963 = vdwg.mxu0
    %v1964 = vadd.f32 %v1771, %v1951
    %v1965 = vadd.f32 %v1771, %v1956
    %v1966 = vadd.f32 %v1771, %v1961
    %s1967 = scalar_lea.vmem %s2, 24
    %v1968 = vld [vmem:[%s1967] sm:$0xff]
    %v1969 = vld [vmem:[%s1967 + $0x8] sm:$0xff]
    %v1970 = vld [vmem:[%s1967 + $0x10] sm:$0x3]
    %v1972 = vsel %vm1775, %v1968, 0
    %v1975 = vsel %vm1775, %v1969, 0
    %v1978 = vsel %vm1775, %v1970, 0
    %1980 = vmatprep.subr.mxu0 0.0
    %1981 = vmatpush1.msra.mxu0 %v1751
    %1982 = vmatprep.subr.mxu0 0.0
    %1983 = vmatpush1.msra.mxu0 %v1756
    %1984 = vmatprep.subr.mxu0 0.0
    %1985 = vmatpush1.msra.mxu0 %v1786
    %1986 = vmatprep.subr.mxu0 0.0
    %1987 = vmatpush1.msra.mxu0 0.0
    %1988 = vmatprep.subr.mxu0 0.0
    %1989 = vmatpush1.msra.mxu0 0.0
    %1990 = vmatprep.subr.mxu0 0.0
    %1991 = vmatpush1.msra.mxu0 0.0
    %1992 = vmatprep.subr.mxu0 0.0
    %1993 = vmatpush1.msra.mxu0 0.0
    %1994 = vmatprep.subr.mxu0 0.0
    %1995 = vmatpush1.msra.mxu0 0.0
    %1996 = vmatprep.subr.mxu0 0.0
    %1997 = vmatpush1.msra.mxu0 0.0
    %1998 = vmatprep.subr.mxu0 0.0
    %1999 = vmatpush1.msra.mxu0 0.0
    %2000 = vmatprep.subr.mxu0 0.0
    %2001 = vmatpush1.msra.mxu0 0.0
    %2002 = vmatprep.subr.mxu0 0.0
    %2003 = vmatpush1.msra.mxu0 0.0
    %2004 = vmatprep.subr.mxu0 0.0
    %2005 = vmatpush1.msra.mxu0 0.0
    %2006 = vmatprep.subr.mxu0 0.0
    %2007 = vmatpush1.msra.mxu0 0.0
    %2008 = vmatprep.subr.mxu0 0.0
    %2009 = vmatpush1.msra.mxu0 0.0
    %2010 = vmatprep.subr.mxu0 0.0
    %2011 = vmatpush1.msra.mxu0 0.0
    %2012 = vmatprep.subr.mxu0 0.0
    %2013 = vmatpush1.msra.mxu0 0.0
    %2014 = vmatprep.subr.mxu0 0.0
    %2015 = vmatpush1.msra.mxu0 0.0
    %2016 = vmatprep.subr.mxu0 0.0
    %2017 = vmatpush1.msra.mxu0 0.0
    %2018 = vmatprep.subr.mxu0 0.0
    %2019 = vmatpush1.msra.mxu0 0.0
    %2020 = vmatprep.subr.mxu0 0.0
    %2021 = vmatpush1.msra.mxu0 0.0
    %2022 = vmatprep.subr.mxu0 0.0
    %2023 = vmatpush1.msra.mxu0 0.0
    %2024 = vmatprep.subr.mxu0 0.0
    %2025 = vmatpush1.msra.mxu0 0.0
    %2026 = vmatprep.subr.mxu0 0.0
    %2027 = vmatpush1.msra.mxu0 0.0
    %2028 = vmatprep.subr.mxu0 0.0
    %2029 = vmatpush1.msra.mxu0 0.0
    %2030 = vmatprep.subr.mxu0 0.0
    %2031 = vmatpush1.msra.mxu0 0.0
    %2032 = vmatprep.subr.mxu0 0.0
    %2033 = vmatpush1.msra.mxu0 0.0
    %2034 = vmatprep.subr.mxu0 0.0
    %2035 = vmatpush1.msra.mxu0 0.0
    %2036 = vmatprep.subr.mxu0 0.0
    %2037 = vmatpush1.msra.mxu0 0.0
    %2038 = vmatprep.subr.mxu0 0.0
    %2039 = vmatpush1.msra.mxu0 0.0
    %2040 = vmatprep.subr.mxu0 0.0
    %2041 = vmatpush1.msra.mxu0 0.0
    %2042 = vmatprep.subr.mxu0 0.0
    %2043 = vmatpush1.msra.mxu0 0.0
    %2044 = vmatprep.mubr.f32.mxu0 0.0
    %2045 = vmatmul.mubr.f32.gmra.mrb[0].mxu0 %v1972
    %v2046 = vpop.f32.mrb[0].mxu0
    %v2047 = vadd.f32 0.0, %v2046
    %v2048 = vpop.f32.mrb[0].mxu0
    %2049 = vmatprep.mubr.f32.mxu0 0.0
    %2050 = vmatmul.mubr.f32.gmra.mrb[0].mxu0 %v1975
    %v2051 = vpop.f32.mrb[0].mxu0
    %v2052 = vadd.f32 0.0, %v2051
    %v2053 = vpop.f32.mrb[0].mxu0
    %2054 = vmatprep.mubr.f32.mxu0 0.0
    %2055 = vmatmul.mubr.f32.gmra.mrb[0].mxu0 %v1978
    %v2056 = vpop.f32.mrb[0].mxu0
    %v2057 = vadd.f32 0.0, %v2056
    %v2058 = vpop.f32.mrb[0].mxu0
    %2059 = vdwg.mxu0
    %s2060 = scalar_lea.vmem [#allocation8], 128
    %v2061 = vld [vmem:[%s2060] sm:$0xff]
    %v2062 = vld [vmem:[%s2060 + $0x8] sm:$0xff]
    %v2063 = vld [vmem:[%s2060 + $0x10] sm:$0xff]
    %v2064 = vld [vmem:[%s2060 + $0x18] sm:$0xff]
    %v2065 = vld [vmem:[%s2060 + $0x20] sm:$0xff]
    %v2066 = vld [vmem:[%s2060 + $0x28] sm:$0xff]
    %v2067 = vld [vmem:[%s2060 + $0x30] sm:$0xff]
    %v2068 = vld [vmem:[%s2060 + $0x38] sm:$0xff]
    %v2069 = vld [vmem:[%s2060 + $0x40] sm:$0xff]
    %v2070 = vld [vmem:[%s2060 + $0x48] sm:$0xff]
    %v2071 = vld [vmem:[%s2060 + $0x50] sm:$0xff]
    %v2072 = vld [vmem:[%s2060 + $0x58] sm:$0xff]
    %v2073 = vld [vmem:[%s2060 + $0x60] sm:$0xff]
    %v2074 = vld [vmem:[%s2060 + $0x68] sm:$0xff]
    %v2075 = vld [vmem:[%s2060 + $0x70] sm:$0xff]
    %v2076 = vld [vmem:[%s2060 + $0x78] sm:$0xff]
    %2077 = vmatprep.subr.mxu0 0.0
    %2078 = vmatpush1.msra.mxu0 %v2061
    %2079 = vmatprep.subr.mxu0 0.0
    %2080 = vmatpush1.msra.mxu0 %v2062
    %2081 = vmatprep.subr.mxu0 0.0
    %2082 = vmatpush1.msra.mxu0 %v2063
    %2083 = vmatprep.subr.mxu0 0.0
    %2084 = vmatpush1.msra.mxu0 %v2064
    %2085 = vmatprep.subr.mxu0 0.0
    %2086 = vmatpush1.msra.mxu0 %v2065
    %2087 = vmatprep.subr.mxu0 0.0
    %2088 = vmatpush1.msra.mxu0 %v2066
    %2089 = vmatprep.subr.mxu0 0.0
    %2090 = vmatpush1.msra.mxu0 %v2067
    %2091 = vmatprep.subr.mxu0 0.0
    %2092 = vmatpush1.msra.mxu0 %v2068
    %2093 = vmatprep.subr.mxu0 0.0
    %2094 = vmatpush1.msra.mxu0 %v2069
    %2095 = vmatprep.subr.mxu0 0.0
    %2096 = vmatpush1.msra.mxu0 %v2070
    %2097 = vmatprep.subr.mxu0 0.0
    %2098 = vmatpush1.msra.mxu0 %v2071
    %2099 = vmatprep.subr.mxu0 0.0
    %2100 = vmatpush1.msra.mxu0 %v2072
    %2101 = vmatprep.subr.mxu0 0.0
    %2102 = vmatpush1.msra.mxu0 %v2073
    %2103 = vmatprep.subr.mxu0 0.0
    %2104 = vmatpush1.msra.mxu0 %v2074
    %2105 = vmatprep.subr.mxu0 0.0
    %2106 = vmatpush1.msra.mxu0 %v2075
    %2107 = vmatprep.subr.mxu0 0.0
    %2108 = vmatpush1.msra.mxu0 %v2076
    %2109 = vmatprep.subr.mxu0 0.0
    %2110 = vmatpush1.msra.mxu0 0.0
    %2111 = vmatprep.subr.mxu0 0.0
    %2112 = vmatpush1.msra.mxu0 0.0
    %2113 = vmatprep.subr.mxu0 0.0
    %2114 = vmatpush1.msra.mxu0 0.0
    %2115 = vmatprep.subr.mxu0 0.0
    %2116 = vmatpush1.msra.mxu0 0.0
    %2117 = vmatprep.subr.mxu0 0.0
    %2118 = vmatpush1.msra.mxu0 0.0
    %2119 = vmatprep.subr.mxu0 0.0
    %2120 = vmatpush1.msra.mxu0 0.0
    %2121 = vmatprep.subr.mxu0 0.0
    %2122 = vmatpush1.msra.mxu0 0.0
    %2123 = vmatprep.subr.mxu0 0.0
    %2124 = vmatpush1.msra.mxu0 0.0
    %2125 = vmatprep.subr.mxu0 0.0
    %2126 = vmatpush1.msra.mxu0 0.0
    %2127 = vmatprep.subr.mxu0 0.0
    %2128 = vmatpush1.msra.mxu0 0.0
    %2129 = vmatprep.subr.mxu0 0.0
    %2130 = vmatpush1.msra.mxu0 0.0
    %2131 = vmatprep.subr.mxu0 0.0
    %2132 = vmatpush1.msra.mxu0 0.0
    %2133 = vmatprep.subr.mxu0 0.0
    %2134 = vmatpush1.msra.mxu0 0.0
    %2135 = vmatprep.subr.mxu0 0.0
    %2136 = vmatpush1.msra.mxu0 0.0
    %2137 = vmatprep.subr.mxu0 0.0
    %2138 = vmatpush1.msra.mxu0 0.0
    %2139 = vmatprep.subr.mxu0 0.0
    %2140 = vmatpush1.msra.mxu0 0.0
    %2141 = vmatprep.mubr.f32.mxu0 0.0
    %2142 = vmatmul.mubr.f32.gmra.mrb[0].mxu0 %v2047
    %v2143 = vpop.f32.mrb[0].mxu0
    %v2144 = vadd.f32 0.0, %v2143
    %v2145 = vpop.f32.mrb[0].mxu0
    %2146 = vmatprep.mubr.f32.mxu0 0.0
    %2147 = vmatmul.mubr.f32.gmra.mrb[0].mxu0 %v2052
    %v2148 = vpop.f32.mrb[0].mxu0
    %v2149 = vadd.f32 0.0, %v2148
    %v2150 = vpop.f32.mrb[0].mxu0
    %2151 = vmatprep.mubr.f32.mxu0 0.0
    %2152 = vmatmul.mubr.f32.gmra.mrb[0].mxu0 %v2057
    %v2153 = vpop.f32.mrb[0].mxu0
    %v2154 = vadd.f32 0.0, %v2153
    %v2155 = vpop.f32.mrb[0].mxu0
    %2156 = vdwg.mxu0
    %v2157 = vadd.f32 %v1964, %v2144
    %v2158 = vadd.f32 %v1965, %v2149
    %v2159 = vadd.f32 %v1966, %v2154
    %s2160 = scalar_lea.vmem %s2, 48
    %v2161 = vld [vmem:[%s2160] sm:$0xff]
    %v2162 = vld [vmem:[%s2160 + $0x8] sm:$0xff]
    %v2163 = vld [vmem:[%s2160 + $0x10] sm:$0x3]
    %v2165 = vsel %vm1775, %v2161, 0
    %v2168 = vsel %vm1775, %v2162, 0
    %v2171 = vsel %vm1775, %v2163, 0
    %2173 = vmatprep.subr.mxu0 0.0
    %2174 = vmatpush1.msra.mxu0 %v1751
    %2175 = vmatprep.subr.mxu0 0.0
    %2176 = vmatpush1.msra.mxu0 %v1756
    %2177 = vmatprep.subr.mxu0 0.0
    %2178 = vmatpush1.msra.mxu0 %v1786
    %2179 = vmatprep.subr.mxu0 0.0
    %2180 = vmatpush1.msra.mxu0 0.0
    %2181 = vmatprep.subr.mxu0 0.0
    %2182 = vmatpush1.msra.mxu0 0.0
    %2183 = vmatprep.subr.mxu0 0.0
    %2184 = vmatpush1.msra.mxu0 0.0
    %2185 = vmatprep.subr.mxu0 0.0
    %2186 = vmatpush1.msra.mxu0 0.0
    %2187 = vmatprep.subr.mxu0 0.0
    %2188 = vmatpush1.msra.mxu0 0.0
    %2189 = vmatprep.subr.mxu0 0.0
    %2190 = vmatpush1.msra.mxu0 0.0
    %2191 = vmatprep.subr.mxu0 0.0
    %2192 = vmatpush1.msra.mxu0 0.0
    %2193 = vmatprep.subr.mxu0 0.0
    %2194 = vmatpush1.msra.mxu0 0.0
    %2195 = vmatprep.subr.mxu0 0.0
    %2196 = vmatpush1.msra.mxu0 0.0
    %2197 = vmatprep.subr.mxu0 0.0
    %2198 = vmatpush1.msra.mxu0 0.0
    %2199 = vmatprep.subr.mxu0 0.0
    %2200 = vmatpush1.msra.mxu0 0.0
    %2201 = vmatprep.subr.mxu0 0.0
    %2202 = vmatpush1.msra.mxu0 0.0
    %2203 = vmatprep.subr.mxu0 0.0
    %2204 = vmatpush1.msra.mxu0 0.0
    %2205 = vmatprep.subr.mxu0 0.0
    %2206 = vmatpush1.msra.mxu0 0.0
    %2207 = vmatprep.subr.mxu0 0.0
    %2208 = vmatpush1.msra.mxu0 0.0
    %2209 = vmatprep.subr.mxu0 0.0
    %2210 = vmatpush1.msra.mxu0 0.0
    %2211 = vmatprep.subr.mxu0 0.0
    %2212 = vmatpush1.msra.mxu0 0.0
    %2213 = vmatprep.subr.mxu0 0.0
    %2214 = vmatpush1.msra.mxu0 0.0
    %2215 = vmatprep.subr.mxu0 0.0
    %2216 = vmatpush1.msra.mxu0 0.0
    %2217 = vmatprep.subr.mxu0 0.0
    %2218 = vmatpush1.msra.mxu0 0.0
    %2219 = vmatprep.subr.mxu0 0.0
    %2220 = vmatpush1.msra.mxu0 0.0
    %2221 = vmatprep.subr.mxu0 0.0
    %2222 = vmatpush1.msra.mxu0 0.0
    %2223 = vmatprep.subr.mxu0 0.0
    %2224 = vmatpush1.msra.mxu0 0.0
    %2225 = vmatprep.subr.mxu0 0.0
    %2226 = vmatpush1.msra.mxu0 0.0
    %2227 = vmatprep.subr.mxu0 0.0
    %2228 = vmatpush1.msra.mxu0 0.0
    %2229 = vmatprep.subr.mxu0 0.0
    %2230 = vmatpush1.msra.mxu0 0.0
    %2231 = vmatprep.subr.mxu0 0.0
    %2232 = vmatpush1.msra.mxu0 0.0
    %2233 = vmatprep.subr.mxu0 0.0
    %2234 = vmatpush1.msra.mxu0 0.0
    %2235 = vmatprep.subr.mxu0 0.0
    %2236 = vmatpush1.msra.mxu0 0.0
    %2237 = vmatprep.mubr.f32.mxu0 0.0
    %2238 = vmatmul.mubr.f32.gmra.mrb[0].mxu0 %v2165
    %v2239 = vpop.f32.mrb[0].mxu0
    %v2240 = vadd.f32 0.0, %v2239
    %v2241 = vpop.f32.mrb[0].mxu0
    %2242 = vmatprep.mubr.f32.mxu0 0.0
    %2243 = vmatmul.mubr.f32.gmra.mrb[0].mxu0 %v2168
    %v2244 = vpop.f32.mrb[0].mxu0
    %v2245 = vadd.f32 0.0, %v2244
    %v2246 = vpop.f32.mrb[0].mxu0
    %2247 = vmatprep.mubr.f32.mxu0 0.0
    %2248 = vmatmul.mubr.f32.gmra.mrb[0].mxu0 %v2171
    %v2249 = vpop.f32.mrb[0].mxu0
    %v2250 = vadd.f32 0.0, %v2249
    %v2251 = vpop.f32.mrb[0].mxu0
    %2252 = vdwg.mxu0
    %s2253 = scalar_lea.vmem [#allocation8], 256
    %v2254 = vld [vmem:[%s2253] sm:$0xff]
    %v2255 = vld [vmem:[%s2253 + $0x8] sm:$0xff]
    %v2256 = vld [vmem:[%s2253 + $0x10] sm:$0xff]
    %v2257 = vld [vmem:[%s2253 + $0x18] sm:$0xff]
    %v2258 = vld [vmem:[%s2253 + $0x20] sm:$0xff]
    %v2259 = vld [vmem:[%s2253 + $0x28] sm:$0xff]
    %v2260 = vld [vmem:[%s2253 + $0x30] sm:$0xff]
    %v2261 = vld [vmem:[%s2253 + $0x38] sm:$0xff]
    %v2262 = vld [vmem:[%s2253 + $0x40] sm:$0xff]
    %v2263 = vld [vmem:[%s2253 + $0x48] sm:$0xff]
    %v2264 = vld [vmem:[%s2253 + $0x50] sm:$0xff]
    %v2265 = vld [vmem:[%s2253 + $0x58] sm:$0xff]
    %v2266 = vld [vmem:[%s2253 + $0x60] sm:$0xff]
    %v2267 = vld [vmem:[%s2253 + $0x68] sm:$0xff]
    %v2268 = vld [vmem:[%s2253 + $0x70] sm:$0xff]
    %v2269 = vld [vmem:[%s2253 + $0x78] sm:$0xff]
    %2270 = vmatprep.subr.mxu0 0.0
    %2271 = vmatpush1.msra.mxu0 %v2254
    %2272 = vmatprep.subr.mxu0 0.0
    %2273 = vmatpush1.msra.mxu0 %v2255
    %2274 = vmatprep.subr.mxu0 0.0
    %2275 = vmatpush1.msra.mxu0 %v2256
    %2276 = vmatprep.subr.mxu0 0.0
    %2277 = vmatpush1.msra.mxu0 %v2257
    %2278 = vmatprep.subr.mxu0 0.0
    %2279 = vmatpush1.msra.mxu0 %v2258
    %2280 = vmatprep.subr.mxu0 0.0
    %2281 = vmatpush1.msra.mxu0 %v2259
    %2282 = vmatprep.subr.mxu0 0.0
    %2283 = vmatpush1.msra.mxu0 %v2260
    %2284 = vmatprep.subr.mxu0 0.0
    %2285 = vmatpush1.msra.mxu0 %v2261
    %2286 = vmatprep.subr.mxu0 0.0
    %2287 = vmatpush1.msra.mxu0 %v2262
    %2288 = vmatprep.subr.mxu0 0.0
    %2289 = vmatpush1.msra.mxu0 %v2263
    %2290 = vmatprep.subr.mxu0 0.0
    %2291 = vmatpush1.msra.mxu0 %v2264
    %2292 = vmatprep.subr.mxu0 0.0
    %2293 = vmatpush1.msra.mxu0 %v2265
    %2294 = vmatprep.subr.mxu0 0.0
    %2295 = vmatpush1.msra.mxu0 %v2266
    %2296 = vmatprep.subr.mxu0 0.0
    %2297 = vmatpush1.msra.mxu0 %v2267
    %2298 = vmatprep.subr.mxu0 0.0
    %2299 = vmatpush1.msra.mxu0 %v2268
    %2300 = vmatprep.subr.mxu0 0.0
    %2301 = vmatpush1.msra.mxu0 %v2269
    %2302 = vmatprep.subr.mxu0 0.0
    %2303 = vmatpush1.msra.mxu0 0.0
    %2304 = vmatprep.subr.mxu0 0.0
    %2305 = vmatpush1.msra.mxu0 0.0
    %2306 = vmatprep.subr.mxu0 0.0
    %2307 = vmatpush1.msra.mxu0 0.0
    %2308 = vmatprep.subr.mxu0 0.0
    %2309 = vmatpush1.msra.mxu0 0.0
    %2310 = vmatprep.subr.mxu0 0.0
    %2311 = vmatpush1.msra.mxu0 0.0
    %2312 = vmatprep.subr.mxu0 0.0
    %2313 = vmatpush1.msra.mxu0 0.0
    %2314 = vmatprep.subr.mxu0 0.0
    %2315 = vmatpush1.msra.mxu0 0.0
    %2316 = vmatprep.subr.mxu0 0.0
    %2317 = vmatpush1.msra.mxu0 0.0
    %2318 = vmatprep.subr.mxu0 0.0
    %2319 = vmatpush1.msra.mxu0 0.0
    %2320 = vmatprep.subr.mxu0 0.0
    %2321 = vmatpush1.msra.mxu0 0.0
    %2322 = vmatprep.subr.mxu0 0.0
    %2323 = vmatpush1.msra.mxu0 0.0
    %2324 = vmatprep.subr.mxu0 0.0
    %2325 = vmatpush1.msra.mxu0 0.0
    %2326 = vmatprep.subr.mxu0 0.0
    %2327 = vmatpush1.msra.mxu0 0.0
    %2328 = vmatprep.subr.mxu0 0.0
    %2329 = vmatpush1.msra.mxu0 0.0
    %2330 = vmatprep.subr.mxu0 0.0
    %2331 = vmatpush1.msra.mxu0 0.0
    %2332 = vmatprep.subr.mxu0 0.0
    %2333 = vmatpush1.msra.mxu0 0.0
    %2334 = vmatprep.mubr.f32.mxu0 0.0
    %2335 = vmatmul.mubr.f32.gmra.mrb[0].mxu0 %v2240
    %v2336 = vpop.f32.mrb[0].mxu0
    %v2337 = vadd.f32 0.0, %v2336
    %v2338 = vpop.f32.mrb[0].mxu0
    %2339 = vmatprep.mubr.f32.mxu0 0.0
    %2340 = vmatmul.mubr.f32.gmra.mrb[0].mxu0 %v2245
    %v2341 = vpop.f32.mrb[0].mxu0
    %v2342 = vadd.f32 0.0, %v2341
    %v2343 = vpop.f32.mrb[0].mxu0
    %2344 = vmatprep.mubr.f32.mxu0 0.0
    %2345 = vmatmul.mubr.f32.gmra.mrb[0].mxu0 %v2250
    %v2346 = vpop.f32.mrb[0].mxu0
    %v2347 = vadd.f32 0.0, %v2346
    %v2348 = vpop.f32.mrb[0].mxu0
    %2349 = vdwg.mxu0
    %v2350 = vadd.f32 %v2157, %v2337
    %v2351 = vadd.f32 %v2158, %v2342
    %v2352 = vadd.f32 %v2159, %v2347
    %s2353 = scalar_lea.vmem %s2, 72
    %v2354 = vld [vmem:[%s2353] sm:$0xff]
    %v2355 = vld [vmem:[%s2353 + $0x8] sm:$0xff]
    %v2356 = vld [vmem:[%s2353 + $0x10] sm:$0x3]
    %v2358 = vsel %vm1775, %v2354, 0
    %v2361 = vsel %vm1775, %v2355, 0
    %v2364 = vsel %vm1775, %v2356, 0
    %2366 = vmatprep.subr.mxu0 0.0
    %2367 = vmatpush1.msra.mxu0 %v1751
    %2368 = vmatprep.subr.mxu0 0.0
    %2369 = vmatpush1.msra.mxu0 %v1756
    %2370 = vmatprep.subr.mxu0 0.0
    %2371 = vmatpush1.msra.mxu0 %v1786
    %2372 = vmatprep.subr.mxu0 0.0
    %2373 = vmatpush1.msra.mxu0 0.0
    %2374 = vmatprep.subr.mxu0 0.0
    %2375 = vmatpush1.msra.mxu0 0.0
    %2376 = vmatprep.subr.mxu0 0.0
    %2377 = vmatpush1.msra.mxu0 0.0
    %2378 = vmatprep.subr.mxu0 0.0
    %2379 = vmatpush1.msra.mxu0 0.0
    %2380 = vmatprep.subr.mxu0 0.0
    %2381 = vmatpush1.msra.mxu0 0.0
    %2382 = vmatprep.subr.mxu0 0.0
    %2383 = vmatpush1.msra.mxu0 0.0
    %2384 = vmatprep.subr.mxu0 0.0
    %2385 = vmatpush1.msra.mxu0 0.0
    %2386 = vmatprep.subr.mxu0 0.0
    %2387 = vmatpush1.msra.mxu0 0.0
    %2388 = vmatprep.subr.mxu0 0.0
    %2389 = vmatpush1.msra.mxu0 0.0
    %2390 = vmatprep.subr.mxu0 0.0
    %2391 = vmatpush1.msra.mxu0 0.0
    %2392 = vmatprep.subr.mxu0 0.0
    %2393 = vmatpush1.msra.mxu0 0.0
    %2394 = vmatprep.subr.mxu0 0.0
    %2395 = vmatpush1.msra.mxu0 0.0
    %2396 = vmatprep.subr.mxu0 0.0
    %2397 = vmatpush1.msra.mxu0 0.0
    %2398 = vmatprep.subr.mxu0 0.0
    %2399 = vmatpush1.msra.mxu0 0.0
    %2400 = vmatprep.subr.mxu0 0.0
    %2401 = vmatpush1.msra.mxu0 0.0
    %2402 = vmatprep.subr.mxu0 0.0
    %2403 = vmatpush1.msra.mxu0 0.0
    %2404 = vmatprep.subr.mxu0 0.0
    %2405 = vmatpush1.msra.mxu0 0.0
    %2406 = vmatprep.subr.mxu0 0.0
    %2407 = vmatpush1.msra.mxu0 0.0
    %2408 = vmatprep.subr.mxu0 0.0
    %2409 = vmatpush1.msra.mxu0 0.0
    %2410 = vmatprep.subr.mxu0 0.0
    %2411 = vmatpush1.msra.mxu0 0.0
    %2412 = vmatprep.subr.mxu0 0.0
    %2413 = vmatpush1.msra.mxu0 0.0
    %2414 = vmatprep.subr.mxu0 0.0
    %2415 = vmatpush1.msra.mxu0 0.0
    %2416 = vmatprep.subr.mxu0 0.0
    %2417 = vmatpush1.msra.mxu0 0.0
    %2418 = vmatprep.subr.mxu0 0.0
    %2419 = vmatpush1.msra.mxu0 0.0
    %2420 = vmatprep.subr.mxu0 0.0
    %2421 = vmatpush1.msra.mxu0 0.0
    %2422 = vmatprep.subr.mxu0 0.0
    %2423 = vmatpush1.msra.mxu0 0.0
    %2424 = vmatprep.subr.mxu0 0.0
    %2425 = vmatpush1.msra.mxu0 0.0
    %2426 = vmatprep.subr.mxu0 0.0
    %2427 = vmatpush1.msra.mxu0 0.0
    %2428 = vmatprep.subr.mxu0 0.0
    %2429 = vmatpush1.msra.mxu0 0.0
    %2430 = vmatprep.mubr.f32.mxu0 0.0
    %2431 = vmatmul.mubr.f32.gmra.mrb[0].mxu0 %v2358
    %v2432 = vpop.f32.mrb[0].mxu0
    %v2433 = vadd.f32 0.0, %v2432
    %v2434 = vpop.f32.mrb[0].mxu0
    %2435 = vmatprep.mubr.f32.mxu0 0.0
    %2436 = vmatmul.mubr.f32.gmra.mrb[0].mxu0 %v2361
    %v2437 = vpop.f32.mrb[0].mxu0
    %v2438 = vadd.f32 0.0, %v2437
    %v2439 = vpop.f32.mrb[0].mxu0
    %2440 = vmatprep.mubr.f32.mxu0 0.0
    %2441 = vmatmul.mubr.f32.gmra.mrb[0].mxu0 %v2364
    %v2442 = vpop.f32.mrb[0].mxu0
    %v2443 = vadd.f32 0.0, %v2442
    %v2444 = vpop.f32.mrb[0].mxu0
    %2445 = vdwg.mxu0
    %s2446 = scalar_lea.vmem [#allocation8], 384
    %v2447 = vld [vmem:[%s2446] sm:$0xff]
    %v2448 = vld [vmem:[%s2446 + $0x8] sm:$0xff]
    %v2449 = vld [vmem:[%s2446 + $0x10] sm:$0xff]
    %v2450 = vld [vmem:[%s2446 + $0x18] sm:$0xff]
    %v2451 = vld [vmem:[%s2446 + $0x20] sm:$0xff]
    %v2452 = vld [vmem:[%s2446 + $0x28] sm:$0xff]
    %v2453 = vld [vmem:[%s2446 + $0x30] sm:$0xff]
    %v2454 = vld [vmem:[%s2446 + $0x38] sm:$0xff]
    %v2455 = vld [vmem:[%s2446 + $0x40] sm:$0xff]
    %v2456 = vld [vmem:[%s2446 + $0x48] sm:$0xff]
    %v2457 = vld [vmem:[%s2446 + $0x50] sm:$0xff]
    %v2458 = vld [vmem:[%s2446 + $0x58] sm:$0xff]
    %v2459 = vld [vmem:[%s2446 + $0x60] sm:$0xff]
    %v2460 = vld [vmem:[%s2446 + $0x68] sm:$0xff]
    %v2461 = vld [vmem:[%s2446 + $0x70] sm:$0xff]
    %v2462 = vld [vmem:[%s2446 + $0x78] sm:$0xff]
    %2463 = vmatprep.subr.mxu0 0.0
    %2464 = vmatpush1.msra.mxu0 %v2447
    %2465 = vmatprep.subr.mxu0 0.0
    %2466 = vmatpush1.msra.mxu0 %v2448
    %2467 = vmatprep.subr.mxu0 0.0
    %2468 = vmatpush1.msra.mxu0 %v2449
    %2469 = vmatprep.subr.mxu0 0.0
    %2470 = vmatpush1.msra.mxu0 %v2450
    %2471 = vmatprep.subr.mxu0 0.0
    %2472 = vmatpush1.msra.mxu0 %v2451
    %2473 = vmatprep.subr.mxu0 0.0
    %2474 = vmatpush1.msra.mxu0 %v2452
    %2475 = vmatprep.subr.mxu0 0.0
    %2476 = vmatpush1.msra.mxu0 %v2453
    %2477 = vmatprep.subr.mxu0 0.0
    %2478 = vmatpush1.msra.mxu0 %v2454
    %2479 = vmatprep.subr.mxu0 0.0
    %2480 = vmatpush1.msra.mxu0 %v2455
    %2481 = vmatprep.subr.mxu0 0.0
    %2482 = vmatpush1.msra.mxu0 %v2456
    %2483 = vmatprep.subr.mxu0 0.0
    %2484 = vmatpush1.msra.mxu0 %v2457
    %2485 = vmatprep.subr.mxu0 0.0
    %2486 = vmatpush1.msra.mxu0 %v2458
    %2487 = vmatprep.subr.mxu0 0.0
    %2488 = vmatpush1.msra.mxu0 %v2459
    %2489 = vmatprep.subr.mxu0 0.0
    %2490 = vmatpush1.msra.mxu0 %v2460
    %2491 = vmatprep.subr.mxu0 0.0
    %2492 = vmatpush1.msra.mxu0 %v2461
    %2493 = vmatprep.subr.mxu0 0.0
    %2494 = vmatpush1.msra.mxu0 %v2462
    %2495 = vmatprep.subr.mxu0 0.0
    %2496 = vmatpush1.msra.mxu0 0.0
    %2497 = vmatprep.subr.mxu0 0.0
    %2498 = vmatpush1.msra.mxu0 0.0
    %2499 = vmatprep.subr.mxu0 0.0
    %2500 = vmatpush1.msra.mxu0 0.0
    %2501 = vmatprep.subr.mxu0 0.0
    %2502 = vmatpush1.msra.mxu0 0.0
    %2503 = vmatprep.subr.mxu0 0.0
    %2504 = vmatpush1.msra.mxu0 0.0
    %2505 = vmatprep.subr.mxu0 0.0
    %2506 = vmatpush1.msra.mxu0 0.0
    %2507 = vmatprep.subr.mxu0 0.0
    %2508 = vmatpush1.msra.mxu0 0.0
    %2509 = vmatprep.subr.mxu0 0.0
    %2510 = vmatpush1.msra.mxu0 0.0
    %2511 = vmatprep.subr.mxu0 0.0
    %2512 = vmatpush1.msra.mxu0 0.0
    %2513 = vmatprep.subr.mxu0 0.0
    %2514 = vmatpush1.msra.mxu0 0.0
    %2515 = vmatprep.subr.mxu0 0.0
    %2516 = vmatpush1.msra.mxu0 0.0
    %2517 = vmatprep.subr.mxu0 0.0
    %2518 = vmatpush1.msra.mxu0 0.0
    %2519 = vmatprep.subr.mxu0 0.0
    %2520 = vmatpush1.msra.mxu0 0.0
    %2521 = vmatprep.subr.mxu0 0.0
    %2522 = vmatpush1.msra.mxu0 0.0
    %2523 = vmatprep.subr.mxu0 0.0
    %2524 = vmatpush1.msra.mxu0 0.0
    %2525 = vmatprep.subr.mxu0 0.0
    %2526 = vmatpush1.msra.mxu0 0.0
    %2527 = vmatprep.mubr.f32.mxu0 0.0
    %2528 = vmatmul.mubr.f32.gmra.mrb[0].mxu0 %v2433
    %v2529 = vpop.f32.mrb[0].mxu0
    %v2530 = vadd.f32 0.0, %v2529
    %v2531 = vpop.f32.mrb[0].mxu0
    %2532 = vmatprep.mubr.f32.mxu0 0.0
    %2533 = vmatmul.mubr.f32.gmra.mrb[0].mxu0 %v2438
    %v2534 = vpop.f32.mrb[0].mxu0
    %v2535 = vadd.f32 0.0, %v2534
    %v2536 = vpop.f32.mrb[0].mxu0
    %2537 = vmatprep.mubr.f32.mxu0 0.0
    %2538 = vmatmul.mubr.f32.gmra.mrb[0].mxu0 %v2443
    %v2539 = vpop.f32.mrb[0].mxu0
    %v2540 = vadd.f32 0.0, %v2539
    %v2541 = vpop.f32.mrb[0].mxu0
    %2542 = vdwg.mxu0
    %v2543 = vadd.f32 %v2350, %v2530
    %v2544 = vadd.f32 %v2351, %v2535
    %v2545 = vadd.f32 %v2352, %v2540
    %s2546 = scalar_lea.vmem %s2, 96
    %v2547 = vld [vmem:[%s2546] sm:$0xff]
    %v2548 = vld [vmem:[%s2546 + $0x8] sm:$0xff]
    %v2549 = vld [vmem:[%s2546 + $0x10] sm:$0x3]
    %v2551 = vsel %vm1775, %v2547, 0
    %v2554 = vsel %vm1775, %v2548, 0
    %v2557 = vsel %vm1775, %v2549, 0
    %2559 = vmatprep.subr.mxu0 0.0
    %2560 = vmatpush1.msra.mxu0 %v1751
    %2561 = vmatprep.subr.mxu0 0.0
    %2562 = vmatpush1.msra.mxu0 %v1756
    %2563 = vmatprep.subr.mxu0 0.0
    %2564 = vmatpush1.msra.mxu0 %v1786
    %2565 = vmatprep.subr.mxu0 0.0
    %2566 = vmatpush1.msra.mxu0 0.0
    %2567 = vmatprep.subr.mxu0 0.0
    %2568 = vmatpush1.msra.mxu0 0.0
    %2569 = vmatprep.subr.mxu0 0.0
    %2570 = vmatpush1.msra.mxu0 0.0
    %2571 = vmatprep.subr.mxu0 0.0
    %2572 = vmatpush1.msra.mxu0 0.0
    %2573 = vmatprep.subr.mxu0 0.0
    %2574 = vmatpush1.msra.mxu0 0.0
    %2575 = vmatprep.subr.mxu0 0.0
    %2576 = vmatpush1.msra.mxu0 0.0
    %2577 = vmatprep.subr.mxu0 0.0
    %2578 = vmatpush1.msra.mxu0 0.0
    %2579 = vmatprep.subr.mxu0 0.0
    %2580 = vmatpush1.msra.mxu0 0.0
    %2581 = vmatprep.subr.mxu0 0.0
    %2582 = vmatpush1.msra.mxu0 0.0
    %2583 = vmatprep.subr.mxu0 0.0
    %2584 = vmatpush1.msra.mxu0 0.0
    %2585 = vmatprep.subr.mxu0 0.0
    %2586 = vmatpush1.msra.mxu0 0.0
    %2587 = vmatprep.subr.mxu0 0.0
    %2588 = vmatpush1.msra.mxu0 0.0
    %2589 = vmatprep.subr.mxu0 0.0
    %2590 = vmatpush1.msra.mxu0 0.0
    %2591 = vmatprep.subr.mxu0 0.0
    %2592 = vmatpush1.msra.mxu0 0.0
    %2593 = vmatprep.subr.mxu0 0.0
    %2594 = vmatpush1.msra.mxu0 0.0
    %2595 = vmatprep.subr.mxu0 0.0
    %2596 = vmatpush1.msra.mxu0 0.0
    %2597 = vmatprep.subr.mxu0 0.0
    %2598 = vmatpush1.msra.mxu0 0.0
    %2599 = vmatprep.subr.mxu0 0.0
    %2600 = vmatpush1.msra.mxu0 0.0
    %2601 = vmatprep.subr.mxu0 0.0
    %2602 = vmatpush1.msra.mxu0 0.0
    %2603 = vmatprep.subr.mxu0 0.0
    %2604 = vmatpush1.msra.mxu0 0.0
    %2605 = vmatprep.subr.mxu0 0.0
    %2606 = vmatpush1.msra.mxu0 0.0
    %2607 = vmatprep.subr.mxu0 0.0
    %2608 = vmatpush1.msra.mxu0 0.0
    %2609 = vmatprep.subr.mxu0 0.0
    %2610 = vmatpush1.msra.mxu0 0.0
    %2611 = vmatprep.subr.mxu0 0.0
    %2612 = vmatpush1.msra.mxu0 0.0
    %2613 = vmatprep.subr.mxu0 0.0
    %2614 = vmatpush1.msra.mxu0 0.0
    %2615 = vmatprep.subr.mxu0 0.0
    %2616 = vmatpush1.msra.mxu0 0.0
    %2617 = vmatprep.subr.mxu0 0.0
    %2618 = vmatpush1.msra.mxu0 0.0
    %2619 = vmatprep.subr.mxu0 0.0
    %2620 = vmatpush1.msra.mxu0 0.0
    %2621 = vmatprep.subr.mxu0 0.0
    %2622 = vmatpush1.msra.mxu0 0.0
    %2623 = vmatprep.mubr.f32.mxu0 0.0
    %2624 = vmatmul.mubr.f32.gmra.mrb[0].mxu0 %v2551
    %v2625 = vpop.f32.mrb[0].mxu0
    %v2626 = vadd.f32 0.0, %v2625
    %v2627 = vpop.f32.mrb[0].mxu0
    %2628 = vmatprep.mubr.f32.mxu0 0.0
    %2629 = vmatmul.mubr.f32.gmra.mrb[0].mxu0 %v2554
    %v2630 = vpop.f32.mrb[0].mxu0
    %v2631 = vadd.f32 0.0, %v2630
    %v2632 = vpop.f32.mrb[0].mxu0
    %2633 = vmatprep.mubr.f32.mxu0 0.0
    %2634 = vmatmul.mubr.f32.gmra.mrb[0].mxu0 %v2557
    %v2635 = vpop.f32.mrb[0].mxu0
    %v2636 = vadd.f32 0.0, %v2635
    %v2637 = vpop.f32.mrb[0].mxu0
    %2638 = vdwg.mxu0
    %s2639 = scalar_lea.vmem [#allocation8], 512
    %v2640 = vld [vmem:[%s2639] sm:$0xff]
    %v2641 = vld [vmem:[%s2639 + $0x8] sm:$0xff]
    %v2642 = vld [vmem:[%s2639 + $0x10] sm:$0xff]
    %v2643 = vld [vmem:[%s2639 + $0x18] sm:$0xff]
    %v2644 = vld [vmem:[%s2639 + $0x20] sm:$0xff]
    %v2645 = vld [vmem:[%s2639 + $0x28] sm:$0xff]
    %v2646 = vld [vmem:[%s2639 + $0x30] sm:$0xff]
    %v2647 = vld [vmem:[%s2639 + $0x38] sm:$0xff]
    %v2648 = vld [vmem:[%s2639 + $0x40] sm:$0xff]
    %v2649 = vld [vmem:[%s2639 + $0x48] sm:$0xff]
    %v2650 = vld [vmem:[%s2639 + $0x50] sm:$0xff]
    %v2651 = vld [vmem:[%s2639 + $0x58] sm:$0xff]
    %v2652 = vld [vmem:[%s2639 + $0x60] sm:$0xff]
    %v2653 = vld [vmem:[%s2639 + $0x68] sm:$0xff]
    %v2654 = vld [vmem:[%s2639 + $0x70] sm:$0xff]
    %v2655 = vld [vmem:[%s2639 + $0x78] sm:$0xff]
    %2656 = vmatprep.subr.mxu0 0.0
    %2657 = vmatpush1.msra.mxu0 %v2640
    %2658 = vmatprep.subr.mxu0 0.0
    %2659 = vmatpush1.msra.mxu0 %v2641
    %2660 = vmatprep.subr.mxu0 0.0
    %2661 = vmatpush1.msra.mxu0 %v2642
    %2662 = vmatprep.subr.mxu0 0.0
    %2663 = vmatpush1.msra.mxu0 %v2643
    %2664 = vmatprep.subr.mxu0 0.0
    %2665 = vmatpush1.msra.mxu0 %v2644
    %2666 = vmatprep.subr.mxu0 0.0
    %2667 = vmatpush1.msra.mxu0 %v2645
    %2668 = vmatprep.subr.mxu0 0.0
    %2669 = vmatpush1.msra.mxu0 %v2646
    %2670 = vmatprep.subr.mxu0 0.0
    %2671 = vmatpush1.msra.mxu0 %v2647
    %2672 = vmatprep.subr.mxu0 0.0
    %2673 = vmatpush1.msra.mxu0 %v2648
    %2674 = vmatprep.subr.mxu0 0.0
    %2675 = vmatpush1.msra.mxu0 %v2649
    %2676 = vmatprep.subr.mxu0 0.0
    %2677 = vmatpush1.msra.mxu0 %v2650
    %2678 = vmatprep.subr.mxu0 0.0
    %2679 = vmatpush1.msra.mxu0 %v2651
    %2680 = vmatprep.subr.mxu0 0.0
    %2681 = vmatpush1.msra.mxu0 %v2652
    %2682 = vmatprep.subr.mxu0 0.0
    %2683 = vmatpush1.msra.mxu0 %v2653
    %2684 = vmatprep.subr.mxu0 0.0
    %2685 = vmatpush1.msra.mxu0 %v2654
    %2686 = vmatprep.subr.mxu0 0.0
    %2687 = vmatpush1.msra.mxu0 %v2655
    %2688 = vmatprep.subr.mxu0 0.0
    %2689 = vmatpush1.msra.mxu0 0.0
    %2690 = vmatprep.subr.mxu0 0.0
    %2691 = vmatpush1.msra.mxu0 0.0
    %2692 = vmatprep.subr.mxu0 0.0
    %2693 = vmatpush1.msra.mxu0 0.0
    %2694 = vmatprep.subr.mxu0 0.0
    %2695 = vmatpush1.msra.mxu0 0.0
    %2696 = vmatprep.subr.mxu0 0.0
    %2697 = vmatpush1.msra.mxu0 0.0
    %2698 = vmatprep.subr.mxu0 0.0
    %2699 = vmatpush1.msra.mxu0 0.0
    %2700 = vmatprep.subr.mxu0 0.0
    %2701 = vmatpush1.msra.mxu0 0.0
    %2702 = vmatprep.subr.mxu0 0.0
    %2703 = vmatpush1.msra.mxu0 0.0
    %2704 = vmatprep.subr.mxu0 0.0
    %2705 = vmatpush1.msra.mxu0 0.0
    %2706 = vmatprep.subr.mxu0 0.0
    %2707 = vmatpush1.msra.mxu0 0.0
    %2708 = vmatprep.subr.mxu0 0.0
    %2709 = vmatpush1.msra.mxu0 0.0
    %2710 = vmatprep.subr.mxu0 0.0
    %2711 = vmatpush1.msra.mxu0 0.0
    %2712 = vmatprep.subr.mxu0 0.0
    %2713 = vmatpush1.msra.mxu0 0.0
    %2714 = vmatprep.subr.mxu0 0.0
    %2715 = vmatpush1.msra.mxu0 0.0
    %2716 = vmatprep.subr.mxu0 0.0
    %2717 = vmatpush1.msra.mxu0 0.0
    %2718 = vmatprep.subr.mxu0 0.0
    %2719 = vmatpush1.msra.mxu0 0.0
    %2720 = vmatprep.mubr.f32.mxu0 0.0
    %2721 = vmatmul.mubr.f32.gmra.mrb[0].mxu0 %v2626
    %v2722 = vpop.f32.mrb[0].mxu0
    %v2723 = vadd.f32 0.0, %v2722
    %v2724 = vpop.f32.mrb[0].mxu0
    %2725 = vmatprep.mubr.f32.mxu0 0.0
    %2726 = vmatmul.mubr.f32.gmra.mrb[0].mxu0 %v2631
    %v2727 = vpop.f32.mrb[0].mxu0
    %v2728 = vadd.f32 0.0, %v2727
    %v2729 = vpop.f32.mrb[0].mxu0
    %2730 = vmatprep.mubr.f32.mxu0 0.0
    %2731 = vmatmul.mubr.f32.gmra.mrb[0].mxu0 %v2636
    %v2732 = vpop.f32.mrb[0].mxu0
    %v2733 = vadd.f32 0.0, %v2732
    %v2734 = vpop.f32.mrb[0].mxu0
    %2735 = vdwg.mxu0
    %v2736 = vadd.f32 %v2543, %v2723
    %v2737 = vadd.f32 %v2544, %v2728
    %v2738 = vadd.f32 %v2545, %v2733
    %s2739 = scalar_lea.vmem %s2, 120
    %v2740 = vld [vmem:[%s2739] sm:$0xff]
    %v2741 = vld [vmem:[%s2739 + $0x8] sm:$0xff]
    %v2742 = vld [vmem:[%s2739 + $0x10] sm:$0x3]
    %v2744 = vsel %vm1775, %v2740, 0
    %v2747 = vsel %vm1775, %v2741, 0
    %v2750 = vsel %vm1775, %v2742, 0
    %2752 = vmatprep.subr.mxu0 0.0
    %2753 = vmatpush1.msra.mxu0 %v1751
    %2754 = vmatprep.subr.mxu0 0.0
    %2755 = vmatpush1.msra.mxu0 %v1756
    %2756 = vmatprep.subr.mxu0 0.0
    %2757 = vmatpush1.msra.mxu0 %v1786
    %2758 = vmatprep.subr.mxu0 0.0
    %2759 = vmatpush1.msra.mxu0 0.0
    %2760 = vmatprep.subr.mxu0 0.0
    %2761 = vmatpush1.msra.mxu0 0.0
    %2762 = vmatprep.subr.mxu0 0.0
    %2763 = vmatpush1.msra.mxu0 0.0
    %2764 = vmatprep.subr.mxu0 0.0
    %2765 = vmatpush1.msra.mxu0 0.0
    %2766 = vmatprep.subr.mxu0 0.0
    %2767 = vmatpush1.msra.mxu0 0.0
    %2768 = vmatprep.subr.mxu0 0.0
    %2769 = vmatpush1.msra.mxu0 0.0
    %2770 = vmatprep.subr.mxu0 0.0
    %2771 = vmatpush1.msra.mxu0 0.0
    %2772 = vmatprep.subr.mxu0 0.0
    %2773 = vmatpush1.msra.mxu0 0.0
    %2774 = vmatprep.subr.mxu0 0.0
    %2775 = vmatpush1.msra.mxu0 0.0
    %2776 = vmatprep.subr.mxu0 0.0
    %2777 = vmatpush1.msra.mxu0 0.0
    %2778 = vmatprep.subr.mxu0 0.0
    %2779 = vmatpush1.msra.mxu0 0.0
    %2780 = vmatprep.subr.mxu0 0.0
    %2781 = vmatpush1.msra.mxu0 0.0
    %2782 = vmatprep.subr.mxu0 0.0
    %2783 = vmatpush1.msra.mxu0 0.0
    %2784 = vmatprep.subr.mxu0 0.0
    %2785 = vmatpush1.msra.mxu0 0.0
    %2786 = vmatprep.subr.mxu0 0.0
    %2787 = vmatpush1.msra.mxu0 0.0
    %2788 = vmatprep.subr.mxu0 0.0
    %2789 = vmatpush1.msra.mxu0 0.0
    %2790 = vmatprep.subr.mxu0 0.0
    %2791 = vmatpush1.msra.mxu0 0.0
    %2792 = vmatprep.subr.mxu0 0.0
    %2793 = vmatpush1.msra.mxu0 0.0
    %2794 = vmatprep.subr.mxu0 0.0
    %2795 = vmatpush1.msra.mxu0 0.0
    %2796 = vmatprep.subr.mxu0 0.0
    %2797 = vmatpush1.msra.mxu0 0.0
    %2798 = vmatprep.subr.mxu0 0.0
    %2799 = vmatpush1.msra.mxu0 0.0
    %2800 = vmatprep.subr.mxu0 0.0
    %2801 = vmatpush1.msra.mxu0 0.0
    %2802 = vmatprep.subr.mxu0 0.0
    %2803 = vmatpush1.msra.mxu0 0.0
    %2804 = vmatprep.subr.mxu0 0.0
    %2805 = vmatpush1.msra.mxu0 0.0
    %2806 = vmatprep.subr.mxu0 0.0
    %2807 = vmatpush1.msra.mxu0 0.0
    %2808 = vmatprep.subr.mxu0 0.0
    %2809 = vmatpush1.msra.mxu0 0.0
    %2810 = vmatprep.subr.mxu0 0.0
    %2811 = vmatpush1.msra.mxu0 0.0
    %2812 = vmatprep.subr.mxu0 0.0
    %2813 = vmatpush1.msra.mxu0 0.0
    %2814 = vmatprep.subr.mxu0 0.0
    %2815 = vmatpush1.msra.mxu0 0.0
    %2816 = vmatprep.mubr.f32.mxu0 0.0
    %2817 = vmatmul.mubr.f32.gmra.mrb[0].mxu0 %v2744
    %v2818 = vpop.f32.mrb[0].mxu0
    %v2819 = vadd.f32 0.0, %v2818
    %v2820 = vpop.f32.mrb[0].mxu0
    %2821 = vmatprep.mubr.f32.mxu0 0.0
    %2822 = vmatmul.mubr.f32.gmra.mrb[0].mxu0 %v2747
    %v2823 = vpop.f32.mrb[0].mxu0
    %v2824 = vadd.f32 0.0, %v2823
    %v2825 = vpop.f32.mrb[0].mxu0
    %2826 = vmatprep.mubr.f32.mxu0 0.0
    %2827 = vmatmul.mubr.f32.gmra.mrb[0].mxu0 %v2750
    %v2828 = vpop.f32.mrb[0].mxu0
    %v2829 = vadd.f32 0.0, %v2828
    %v2830 = vpop.f32.mrb[0].mxu0
    %2831 = vdwg.mxu0
    %s2832 = scalar_lea.vmem [#allocation8], 640
    %v2833 = vld [vmem:[%s2832] sm:$0xff]
    %v2834 = vld [vmem:[%s2832 + $0x8] sm:$0xff]
    %v2835 = vld [vmem:[%s2832 + $0x10] sm:$0xff]
    %v2836 = vld [vmem:[%s2832 + $0x18] sm:$0xff]
    %v2837 = vld [vmem:[%s2832 + $0x20] sm:$0xff]
    %v2838 = vld [vmem:[%s2832 + $0x28] sm:$0xff]
    %v2839 = vld [vmem:[%s2832 + $0x30] sm:$0xff]
    %v2840 = vld [vmem:[%s2832 + $0x38] sm:$0xff]
    %v2841 = vld [vmem:[%s2832 + $0x40] sm:$0xff]
    %v2842 = vld [vmem:[%s2832 + $0x48] sm:$0xff]
    %v2843 = vld [vmem:[%s2832 + $0x50] sm:$0xff]
    %v2844 = vld [vmem:[%s2832 + $0x58] sm:$0xff]
    %v2845 = vld [vmem:[%s2832 + $0x60] sm:$0xff]
    %v2846 = vld [vmem:[%s2832 + $0x68] sm:$0xff]
    %v2847 = vld [vmem:[%s2832 + $0x70] sm:$0xff]
    %v2848 = vld [vmem:[%s2832 + $0x78] sm:$0xff]
    %2849 = vmatprep.subr.mxu0 0.0
    %2850 = vmatpush1.msra.mxu0 %v2833
    %2851 = vmatprep.subr.mxu0 0.0
    %2852 = vmatpush1.msra.mxu0 %v2834
    %2853 = vmatprep.subr.mxu0 0.0
    %2854 = vmatpush1.msra.mxu0 %v2835
    %2855 = vmatprep.subr.mxu0 0.0
    %2856 = vmatpush1.msra.mxu0 %v2836
    %2857 = vmatprep.subr.mxu0 0.0
    %2858 = vmatpush1.msra.mxu0 %v2837
    %2859 = vmatprep.subr.mxu0 0.0
    %2860 = vmatpush1.msra.mxu0 %v2838
    %2861 = vmatprep.subr.mxu0 0.0
    %2862 = vmatpush1.msra.mxu0 %v2839
    %2863 = vmatprep.subr.mxu0 0.0
    %2864 = vmatpush1.msra.mxu0 %v2840
    %2865 = vmatprep.subr.mxu0 0.0
    %2866 = vmatpush1.msra.mxu0 %v2841
    %2867 = vmatprep.subr.mxu0 0.0
    %2868 = vmatpush1.msra.mxu0 %v2842
    %2869 = vmatprep.subr.mxu0 0.0
    %2870 = vmatpush1.msra.mxu0 %v2843
    %2871 = vmatprep.subr.mxu0 0.0
    %2872 = vmatpush1.msra.mxu0 %v2844
    %2873 = vmatprep.subr.mxu0 0.0
    %2874 = vmatpush1.msra.mxu0 %v2845
    %2875 = vmatprep.subr.mxu0 0.0
    %2876 = vmatpush1.msra.mxu0 %v2846
    %2877 = vmatprep.subr.mxu0 0.0
    %2878 = vmatpush1.msra.mxu0 %v2847
    %2879 = vmatprep.subr.mxu0 0.0
    %2880 = vmatpush1.msra.mxu0 %v2848
    %2881 = vmatprep.subr.mxu0 0.0
    %2882 = vmatpush1.msra.mxu0 0.0
    %2883 = vmatprep.subr.mxu0 0.0
    %2884 = vmatpush1.msra.mxu0 0.0
    %2885 = vmatprep.subr.mxu0 0.0
    %2886 = vmatpush1.msra.mxu0 0.0
    %2887 = vmatprep.subr.mxu0 0.0
    %2888 = vmatpush1.msra.mxu0 0.0
    %2889 = vmatprep.subr.mxu0 0.0
    %2890 = vmatpush1.msra.mxu0 0.0
    %2891 = vmatprep.subr.mxu0 0.0
    %2892 = vmatpush1.msra.mxu0 0.0
    %2893 = vmatprep.subr.mxu0 0.0
    %2894 = vmatpush1.msra.mxu0 0.0
    %2895 = vmatprep.subr.mxu0 0.0
    %2896 = vmatpush1.msra.mxu0 0.0
    %2897 = vmatprep.subr.mxu0 0.0
    %2898 = vmatpush1.msra.mxu0 0.0
    %2899 = vmatprep.subr.mxu0 0.0
    %2900 = vmatpush1.msra.mxu0 0.0
    %2901 = vmatprep.subr.mxu0 0.0
    %2902 = vmatpush1.msra.mxu0 0.0
    %2903 = vmatprep.subr.mxu0 0.0
    %2904 = vmatpush1.msra.mxu0 0.0
    %2905 = vmatprep.subr.mxu0 0.0
    %2906 = vmatpush1.msra.mxu0 0.0
    %2907 = vmatprep.subr.mxu0 0.0
    %2908 = vmatpush1.msra.mxu0 0.0
    %2909 = vmatprep.subr.mxu0 0.0
    %2910 = vmatpush1.msra.mxu0 0.0
    %2911 = vmatprep.subr.mxu0 0.0
    %2912 = vmatpush1.msra.mxu0 0.0
    %2913 = vmatprep.mubr.f32.mxu0 0.0
    %2914 = vmatmul.mubr.f32.gmra.mrb[0].mxu0 %v2819
    %v2915 = vpop.f32.mrb[0].mxu0
    %v2916 = vadd.f32 0.0, %v2915
    %v2917 = vpop.f32.mrb[0].mxu0
    %2918 = vmatprep.mubr.f32.mxu0 0.0
    %2919 = vmatmul.mubr.f32.gmra.mrb[0].mxu0 %v2824
    %v2920 = vpop.f32.mrb[0].mxu0
    %v2921 = vadd.f32 0.0, %v2920
    %v2922 = vpop.f32.mrb[0].mxu0
    %2923 = vmatprep.mubr.f32.mxu0 0.0
    %2924 = vmatmul.mubr.f32.gmra.mrb[0].mxu0 %v2829
    %v2925 = vpop.f32.mrb[0].mxu0
    %v2926 = vadd.f32 0.0, %v2925
    %v2927 = vpop.f32.mrb[0].mxu0
    %2928 = vdwg.mxu0
    %v2929 = vadd.f32 %v2736, %v2916
    %v2930 = vadd.f32 %v2737, %v2921
    %v2931 = vadd.f32 %v2738, %v2926
    %vm2932 = vcmp.gt.f32.partialorder %v2929, 0.0
    %vm2933 = vcmp.gt.f32.partialorder %v2930, 0.0
    %vm2934 = vcmp.gt.f32.partialorder %v2931, 0.0
    %v2935 = vmin.f32 %v2929, 0.0
    %v2936 = vmin.f32 %v2930, 0.0
    %v2937 = vmin.f32 %v2931, 0.0
    %v2938 = vmul.f32 %v2935, 1.442695
    %v2939 = vpow.pop %v2938
    %v2940 = vmul.f32 %v2936, 1.442695
    %v2941 = vpow.pop %v2940
    %v2942 = vmul.f32 %v2937, 1.442695
    %v2943 = vpow.pop %v2942
    %v2944 = vsub.f32 %v2939, 1.0
    %v2945 = vsub.f32 %v2941, 1.0
    %v2946 = vsub.f32 %v2943, 1.0
    %v2947 = vsel %vm2932, %v2929, %v2944
    %v2948 = vsel %vm2933, %v2930, %v2945
    %v2949 = vsel %vm2934, %v2931, %v2946
    %v2950 = vld [vmem:[#allocation25] sm:$0xff]
    %v2951 = vld [vmem:[#allocation25 + $0x8] sm:$0x3]
    %v2953 = vsel %vm1775, %v2950, 0
    %v2956 = vsel %vm1775, %v2951, 0
    %v2959 = vsel %vm319, %v2949, 0
    %2961 = vmatprep.subr.mxu0 0.0
    %2962 = vmatpush1.msra.mxu0 %v2947
    %2963 = vmatprep.subr.mxu0 0.0
    %2964 = vmatpush1.msra.mxu0 %v2948
    %2965 = vmatprep.subr.mxu0 0.0
    %2966 = vmatpush1.msra.mxu0 %v2959
    %2967 = vmatprep.subr.mxu0 0.0
    %2968 = vmatpush1.msra.mxu0 0.0
    %2969 = vmatprep.subr.mxu0 0.0
    %2970 = vmatpush1.msra.mxu0 0.0
    %2971 = vmatprep.subr.mxu0 0.0
    %2972 = vmatpush1.msra.mxu0 0.0
    %2973 = vmatprep.subr.mxu0 0.0
    %2974 = vmatpush1.msra.mxu0 0.0
    %2975 = vmatprep.subr.mxu0 0.0
    %2976 = vmatpush1.msra.mxu0 0.0
    %2977 = vmatprep.subr.mxu0 0.0
    %2978 = vmatpush1.msra.mxu0 0.0
    %2979 = vmatprep.subr.mxu0 0.0
    %2980 = vmatpush1.msra.mxu0 0.0
    %2981 = vmatprep.subr.mxu0 0.0
    %2982 = vmatpush1.msra.mxu0 0.0
    %2983 = vmatprep.subr.mxu0 0.0
    %2984 = vmatpush1.msra.mxu0 0.0
    %2985 = vmatprep.subr.mxu0 0.0
    %2986 = vmatpush1.msra.mxu0 0.0
    %2987 = vmatprep.subr.mxu0 0.0
    %2988 = vmatpush1.msra.mxu0 0.0
    %2989 = vmatprep.subr.mxu0 0.0
    %2990 = vmatpush1.msra.mxu0 0.0
    %2991 = vmatprep.subr.mxu0 0.0
    %2992 = vmatpush1.msra.mxu0 0.0
    %2993 = vmatprep.subr.mxu0 0.0
    %2994 = vmatpush1.msra.mxu0 0.0
    %2995 = vmatprep.subr.mxu0 0.0
    %2996 = vmatpush1.msra.mxu0 0.0
    %2997 = vmatprep.subr.mxu0 0.0
    %2998 = vmatpush1.msra.mxu0 0.0
    %2999 = vmatprep.subr.mxu0 0.0
    %3000 = vmatpush1.msra.mxu0 0.0
    %3001 = vmatprep.subr.mxu0 0.0
    %3002 = vmatpush1.msra.mxu0 0.0
    %3003 = vmatprep.subr.mxu0 0.0
    %3004 = vmatpush1.msra.mxu0 0.0
    %3005 = vmatprep.subr.mxu0 0.0
    %3006 = vmatpush1.msra.mxu0 0.0
    %3007 = vmatprep.subr.mxu0 0.0
    %3008 = vmatpush1.msra.mxu0 0.0
    %3009 = vmatprep.subr.mxu0 0.0
    %3010 = vmatpush1.msra.mxu0 0.0
    %3011 = vmatprep.subr.mxu0 0.0
    %3012 = vmatpush1.msra.mxu0 0.0
    %3013 = vmatprep.subr.mxu0 0.0
    %3014 = vmatpush1.msra.mxu0 0.0
    %3015 = vmatprep.subr.mxu0 0.0
    %3016 = vmatpush1.msra.mxu0 0.0
    %3017 = vmatprep.subr.mxu0 0.0
    %3018 = vmatpush1.msra.mxu0 0.0
    %3019 = vmatprep.subr.mxu0 0.0
    %3020 = vmatpush1.msra.mxu0 0.0
    %3021 = vmatprep.subr.mxu0 0.0
    %3022 = vmatpush1.msra.mxu0 0.0
    %3023 = vmatprep.subr.mxu0 0.0
    %3024 = vmatpush1.msra.mxu0 0.0
    %3025 = vmatprep.mubr.f32.mxu0 0.0
    %3026 = vmatmul.mubr.f32.gmra.mrb[0].mxu0 %v2953
    %v3027 = vpop.f32.mrb[0].mxu0
    %v3028 = vadd.f32 0.0, %v3027
    %v3029 = vpop.f32.mrb[0].mxu0
    %3030 = vmatprep.mubr.f32.mxu0 0.0
    %3031 = vmatmul.mubr.f32.gmra.mrb[0].mxu0 %v2956
    %v3032 = vpop.f32.mrb[0].mxu0
    %v3033 = vadd.f32 0.0, %v3032
    %v3034 = vpop.f32.mrb[0].mxu0
    %3035 = vdwg.mxu0
    %v3036 = vld [vmem:[#allocation13] sm:$0x1]
    %v3038 = vlaneseq
    %v3039 = vshrl.u32 %v3038, 7
    %v3040 = vsub.s32 0, %v3039
    %v3041 = vrot.slane %v3036, %v3040
    %v3043 = vadd.f32 %v3041, 0.0
    %v3044 = vld [vmem:[#allocation14] sm:$0x3]
    %vm3045 = vcmask 80896
    %v3047 = vsel %vm3045, %v3044, 0
    %v3050 = vsel %vm319, %v3033, 0
    %3052 = vmatprep.subr.mxu0 0.0
    %3053 = vmatpush1.msra.mxu0 %v3028
    %3054 = vmatprep.subr.mxu0 0.0
    %3055 = vmatpush1.msra.mxu0 %v3050
    %3056 = vmatprep.subr.mxu0 0.0
    %3057 = vmatpush1.msra.mxu0 0.0
    %3058 = vmatprep.subr.mxu0 0.0
    %3059 = vmatpush1.msra.mxu0 0.0
    %3060 = vmatprep.subr.mxu0 0.0
    %3061 = vmatpush1.msra.mxu0 0.0
    %3062 = vmatprep.subr.mxu0 0.0
    %3063 = vmatpush1.msra.mxu0 0.0
    %3064 = vmatprep.subr.mxu0 0.0
    %3065 = vmatpush1.msra.mxu0 0.0
    %3066 = vmatprep.subr.mxu0 0.0
    %3067 = vmatpush1.msra.mxu0 0.0
    %3068 = vmatprep.subr.mxu0 0.0
    %3069 = vmatpush1.msra.mxu0 0.0
    %3070 = vmatprep.subr.mxu0 0.0
    %3071 = vmatpush1.msra.mxu0 0.0
    %3072 = vmatprep.subr.mxu0 0.0
    %3073 = vmatpush1.msra.mxu0 0.0
    %3074 = vmatprep.subr.mxu0 0.0
    %3075 = vmatpush1.msra.mxu0 0.0
    %3076 = vmatprep.subr.mxu0 0.0
    %3077 = vmatpush1.msra.mxu0 0.0
    %3078 = vmatprep.subr.mxu0 0.0
    %3079 = vmatpush1.msra.mxu0 0.0
    %3080 = vmatprep.subr.mxu0 0.0
    %3081 = vmatpush1.msra.mxu0 0.0
    %3082 = vmatprep.subr.mxu0 0.0
    %3083 = vmatpush1.msra.mxu0 0.0
    %3084 = vmatprep.subr.mxu0 0.0
    %3085 = vmatpush1.msra.mxu0 0.0
    %3086 = vmatprep.subr.mxu0 0.0
    %3087 = vmatpush1.msra.mxu0 0.0
    %3088 = vmatprep.subr.mxu0 0.0
    %3089 = vmatpush1.msra.mxu0 0.0
    %3090 = vmatprep.subr.mxu0 0.0
    %3091 = vmatpush1.msra.mxu0 0.0
    %3092 = vmatprep.subr.mxu0 0.0
    %3093 = vmatpush1.msra.mxu0 0.0
    %3094 = vmatprep.subr.mxu0 0.0
    %3095 = vmatpush1.msra.mxu0 0.0
    %3096 = vmatprep.subr.mxu0 0.0
    %3097 = vmatpush1.msra.mxu0 0.0
    %3098 = vmatprep.subr.mxu0 0.0
    %3099 = vmatpush1.msra.mxu0 0.0
    %3100 = vmatprep.subr.mxu0 0.0
    %3101 = vmatpush1.msra.mxu0 0.0
    %3102 = vmatprep.subr.mxu0 0.0
    %3103 = vmatpush1.msra.mxu0 0.0
    %3104 = vmatprep.subr.mxu0 0.0
    %3105 = vmatpush1.msra.mxu0 0.0
    %3106 = vmatprep.subr.mxu0 0.0
    %3107 = vmatpush1.msra.mxu0 0.0
    %3108 = vmatprep.subr.mxu0 0.0
    %3109 = vmatpush1.msra.mxu0 0.0
    %3110 = vmatprep.subr.mxu0 0.0
    %3111 = vmatpush1.msra.mxu0 0.0
    %3112 = vmatprep.subr.mxu0 0.0
    %3113 = vmatpush1.msra.mxu0 0.0
    %3114 = vmatprep.subr.mxu0 0.0
    %3115 = vmatpush1.msra.mxu0 0.0
    %3116 = vmatprep.mubr.f32.mxu0 0.0
    %3117 = vmatmul.mubr.f32.gmra.mrb[0].mxu0 %v3047
    %v3118 = vpop.f32.mrb[0].mxu0
    %v3119 = vadd.f32 0.0, %v3118
    %v3120 = vpop.f32.mrb[0].mxu0
    %3121 = vdwg.mxu0
    %v3122 = vld [vmem:[#allocation11] sm:$0xff]
    %v3123 = vld [vmem:[#allocation11 + $0x8] sm:$0xff]
    %v3124 = vld [vmem:[#allocation11 + $0x10] sm:$0xff]
    %v3125 = vld [vmem:[#allocation11 + $0x18] sm:$0xff]
    %v3126 = vld [vmem:[#allocation11 + $0x20] sm:$0xff]
    %v3127 = vld [vmem:[#allocation11 + $0x28] sm:$0xff]
    %v3128 = vld [vmem:[#allocation11 + $0x30] sm:$0xff]
    %v3129 = vld [vmem:[#allocation11 + $0x38] sm:$0xff]
    %v3130 = vld [vmem:[#allocation11 + $0x40] sm:$0xff]
    %v3131 = vld [vmem:[#allocation11 + $0x48] sm:$0xff]
    %v3132 = vld [vmem:[#allocation11 + $0x50] sm:$0xff]
    %v3133 = vld [vmem:[#allocation11 + $0x58] sm:$0xff]
    %v3134 = vld [vmem:[#allocation11 + $0x60] sm:$0xff]
    %v3135 = vld [vmem:[#allocation11 + $0x68] sm:$0xff]
    %v3136 = vld [vmem:[#allocation11 + $0x70] sm:$0xff]
    %v3137 = vld [vmem:[#allocation11 + $0x78] sm:$0xff]
    %3138 = vmatprep.subr.mxu0 0.0
    %3139 = vmatpush1.msra.mxu0 %v3122
    %3140 = vmatprep.subr.mxu0 0.0
    %3141 = vmatpush1.msra.mxu0 %v3123
    %3142 = vmatprep.subr.mxu0 0.0
    %3143 = vmatpush1.msra.mxu0 %v3124
    %3144 = vmatprep.subr.mxu0 0.0
    %3145 = vmatpush1.msra.mxu0 %v3125
    %3146 = vmatprep.subr.mxu0 0.0
    %3147 = vmatpush1.msra.mxu0 %v3126
    %3148 = vmatprep.subr.mxu0 0.0
    %3149 = vmatpush1.msra.mxu0 %v3127
    %3150 = vmatprep.subr.mxu0 0.0
    %3151 = vmatpush1.msra.mxu0 %v3128
    %3152 = vmatprep.subr.mxu0 0.0
    %3153 = vmatpush1.msra.mxu0 %v3129
    %3154 = vmatprep.subr.mxu0 0.0
    %3155 = vmatpush1.msra.mxu0 %v3130
    %3156 = vmatprep.subr.mxu0 0.0
    %3157 = vmatpush1.msra.mxu0 %v3131
    %3158 = vmatprep.subr.mxu0 0.0
    %3159 = vmatpush1.msra.mxu0 %v3132
    %3160 = vmatprep.subr.mxu0 0.0
    %3161 = vmatpush1.msra.mxu0 %v3133
    %3162 = vmatprep.subr.mxu0 0.0
    %3163 = vmatpush1.msra.mxu0 %v3134
    %3164 = vmatprep.subr.mxu0 0.0
    %3165 = vmatpush1.msra.mxu0 %v3135
    %3166 = vmatprep.subr.mxu0 0.0
    %3167 = vmatpush1.msra.mxu0 %v3136
    %3168 = vmatprep.subr.mxu0 0.0
    %3169 = vmatpush1.msra.mxu0 %v3137
    %3170 = vmatprep.subr.mxu0 0.0
    %3171 = vmatpush1.msra.mxu0 0.0
    %3172 = vmatprep.subr.mxu0 0.0
    %3173 = vmatpush1.msra.mxu0 0.0
    %3174 = vmatprep.subr.mxu0 0.0
    %3175 = vmatpush1.msra.mxu0 0.0
    %3176 = vmatprep.subr.mxu0 0.0
    %3177 = vmatpush1.msra.mxu0 0.0
    %3178 = vmatprep.subr.mxu0 0.0
    %3179 = vmatpush1.msra.mxu0 0.0
    %3180 = vmatprep.subr.mxu0 0.0
    %3181 = vmatpush1.msra.mxu0 0.0
    %3182 = vmatprep.subr.mxu0 0.0
    %3183 = vmatpush1.msra.mxu0 0.0
    %3184 = vmatprep.subr.mxu0 0.0
    %3185 = vmatpush1.msra.mxu0 0.0
    %3186 = vmatprep.subr.mxu0 0.0
    %3187 = vmatpush1.msra.mxu0 0.0
    %3188 = vmatprep.subr.mxu0 0.0
    %3189 = vmatpush1.msra.mxu0 0.0
    %3190 = vmatprep.subr.mxu0 0.0
    %3191 = vmatpush1.msra.mxu0 0.0
    %3192 = vmatprep.subr.mxu0 0.0
    %3193 = vmatpush1.msra.mxu0 0.0
    %3194 = vmatprep.subr.mxu0 0.0
    %3195 = vmatpush1.msra.mxu0 0.0
    %3196 = vmatprep.subr.mxu0 0.0
    %3197 = vmatpush1.msra.mxu0 0.0
    %3198 = vmatprep.subr.mxu0 0.0
    %3199 = vmatpush1.msra.mxu0 0.0
    %3200 = vmatprep.subr.mxu0 0.0
    %3201 = vmatpush1.msra.mxu0 0.0
    %3202 = vmatprep.mubr.f32.mxu0 0.0
    %3203 = vmatmul.mubr.f32.gmra.mrb[0].mxu0 %v3119
    %v3204 = vpop.f32.mrb[0].mxu0
    %v3205 = vadd.f32 0.0, %v3204
    %v3206 = vpop.f32.mrb[0].mxu0
    %3207 = vdwg.mxu0
    %v3208 = vadd.f32 %v3043, %v3205
    %s3209 = scalar_lea.vmem [#allocation14], 2
    %v3210 = vld [vmem:[%s3209] sm:$0x3]
    %v3212 = vsel %vm3045, %v3210, 0
    %3214 = vmatprep.subr.mxu0 0.0
    %3215 = vmatpush1.msra.mxu0 %v3028
    %3216 = vmatprep.subr.mxu0 0.0
    %3217 = vmatpush1.msra.mxu0 %v3050
    %3218 = vmatprep.subr.mxu0 0.0
    %3219 = vmatpush1.msra.mxu0 0.0
    %3220 = vmatprep.subr.mxu0 0.0
    %3221 = vmatpush1.msra.mxu0 0.0
    %3222 = vmatprep.subr.mxu0 0.0
    %3223 = vmatpush1.msra.mxu0 0.0
    %3224 = vmatprep.subr.mxu0 0.0
    %3225 = vmatpush1.msra.mxu0 0.0
    %3226 = vmatprep.subr.mxu0 0.0
    %3227 = vmatpush1.msra.mxu0 0.0
    %3228 = vmatprep.subr.mxu0 0.0
    %3229 = vmatpush1.msra.mxu0 0.0
    %3230 = vmatprep.subr.mxu0 0.0
    %3231 = vmatpush1.msra.mxu0 0.0
    %3232 = vmatprep.subr.mxu0 0.0
    %3233 = vmatpush1.msra.mxu0 0.0
    %3234 = vmatprep.subr.mxu0 0.0
    %3235 = vmatpush1.msra.mxu0 0.0
    %3236 = vmatprep.subr.mxu0 0.0
    %3237 = vmatpush1.msra.mxu0 0.0
    %3238 = vmatprep.subr.mxu0 0.0
    %3239 = vmatpush1.msra.mxu0 0.0
    %3240 = vmatprep.subr.mxu0 0.0
    %3241 = vmatpush1.msra.mxu0 0.0
    %3242 = vmatprep.subr.mxu0 0.0
    %3243 = vmatpush1.msra.mxu0 0.0
    %3244 = vmatprep.subr.mxu0 0.0
    %3245 = vmatpush1.msra.mxu0 0.0
    %3246 = vmatprep.subr.mxu0 0.0
    %3247 = vmatpush1.msra.mxu0 0.0
    %3248 = vmatprep.subr.mxu0 0.0
    %3249 = vmatpush1.msra.mxu0 0.0
    %3250 = vmatprep.subr.mxu0 0.0
    %3251 = vmatpush1.msra.mxu0 0.0
    %3252 = vmatprep.subr.mxu0 0.0
    %3253 = vmatpush1.msra.mxu0 0.0
    %3254 = vmatprep.subr.mxu0 0.0
    %3255 = vmatpush1.msra.mxu0 0.0
    %3256 = vmatprep.subr.mxu0 0.0
    %3257 = vmatpush1.msra.mxu0 0.0
    %3258 = vmatprep.subr.mxu0 0.0
    %3259 = vmatpush1.msra.mxu0 0.0
    %3260 = vmatprep.subr.mxu0 0.0
    %3261 = vmatpush1.msra.mxu0 0.0
    %3262 = vmatprep.subr.mxu0 0.0
    %3263 = vmatpush1.msra.mxu0 0.0
    %3264 = vmatprep.subr.mxu0 0.0
    %3265 = vmatpush1.msra.mxu0 0.0
    %3266 = vmatprep.subr.mxu0 0.0
    %3267 = vmatpush1.msra.mxu0 0.0
    %3268 = vmatprep.subr.mxu0 0.0
    %3269 = vmatpush1.msra.mxu0 0.0
    %3270 = vmatprep.subr.mxu0 0.0
    %3271 = vmatpush1.msra.mxu0 0.0
    %3272 = vmatprep.subr.mxu0 0.0
    %3273 = vmatpush1.msra.mxu0 0.0
    %3274 = vmatprep.subr.mxu0 0.0
    %3275 = vmatpush1.msra.mxu0 0.0
    %3276 = vmatprep.subr.mxu0 0.0
    %3277 = vmatpush1.msra.mxu0 0.0
    %3278 = vmatprep.mubr.f32.mxu0 0.0
    %3279 = vmatmul.mubr.f32.gmra.mrb[0].mxu0 %v3212
    %v3280 = vpop.f32.mrb[0].mxu0
    %v3281 = vadd.f32 0.0, %v3280
    %v3282 = vpop.f32.mrb[0].mxu0
    %3283 = vdwg.mxu0
    %s3284 = scalar_lea.vmem [#allocation11], 128
    %v3285 = vld [vmem:[%s3284] sm:$0xff]
    %v3286 = vld [vmem:[%s3284 + $0x8] sm:$0xff]
    %v3287 = vld [vmem:[%s3284 + $0x10] sm:$0xff]
    %v3288 = vld [vmem:[%s3284 + $0x18] sm:$0xff]
    %v3289 = vld [vmem:[%s3284 + $0x20] sm:$0xff]
    %v3290 = vld [vmem:[%s3284 + $0x28] sm:$0xff]
    %v3291 = vld [vmem:[%s3284 + $0x30] sm:$0xff]
    %v3292 = vld [vmem:[%s3284 + $0x38] sm:$0xff]
    %v3293 = vld [vmem:[%s3284 + $0x40] sm:$0xff]
    %v3294 = vld [vmem:[%s3284 + $0x48] sm:$0xff]
    %v3295 = vld [vmem:[%s3284 + $0x50] sm:$0xff]
    %v3296 = vld [vmem:[%s3284 + $0x58] sm:$0xff]
    %v3297 = vld [vmem:[%s3284 + $0x60] sm:$0xff]
    %v3298 = vld [vmem:[%s3284 + $0x68] sm:$0xff]
    %v3299 = vld [vmem:[%s3284 + $0x70] sm:$0xff]
    %v3300 = vld [vmem:[%s3284 + $0x78] sm:$0xff]
    %3301 = vmatprep.subr.mxu0 0.0
    %3302 = vmatpush1.msra.mxu0 %v3285
    %3303 = vmatprep.subr.mxu0 0.0
    %3304 = vmatpush1.msra.mxu0 %v3286
    %3305 = vmatprep.subr.mxu0 0.0
    %3306 = vmatpush1.msra.mxu0 %v3287
    %3307 = vmatprep.subr.mxu0 0.0
    %3308 = vmatpush1.msra.mxu0 %v3288
    %3309 = vmatprep.subr.mxu0 0.0
    %3310 = vmatpush1.msra.mxu0 %v3289
    %3311 = vmatprep.subr.mxu0 0.0
    %3312 = vmatpush1.msra.mxu0 %v3290
    %3313 = vmatprep.subr.mxu0 0.0
    %3314 = vmatpush1.msra.mxu0 %v3291
    %3315 = vmatprep.subr.mxu0 0.0
    %3316 = vmatpush1.msra.mxu0 %v3292
    %3317 = vmatprep.subr.mxu0 0.0
    %3318 = vmatpush1.msra.mxu0 %v3293
    %3319 = vmatprep.subr.mxu0 0.0
    %3320 = vmatpush1.msra.mxu0 %v3294
    %3321 = vmatprep.subr.mxu0 0.0
    %3322 = vmatpush1.msra.mxu0 %v3295
    %3323 = vmatprep.subr.mxu0 0.0
    %3324 = vmatpush1.msra.mxu0 %v3296
    %3325 = vmatprep.subr.mxu0 0.0
    %3326 = vmatpush1.msra.mxu0 %v3297
    %3327 = vmatprep.subr.mxu0 0.0
    %3328 = vmatpush1.msra.mxu0 %v3298
    %3329 = vmatprep.subr.mxu0 0.0
    %3330 = vmatpush1.msra.mxu0 %v3299
    %3331 = vmatprep.subr.mxu0 0.0
    %3332 = vmatpush1.msra.mxu0 %v3300
    %3333 = vmatprep.subr.mxu0 0.0
    %3334 = vmatpush1.msra.mxu0 0.0
    %3335 = vmatprep.subr.mxu0 0.0
    %3336 = vmatpush1.msra.mxu0 0.0
    %3337 = vmatprep.subr.mxu0 0.0
    %3338 = vmatpush1.msra.mxu0 0.0
    %3339 = vmatprep.subr.mxu0 0.0
    %3340 = vmatpush1.msra.mxu0 0.0
    %3341 = vmatprep.subr.mxu0 0.0
    %3342 = vmatpush1.msra.mxu0 0.0
    %3343 = vmatprep.subr.mxu0 0.0
    %3344 = vmatpush1.msra.mxu0 0.0
    %3345 = vmatprep.subr.mxu0 0.0
    %3346 = vmatpush1.msra.mxu0 0.0
    %3347 = vmatprep.subr.mxu0 0.0
    %3348 = vmatpush1.msra.mxu0 0.0
    %3349 = vmatprep.subr.mxu0 0.0
    %3350 = vmatpush1.msra.mxu0 0.0
    %3351 = vmatprep.subr.mxu0 0.0
    %3352 = vmatpush1.msra.mxu0 0.0
    %3353 = vmatprep.subr.mxu0 0.0
    %3354 = vmatpush1.msra.mxu0 0.0
    %3355 = vmatprep.subr.mxu0 0.0
    %3356 = vmatpush1.msra.mxu0 0.0
    %3357 = vmatprep.subr.mxu0 0.0
    %3358 = vmatpush1.msra.mxu0 0.0
    %3359 = vmatprep.subr.mxu0 0.0
    %3360 = vmatpush1.msra.mxu0 0.0
    %3361 = vmatprep.subr.mxu0 0.0
    %3362 = vmatpush1.msra.mxu0 0.0
    %3363 = vmatprep.subr.mxu0 0.0
    %3364 = vmatpush1.msra.mxu0 0.0
    %3365 = vmatprep.mubr.f32.mxu0 0.0
    %3366 = vmatmul.mubr.f32.gmra.mrb[0].mxu0 %v3281
    %v3367 = vpop.f32.mrb[0].mxu0
    %v3368 = vadd.f32 0.0, %v3367
    %v3369 = vpop.f32.mrb[0].mxu0
    %3370 = vdwg.mxu0
    %v3371 = vadd.f32 %v3208, %v3368
    %s3372 = scalar_lea.vmem [#allocation14], 4
    %v3373 = vld [vmem:[%s3372] sm:$0x3]
    %v3375 = vsel %vm3045, %v3373, 0
    %3377 = vmatprep.subr.mxu0 0.0
    %3378 = vmatpush1.msra.mxu0 %v3028
    %3379 = vmatprep.subr.mxu0 0.0
    %3380 = vmatpush1.msra.mxu0 %v3050
    %3381 = vmatprep.subr.mxu0 0.0
    %3382 = vmatpush1.msra.mxu0 0.0
    %3383 = vmatprep.subr.mxu0 0.0
    %3384 = vmatpush1.msra.mxu0 0.0
    %3385 = vmatprep.subr.mxu0 0.0
    %3386 = vmatpush1.msra.mxu0 0.0
    %3387 = vmatprep.subr.mxu0 0.0
    %3388 = vmatpush1.msra.mxu0 0.0
    %3389 = vmatprep.subr.mxu0 0.0
    %3390 = vmatpush1.msra.mxu0 0.0
    %3391 = vmatprep.subr.mxu0 0.0
    %3392 = vmatpush1.msra.mxu0 0.0
    %3393 = vmatprep.subr.mxu0 0.0
    %3394 = vmatpush1.msra.mxu0 0.0
    %3395 = vmatprep.subr.mxu0 0.0
    %3396 = vmatpush1.msra.mxu0 0.0
    %3397 = vmatprep.subr.mxu0 0.0
    %3398 = vmatpush1.msra.mxu0 0.0
    %3399 = vmatprep.subr.mxu0 0.0
    %3400 = vmatpush1.msra.mxu0 0.0
    %3401 = vmatprep.subr.mxu0 0.0
    %3402 = vmatpush1.msra.mxu0 0.0
    %3403 = vmatprep.subr.mxu0 0.0
    %3404 = vmatpush1.msra.mxu0 0.0
    %3405 = vmatprep.subr.mxu0 0.0
    %3406 = vmatpush1.msra.mxu0 0.0
    %3407 = vmatprep.subr.mxu0 0.0
    %3408 = vmatpush1.msra.mxu0 0.0
    %3409 = vmatprep.subr.mxu0 0.0
    %3410 = vmatpush1.msra.mxu0 0.0
    %3411 = vmatprep.subr.mxu0 0.0
    %3412 = vmatpush1.msra.mxu0 0.0
    %3413 = vmatprep.subr.mxu0 0.0
    %3414 = vmatpush1.msra.mxu0 0.0
    %3415 = vmatprep.subr.mxu0 0.0
    %3416 = vmatpush1.msra.mxu0 0.0
    %3417 = vmatprep.subr.mxu0 0.0
    %3418 = vmatpush1.msra.mxu0 0.0
    %3419 = vmatprep.subr.mxu0 0.0
    %3420 = vmatpush1.msra.mxu0 0.0
    %3421 = vmatprep.subr.mxu0 0.0
    %3422 = vmatpush1.msra.mxu0 0.0
    %3423 = vmatprep.subr.mxu0 0.0
    %3424 = vmatpush1.msra.mxu0 0.0
    %3425 = vmatprep.subr.mxu0 0.0
    %3426 = vmatpush1.msra.mxu0 0.0
    %3427 = vmatprep.subr.mxu0 0.0
    %3428 = vmatpush1.msra.mxu0 0.0
    %3429 = vmatprep.subr.mxu0 0.0
    %3430 = vmatpush1.msra.mxu0 0.0
    %3431 = vmatprep.subr.mxu0 0.0
    %3432 = vmatpush1.msra.mxu0 0.0
    %3433 = vmatprep.subr.mxu0 0.0
    %3434 = vmatpush1.msra.mxu0 0.0
    %3435 = vmatprep.subr.mxu0 0.0
    %3436 = vmatpush1.msra.mxu0 0.0
    %3437 = vmatprep.subr.mxu0 0.0
    %3438 = vmatpush1.msra.mxu0 0.0
    %3439 = vmatprep.subr.mxu0 0.0
    %3440 = vmatpush1.msra.mxu0 0.0
    %3441 = vmatprep.mubr.f32.mxu0 0.0
    %3442 = vmatmul.mubr.f32.gmra.mrb[0].mxu0 %v3375
    %v3443 = vpop.f32.mrb[0].mxu0
    %v3444 = vadd.f32 0.0, %v3443
    %v3445 = vpop.f32.mrb[0].mxu0
    %3446 = vdwg.mxu0
    %s3447 = scalar_lea.vmem [#allocation11], 256
    %v3448 = vld [vmem:[%s3447] sm:$0xff]
    %v3449 = vld [vmem:[%s3447 + $0x8] sm:$0xff]
    %v3450 = vld [vmem:[%s3447 + $0x10] sm:$0xff]
    %v3451 = vld [vmem:[%s3447 + $0x18] sm:$0xff]
    %v3452 = vld [vmem:[%s3447 + $0x20] sm:$0xff]
    %v3453 = vld [vmem:[%s3447 + $0x28] sm:$0xff]
    %v3454 = vld [vmem:[%s3447 + $0x30] sm:$0xff]
    %v3455 = vld [vmem:[%s3447 + $0x38] sm:$0xff]
    %v3456 = vld [vmem:[%s3447 + $0x40] sm:$0xff]
    %v3457 = vld [vmem:[%s3447 + $0x48] sm:$0xff]
    %v3458 = vld [vmem:[%s3447 + $0x50] sm:$0xff]
    %v3459 = vld [vmem:[%s3447 + $0x58] sm:$0xff]
    %v3460 = vld [vmem:[%s3447 + $0x60] sm:$0xff]
    %v3461 = vld [vmem:[%s3447 + $0x68] sm:$0xff]
    %v3462 = vld [vmem:[%s3447 + $0x70] sm:$0xff]
    %v3463 = vld [vmem:[%s3447 + $0x78] sm:$0xff]
    %3464 = vmatprep.subr.mxu0 0.0
    %3465 = vmatpush1.msra.mxu0 %v3448
    %3466 = vmatprep.subr.mxu0 0.0
    %3467 = vmatpush1.msra.mxu0 %v3449
    %3468 = vmatprep.subr.mxu0 0.0
    %3469 = vmatpush1.msra.mxu0 %v3450
    %3470 = vmatprep.subr.mxu0 0.0
    %3471 = vmatpush1.msra.mxu0 %v3451
    %3472 = vmatprep.subr.mxu0 0.0
    %3473 = vmatpush1.msra.mxu0 %v3452
    %3474 = vmatprep.subr.mxu0 0.0
    %3475 = vmatpush1.msra.mxu0 %v3453
    %3476 = vmatprep.subr.mxu0 0.0
    %3477 = vmatpush1.msra.mxu0 %v3454
    %3478 = vmatprep.subr.mxu0 0.0
    %3479 = vmatpush1.msra.mxu0 %v3455
    %3480 = vmatprep.subr.mxu0 0.0
    %3481 = vmatpush1.msra.mxu0 %v3456
    %3482 = vmatprep.subr.mxu0 0.0
    %3483 = vmatpush1.msra.mxu0 %v3457
    %3484 = vmatprep.subr.mxu0 0.0
    %3485 = vmatpush1.msra.mxu0 %v3458
    %3486 = vmatprep.subr.mxu0 0.0
    %3487 = vmatpush1.msra.mxu0 %v3459
    %3488 = vmatprep.subr.mxu0 0.0
    %3489 = vmatpush1.msra.mxu0 %v3460
    %3490 = vmatprep.subr.mxu0 0.0
    %3491 = vmatpush1.msra.mxu0 %v3461
    %3492 = vmatprep.subr.mxu0 0.0
    %3493 = vmatpush1.msra.mxu0 %v3462
    %3494 = vmatprep.subr.mxu0 0.0
    %3495 = vmatpush1.msra.mxu0 %v3463
    %3496 = vmatprep.subr.mxu0 0.0
    %3497 = vmatpush1.msra.mxu0 0.0
    %3498 = vmatprep.subr.mxu0 0.0
    %3499 = vmatpush1.msra.mxu0 0.0
    %3500 = vmatprep.subr.mxu0 0.0
    %3501 = vmatpush1.msra.mxu0 0.0
    %3502 = vmatprep.subr.mxu0 0.0
    %3503 = vmatpush1.msra.mxu0 0.0
    %3504 = vmatprep.subr.mxu0 0.0
    %3505 = vmatpush1.msra.mxu0 0.0
    %3506 = vmatprep.subr.mxu0 0.0
    %3507 = vmatpush1.msra.mxu0 0.0
    %3508 = vmatprep.subr.mxu0 0.0
    %3509 = vmatpush1.msra.mxu0 0.0
    %3510 = vmatprep.subr.mxu0 0.0
    %3511 = vmatpush1.msra.mxu0 0.0
    %3512 = vmatprep.subr.mxu0 0.0
    %3513 = vmatpush1.msra.mxu0 0.0
    %3514 = vmatprep.subr.mxu0 0.0
    %3515 = vmatpush1.msra.mxu0 0.0
    %3516 = vmatprep.subr.mxu0 0.0
    %3517 = vmatpush1.msra.mxu0 0.0
    %3518 = vmatprep.subr.mxu0 0.0
    %3519 = vmatpush1.msra.mxu0 0.0
    %3520 = vmatprep.subr.mxu0 0.0
    %3521 = vmatpush1.msra.mxu0 0.0
    %3522 = vmatprep.subr.mxu0 0.0
    %3523 = vmatpush1.msra.mxu0 0.0
    %3524 = vmatprep.subr.mxu0 0.0
    %3525 = vmatpush1.msra.mxu0 0.0
    %3526 = vmatprep.subr.mxu0 0.0
    %3527 = vmatpush1.msra.mxu0 0.0
    %3528 = vmatprep.mubr.f32.mxu0 0.0
    %3529 = vmatmul.mubr.f32.gmra.mrb[0].mxu0 %v3444
    %v3530 = vpop.f32.mrb[0].mxu0
    %v3531 = vadd.f32 0.0, %v3530
    %v3532 = vpop.f32.mrb[0].mxu0
    %3533 = vdwg.mxu0
    %v3534 = vadd.f32 %v3371, %v3531
    %s3535 = scalar_lea.vmem [#allocation14], 6
    %v3536 = vld [vmem:[%s3535] sm:$0x3]
    %v3538 = vsel %vm3045, %v3536, 0
    %3540 = vmatprep.subr.mxu0 0.0
    %3541 = vmatpush1.msra.mxu0 %v3028
    %3542 = vmatprep.subr.mxu0 0.0
    %3543 = vmatpush1.msra.mxu0 %v3050
    %3544 = vmatprep.subr.mxu0 0.0
    %3545 = vmatpush1.msra.mxu0 0.0
    %3546 = vmatprep.subr.mxu0 0.0
    %3547 = vmatpush1.msra.mxu0 0.0
    %3548 = vmatprep.subr.mxu0 0.0
    %3549 = vmatpush1.msra.mxu0 0.0
    %3550 = vmatprep.subr.mxu0 0.0
    %3551 = vmatpush1.msra.mxu0 0.0
    %3552 = vmatprep.subr.mxu0 0.0
    %3553 = vmatpush1.msra.mxu0 0.0
    %3554 = vmatprep.subr.mxu0 0.0
    %3555 = vmatpush1.msra.mxu0 0.0
    %3556 = vmatprep.subr.mxu0 0.0
    %3557 = vmatpush1.msra.mxu0 0.0
    %3558 = vmatprep.subr.mxu0 0.0
    %3559 = vmatpush1.msra.mxu0 0.0
    %3560 = vmatprep.subr.mxu0 0.0
    %3561 = vmatpush1.msra.mxu0 0.0
    %3562 = vmatprep.subr.mxu0 0.0
    %3563 = vmatpush1.msra.mxu0 0.0
    %3564 = vmatprep.subr.mxu0 0.0
    %3565 = vmatpush1.msra.mxu0 0.0
    %3566 = vmatprep.subr.mxu0 0.0
    %3567 = vmatpush1.msra.mxu0 0.0
    %3568 = vmatprep.subr.mxu0 0.0
    %3569 = vmatpush1.msra.mxu0 0.0
    %3570 = vmatprep.subr.mxu0 0.0
    %3571 = vmatpush1.msra.mxu0 0.0
    %3572 = vmatprep.subr.mxu0 0.0
    %3573 = vmatpush1.msra.mxu0 0.0
    %3574 = vmatprep.subr.mxu0 0.0
    %3575 = vmatpush1.msra.mxu0 0.0
    %3576 = vmatprep.subr.mxu0 0.0
    %3577 = vmatpush1.msra.mxu0 0.0
    %3578 = vmatprep.subr.mxu0 0.0
    %3579 = vmatpush1.msra.mxu0 0.0
    %3580 = vmatprep.subr.mxu0 0.0
    %3581 = vmatpush1.msra.mxu0 0.0
    %3582 = vmatprep.subr.mxu0 0.0
    %3583 = vmatpush1.msra.mxu0 0.0
    %3584 = vmatprep.subr.mxu0 0.0
    %3585 = vmatpush1.msra.mxu0 0.0
    %3586 = vmatprep.subr.mxu0 0.0
    %3587 = vmatpush1.msra.mxu0 0.0
    %3588 = vmatprep.subr.mxu0 0.0
    %3589 = vmatpush1.msra.mxu0 0.0
    %3590 = vmatprep.subr.mxu0 0.0
    %3591 = vmatpush1.msra.mxu0 0.0
    %3592 = vmatprep.subr.mxu0 0.0
    %3593 = vmatpush1.msra.mxu0 0.0
    %3594 = vmatprep.subr.mxu0 0.0
    %3595 = vmatpush1.msra.mxu0 0.0
    %3596 = vmatprep.subr.mxu0 0.0
    %3597 = vmatpush1.msra.mxu0 0.0
    %3598 = vmatprep.subr.mxu0 0.0
    %3599 = vmatpush1.msra.mxu0 0.0
    %3600 = vmatprep.subr.mxu0 0.0
    %3601 = vmatpush1.msra.mxu0 0.0
    %3602 = vmatprep.subr.mxu0 0.0
    %3603 = vmatpush1.msra.mxu0 0.0
    %3604 = vmatprep.mubr.f32.mxu0 0.0
    %3605 = vmatmul.mubr.f32.gmra.mrb[0].mxu0 %v3538
    %v3606 = vpop.f32.mrb[0].mxu0
    %v3607 = vadd.f32 0.0, %v3606
    %v3608 = vpop.f32.mrb[0].mxu0
    %3609 = vdwg.mxu0
    %s3610 = scalar_lea.vmem [#allocation11], 384
    %v3611 = vld [vmem:[%s3610] sm:$0xff]
    %v3612 = vld [vmem:[%s3610 + $0x8] sm:$0xff]
    %v3613 = vld [vmem:[%s3610 + $0x10] sm:$0xff]
    %v3614 = vld [vmem:[%s3610 + $0x18] sm:$0xff]
    %v3615 = vld [vmem:[%s3610 + $0x20] sm:$0xff]
    %v3616 = vld [vmem:[%s3610 + $0x28] sm:$0xff]
    %v3617 = vld [vmem:[%s3610 + $0x30] sm:$0xff]
    %v3618 = vld [vmem:[%s3610 + $0x38] sm:$0xff]
    %v3619 = vld [vmem:[%s3610 + $0x40] sm:$0xff]
    %v3620 = vld [vmem:[%s3610 + $0x48] sm:$0xff]
    %v3621 = vld [vmem:[%s3610 + $0x50] sm:$0xff]
    %v3622 = vld [vmem:[%s3610 + $0x58] sm:$0xff]
    %v3623 = vld [vmem:[%s3610 + $0x60] sm:$0xff]
    %v3624 = vld [vmem:[%s3610 + $0x68] sm:$0xff]
    %v3625 = vld [vmem:[%s3610 + $0x70] sm:$0xff]
    %v3626 = vld [vmem:[%s3610 + $0x78] sm:$0xff]
    %3627 = vmatprep.subr.mxu0 0.0
    %3628 = vmatpush1.msra.mxu0 %v3611
    %3629 = vmatprep.subr.mxu0 0.0
    %3630 = vmatpush1.msra.mxu0 %v3612
    %3631 = vmatprep.subr.mxu0 0.0
    %3632 = vmatpush1.msra.mxu0 %v3613
    %3633 = vmatprep.subr.mxu0 0.0
    %3634 = vmatpush1.msra.mxu0 %v3614
    %3635 = vmatprep.subr.mxu0 0.0
    %3636 = vmatpush1.msra.mxu0 %v3615
    %3637 = vmatprep.subr.mxu0 0.0
    %3638 = vmatpush1.msra.mxu0 %v3616
    %3639 = vmatprep.subr.mxu0 0.0
    %3640 = vmatpush1.msra.mxu0 %v3617
    %3641 = vmatprep.subr.mxu0 0.0
    %3642 = vmatpush1.msra.mxu0 %v3618
    %3643 = vmatprep.subr.mxu0 0.0
    %3644 = vmatpush1.msra.mxu0 %v3619
    %3645 = vmatprep.subr.mxu0 0.0
    %3646 = vmatpush1.msra.mxu0 %v3620
    %3647 = vmatprep.subr.mxu0 0.0
    %3648 = vmatpush1.msra.mxu0 %v3621
    %3649 = vmatprep.subr.mxu0 0.0
    %3650 = vmatpush1.msra.mxu0 %v3622
    %3651 = vmatprep.subr.mxu0 0.0
    %3652 = vmatpush1.msra.mxu0 %v3623
    %3653 = vmatprep.subr.mxu0 0.0
    %3654 = vmatpush1.msra.mxu0 %v3624
    %3655 = vmatprep.subr.mxu0 0.0
    %3656 = vmatpush1.msra.mxu0 %v3625
    %3657 = vmatprep.subr.mxu0 0.0
    %3658 = vmatpush1.msra.mxu0 %v3626
    %3659 = vmatprep.subr.mxu0 0.0
    %3660 = vmatpush1.msra.mxu0 0.0
    %3661 = vmatprep.subr.mxu0 0.0
    %3662 = vmatpush1.msra.mxu0 0.0
    %3663 = vmatprep.subr.mxu0 0.0
    %3664 = vmatpush1.msra.mxu0 0.0
    %3665 = vmatprep.subr.mxu0 0.0
    %3666 = vmatpush1.msra.mxu0 0.0
    %3667 = vmatprep.subr.mxu0 0.0
    %3668 = vmatpush1.msra.mxu0 0.0
    %3669 = vmatprep.subr.mxu0 0.0
    %3670 = vmatpush1.msra.mxu0 0.0
    %3671 = vmatprep.subr.mxu0 0.0
    %3672 = vmatpush1.msra.mxu0 0.0
    %3673 = vmatprep.subr.mxu0 0.0
    %3674 = vmatpush1.msra.mxu0 0.0
    %3675 = vmatprep.subr.mxu0 0.0
    %3676 = vmatpush1.msra.mxu0 0.0
    %3677 = vmatprep.subr.mxu0 0.0
    %3678 = vmatpush1.msra.mxu0 0.0
    %3679 = vmatprep.subr.mxu0 0.0
    %3680 = vmatpush1.msra.mxu0 0.0
    %3681 = vmatprep.subr.mxu0 0.0
    %3682 = vmatpush1.msra.mxu0 0.0
    %3683 = vmatprep.subr.mxu0 0.0
    %3684 = vmatpush1.msra.mxu0 0.0
    %3685 = vmatprep.subr.mxu0 0.0
    %3686 = vmatpush1.msra.mxu0 0.0
    %3687 = vmatprep.subr.mxu0 0.0
    %3688 = vmatpush1.msra.mxu0 0.0
    %3689 = vmatprep.subr.mxu0 0.0
    %3690 = vmatpush1.msra.mxu0 0.0
    %3691 = vmatprep.mubr.f32.mxu0 0.0
    %3692 = vmatmul.mubr.f32.gmra.mrb[0].mxu0 %v3607
    %v3693 = vpop.f32.mrb[0].mxu0
    %v3694 = vadd.f32 0.0, %v3693
    %v3695 = vpop.f32.mrb[0].mxu0
    %3696 = vdwg.mxu0
    %v3697 = vadd.f32 %v3534, %v3694
    %s3698 = scalar_lea.vmem [#allocation14], 8
    %v3699 = vld [vmem:[%s3698] sm:$0x3]
    %v3701 = vsel %vm3045, %v3699, 0
    %3703 = vmatprep.subr.mxu0 0.0
    %3704 = vmatpush1.msra.mxu0 %v3028
    %3705 = vmatprep.subr.mxu0 0.0
    %3706 = vmatpush1.msra.mxu0 %v3050
    %3707 = vmatprep.subr.mxu0 0.0
    %3708 = vmatpush1.msra.mxu0 0.0
    %3709 = vmatprep.subr.mxu0 0.0
    %3710 = vmatpush1.msra.mxu0 0.0
    %3711 = vmatprep.subr.mxu0 0.0
    %3712 = vmatpush1.msra.mxu0 0.0
    %3713 = vmatprep.subr.mxu0 0.0
    %3714 = vmatpush1.msra.mxu0 0.0
    %3715 = vmatprep.subr.mxu0 0.0
    %3716 = vmatpush1.msra.mxu0 0.0
    %3717 = vmatprep.subr.mxu0 0.0
    %3718 = vmatpush1.msra.mxu0 0.0
    %3719 = vmatprep.subr.mxu0 0.0
    %3720 = vmatpush1.msra.mxu0 0.0
    %3721 = vmatprep.subr.mxu0 0.0
    %3722 = vmatpush1.msra.mxu0 0.0
    %3723 = vmatprep.subr.mxu0 0.0
    %3724 = vmatpush1.msra.mxu0 0.0
    %3725 = vmatprep.subr.mxu0 0.0
    %3726 = vmatpush1.msra.mxu0 0.0
    %3727 = vmatprep.subr.mxu0 0.0
    %3728 = vmatpush1.msra.mxu0 0.0
    %3729 = vmatprep.subr.mxu0 0.0
    %3730 = vmatpush1.msra.mxu0 0.0
    %3731 = vmatprep.subr.mxu0 0.0
    %3732 = vmatpush1.msra.mxu0 0.0
    %3733 = vmatprep.subr.mxu0 0.0
    %3734 = vmatpush1.msra.mxu0 0.0
    %3735 = vmatprep.subr.mxu0 0.0
    %3736 = vmatpush1.msra.mxu0 0.0
    %3737 = vmatprep.subr.mxu0 0.0
    %3738 = vmatpush1.msra.mxu0 0.0
    %3739 = vmatprep.subr.mxu0 0.0
    %3740 = vmatpush1.msra.mxu0 0.0
    %3741 = vmatprep.subr.mxu0 0.0
    %3742 = vmatpush1.msra.mxu0 0.0
    %3743 = vmatprep.subr.mxu0 0.0
    %3744 = vmatpush1.msra.mxu0 0.0
    %3745 = vmatprep.subr.mxu0 0.0
    %3746 = vmatpush1.msra.mxu0 0.0
    %3747 = vmatprep.subr.mxu0 0.0
    %3748 = vmatpush1.msra.mxu0 0.0
    %3749 = vmatprep.subr.mxu0 0.0
    %3750 = vmatpush1.msra.mxu0 0.0
    %3751 = vmatprep.subr.mxu0 0.0
    %3752 = vmatpush1.msra.mxu0 0.0
    %3753 = vmatprep.subr.mxu0 0.0
    %3754 = vmatpush1.msra.mxu0 0.0
    %3755 = vmatprep.subr.mxu0 0.0
    %3756 = vmatpush1.msra.mxu0 0.0
    %3757 = vmatprep.subr.mxu0 0.0
    %3758 = vmatpush1.msra.mxu0 0.0
    %3759 = vmatprep.subr.mxu0 0.0
    %3760 = vmatpush1.msra.mxu0 0.0
    %3761 = vmatprep.subr.mxu0 0.0
    %3762 = vmatpush1.msra.mxu0 0.0
    %3763 = vmatprep.subr.mxu0 0.0
    %3764 = vmatpush1.msra.mxu0 0.0
    %3765 = vmatprep.subr.mxu0 0.0
    %3766 = vmatpush1.msra.mxu0 0.0
    %3767 = vmatprep.mubr.f32.mxu0 0.0
    %3768 = vmatmul.mubr.f32.gmra.mrb[0].mxu0 %v3701
    %v3769 = vpop.f32.mrb[0].mxu0
    %v3770 = vadd.f32 0.0, %v3769
    %v3771 = vpop.f32.mrb[0].mxu0
    %3772 = vdwg.mxu0
    %s3773 = scalar_lea.vmem [#allocation11], 512
    %v3774 = vld [vmem:[%s3773] sm:$0xff]
    %v3775 = vld [vmem:[%s3773 + $0x8] sm:$0xff]
    %v3776 = vld [vmem:[%s3773 + $0x10] sm:$0xff]
    %v3777 = vld [vmem:[%s3773 + $0x18] sm:$0xff]
    %v3778 = vld [vmem:[%s3773 + $0x20] sm:$0xff]
    %v3779 = vld [vmem:[%s3773 + $0x28] sm:$0xff]
    %v3780 = vld [vmem:[%s3773 + $0x30] sm:$0xff]
    %v3781 = vld [vmem:[%s3773 + $0x38] sm:$0xff]
    %v3782 = vld [vmem:[%s3773 + $0x40] sm:$0xff]
    %v3783 = vld [vmem:[%s3773 + $0x48] sm:$0xff]
    %v3784 = vld [vmem:[%s3773 + $0x50] sm:$0xff]
    %v3785 = vld [vmem:[%s3773 + $0x58] sm:$0xff]
    %v3786 = vld [vmem:[%s3773 + $0x60] sm:$0xff]
    %v3787 = vld [vmem:[%s3773 + $0x68] sm:$0xff]
    %v3788 = vld [vmem:[%s3773 + $0x70] sm:$0xff]
    %v3789 = vld [vmem:[%s3773 + $0x78] sm:$0xff]
    %3790 = vmatprep.subr.mxu0 0.0
    %3791 = vmatpush1.msra.mxu0 %v3774
    %3792 = vmatprep.subr.mxu0 0.0
    %3793 = vmatpush1.msra.mxu0 %v3775
    %3794 = vmatprep.subr.mxu0 0.0
    %3795 = vmatpush1.msra.mxu0 %v3776
    %3796 = vmatprep.subr.mxu0 0.0
    %3797 = vmatpush1.msra.mxu0 %v3777
    %3798 = vmatprep.subr.mxu0 0.0
    %3799 = vmatpush1.msra.mxu0 %v3778
    %3800 = vmatprep.subr.mxu0 0.0
    %3801 = vmatpush1.msra.mxu0 %v3779
    %3802 = vmatprep.subr.mxu0 0.0
    %3803 = vmatpush1.msra.mxu0 %v3780
    %3804 = vmatprep.subr.mxu0 0.0
    %3805 = vmatpush1.msra.mxu0 %v3781
    %3806 = vmatprep.subr.mxu0 0.0
    %3807 = vmatpush1.msra.mxu0 %v3782
    %3808 = vmatprep.subr.mxu0 0.0
    %3809 = vmatpush1.msra.mxu0 %v3783
    %3810 = vmatprep.subr.mxu0 0.0
    %3811 = vmatpush1.msra.mxu0 %v3784
    %3812 = vmatprep.subr.mxu0 0.0
    %3813 = vmatpush1.msra.mxu0 %v3785
    %3814 = vmatprep.subr.mxu0 0.0
    %3815 = vmatpush1.msra.mxu0 %v3786
    %3816 = vmatprep.subr.mxu0 0.0
    %3817 = vmatpush1.msra.mxu0 %v3787
    %3818 = vmatprep.subr.mxu0 0.0
    %3819 = vmatpush1.msra.mxu0 %v3788
    %3820 = vmatprep.subr.mxu0 0.0
    %3821 = vmatpush1.msra.mxu0 %v3789
    %3822 = vmatprep.subr.mxu0 0.0
    %3823 = vmatpush1.msra.mxu0 0.0
    %3824 = vmatprep.subr.mxu0 0.0
    %3825 = vmatpush1.msra.mxu0 0.0
    %3826 = vmatprep.subr.mxu0 0.0
    %3827 = vmatpush1.msra.mxu0 0.0
    %3828 = vmatprep.subr.mxu0 0.0
    %3829 = vmatpush1.msra.mxu0 0.0
    %3830 = vmatprep.subr.mxu0 0.0
    %3831 = vmatpush1.msra.mxu0 0.0
    %3832 = vmatprep.subr.mxu0 0.0
    %3833 = vmatpush1.msra.mxu0 0.0
    %3834 = vmatprep.subr.mxu0 0.0
    %3835 = vmatpush1.msra.mxu0 0.0
    %3836 = vmatprep.subr.mxu0 0.0
    %3837 = vmatpush1.msra.mxu0 0.0
    %3838 = vmatprep.subr.mxu0 0.0
    %3839 = vmatpush1.msra.mxu0 0.0
    %3840 = vmatprep.subr.mxu0 0.0
    %3841 = vmatpush1.msra.mxu0 0.0
    %3842 = vmatprep.subr.mxu0 0.0
    %3843 = vmatpush1.msra.mxu0 0.0
    %3844 = vmatprep.subr.mxu0 0.0
    %3845 = vmatpush1.msra.mxu0 0.0
    %3846 = vmatprep.subr.mxu0 0.0
    %3847 = vmatpush1.msra.mxu0 0.0
    %3848 = vmatprep.subr.mxu0 0.0
    %3849 = vmatpush1.msra.mxu0 0.0
    %3850 = vmatprep.subr.mxu0 0.0
    %3851 = vmatpush1.msra.mxu0 0.0
    %3852 = vmatprep.subr.mxu0 0.0
    %3853 = vmatpush1.msra.mxu0 0.0
    %3854 = vmatprep.mubr.f32.mxu0 0.0
    %3855 = vmatmul.mubr.f32.gmra.mrb[0].mxu0 %v3770
    %v3856 = vpop.f32.mrb[0].mxu0
    %v3857 = vadd.f32 0.0, %v3856
    %v3858 = vpop.f32.mrb[0].mxu0
    %3859 = vdwg.mxu0
    %v3860 = vadd.f32 %v3697, %v3857
    %3861 = vst [vmem:[#allocation28] sm:$0x3] %v3860
    %v3862 = vld [vmem:[#allocation17] sm:$0xff]
    %v3863 = vld [vmem:[#allocation17 + $0x8] sm:$0x3]
    %v3864 = vadd.f32 %v3862, 0.0
    %v3865 = vadd.f32 %v3863, 0.0
    %v3866 = vld [vmem:[#allocation16] sm:$0xff]
    %v3867 = vld [vmem:[#allocation16 + $0x8] sm:$0xff]
    %v3868 = vld [vmem:[#allocation16 + $0x10] sm:$0xff]
    %v3869 = vld [vmem:[#allocation16 + $0x18] sm:$0xff]
    %v3870 = vld [vmem:[#allocation16 + $0x20] sm:$0xff]
    %v3871 = vld [vmem:[#allocation16 + $0x28] sm:$0xff]
    %v3872 = vld [vmem:[#allocation16 + $0x30] sm:$0xff]
    %v3873 = vld [vmem:[#allocation16 + $0x38] sm:$0xff]
    %v3874 = vld [vmem:[#allocation16 + $0x40] sm:$0xff]
    %v3875 = vld [vmem:[#allocation16 + $0x48] sm:$0xff]
    %v3876 = vld [vmem:[#allocation16 + $0x50] sm:$0xff]
    %v3877 = vld [vmem:[#allocation16 + $0x58] sm:$0xff]
    %v3878 = vld [vmem:[#allocation16 + $0x60] sm:$0xff]
    %v3879 = vld [vmem:[#allocation16 + $0x68] sm:$0xff]
    %v3880 = vld [vmem:[#allocation16 + $0x70] sm:$0xff]
    %v3881 = vld [vmem:[#allocation16 + $0x78] sm:$0xff]
    %3882 = vmatprep.subr.mxu0 0.0
    %3883 = vmatpush1.msra.mxu0 %v3866
    %3884 = vmatprep.subr.mxu0 0.0
    %3885 = vmatpush1.msra.mxu0 %v3867
    %3886 = vmatprep.subr.mxu0 0.0
    %3887 = vmatpush1.msra.mxu0 %v3868
    %3888 = vmatprep.subr.mxu0 0.0
    %3889 = vmatpush1.msra.mxu0 %v3869
    %3890 = vmatprep.subr.mxu0 0.0
    %3891 = vmatpush1.msra.mxu0 %v3870
    %3892 = vmatprep.subr.mxu0 0.0
    %3893 = vmatpush1.msra.mxu0 %v3871
    %3894 = vmatprep.subr.mxu0 0.0
    %3895 = vmatpush1.msra.mxu0 %v3872
    %3896 = vmatprep.subr.mxu0 0.0
    %3897 = vmatpush1.msra.mxu0 %v3873
    %3898 = vmatprep.subr.mxu0 0.0
    %3899 = vmatpush1.msra.mxu0 %v3874
    %3900 = vmatprep.subr.mxu0 0.0
    %3901 = vmatpush1.msra.mxu0 %v3875
    %3902 = vmatprep.subr.mxu0 0.0
    %3903 = vmatpush1.msra.mxu0 %v3876
    %3904 = vmatprep.subr.mxu0 0.0
    %3905 = vmatpush1.msra.mxu0 %v3877
    %3906 = vmatprep.subr.mxu0 0.0
    %3907 = vmatpush1.msra.mxu0 %v3878
    %3908 = vmatprep.subr.mxu0 0.0
    %3909 = vmatpush1.msra.mxu0 %v3879
    %3910 = vmatprep.subr.mxu0 0.0
    %3911 = vmatpush1.msra.mxu0 %v3880
    %3912 = vmatprep.subr.mxu0 0.0
    %3913 = vmatpush1.msra.mxu0 %v3881
    %3914 = vmatprep.subr.mxu0 0.0
    %3915 = vmatpush1.msra.mxu0 0.0
    %3916 = vmatprep.subr.mxu0 0.0
    %3917 = vmatpush1.msra.mxu0 0.0
    %3918 = vmatprep.subr.mxu0 0.0
    %3919 = vmatpush1.msra.mxu0 0.0
    %3920 = vmatprep.subr.mxu0 0.0
    %3921 = vmatpush1.msra.mxu0 0.0
    %3922 = vmatprep.subr.mxu0 0.0
    %3923 = vmatpush1.msra.mxu0 0.0
    %3924 = vmatprep.subr.mxu0 0.0
    %3925 = vmatpush1.msra.mxu0 0.0
    %3926 = vmatprep.subr.mxu0 0.0
    %3927 = vmatpush1.msra.mxu0 0.0
    %3928 = vmatprep.subr.mxu0 0.0
    %3929 = vmatpush1.msra.mxu0 0.0
    %3930 = vmatprep.subr.mxu0 0.0
    %3931 = vmatpush1.msra.mxu0 0.0
    %3932 = vmatprep.subr.mxu0 0.0
    %3933 = vmatpush1.msra.mxu0 0.0
    %3934 = vmatprep.subr.mxu0 0.0
    %3935 = vmatpush1.msra.mxu0 0.0
    %3936 = vmatprep.subr.mxu0 0.0
    %3937 = vmatpush1.msra.mxu0 0.0
    %3938 = vmatprep.subr.mxu0 0.0
    %3939 = vmatpush1.msra.mxu0 0.0
    %3940 = vmatprep.subr.mxu0 0.0
    %3941 = vmatpush1.msra.mxu0 0.0
    %3942 = vmatprep.subr.mxu0 0.0
    %3943 = vmatpush1.msra.mxu0 0.0
    %3944 = vmatprep.subr.mxu0 0.0
    %3945 = vmatpush1.msra.mxu0 0.0
    %3946 = vmatprep.mubr.f32.mxu0 0.0
    %3947 = vmatmul.mubr.f32.gmra.mrb[0].mxu0 %v3860
    %v3948 = vpop.f32.mrb[0].mxu0
    %v3949 = vadd.f32 0.0, %v3948
    %v3950 = vpop.f32.mrb[0].mxu0
    %3951 = vdwg.mxu0
    %v3952 = vld [vmem:[#allocation19] sm:$0xff]
    %v3953 = vld [vmem:[#allocation19 + $0x8] sm:$0x3]
    %vm3954 = vcmask 15360
    %v3956 = vsel %vm3954, %v3952, 0
    %v3959 = vsel %vm3954, %v3953, 0
    %v3962 = vsel %vm319, %v3949, 0
    %3964 = vmatprep.subr.mxu0 0.0
    %3965 = vmatpush1.msra.mxu0 %v3962
    %3966 = vmatprep.subr.mxu0 0.0
    %3967 = vmatpush1.msra.mxu0 0.0
    %3968 = vmatprep.subr.mxu0 0.0
    %3969 = vmatpush1.msra.mxu0 0.0
    %3970 = vmatprep.subr.mxu0 0.0
    %3971 = vmatpush1.msra.mxu0 0.0
    %3972 = vmatprep.subr.mxu0 0.0
    %3973 = vmatpush1.msra.mxu0 0.0
    %3974 = vmatprep.subr.mxu0 0.0
    %3975 = vmatpush1.msra.mxu0 0.0
    %3976 = vmatprep.subr.mxu0 0.0
    %3977 = vmatpush1.msra.mxu0 0.0
    %3978 = vmatprep.subr.mxu0 0.0
    %3979 = vmatpush1.msra.mxu0 0.0
    %3980 = vmatprep.subr.mxu0 0.0
    %3981 = vmatpush1.msra.mxu0 0.0
    %3982 = vmatprep.subr.mxu0 0.0
    %3983 = vmatpush1.msra.mxu0 0.0
    %3984 = vmatprep.subr.mxu0 0.0
    %3985 = vmatpush1.msra.mxu0 0.0
    %3986 = vmatprep.subr.mxu0 0.0
    %3987 = vmatpush1.msra.mxu0 0.0
    %3988 = vmatprep.subr.mxu0 0.0
    %3989 = vmatpush1.msra.mxu0 0.0
    %3990 = vmatprep.subr.mxu0 0.0
    %3991 = vmatpush1.msra.mxu0 0.0
    %3992 = vmatprep.subr.mxu0 0.0
    %3993 = vmatpush1.msra.mxu0 0.0
    %3994 = vmatprep.subr.mxu0 0.0
    %3995 = vmatpush1.msra.mxu0 0.0
    %3996 = vmatprep.subr.mxu0 0.0
    %3997 = vmatpush1.msra.mxu0 0.0
    %3998 = vmatprep.subr.mxu0 0.0
    %3999 = vmatpush1.msra.mxu0 0.0
    %4000 = vmatprep.subr.mxu0 0.0
    %4001 = vmatpush1.msra.mxu0 0.0
    %4002 = vmatprep.subr.mxu0 0.0
    %4003 = vmatpush1.msra.mxu0 0.0
    %4004 = vmatprep.subr.mxu0 0.0
    %4005 = vmatpush1.msra.mxu0 0.0
    %4006 = vmatprep.subr.mxu0 0.0
    %4007 = vmatpush1.msra.mxu0 0.0
    %4008 = vmatprep.subr.mxu0 0.0
    %4009 = vmatpush1.msra.mxu0 0.0
    %4010 = vmatprep.subr.mxu0 0.0
    %4011 = vmatpush1.msra.mxu0 0.0
    %4012 = vmatprep.subr.mxu0 0.0
    %4013 = vmatpush1.msra.mxu0 0.0
    %4014 = vmatprep.subr.mxu0 0.0
    %4015 = vmatpush1.msra.mxu0 0.0
    %4016 = vmatprep.subr.mxu0 0.0
    %4017 = vmatpush1.msra.mxu0 0.0
    %4018 = vmatprep.subr.mxu0 0.0
    %4019 = vmatpush1.msra.mxu0 0.0
    %4020 = vmatprep.subr.mxu0 0.0
    %4021 = vmatpush1.msra.mxu0 0.0
    %4022 = vmatprep.subr.mxu0 0.0
    %4023 = vmatpush1.msra.mxu0 0.0
    %4024 = vmatprep.subr.mxu0 0.0
    %4025 = vmatpush1.msra.mxu0 0.0
    %4026 = vmatprep.subr.mxu0 0.0
    %4027 = vmatpush1.msra.mxu0 0.0
    %4028 = vmatprep.mubr.f32.mxu0 0.0
    %4029 = vmatmul.mubr.f32.gmra.mrb[0].mxu0 %v3956
    %v4030 = vpop.f32.mrb[0].mxu0
    %v4031 = vadd.f32 0.0, %v4030
    %v4032 = vpop.f32.mrb[0].mxu0
    %4033 = vmatprep.mubr.f32.mxu0 0.0
    %4034 = vmatmul.mubr.f32.gmra.mrb[0].mxu0 %v3959
    %v4035 = vpop.f32.mrb[0].mxu0
    %v4036 = vadd.f32 0.0, %v4035
    %v4037 = vpop.f32.mrb[0].mxu0
    %4038 = vdwg.mxu0
    %v4039 = vadd.f32 %v3864, %v4031
    %v4040 = vadd.f32 %v3865, %v4036
    %s4041 = scalar_lea.vmem [#allocation16], 128
    %v4042 = vld [vmem:[%s4041] sm:$0xff]
    %v4043 = vld [vmem:[%s4041 + $0x8] sm:$0xff]
    %v4044 = vld [vmem:[%s4041 + $0x10] sm:$0xff]
    %v4045 = vld [vmem:[%s4041 + $0x18] sm:$0xff]
    %v4046 = vld [vmem:[%s4041 + $0x20] sm:$0xff]
    %v4047 = vld [vmem:[%s4041 + $0x28] sm:$0xff]
    %v4048 = vld [vmem:[%s4041 + $0x30] sm:$0xff]
    %v4049 = vld [vmem:[%s4041 + $0x38] sm:$0xff]
    %v4050 = vld [vmem:[%s4041 + $0x40] sm:$0xff]
    %v4051 = vld [vmem:[%s4041 + $0x48] sm:$0xff]
    %v4052 = vld [vmem:[%s4041 + $0x50] sm:$0xff]
    %v4053 = vld [vmem:[%s4041 + $0x58] sm:$0xff]
    %v4054 = vld [vmem:[%s4041 + $0x60] sm:$0xff]
    %v4055 = vld [vmem:[%s4041 + $0x68] sm:$0xff]
    %v4056 = vld [vmem:[%s4041 + $0x70] sm:$0xff]
    %v4057 = vld [vmem:[%s4041 + $0x78] sm:$0xff]
    %4058 = vmatprep.subr.mxu0 0.0
    %4059 = vmatpush1.msra.mxu0 %v4042
    %4060 = vmatprep.subr.mxu0 0.0
    %4061 = vmatpush1.msra.mxu0 %v4043
    %4062 = vmatprep.subr.mxu0 0.0
    %4063 = vmatpush1.msra.mxu0 %v4044
    %4064 = vmatprep.subr.mxu0 0.0
    %4065 = vmatpush1.msra.mxu0 %v4045
    %4066 = vmatprep.subr.mxu0 0.0
    %4067 = vmatpush1.msra.mxu0 %v4046
    %4068 = vmatprep.subr.mxu0 0.0
    %4069 = vmatpush1.msra.mxu0 %v4047
    %4070 = vmatprep.subr.mxu0 0.0
    %4071 = vmatpush1.msra.mxu0 %v4048
    %4072 = vmatprep.subr.mxu0 0.0
    %4073 = vmatpush1.msra.mxu0 %v4049
    %4074 = vmatprep.subr.mxu0 0.0
    %4075 = vmatpush1.msra.mxu0 %v4050
    %4076 = vmatprep.subr.mxu0 0.0
    %4077 = vmatpush1.msra.mxu0 %v4051
    %4078 = vmatprep.subr.mxu0 0.0
    %4079 = vmatpush1.msra.mxu0 %v4052
    %4080 = vmatprep.subr.mxu0 0.0
    %4081 = vmatpush1.msra.mxu0 %v4053
    %4082 = vmatprep.subr.mxu0 0.0
    %4083 = vmatpush1.msra.mxu0 %v4054
    %4084 = vmatprep.subr.mxu0 0.0
    %4085 = vmatpush1.msra.mxu0 %v4055
    %4086 = vmatprep.subr.mxu0 0.0
    %4087 = vmatpush1.msra.mxu0 %v4056
    %4088 = vmatprep.subr.mxu0 0.0
    %4089 = vmatpush1.msra.mxu0 %v4057
    %4090 = vmatprep.subr.mxu0 0.0
    %4091 = vmatpush1.msra.mxu0 0.0
    %4092 = vmatprep.subr.mxu0 0.0
    %4093 = vmatpush1.msra.mxu0 0.0
    %4094 = vmatprep.subr.mxu0 0.0
    %4095 = vmatpush1.msra.mxu0 0.0
    %4096 = vmatprep.subr.mxu0 0.0
    %4097 = vmatpush1.msra.mxu0 0.0
    %4098 = vmatprep.subr.mxu0 0.0
    %4099 = vmatpush1.msra.mxu0 0.0
    %4100 = vmatprep.subr.mxu0 0.0
    %4101 = vmatpush1.msra.mxu0 0.0
    %4102 = vmatprep.subr.mxu0 0.0
    %4103 = vmatpush1.msra.mxu0 0.0
    %4104 = vmatprep.subr.mxu0 0.0
    %4105 = vmatpush1.msra.mxu0 0.0
    %4106 = vmatprep.subr.mxu0 0.0
    %4107 = vmatpush1.msra.mxu0 0.0
    %4108 = vmatprep.subr.mxu0 0.0
    %4109 = vmatpush1.msra.mxu0 0.0
    %4110 = vmatprep.subr.mxu0 0.0
    %4111 = vmatpush1.msra.mxu0 0.0
    %4112 = vmatprep.subr.mxu0 0.0
    %4113 = vmatpush1.msra.mxu0 0.0
    %4114 = vmatprep.subr.mxu0 0.0
    %4115 = vmatpush1.msra.mxu0 0.0
    %4116 = vmatprep.subr.mxu0 0.0
    %4117 = vmatpush1.msra.mxu0 0.0
    %4118 = vmatprep.subr.mxu0 0.0
    %4119 = vmatpush1.msra.mxu0 0.0
    %4120 = vmatprep.subr.mxu0 0.0
    %4121 = vmatpush1.msra.mxu0 0.0
    %4122 = vmatprep.mubr.f32.mxu0 0.0
    %4123 = vmatmul.mubr.f32.gmra.mrb[0].mxu0 %v3860
    %v4124 = vpop.f32.mrb[0].mxu0
    %v4125 = vadd.f32 0.0, %v4124
    %v4126 = vpop.f32.mrb[0].mxu0
    %4127 = vdwg.mxu0
    %s4128 = scalar_lea.vmem [#allocation19], 16
    %v4129 = vld [vmem:[%s4128] sm:$0xff]
    %v4130 = vld [vmem:[%s4128 + $0x8] sm:$0x3]
    %v4132 = vsel %vm3954, %v4129, 0
    %v4135 = vsel %vm3954, %v4130, 0
    %v4138 = vsel %vm319, %v4125, 0
    %4140 = vmatprep.subr.mxu0 0.0
    %4141 = vmatpush1.msra.mxu0 %v4138
    %4142 = vmatprep.subr.mxu0 0.0
    %4143 = vmatpush1.msra.mxu0 0.0
    %4144 = vmatprep.subr.mxu0 0.0
    %4145 = vmatpush1.msra.mxu0 0.0
    %4146 = vmatprep.subr.mxu0 0.0
    %4147 = vmatpush1.msra.mxu0 0.0
    %4148 = vmatprep.subr.mxu0 0.0
    %4149 = vmatpush1.msra.mxu0 0.0
    %4150 = vmatprep.subr.mxu0 0.0
    %4151 = vmatpush1.msra.mxu0 0.0
    %4152 = vmatprep.subr.mxu0 0.0
    %4153 = vmatpush1.msra.mxu0 0.0
    %4154 = vmatprep.subr.mxu0 0.0
    %4155 = vmatpush1.msra.mxu0 0.0
    %4156 = vmatprep.subr.mxu0 0.0
    %4157 = vmatpush1.msra.mxu0 0.0
    %4158 = vmatprep.subr.mxu0 0.0
    %4159 = vmatpush1.msra.mxu0 0.0
    %4160 = vmatprep.subr.mxu0 0.0
    %4161 = vmatpush1.msra.mxu0 0.0
    %4162 = vmatprep.subr.mxu0 0.0
    %4163 = vmatpush1.msra.mxu0 0.0
    %4164 = vmatprep.subr.mxu0 0.0
    %4165 = vmatpush1.msra.mxu0 0.0
    %4166 = vmatprep.subr.mxu0 0.0
    %4167 = vmatpush1.msra.mxu0 0.0
    %4168 = vmatprep.subr.mxu0 0.0
    %4169 = vmatpush1.msra.mxu0 0.0
    %4170 = vmatprep.subr.mxu0 0.0
    %4171 = vmatpush1.msra.mxu0 0.0
    %4172 = vmatprep.subr.mxu0 0.0
    %4173 = vmatpush1.msra.mxu0 0.0
    %4174 = vmatprep.subr.mxu0 0.0
    %4175 = vmatpush1.msra.mxu0 0.0
    %4176 = vmatprep.subr.mxu0 0.0
    %4177 = vmatpush1.msra.mxu0 0.0
    %4178 = vmatprep.subr.mxu0 0.0
    %4179 = vmatpush1.msra.mxu0 0.0
    %4180 = vmatprep.subr.mxu0 0.0
    %4181 = vmatpush1.msra.mxu0 0.0
    %4182 = vmatprep.subr.mxu0 0.0
    %4183 = vmatpush1.msra.mxu0 0.0
    %4184 = vmatprep.subr.mxu0 0.0
    %4185 = vmatpush1.msra.mxu0 0.0
    %4186 = vmatprep.subr.mxu0 0.0
    %4187 = vmatpush1.msra.mxu0 0.0
    %4188 = vmatprep.subr.mxu0 0.0
    %4189 = vmatpush1.msra.mxu0 0.0
    %4190 = vmatprep.subr.mxu0 0.0
    %4191 = vmatpush1.msra.mxu0 0.0
    %4192 = vmatprep.subr.mxu0 0.0
    %4193 = vmatpush1.msra.mxu0 0.0
    %4194 = vmatprep.subr.mxu0 0.0
    %4195 = vmatpush1.msra.mxu0 0.0
    %4196 = vmatprep.subr.mxu0 0.0
    %4197 = vmatpush1.msra.mxu0 0.0
    %4198 = vmatprep.subr.mxu0 0.0
    %4199 = vmatpush1.msra.mxu0 0.0
    %4200 = vmatprep.subr.mxu0 0.0
    %4201 = vmatpush1.msra.mxu0 0.0
    %4202 = vmatprep.subr.mxu0 0.0
    %4203 = vmatpush1.msra.mxu0 0.0
    %4204 = vmatprep.mubr.f32.mxu0 0.0
    %4205 = vmatmul.mubr.f32.gmra.mrb[0].mxu0 %v4132
    %v4206 = vpop.f32.mrb[0].mxu0
    %v4207 = vadd.f32 0.0, %v4206
    %v4208 = vpop.f32.mrb[0].mxu0
    %4209 = vmatprep.mubr.f32.mxu0 0.0
    %4210 = vmatmul.mubr.f32.gmra.mrb[0].mxu0 %v4135
    %v4211 = vpop.f32.mrb[0].mxu0
    %v4212 = vadd.f32 0.0, %v4211
    %v4213 = vpop.f32.mrb[0].mxu0
    %4214 = vdwg.mxu0
    %v4215 = vadd.f32 %v4039, %v4207
    %v4216 = vadd.f32 %v4040, %v4212
    %s4217 = scalar_lea.vmem [#allocation16], 256
    %v4218 = vld [vmem:[%s4217] sm:$0xff]
    %v4219 = vld [vmem:[%s4217 + $0x8] sm:$0xff]
    %v4220 = vld [vmem:[%s4217 + $0x10] sm:$0xff]
    %v4221 = vld [vmem:[%s4217 + $0x18] sm:$0xff]
    %v4222 = vld [vmem:[%s4217 + $0x20] sm:$0xff]
    %v4223 = vld [vmem:[%s4217 + $0x28] sm:$0xff]
    %v4224 = vld [vmem:[%s4217 + $0x30] sm:$0xff]
    %v4225 = vld [vmem:[%s4217 + $0x38] sm:$0xff]
    %v4226 = vld [vmem:[%s4217 + $0x40] sm:$0xff]
    %v4227 = vld [vmem:[%s4217 + $0x48] sm:$0xff]
    %v4228 = vld [vmem:[%s4217 + $0x50] sm:$0xff]
    %v4229 = vld [vmem:[%s4217 + $0x58] sm:$0xff]
    %v4230 = vld [vmem:[%s4217 + $0x60] sm:$0xff]
    %v4231 = vld [vmem:[%s4217 + $0x68] sm:$0xff]
    %v4232 = vld [vmem:[%s4217 + $0x70] sm:$0xff]
    %v4233 = vld [vmem:[%s4217 + $0x78] sm:$0xff]
    %4234 = vmatprep.subr.mxu0 0.0
    %4235 = vmatpush1.msra.mxu0 %v4218
    %4236 = vmatprep.subr.mxu0 0.0
    %4237 = vmatpush1.msra.mxu0 %v4219
    %4238 = vmatprep.subr.mxu0 0.0
    %4239 = vmatpush1.msra.mxu0 %v4220
    %4240 = vmatprep.subr.mxu0 0.0
    %4241 = vmatpush1.msra.mxu0 %v4221
    %4242 = vmatprep.subr.mxu0 0.0
    %4243 = vmatpush1.msra.mxu0 %v4222
    %4244 = vmatprep.subr.mxu0 0.0
    %4245 = vmatpush1.msra.mxu0 %v4223
    %4246 = vmatprep.subr.mxu0 0.0
    %4247 = vmatpush1.msra.mxu0 %v4224
    %4248 = vmatprep.subr.mxu0 0.0
    %4249 = vmatpush1.msra.mxu0 %v4225
    %4250 = vmatprep.subr.mxu0 0.0
    %4251 = vmatpush1.msra.mxu0 %v4226
    %4252 = vmatprep.subr.mxu0 0.0
    %4253 = vmatpush1.msra.mxu0 %v4227
    %4254 = vmatprep.subr.mxu0 0.0
    %4255 = vmatpush1.msra.mxu0 %v4228
    %4256 = vmatprep.subr.mxu0 0.0
    %4257 = vmatpush1.msra.mxu0 %v4229
    %4258 = vmatprep.subr.mxu0 0.0
    %4259 = vmatpush1.msra.mxu0 %v4230
    %4260 = vmatprep.subr.mxu0 0.0
    %4261 = vmatpush1.msra.mxu0 %v4231
    %4262 = vmatprep.subr.mxu0 0.0
    %4263 = vmatpush1.msra.mxu0 %v4232
    %4264 = vmatprep.subr.mxu0 0.0
    %4265 = vmatpush1.msra.mxu0 %v4233
    %4266 = vmatprep.subr.mxu0 0.0
    %4267 = vmatpush1.msra.mxu0 0.0
    %4268 = vmatprep.subr.mxu0 0.0
    %4269 = vmatpush1.msra.mxu0 0.0
    %4270 = vmatprep.subr.mxu0 0.0
    %4271 = vmatpush1.msra.mxu0 0.0
    %4272 = vmatprep.subr.mxu0 0.0
    %4273 = vmatpush1.msra.mxu0 0.0
    %4274 = vmatprep.subr.mxu0 0.0
    %4275 = vmatpush1.msra.mxu0 0.0
    %4276 = vmatprep.subr.mxu0 0.0
    %4277 = vmatpush1.msra.mxu0 0.0
    %4278 = vmatprep.subr.mxu0 0.0
    %4279 = vmatpush1.msra.mxu0 0.0
    %4280 = vmatprep.subr.mxu0 0.0
    %4281 = vmatpush1.msra.mxu0 0.0
    %4282 = vmatprep.subr.mxu0 0.0
    %4283 = vmatpush1.msra.mxu0 0.0
    %4284 = vmatprep.subr.mxu0 0.0
    %4285 = vmatpush1.msra.mxu0 0.0
    %4286 = vmatprep.subr.mxu0 0.0
    %4287 = vmatpush1.msra.mxu0 0.0
    %4288 = vmatprep.subr.mxu0 0.0
    %4289 = vmatpush1.msra.mxu0 0.0
    %4290 = vmatprep.subr.mxu0 0.0
    %4291 = vmatpush1.msra.mxu0 0.0
    %4292 = vmatprep.subr.mxu0 0.0
    %4293 = vmatpush1.msra.mxu0 0.0
    %4294 = vmatprep.subr.mxu0 0.0
    %4295 = vmatpush1.msra.mxu0 0.0
    %4296 = vmatprep.subr.mxu0 0.0
    %4297 = vmatpush1.msra.mxu0 0.0
    %4298 = vmatprep.mubr.f32.mxu0 0.0
    %4299 = vmatmul.mubr.f32.gmra.mrb[0].mxu0 %v3860
    %v4300 = vpop.f32.mrb[0].mxu0
    %v4301 = vadd.f32 0.0, %v4300
    %v4302 = vpop.f32.mrb[0].mxu0
    %4303 = vdwg.mxu0
    %s4304 = scalar_lea.vmem [#allocation19], 32
    %v4305 = vld [vmem:[%s4304] sm:$0xff]
    %v4306 = vld [vmem:[%s4304 + $0x8] sm:$0x3]
    %v4308 = vsel %vm3954, %v4305, 0
    %v4311 = vsel %vm3954, %v4306, 0
    %v4314 = vsel %vm319, %v4301, 0
    %4316 = vmatprep.subr.mxu0 0.0
    %4317 = vmatpush1.msra.mxu0 %v4314
    %4318 = vmatprep.subr.mxu0 0.0
    %4319 = vmatpush1.msra.mxu0 0.0
    %4320 = vmatprep.subr.mxu0 0.0
    %4321 = vmatpush1.msra.mxu0 0.0
    %4322 = vmatprep.subr.mxu0 0.0
    %4323 = vmatpush1.msra.mxu0 0.0
    %4324 = vmatprep.subr.mxu0 0.0
    %4325 = vmatpush1.msra.mxu0 0.0
    %4326 = vmatprep.subr.mxu0 0.0
    %4327 = vmatpush1.msra.mxu0 0.0
    %4328 = vmatprep.subr.mxu0 0.0
    %4329 = vmatpush1.msra.mxu0 0.0
    %4330 = vmatprep.subr.mxu0 0.0
    %4331 = vmatpush1.msra.mxu0 0.0
    %4332 = vmatprep.subr.mxu0 0.0
    %4333 = vmatpush1.msra.mxu0 0.0
    %4334 = vmatprep.subr.mxu0 0.0
    %4335 = vmatpush1.msra.mxu0 0.0
    %4336 = vmatprep.subr.mxu0 0.0
    %4337 = vmatpush1.msra.mxu0 0.0
    %4338 = vmatprep.subr.mxu0 0.0
    %4339 = vmatpush1.msra.mxu0 0.0
    %4340 = vmatprep.subr.mxu0 0.0
    %4341 = vmatpush1.msra.mxu0 0.0
    %4342 = vmatprep.subr.mxu0 0.0
    %4343 = vmatpush1.msra.mxu0 0.0
    %4344 = vmatprep.subr.mxu0 0.0
    %4345 = vmatpush1.msra.mxu0 0.0
    %4346 = vmatprep.subr.mxu0 0.0
    %4347 = vmatpush1.msra.mxu0 0.0
    %4348 = vmatprep.subr.mxu0 0.0
    %4349 = vmatpush1.msra.mxu0 0.0
    %4350 = vmatprep.subr.mxu0 0.0
    %4351 = vmatpush1.msra.mxu0 0.0
    %4352 = vmatprep.subr.mxu0 0.0
    %4353 = vmatpush1.msra.mxu0 0.0
    %4354 = vmatprep.subr.mxu0 0.0
    %4355 = vmatpush1.msra.mxu0 0.0
    %4356 = vmatprep.subr.mxu0 0.0
    %4357 = vmatpush1.msra.mxu0 0.0
    %4358 = vmatprep.subr.mxu0 0.0
    %4359 = vmatpush1.msra.mxu0 0.0
    %4360 = vmatprep.subr.mxu0 0.0
    %4361 = vmatpush1.msra.mxu0 0.0
    %4362 = vmatprep.subr.mxu0 0.0
    %4363 = vmatpush1.msra.mxu0 0.0
    %4364 = vmatprep.subr.mxu0 0.0
    %4365 = vmatpush1.msra.mxu0 0.0
    %4366 = vmatprep.subr.mxu0 0.0
    %4367 = vmatpush1.msra.mxu0 0.0
    %4368 = vmatprep.subr.mxu0 0.0
    %4369 = vmatpush1.msra.mxu0 0.0
    %4370 = vmatprep.subr.mxu0 0.0
    %4371 = vmatpush1.msra.mxu0 0.0
    %4372 = vmatprep.subr.mxu0 0.0
    %4373 = vmatpush1.msra.mxu0 0.0
    %4374 = vmatprep.subr.mxu0 0.0
    %4375 = vmatpush1.msra.mxu0 0.0
    %4376 = vmatprep.subr.mxu0 0.0
    %4377 = vmatpush1.msra.mxu0 0.0
    %4378 = vmatprep.subr.mxu0 0.0
    %4379 = vmatpush1.msra.mxu0 0.0
    %4380 = vmatprep.mubr.f32.mxu0 0.0
    %4381 = vmatmul.mubr.f32.gmra.mrb[0].mxu0 %v4308
    %v4382 = vpop.f32.mrb[0].mxu0
    %v4383 = vadd.f32 0.0, %v4382
    %v4384 = vpop.f32.mrb[0].mxu0
    %4385 = vmatprep.mubr.f32.mxu0 0.0
    %4386 = vmatmul.mubr.f32.gmra.mrb[0].mxu0 %v4311
    %v4387 = vpop.f32.mrb[0].mxu0
    %v4388 = vadd.f32 0.0, %v4387
    %v4389 = vpop.f32.mrb[0].mxu0
    %4390 = vdwg.mxu0
    %v4391 = vadd.f32 %v4215, %v4383
    %v4392 = vadd.f32 %v4216, %v4388
    %s4393 = scalar_lea.vmem [#allocation16], 384
    %v4394 = vld [vmem:[%s4393] sm:$0xff]
    %v4395 = vld [vmem:[%s4393 + $0x8] sm:$0xff]
    %v4396 = vld [vmem:[%s4393 + $0x10] sm:$0xff]
    %v4397 = vld [vmem:[%s4393 + $0x18] sm:$0xff]
    %v4398 = vld [vmem:[%s4393 + $0x20] sm:$0xff]
    %v4399 = vld [vmem:[%s4393 + $0x28] sm:$0xff]
    %v4400 = vld [vmem:[%s4393 + $0x30] sm:$0xff]
    %v4401 = vld [vmem:[%s4393 + $0x38] sm:$0xff]
    %v4402 = vld [vmem:[%s4393 + $0x40] sm:$0xff]
    %v4403 = vld [vmem:[%s4393 + $0x48] sm:$0xff]
    %v4404 = vld [vmem:[%s4393 + $0x50] sm:$0xff]
    %v4405 = vld [vmem:[%s4393 + $0x58] sm:$0xff]
    %v4406 = vld [vmem:[%s4393 + $0x60] sm:$0xff]
    %v4407 = vld [vmem:[%s4393 + $0x68] sm:$0xff]
    %v4408 = vld [vmem:[%s4393 + $0x70] sm:$0xff]
    %v4409 = vld [vmem:[%s4393 + $0x78] sm:$0xff]
    %4410 = vmatprep.subr.mxu0 0.0
    %4411 = vmatpush1.msra.mxu0 %v4394
    %4412 = vmatprep.subr.mxu0 0.0
    %4413 = vmatpush1.msra.mxu0 %v4395
    %4414 = vmatprep.subr.mxu0 0.0
    %4415 = vmatpush1.msra.mxu0 %v4396
    %4416 = vmatprep.subr.mxu0 0.0
    %4417 = vmatpush1.msra.mxu0 %v4397
    %4418 = vmatprep.subr.mxu0 0.0
    %4419 = vmatpush1.msra.mxu0 %v4398
    %4420 = vmatprep.subr.mxu0 0.0
    %4421 = vmatpush1.msra.mxu0 %v4399
    %4422 = vmatprep.subr.mxu0 0.0
    %4423 = vmatpush1.msra.mxu0 %v4400
    %4424 = vmatprep.subr.mxu0 0.0
    %4425 = vmatpush1.msra.mxu0 %v4401
    %4426 = vmatprep.subr.mxu0 0.0
    %4427 = vmatpush1.msra.mxu0 %v4402
    %4428 = vmatprep.subr.mxu0 0.0
    %4429 = vmatpush1.msra.mxu0 %v4403
    %4430 = vmatprep.subr.mxu0 0.0
    %4431 = vmatpush1.msra.mxu0 %v4404
    %4432 = vmatprep.subr.mxu0 0.0
    %4433 = vmatpush1.msra.mxu0 %v4405
    %4434 = vmatprep.subr.mxu0 0.0
    %4435 = vmatpush1.msra.mxu0 %v4406
    %4436 = vmatprep.subr.mxu0 0.0
    %4437 = vmatpush1.msra.mxu0 %v4407
    %4438 = vmatprep.subr.mxu0 0.0
    %4439 = vmatpush1.msra.mxu0 %v4408
    %4440 = vmatprep.subr.mxu0 0.0
    %4441 = vmatpush1.msra.mxu0 %v4409
    %4442 = vmatprep.subr.mxu0 0.0
    %4443 = vmatpush1.msra.mxu0 0.0
    %4444 = vmatprep.subr.mxu0 0.0
    %4445 = vmatpush1.msra.mxu0 0.0
    %4446 = vmatprep.subr.mxu0 0.0
    %4447 = vmatpush1.msra.mxu0 0.0
    %4448 = vmatprep.subr.mxu0 0.0
    %4449 = vmatpush1.msra.mxu0 0.0
    %4450 = vmatprep.subr.mxu0 0.0
    %4451 = vmatpush1.msra.mxu0 0.0
    %4452 = vmatprep.subr.mxu0 0.0
    %4453 = vmatpush1.msra.mxu0 0.0
    %4454 = vmatprep.subr.mxu0 0.0
    %4455 = vmatpush1.msra.mxu0 0.0
    %4456 = vmatprep.subr.mxu0 0.0
    %4457 = vmatpush1.msra.mxu0 0.0
    %4458 = vmatprep.subr.mxu0 0.0
    %4459 = vmatpush1.msra.mxu0 0.0
    %4460 = vmatprep.subr.mxu0 0.0
    %4461 = vmatpush1.msra.mxu0 0.0
    %4462 = vmatprep.subr.mxu0 0.0
    %4463 = vmatpush1.msra.mxu0 0.0
    %4464 = vmatprep.subr.mxu0 0.0
    %4465 = vmatpush1.msra.mxu0 0.0
    %4466 = vmatprep.subr.mxu0 0.0
    %4467 = vmatpush1.msra.mxu0 0.0
    %4468 = vmatprep.subr.mxu0 0.0
    %4469 = vmatpush1.msra.mxu0 0.0
    %4470 = vmatprep.subr.mxu0 0.0
    %4471 = vmatpush1.msra.mxu0 0.0
    %4472 = vmatprep.subr.mxu0 0.0
    %4473 = vmatpush1.msra.mxu0 0.0
    %4474 = vmatprep.mubr.f32.mxu0 0.0
    %4475 = vmatmul.mubr.f32.gmra.mrb[0].mxu0 %v3860
    %v4476 = vpop.f32.mrb[0].mxu0
    %v4477 = vadd.f32 0.0, %v4476
    %v4478 = vpop.f32.mrb[0].mxu0
    %4479 = vdwg.mxu0
    %s4480 = scalar_lea.vmem [#allocation19], 48
    %v4481 = vld [vmem:[%s4480] sm:$0xff]
    %v4482 = vld [vmem:[%s4480 + $0x8] sm:$0x3]
    %v4484 = vsel %vm3954, %v4481, 0
    %v4487 = vsel %vm3954, %v4482, 0
    %v4490 = vsel %vm319, %v4477, 0
    %4492 = vmatprep.subr.mxu0 0.0
    %4493 = vmatpush1.msra.mxu0 %v4490
    %4494 = vmatprep.subr.mxu0 0.0
    %4495 = vmatpush1.msra.mxu0 0.0
    %4496 = vmatprep.subr.mxu0 0.0
    %4497 = vmatpush1.msra.mxu0 0.0
    %4498 = vmatprep.subr.mxu0 0.0
    %4499 = vmatpush1.msra.mxu0 0.0
    %4500 = vmatprep.subr.mxu0 0.0
    %4501 = vmatpush1.msra.mxu0 0.0
    %4502 = vmatprep.subr.mxu0 0.0
    %4503 = vmatpush1.msra.mxu0 0.0
    %4504 = vmatprep.subr.mxu0 0.0
    %4505 = vmatpush1.msra.mxu0 0.0
    %4506 = vmatprep.subr.mxu0 0.0
    %4507 = vmatpush1.msra.mxu0 0.0
    %4508 = vmatprep.subr.mxu0 0.0
    %4509 = vmatpush1.msra.mxu0 0.0
    %4510 = vmatprep.subr.mxu0 0.0
    %4511 = vmatpush1.msra.mxu0 0.0
    %4512 = vmatprep.subr.mxu0 0.0
    %4513 = vmatpush1.msra.mxu0 0.0
    %4514 = vmatprep.subr.mxu0 0.0
    %4515 = vmatpush1.msra.mxu0 0.0
    %4516 = vmatprep.subr.mxu0 0.0
    %4517 = vmatpush1.msra.mxu0 0.0
    %4518 = vmatprep.subr.mxu0 0.0
    %4519 = vmatpush1.msra.mxu0 0.0
    %4520 = vmatprep.subr.mxu0 0.0
    %4521 = vmatpush1.msra.mxu0 0.0
    %4522 = vmatprep.subr.mxu0 0.0
    %4523 = vmatpush1.msra.mxu0 0.0
    %4524 = vmatprep.subr.mxu0 0.0
    %4525 = vmatpush1.msra.mxu0 0.0
    %4526 = vmatprep.subr.mxu0 0.0
    %4527 = vmatpush1.msra.mxu0 0.0
    %4528 = vmatprep.subr.mxu0 0.0
    %4529 = vmatpush1.msra.mxu0 0.0
    %4530 = vmatprep.subr.mxu0 0.0
    %4531 = vmatpush1.msra.mxu0 0.0
    %4532 = vmatprep.subr.mxu0 0.0
    %4533 = vmatpush1.msra.mxu0 0.0
    %4534 = vmatprep.subr.mxu0 0.0
    %4535 = vmatpush1.msra.mxu0 0.0
    %4536 = vmatprep.subr.mxu0 0.0
    %4537 = vmatpush1.msra.mxu0 0.0
    %4538 = vmatprep.subr.mxu0 0.0
    %4539 = vmatpush1.msra.mxu0 0.0
    %4540 = vmatprep.subr.mxu0 0.0
    %4541 = vmatpush1.msra.mxu0 0.0
    %4542 = vmatprep.subr.mxu0 0.0
    %4543 = vmatpush1.msra.mxu0 0.0
    %4544 = vmatprep.subr.mxu0 0.0
    %4545 = vmatpush1.msra.mxu0 0.0
    %4546 = vmatprep.subr.mxu0 0.0
    %4547 = vmatpush1.msra.mxu0 0.0
    %4548 = vmatprep.subr.mxu0 0.0
    %4549 = vmatpush1.msra.mxu0 0.0
    %4550 = vmatprep.subr.mxu0 0.0
    %4551 = vmatpush1.msra.mxu0 0.0
    %4552 = vmatprep.subr.mxu0 0.0
    %4553 = vmatpush1.msra.mxu0 0.0
    %4554 = vmatprep.subr.mxu0 0.0
    %4555 = vmatpush1.msra.mxu0 0.0
    %4556 = vmatprep.mubr.f32.mxu0 0.0
    %4557 = vmatmul.mubr.f32.gmra.mrb[0].mxu0 %v4484
    %v4558 = vpop.f32.mrb[0].mxu0
    %v4559 = vadd.f32 0.0, %v4558
    %v4560 = vpop.f32.mrb[0].mxu0
    %4561 = vmatprep.mubr.f32.mxu0 0.0
    %4562 = vmatmul.mubr.f32.gmra.mrb[0].mxu0 %v4487
    %v4563 = vpop.f32.mrb[0].mxu0
    %v4564 = vadd.f32 0.0, %v4563
    %v4565 = vpop.f32.mrb[0].mxu0
    %4566 = vdwg.mxu0
    %v4567 = vadd.f32 %v4391, %v4559
    %v4568 = vadd.f32 %v4392, %v4564
    %s4569 = scalar_lea.vmem [#allocation16], 512
    %v4570 = vld [vmem:[%s4569] sm:$0xff]
    %v4571 = vld [vmem:[%s4569 + $0x8] sm:$0xff]
    %v4572 = vld [vmem:[%s4569 + $0x10] sm:$0xff]
    %v4573 = vld [vmem:[%s4569 + $0x18] sm:$0xff]
    %v4574 = vld [vmem:[%s4569 + $0x20] sm:$0xff]
    %v4575 = vld [vmem:[%s4569 + $0x28] sm:$0xff]
    %v4576 = vld [vmem:[%s4569 + $0x30] sm:$0xff]
    %v4577 = vld [vmem:[%s4569 + $0x38] sm:$0xff]
    %v4578 = vld [vmem:[%s4569 + $0x40] sm:$0xff]
    %v4579 = vld [vmem:[%s4569 + $0x48] sm:$0xff]
    %v4580 = vld [vmem:[%s4569 + $0x50] sm:$0xff]
    %v4581 = vld [vmem:[%s4569 + $0x58] sm:$0xff]
    %v4582 = vld [vmem:[%s4569 + $0x60] sm:$0xff]
    %v4583 = vld [vmem:[%s4569 + $0x68] sm:$0xff]
    %v4584 = vld [vmem:[%s4569 + $0x70] sm:$0xff]
    %v4585 = vld [vmem:[%s4569 + $0x78] sm:$0xff]
    %4586 = vmatprep.subr.mxu0 0.0
    %4587 = vmatpush1.msra.mxu0 %v4570
    %4588 = vmatprep.subr.mxu0 0.0
    %4589 = vmatpush1.msra.mxu0 %v4571
    %4590 = vmatprep.subr.mxu0 0.0
    %4591 = vmatpush1.msra.mxu0 %v4572
    %4592 = vmatprep.subr.mxu0 0.0
    %4593 = vmatpush1.msra.mxu0 %v4573
    %4594 = vmatprep.subr.mxu0 0.0
    %4595 = vmatpush1.msra.mxu0 %v4574
    %4596 = vmatprep.subr.mxu0 0.0
    %4597 = vmatpush1.msra.mxu0 %v4575
    %4598 = vmatprep.subr.mxu0 0.0
    %4599 = vmatpush1.msra.mxu0 %v4576
    %4600 = vmatprep.subr.mxu0 0.0
    %4601 = vmatpush1.msra.mxu0 %v4577
    %4602 = vmatprep.subr.mxu0 0.0
    %4603 = vmatpush1.msra.mxu0 %v4578
    %4604 = vmatprep.subr.mxu0 0.0
    %4605 = vmatpush1.msra.mxu0 %v4579
    %4606 = vmatprep.subr.mxu0 0.0
    %4607 = vmatpush1.msra.mxu0 %v4580
    %4608 = vmatprep.subr.mxu0 0.0
    %4609 = vmatpush1.msra.mxu0 %v4581
    %4610 = vmatprep.subr.mxu0 0.0
    %4611 = vmatpush1.msra.mxu0 %v4582
    %4612 = vmatprep.subr.mxu0 0.0
    %4613 = vmatpush1.msra.mxu0 %v4583
    %4614 = vmatprep.subr.mxu0 0.0
    %4615 = vmatpush1.msra.mxu0 %v4584
    %4616 = vmatprep.subr.mxu0 0.0
    %4617 = vmatpush1.msra.mxu0 %v4585
    %4618 = vmatprep.subr.mxu0 0.0
    %4619 = vmatpush1.msra.mxu0 0.0
    %4620 = vmatprep.subr.mxu0 0.0
    %4621 = vmatpush1.msra.mxu0 0.0
    %4622 = vmatprep.subr.mxu0 0.0
    %4623 = vmatpush1.msra.mxu0 0.0
    %4624 = vmatprep.subr.mxu0 0.0
    %4625 = vmatpush1.msra.mxu0 0.0
    %4626 = vmatprep.subr.mxu0 0.0
    %4627 = vmatpush1.msra.mxu0 0.0
    %4628 = vmatprep.subr.mxu0 0.0
    %4629 = vmatpush1.msra.mxu0 0.0
    %4630 = vmatprep.subr.mxu0 0.0
    %4631 = vmatpush1.msra.mxu0 0.0
    %4632 = vmatprep.subr.mxu0 0.0
    %4633 = vmatpush1.msra.mxu0 0.0
    %4634 = vmatprep.subr.mxu0 0.0
    %4635 = vmatpush1.msra.mxu0 0.0
    %4636 = vmatprep.subr.mxu0 0.0
    %4637 = vmatpush1.msra.mxu0 0.0
    %4638 = vmatprep.subr.mxu0 0.0
    %4639 = vmatpush1.msra.mxu0 0.0
    %4640 = vmatprep.subr.mxu0 0.0
    %4641 = vmatpush1.msra.mxu0 0.0
    %4642 = vmatprep.subr.mxu0 0.0
    %4643 = vmatpush1.msra.mxu0 0.0
    %4644 = vmatprep.subr.mxu0 0.0
    %4645 = vmatpush1.msra.mxu0 0.0
    %4646 = vmatprep.subr.mxu0 0.0
    %4647 = vmatpush1.msra.mxu0 0.0
    %4648 = vmatprep.subr.mxu0 0.0
    %4649 = vmatpush1.msra.mxu0 0.0
    %4650 = vmatprep.mubr.f32.mxu0 0.0
    %4651 = vmatmul.mubr.f32.gmra.mrb[0].mxu0 %v3860
    %v4652 = vpop.f32.mrb[0].mxu0
    %v4653 = vadd.f32 0.0, %v4652
    %v4654 = vpop.f32.mrb[0].mxu0
    %4655 = vdwg.mxu0
    %s4656 = scalar_lea.vmem [#allocation19], 64
    %v4657 = vld [vmem:[%s4656] sm:$0xff]
    %v4658 = vld [vmem:[%s4656 + $0x8] sm:$0x3]
    %v4660 = vsel %vm3954, %v4657, 0
    %v4663 = vsel %vm3954, %v4658, 0
    %v4666 = vsel %vm319, %v4653, 0
    %4668 = vmatprep.subr.mxu0 0.0
    %4669 = vmatpush1.msra.mxu0 %v4666
    %4670 = vmatprep.subr.mxu0 0.0
    %4671 = vmatpush1.msra.mxu0 0.0
    %4672 = vmatprep.subr.mxu0 0.0
    %4673 = vmatpush1.msra.mxu0 0.0
    %4674 = vmatprep.subr.mxu0 0.0
    %4675 = vmatpush1.msra.mxu0 0.0
    %4676 = vmatprep.subr.mxu0 0.0
    %4677 = vmatpush1.msra.mxu0 0.0
    %4678 = vmatprep.subr.mxu0 0.0
    %4679 = vmatpush1.msra.mxu0 0.0
    %4680 = vmatprep.subr.mxu0 0.0
    %4681 = vmatpush1.msra.mxu0 0.0
    %4682 = vmatprep.subr.mxu0 0.0
    %4683 = vmatpush1.msra.mxu0 0.0
    %4684 = vmatprep.subr.mxu0 0.0
    %4685 = vmatpush1.msra.mxu0 0.0
    %4686 = vmatprep.subr.mxu0 0.0
    %4687 = vmatpush1.msra.mxu0 0.0
    %4688 = vmatprep.subr.mxu0 0.0
    %4689 = vmatpush1.msra.mxu0 0.0
    %4690 = vmatprep.subr.mxu0 0.0
    %4691 = vmatpush1.msra.mxu0 0.0
    %4692 = vmatprep.subr.mxu0 0.0
    %4693 = vmatpush1.msra.mxu0 0.0
    %4694 = vmatprep.subr.mxu0 0.0
    %4695 = vmatpush1.msra.mxu0 0.0
    %4696 = vmatprep.subr.mxu0 0.0
    %4697 = vmatpush1.msra.mxu0 0.0
    %4698 = vmatprep.subr.mxu0 0.0
    %4699 = vmatpush1.msra.mxu0 0.0
    %4700 = vmatprep.subr.mxu0 0.0
    %4701 = vmatpush1.msra.mxu0 0.0
    %4702 = vmatprep.subr.mxu0 0.0
    %4703 = vmatpush1.msra.mxu0 0.0
    %4704 = vmatprep.subr.mxu0 0.0
    %4705 = vmatpush1.msra.mxu0 0.0
    %4706 = vmatprep.subr.mxu0 0.0
    %4707 = vmatpush1.msra.mxu0 0.0
    %4708 = vmatprep.subr.mxu0 0.0
    %4709 = vmatpush1.msra.mxu0 0.0
    %4710 = vmatprep.subr.mxu0 0.0
    %4711 = vmatpush1.msra.mxu0 0.0
    %4712 = vmatprep.subr.mxu0 0.0
    %4713 = vmatpush1.msra.mxu0 0.0
    %4714 = vmatprep.subr.mxu0 0.0
    %4715 = vmatpush1.msra.mxu0 0.0
    %4716 = vmatprep.subr.mxu0 0.0
    %4717 = vmatpush1.msra.mxu0 0.0
    %4718 = vmatprep.subr.mxu0 0.0
    %4719 = vmatpush1.msra.mxu0 0.0
    %4720 = vmatprep.subr.mxu0 0.0
    %4721 = vmatpush1.msra.mxu0 0.0
    %4722 = vmatprep.subr.mxu0 0.0
    %4723 = vmatpush1.msra.mxu0 0.0
    %4724 = vmatprep.subr.mxu0 0.0
    %4725 = vmatpush1.msra.mxu0 0.0
    %4726 = vmatprep.subr.mxu0 0.0
    %4727 = vmatpush1.msra.mxu0 0.0
    %4728 = vmatprep.subr.mxu0 0.0
    %4729 = vmatpush1.msra.mxu0 0.0
    %4730 = vmatprep.subr.mxu0 0.0
    %4731 = vmatpush1.msra.mxu0 0.0
    %4732 = vmatprep.mubr.f32.mxu0 0.0
    %4733 = vmatmul.mubr.f32.gmra.mrb[0].mxu0 %v4660
    %v4734 = vpop.f32.mrb[0].mxu0
    %v4735 = vadd.f32 0.0, %v4734
    %v4736 = vpop.f32.mrb[0].mxu0
    %4737 = vmatprep.mubr.f32.mxu0 0.0
    %4738 = vmatmul.mubr.f32.gmra.mrb[0].mxu0 %v4663
    %v4739 = vpop.f32.mrb[0].mxu0
    %v4740 = vadd.f32 0.0, %v4739
    %v4741 = vpop.f32.mrb[0].mxu0
    %4742 = vdwg.mxu0
    %v4743 = vadd.f32 %v4567, %v4735
    %v4744 = vadd.f32 %v4568, %v4740
    %v4745 = vld [vmem:[#allocation26] sm:$0xff]
    %v4746 = vld [vmem:[#allocation26 + $0x8] sm:$0xff]
    %v4747 = vld [vmem:[#allocation26 + $0x10] sm:$0x3]
    %v4749 = vsel %vm3045, %v4745, 0
    %v4752 = vsel %vm3045, %v4746, 0
    %v4755 = vsel %vm3045, %v4747, 0
    %v4758 = vsel %vm319, %v4744, 0
    %4760 = vmatprep.subr.mxu0 0.0
    %4761 = vmatpush1.msra.mxu0 %v4743
    %4762 = vmatprep.subr.mxu0 0.0
    %4763 = vmatpush1.msra.mxu0 %v4758
    %4764 = vmatprep.subr.mxu0 0.0
    %4765 = vmatpush1.msra.mxu0 0.0
    %4766 = vmatprep.subr.mxu0 0.0
    %4767 = vmatpush1.msra.mxu0 0.0
    %4768 = vmatprep.subr.mxu0 0.0
    %4769 = vmatpush1.msra.mxu0 0.0
    %4770 = vmatprep.subr.mxu0 0.0
    %4771 = vmatpush1.msra.mxu0 0.0
    %4772 = vmatprep.subr.mxu0 0.0
    %4773 = vmatpush1.msra.mxu0 0.0
    %4774 = vmatprep.subr.mxu0 0.0
    %4775 = vmatpush1.msra.mxu0 0.0
    %4776 = vmatprep.subr.mxu0 0.0
    %4777 = vmatpush1.msra.mxu0 0.0
    %4778 = vmatprep.subr.mxu0 0.0
    %4779 = vmatpush1.msra.mxu0 0.0
    %4780 = vmatprep.subr.mxu0 0.0
    %4781 = vmatpush1.msra.mxu0 0.0
    %4782 = vmatprep.subr.mxu0 0.0
    %4783 = vmatpush1.msra.mxu0 0.0
    %4784 = vmatprep.subr.mxu0 0.0
    %4785 = vmatpush1.msra.mxu0 0.0
    %4786 = vmatprep.subr.mxu0 0.0
    %4787 = vmatpush1.msra.mxu0 0.0
    %4788 = vmatprep.subr.mxu0 0.0
    %4789 = vmatpush1.msra.mxu0 0.0
    %4790 = vmatprep.subr.mxu0 0.0
    %4791 = vmatpush1.msra.mxu0 0.0
    %4792 = vmatprep.subr.mxu0 0.0
    %4793 = vmatpush1.msra.mxu0 0.0
    %4794 = vmatprep.subr.mxu0 0.0
    %4795 = vmatpush1.msra.mxu0 0.0
    %4796 = vmatprep.subr.mxu0 0.0
    %4797 = vmatpush1.msra.mxu0 0.0
    %4798 = vmatprep.subr.mxu0 0.0
    %4799 = vmatpush1.msra.mxu0 0.0
    %4800 = vmatprep.subr.mxu0 0.0
    %4801 = vmatpush1.msra.mxu0 0.0
    %4802 = vmatprep.subr.mxu0 0.0
    %4803 = vmatpush1.msra.mxu0 0.0
    %4804 = vmatprep.subr.mxu0 0.0
    %4805 = vmatpush1.msra.mxu0 0.0
    %4806 = vmatprep.subr.mxu0 0.0
    %4807 = vmatpush1.msra.mxu0 0.0
    %4808 = vmatprep.subr.mxu0 0.0
    %4809 = vmatpush1.msra.mxu0 0.0
    %4810 = vmatprep.subr.mxu0 0.0
    %4811 = vmatpush1.msra.mxu0 0.0
    %4812 = vmatprep.subr.mxu0 0.0
    %4813 = vmatpush1.msra.mxu0 0.0
    %4814 = vmatprep.subr.mxu0 0.0
    %4815 = vmatpush1.msra.mxu0 0.0
    %4816 = vmatprep.subr.mxu0 0.0
    %4817 = vmatpush1.msra.mxu0 0.0
    %4818 = vmatprep.subr.mxu0 0.0
    %4819 = vmatpush1.msra.mxu0 0.0
    %4820 = vmatprep.subr.mxu0 0.0
    %4821 = vmatpush1.msra.mxu0 0.0
    %4822 = vmatprep.subr.mxu0 0.0
    %4823 = vmatpush1.msra.mxu0 0.0
    %4824 = vmatprep.mubr.f32.mxu0 0.0
    %4825 = vmatmul.mubr.f32.gmra.mrb[0].mxu0 %v4749
    %v4826 = vpop.f32.mrb[0].mxu0
    %v4827 = vadd.f32 0.0, %v4826
    %v4828 = vpop.f32.mrb[0].mxu0
    %4829 = vmatprep.mubr.f32.mxu0 0.0
    %4830 = vmatmul.mubr.f32.gmra.mrb[0].mxu0 %v4752
    %v4831 = vpop.f32.mrb[0].mxu0
    %v4832 = vadd.f32 0.0, %v4831
    %v4833 = vpop.f32.mrb[0].mxu0
    %4834 = vmatprep.mubr.f32.mxu0 0.0
    %4835 = vmatmul.mubr.f32.gmra.mrb[0].mxu0 %v4755
    %v4836 = vpop.f32.mrb[0].mxu0
    %v4837 = vadd.f32 0.0, %v4836
    %v4838 = vpop.f32.mrb[0].mxu0
    %4839 = vdwg.mxu0
    %v4840 = vld [vmem:[%s14] sm:$0x1]
    %v4842 = vlaneseq
    %v4843 = vshrl.u32 %v4842, 7
    %v4844 = vsub.s32 0, %v4843
    %v4845 = vrot.slane %v4840, %v4844
    %v4847 = vadd.f32 %v4845, 0.0
    %v4848 = vld [vmem:[%s2] sm:$0xff]
    %v4849 = vld [vmem:[%s2 + $0x8] sm:$0xff]
    %v4850 = vld [vmem:[%s2 + $0x10] sm:$0x3]
    %v4852 = vsel %vm1775, %v4848, 0
    %v4855 = vsel %vm1775, %v4849, 0
    %v4858 = vsel %vm1775, %v4850, 0
    %v4861 = vsel %vm319, %v4837, 0
    %4863 = vmatprep.subr.mxu0 0.0
    %4864 = vmatpush1.msra.mxu0 %v4827
    %4865 = vmatprep.subr.mxu0 0.0
    %4866 = vmatpush1.msra.mxu0 %v4832
    %4867 = vmatprep.subr.mxu0 0.0
    %4868 = vmatpush1.msra.mxu0 %v4861
    %4869 = vmatprep.subr.mxu0 0.0
    %4870 = vmatpush1.msra.mxu0 0.0
    %4871 = vmatprep.subr.mxu0 0.0
    %4872 = vmatpush1.msra.mxu0 0.0
    %4873 = vmatprep.subr.mxu0 0.0
    %4874 = vmatpush1.msra.mxu0 0.0
    %4875 = vmatprep.subr.mxu0 0.0
    %4876 = vmatpush1.msra.mxu0 0.0
    %4877 = vmatprep.subr.mxu0 0.0
    %4878 = vmatpush1.msra.mxu0 0.0
    %4879 = vmatprep.subr.mxu0 0.0
    %4880 = vmatpush1.msra.mxu0 0.0
    %4881 = vmatprep.subr.mxu0 0.0
    %4882 = vmatpush1.msra.mxu0 0.0
    %4883 = vmatprep.subr.mxu0 0.0
    %4884 = vmatpush1.msra.mxu0 0.0
    %4885 = vmatprep.subr.mxu0 0.0
    %4886 = vmatpush1.msra.mxu0 0.0
    %4887 = vmatprep.subr.mxu0 0.0
    %4888 = vmatpush1.msra.mxu0 0.0
    %4889 = vmatprep.subr.mxu0 0.0
    %4890 = vmatpush1.msra.mxu0 0.0
    %4891 = vmatprep.subr.mxu0 0.0
    %4892 = vmatpush1.msra.mxu0 0.0
    %4893 = vmatprep.subr.mxu0 0.0
    %4894 = vmatpush1.msra.mxu0 0.0
    %4895 = vmatprep.subr.mxu0 0.0
    %4896 = vmatpush1.msra.mxu0 0.0
    %4897 = vmatprep.subr.mxu0 0.0
    %4898 = vmatpush1.msra.mxu0 0.0
    %4899 = vmatprep.subr.mxu0 0.0
    %4900 = vmatpush1.msra.mxu0 0.0
    %4901 = vmatprep.subr.mxu0 0.0
    %4902 = vmatpush1.msra.mxu0 0.0
    %4903 = vmatprep.subr.mxu0 0.0
    %4904 = vmatpush1.msra.mxu0 0.0
    %4905 = vmatprep.subr.mxu0 0.0
    %4906 = vmatpush1.msra.mxu0 0.0
    %4907 = vmatprep.subr.mxu0 0.0
    %4908 = vmatpush1.msra.mxu0 0.0
    %4909 = vmatprep.subr.mxu0 0.0
    %4910 = vmatpush1.msra.mxu0 0.0
    %4911 = vmatprep.subr.mxu0 0.0
    %4912 = vmatpush1.msra.mxu0 0.0
    %4913 = vmatprep.subr.mxu0 0.0
    %4914 = vmatpush1.msra.mxu0 0.0
    %4915 = vmatprep.subr.mxu0 0.0
    %4916 = vmatpush1.msra.mxu0 0.0
    %4917 = vmatprep.subr.mxu0 0.0
    %4918 = vmatpush1.msra.mxu0 0.0
    %4919 = vmatprep.subr.mxu0 0.0
    %4920 = vmatpush1.msra.mxu0 0.0
    %4921 = vmatprep.subr.mxu0 0.0
    %4922 = vmatpush1.msra.mxu0 0.0
    %4923 = vmatprep.subr.mxu0 0.0
    %4924 = vmatpush1.msra.mxu0 0.0
    %4925 = vmatprep.subr.mxu0 0.0
    %4926 = vmatpush1.msra.mxu0 0.0
    %4927 = vmatprep.mubr.f32.mxu0 0.0
    %4928 = vmatmul.mubr.f32.gmra.mrb[0].mxu0 %v4852
    %v4929 = vpop.f32.mrb[0].mxu0
    %v4930 = vadd.f32 0.0, %v4929
    %v4931 = vpop.f32.mrb[0].mxu0
    %4932 = vmatprep.mubr.f32.mxu0 0.0
    %4933 = vmatmul.mubr.f32.gmra.mrb[0].mxu0 %v4855
    %v4934 = vpop.f32.mrb[0].mxu0
    %v4935 = vadd.f32 0.0, %v4934
    %v4936 = vpop.f32.mrb[0].mxu0
    %4937 = vmatprep.mubr.f32.mxu0 0.0
    %4938 = vmatmul.mubr.f32.gmra.mrb[0].mxu0 %v4858
    %v4939 = vpop.f32.mrb[0].mxu0
    %v4940 = vadd.f32 0.0, %v4939
    %v4941 = vpop.f32.mrb[0].mxu0
    %4942 = vdwg.mxu0
    %v4943 = vld [vmem:[#allocation20] sm:$0xff]
    %v4944 = vld [vmem:[#allocation20 + $0x8] sm:$0xff]
    %v4945 = vld [vmem:[#allocation20 + $0x10] sm:$0xff]
    %v4946 = vld [vmem:[#allocation20 + $0x18] sm:$0xff]
    %v4947 = vld [vmem:[#allocation20 + $0x20] sm:$0xff]
    %v4948 = vld [vmem:[#allocation20 + $0x28] sm:$0xff]
    %v4949 = vld [vmem:[#allocation20 + $0x30] sm:$0xff]
    %v4950 = vld [vmem:[#allocation20 + $0x38] sm:$0xff]
    %v4951 = vld [vmem:[#allocation20 + $0x40] sm:$0xff]
    %v4952 = vld [vmem:[#allocation20 + $0x48] sm:$0xff]
    %v4953 = vld [vmem:[#allocation20 + $0x50] sm:$0xff]
    %v4954 = vld [vmem:[#allocation20 + $0x58] sm:$0xff]
    %v4955 = vld [vmem:[#allocation20 + $0x60] sm:$0xff]
    %v4956 = vld [vmem:[#allocation20 + $0x68] sm:$0xff]
    %v4957 = vld [vmem:[#allocation20 + $0x70] sm:$0xff]
    %v4958 = vld [vmem:[#allocation20 + $0x78] sm:$0xff]
    %4959 = vmatprep.subr.mxu0 0.0
    %4960 = vmatpush1.msra.mxu0 %v4943
    %4961 = vmatprep.subr.mxu0 0.0
    %4962 = vmatpush1.msra.mxu0 %v4944
    %4963 = vmatprep.subr.mxu0 0.0
    %4964 = vmatpush1.msra.mxu0 %v4945
    %4965 = vmatprep.subr.mxu0 0.0
    %4966 = vmatpush1.msra.mxu0 %v4946
    %4967 = vmatprep.subr.mxu0 0.0
    %4968 = vmatpush1.msra.mxu0 %v4947
    %4969 = vmatprep.subr.mxu0 0.0
    %4970 = vmatpush1.msra.mxu0 %v4948
    %4971 = vmatprep.subr.mxu0 0.0
    %4972 = vmatpush1.msra.mxu0 %v4949
    %4973 = vmatprep.subr.mxu0 0.0
    %4974 = vmatpush1.msra.mxu0 %v4950
    %4975 = vmatprep.subr.mxu0 0.0
    %4976 = vmatpush1.msra.mxu0 %v4951
    %4977 = vmatprep.subr.mxu0 0.0
    %4978 = vmatpush1.msra.mxu0 %v4952
    %4979 = vmatprep.subr.mxu0 0.0
    %4980 = vmatpush1.msra.mxu0 %v4953
    %4981 = vmatprep.subr.mxu0 0.0
    %4982 = vmatpush1.msra.mxu0 %v4954
    %4983 = vmatprep.subr.mxu0 0.0
    %4984 = vmatpush1.msra.mxu0 %v4955
    %4985 = vmatprep.subr.mxu0 0.0
    %4986 = vmatpush1.msra.mxu0 %v4956
    %4987 = vmatprep.subr.mxu0 0.0
    %4988 = vmatpush1.msra.mxu0 %v4957
    %4989 = vmatprep.subr.mxu0 0.0
    %4990 = vmatpush1.msra.mxu0 %v4958
    %4991 = vmatprep.subr.mxu0 0.0
    %4992 = vmatpush1.msra.mxu0 0.0
    %4993 = vmatprep.subr.mxu0 0.0
    %4994 = vmatpush1.msra.mxu0 0.0
    %4995 = vmatprep.subr.mxu0 0.0
    %4996 = vmatpush1.msra.mxu0 0.0
    %4997 = vmatprep.subr.mxu0 0.0
    %4998 = vmatpush1.msra.mxu0 0.0
    %4999 = vmatprep.subr.mxu0 0.0
    %5000 = vmatpush1.msra.mxu0 0.0
    %5001 = vmatprep.subr.mxu0 0.0
    %5002 = vmatpush1.msra.mxu0 0.0
    %5003 = vmatprep.subr.mxu0 0.0
    %5004 = vmatpush1.msra.mxu0 0.0
    %5005 = vmatprep.subr.mxu0 0.0
    %5006 = vmatpush1.msra.mxu0 0.0
    %5007 = vmatprep.subr.mxu0 0.0
    %5008 = vmatpush1.msra.mxu0 0.0
    %5009 = vmatprep.subr.mxu0 0.0
    %5010 = vmatpush1.msra.mxu0 0.0
    %5011 = vmatprep.subr.mxu0 0.0
    %5012 = vmatpush1.msra.mxu0 0.0
    %5013 = vmatprep.subr.mxu0 0.0
    %5014 = vmatpush1.msra.mxu0 0.0
    %5015 = vmatprep.subr.mxu0 0.0
    %5016 = vmatpush1.msra.mxu0 0.0
    %5017 = vmatprep.subr.mxu0 0.0
    %5018 = vmatpush1.msra.mxu0 0.0
    %5019 = vmatprep.subr.mxu0 0.0
    %5020 = vmatpush1.msra.mxu0 0.0
    %5021 = vmatprep.subr.mxu0 0.0
    %5022 = vmatpush1.msra.mxu0 0.0
    %5023 = vmatprep.mubr.f32.mxu0 0.0
    %5024 = vmatmul.mubr.f32.gmra.mrb[0].mxu0 %v4930
    %v5025 = vpop.f32.mrb[0].mxu0
    %v5026 = vadd.f32 0.0, %v5025
    %v5027 = vpop.f32.mrb[0].mxu0
    %5028 = vmatprep.mubr.f32.mxu0 0.0
    %5029 = vmatmul.mubr.f32.gmra.mrb[0].mxu0 %v4935
    %v5030 = vpop.f32.mrb[0].mxu0
    %v5031 = vadd.f32 0.0, %v5030
    %v5032 = vpop.f32.mrb[0].mxu0
    %5033 = vmatprep.mubr.f32.mxu0 0.0
    %5034 = vmatmul.mubr.f32.gmra.mrb[0].mxu0 %v4940
    %v5035 = vpop.f32.mrb[0].mxu0
    %v5036 = vadd.f32 0.0, %v5035
    %v5037 = vpop.f32.mrb[0].mxu0
    %5038 = vdwg.mxu0
    %v5039 = vadd.f32 %v4847, %v5026
    %v5040 = vadd.f32 %v4847, %v5031
    %v5041 = vadd.f32 %v4847, %v5036
    %v5042 = vld [vmem:[%s1967] sm:$0xff]
    %v5043 = vld [vmem:[%s1967 + $0x8] sm:$0xff]
    %v5044 = vld [vmem:[%s1967 + $0x10] sm:$0x3]
    %v5046 = vsel %vm1775, %v5042, 0
    %v5049 = vsel %vm1775, %v5043, 0
    %v5052 = vsel %vm1775, %v5044, 0
    %5054 = vmatprep.subr.mxu0 0.0
    %5055 = vmatpush1.msra.mxu0 %v4827
    %5056 = vmatprep.subr.mxu0 0.0
    %5057 = vmatpush1.msra.mxu0 %v4832
    %5058 = vmatprep.subr.mxu0 0.0
    %5059 = vmatpush1.msra.mxu0 %v4861
    %5060 = vmatprep.subr.mxu0 0.0
    %5061 = vmatpush1.msra.mxu0 0.0
    %5062 = vmatprep.subr.mxu0 0.0
    %5063 = vmatpush1.msra.mxu0 0.0
    %5064 = vmatprep.subr.mxu0 0.0
    %5065 = vmatpush1.msra.mxu0 0.0
    %5066 = vmatprep.subr.mxu0 0.0
    %5067 = vmatpush1.msra.mxu0 0.0
    %5068 = vmatprep.subr.mxu0 0.0
    %5069 = vmatpush1.msra.mxu0 0.0
    %5070 = vmatprep.subr.mxu0 0.0
    %5071 = vmatpush1.msra.mxu0 0.0
    %5072 = vmatprep.subr.mxu0 0.0
    %5073 = vmatpush1.msra.mxu0 0.0
    %5074 = vmatprep.subr.mxu0 0.0
    %5075 = vmatpush1.msra.mxu0 0.0
    %5076 = vmatprep.subr.mxu0 0.0
    %5077 = vmatpush1.msra.mxu0 0.0
    %5078 = vmatprep.subr.mxu0 0.0
    %5079 = vmatpush1.msra.mxu0 0.0
    %5080 = vmatprep.subr.mxu0 0.0
    %5081 = vmatpush1.msra.mxu0 0.0
    %5082 = vmatprep.subr.mxu0 0.0
    %5083 = vmatpush1.msra.mxu0 0.0
    %5084 = vmatprep.subr.mxu0 0.0
    %5085 = vmatpush1.msra.mxu0 0.0
    %5086 = vmatprep.subr.mxu0 0.0
    %5087 = vmatpush1.msra.mxu0 0.0
    %5088 = vmatprep.subr.mxu0 0.0
    %5089 = vmatpush1.msra.mxu0 0.0
    %5090 = vmatprep.subr.mxu0 0.0
    %5091 = vmatpush1.msra.mxu0 0.0
    %5092 = vmatprep.subr.mxu0 0.0
    %5093 = vmatpush1.msra.mxu0 0.0
    %5094 = vmatprep.subr.mxu0 0.0
    %5095 = vmatpush1.msra.mxu0 0.0
    %5096 = vmatprep.subr.mxu0 0.0
    %5097 = vmatpush1.msra.mxu0 0.0
    %5098 = vmatprep.subr.mxu0 0.0
    %5099 = vmatpush1.msra.mxu0 0.0
    %5100 = vmatprep.subr.mxu0 0.0
    %5101 = vmatpush1.msra.mxu0 0.0
    %5102 = vmatprep.subr.mxu0 0.0
    %5103 = vmatpush1.msra.mxu0 0.0
    %5104 = vmatprep.subr.mxu0 0.0
    %5105 = vmatpush1.msra.mxu0 0.0
    %5106 = vmatprep.subr.mxu0 0.0
    %5107 = vmatpush1.msra.mxu0 0.0
    %5108 = vmatprep.subr.mxu0 0.0
    %5109 = vmatpush1.msra.mxu0 0.0
    %5110 = vmatprep.subr.mxu0 0.0
    %5111 = vmatpush1.msra.mxu0 0.0
    %5112 = vmatprep.subr.mxu0 0.0
    %5113 = vmatpush1.msra.mxu0 0.0
    %5114 = vmatprep.subr.mxu0 0.0
    %5115 = vmatpush1.msra.mxu0 0.0
    %5116 = vmatprep.subr.mxu0 0.0
    %5117 = vmatpush1.msra.mxu0 0.0
    %5118 = vmatprep.mubr.f32.mxu0 0.0
    %5119 = vmatmul.mubr.f32.gmra.mrb[0].mxu0 %v5046
    %v5120 = vpop.f32.mrb[0].mxu0
    %v5121 = vadd.f32 0.0, %v5120
    %v5122 = vpop.f32.mrb[0].mxu0
    %5123 = vmatprep.mubr.f32.mxu0 0.0
    %5124 = vmatmul.mubr.f32.gmra.mrb[0].mxu0 %v5049
    %v5125 = vpop.f32.mrb[0].mxu0
    %v5126 = vadd.f32 0.0, %v5125
    %v5127 = vpop.f32.mrb[0].mxu0
    %5128 = vmatprep.mubr.f32.mxu0 0.0
    %5129 = vmatmul.mubr.f32.gmra.mrb[0].mxu0 %v5052
    %v5130 = vpop.f32.mrb[0].mxu0
    %v5131 = vadd.f32 0.0, %v5130
    %v5132 = vpop.f32.mrb[0].mxu0
    %5133 = vdwg.mxu0
    %s5134 = scalar_lea.vmem [#allocation20], 128
    %v5135 = vld [vmem:[%s5134] sm:$0xff]
    %v5136 = vld [vmem:[%s5134 + $0x8] sm:$0xff]
    %v5137 = vld [vmem:[%s5134 + $0x10] sm:$0xff]
    %v5138 = vld [vmem:[%s5134 + $0x18] sm:$0xff]
    %v5139 = vld [vmem:[%s5134 + $0x20] sm:$0xff]
    %v5140 = vld [vmem:[%s5134 + $0x28] sm:$0xff]
    %v5141 = vld [vmem:[%s5134 + $0x30] sm:$0xff]
    %v5142 = vld [vmem:[%s5134 + $0x38] sm:$0xff]
    %v5143 = vld [vmem:[%s5134 + $0x40] sm:$0xff]
    %v5144 = vld [vmem:[%s5134 + $0x48] sm:$0xff]
    %v5145 = vld [vmem:[%s5134 + $0x50] sm:$0xff]
    %v5146 = vld [vmem:[%s5134 + $0x58] sm:$0xff]
    %v5147 = vld [vmem:[%s5134 + $0x60] sm:$0xff]
    %v5148 = vld [vmem:[%s5134 + $0x68] sm:$0xff]
    %v5149 = vld [vmem:[%s5134 + $0x70] sm:$0xff]
    %v5150 = vld [vmem:[%s5134 + $0x78] sm:$0xff]
    %5151 = vmatprep.subr.mxu0 0.0
    %5152 = vmatpush1.msra.mxu0 %v5135
    %5153 = vmatprep.subr.mxu0 0.0
    %5154 = vmatpush1.msra.mxu0 %v5136
    %5155 = vmatprep.subr.mxu0 0.0
    %5156 = vmatpush1.msra.mxu0 %v5137
    %5157 = vmatprep.subr.mxu0 0.0
    %5158 = vmatpush1.msra.mxu0 %v5138
    %5159 = vmatprep.subr.mxu0 0.0
    %5160 = vmatpush1.msra.mxu0 %v5139
    %5161 = vmatprep.subr.mxu0 0.0
    %5162 = vmatpush1.msra.mxu0 %v5140
    %5163 = vmatprep.subr.mxu0 0.0
    %5164 = vmatpush1.msra.mxu0 %v5141
    %5165 = vmatprep.subr.mxu0 0.0
    %5166 = vmatpush1.msra.mxu0 %v5142
    %5167 = vmatprep.subr.mxu0 0.0
    %5168 = vmatpush1.msra.mxu0 %v5143
    %5169 = vmatprep.subr.mxu0 0.0
    %5170 = vmatpush1.msra.mxu0 %v5144
    %5171 = vmatprep.subr.mxu0 0.0
    %5172 = vmatpush1.msra.mxu0 %v5145
    %5173 = vmatprep.subr.mxu0 0.0
    %5174 = vmatpush1.msra.mxu0 %v5146
    %5175 = vmatprep.subr.mxu0 0.0
    %5176 = vmatpush1.msra.mxu0 %v5147
    %5177 = vmatprep.subr.mxu0 0.0
    %5178 = vmatpush1.msra.mxu0 %v5148
    %5179 = vmatprep.subr.mxu0 0.0
    %5180 = vmatpush1.msra.mxu0 %v5149
    %5181 = vmatprep.subr.mxu0 0.0
    %5182 = vmatpush1.msra.mxu0 %v5150
    %5183 = vmatprep.subr.mxu0 0.0
    %5184 = vmatpush1.msra.mxu0 0.0
    %5185 = vmatprep.subr.mxu0 0.0
    %5186 = vmatpush1.msra.mxu0 0.0
    %5187 = vmatprep.subr.mxu0 0.0
    %5188 = vmatpush1.msra.mxu0 0.0
    %5189 = vmatprep.subr.mxu0 0.0
    %5190 = vmatpush1.msra.mxu0 0.0
    %5191 = vmatprep.subr.mxu0 0.0
    %5192 = vmatpush1.msra.mxu0 0.0
    %5193 = vmatprep.subr.mxu0 0.0
    %5194 = vmatpush1.msra.mxu0 0.0
    %5195 = vmatprep.subr.mxu0 0.0
    %5196 = vmatpush1.msra.mxu0 0.0
    %5197 = vmatprep.subr.mxu0 0.0
    %5198 = vmatpush1.msra.mxu0 0.0
    %5199 = vmatprep.subr.mxu0 0.0
    %5200 = vmatpush1.msra.mxu0 0.0
    %5201 = vmatprep.subr.mxu0 0.0
    %5202 = vmatpush1.msra.mxu0 0.0
    %5203 = vmatprep.subr.mxu0 0.0
    %5204 = vmatpush1.msra.mxu0 0.0
    %5205 = vmatprep.subr.mxu0 0.0
    %5206 = vmatpush1.msra.mxu0 0.0
    %5207 = vmatprep.subr.mxu0 0.0
    %5208 = vmatpush1.msra.mxu0 0.0
    %5209 = vmatprep.subr.mxu0 0.0
    %5210 = vmatpush1.msra.mxu0 0.0
    %5211 = vmatprep.subr.mxu0 0.0
    %5212 = vmatpush1.msra.mxu0 0.0
    %5213 = vmatprep.subr.mxu0 0.0
    %5214 = vmatpush1.msra.mxu0 0.0
    %5215 = vmatprep.mubr.f32.mxu0 0.0
    %5216 = vmatmul.mubr.f32.gmra.mrb[0].mxu0 %v5121
    %v5217 = vpop.f32.mrb[0].mxu0
    %v5218 = vadd.f32 0.0, %v5217
    %v5219 = vpop.f32.mrb[0].mxu0
    %5220 = vmatprep.mubr.f32.mxu0 0.0
    %5221 = vmatmul.mubr.f32.gmra.mrb[0].mxu0 %v5126
    %v5222 = vpop.f32.mrb[0].mxu0
    %v5223 = vadd.f32 0.0, %v5222
    %v5224 = vpop.f32.mrb[0].mxu0
    %5225 = vmatprep.mubr.f32.mxu0 0.0
    %5226 = vmatmul.mubr.f32.gmra.mrb[0].mxu0 %v5131
    %v5227 = vpop.f32.mrb[0].mxu0
    %v5228 = vadd.f32 0.0, %v5227
    %v5229 = vpop.f32.mrb[0].mxu0
    %5230 = vdwg.mxu0
    %v5231 = vadd.f32 %v5039, %v5218
    %v5232 = vadd.f32 %v5040, %v5223
    %v5233 = vadd.f32 %v5041, %v5228
    %v5234 = vld [vmem:[%s2160] sm:$0xff]
    %v5235 = vld [vmem:[%s2160 + $0x8] sm:$0xff]
    %v5236 = vld [vmem:[%s2160 + $0x10] sm:$0x3]
    %v5238 = vsel %vm1775, %v5234, 0
    %v5241 = vsel %vm1775, %v5235, 0
    %v5244 = vsel %vm1775, %v5236, 0
    %5246 = vmatprep.subr.mxu0 0.0
    %5247 = vmatpush1.msra.mxu0 %v4827
    %5248 = vmatprep.subr.mxu0 0.0
    %5249 = vmatpush1.msra.mxu0 %v4832
    %5250 = vmatprep.subr.mxu0 0.0
    %5251 = vmatpush1.msra.mxu0 %v4861
    %5252 = vmatprep.subr.mxu0 0.0
    %5253 = vmatpush1.msra.mxu0 0.0
    %5254 = vmatprep.subr.mxu0 0.0
    %5255 = vmatpush1.msra.mxu0 0.0
    %5256 = vmatprep.subr.mxu0 0.0
    %5257 = vmatpush1.msra.mxu0 0.0
    %5258 = vmatprep.subr.mxu0 0.0
    %5259 = vmatpush1.msra.mxu0 0.0
    %5260 = vmatprep.subr.mxu0 0.0
    %5261 = vmatpush1.msra.mxu0 0.0
    %5262 = vmatprep.subr.mxu0 0.0
    %5263 = vmatpush1.msra.mxu0 0.0
    %5264 = vmatprep.subr.mxu0 0.0
    %5265 = vmatpush1.msra.mxu0 0.0
    %5266 = vmatprep.subr.mxu0 0.0
    %5267 = vmatpush1.msra.mxu0 0.0
    %5268 = vmatprep.subr.mxu0 0.0
    %5269 = vmatpush1.msra.mxu0 0.0
    %5270 = vmatprep.subr.mxu0 0.0
    %5271 = vmatpush1.msra.mxu0 0.0
    %5272 = vmatprep.subr.mxu0 0.0
    %5273 = vmatpush1.msra.mxu0 0.0
    %5274 = vmatprep.subr.mxu0 0.0
    %5275 = vmatpush1.msra.mxu0 0.0
    %5276 = vmatprep.subr.mxu0 0.0
    %5277 = vmatpush1.msra.mxu0 0.0
    %5278 = vmatprep.subr.mxu0 0.0
    %5279 = vmatpush1.msra.mxu0 0.0
    %5280 = vmatprep.subr.mxu0 0.0
    %5281 = vmatpush1.msra.mxu0 0.0
    %5282 = vmatprep.subr.mxu0 0.0
    %5283 = vmatpush1.msra.mxu0 0.0
    %5284 = vmatprep.subr.mxu0 0.0
    %5285 = vmatpush1.msra.mxu0 0.0
    %5286 = vmatprep.subr.mxu0 0.0
    %5287 = vmatpush1.msra.mxu0 0.0
    %5288 = vmatprep.subr.mxu0 0.0
    %5289 = vmatpush1.msra.mxu0 0.0
    %5290 = vmatprep.subr.mxu0 0.0
    %5291 = vmatpush1.msra.mxu0 0.0
    %5292 = vmatprep.subr.mxu0 0.0
    %5293 = vmatpush1.msra.mxu0 0.0
    %5294 = vmatprep.subr.mxu0 0.0
    %5295 = vmatpush1.msra.mxu0 0.0
    %5296 = vmatprep.subr.mxu0 0.0
    %5297 = vmatpush1.msra.mxu0 0.0
    %5298 = vmatprep.subr.mxu0 0.0
    %5299 = vmatpush1.msra.mxu0 0.0
    %5300 = vmatprep.subr.mxu0 0.0
    %5301 = vmatpush1.msra.mxu0 0.0
    %5302 = vmatprep.subr.mxu0 0.0
    %5303 = vmatpush1.msra.mxu0 0.0
    %5304 = vmatprep.subr.mxu0 0.0
    %5305 = vmatpush1.msra.mxu0 0.0
    %5306 = vmatprep.subr.mxu0 0.0
    %5307 = vmatpush1.msra.mxu0 0.0
    %5308 = vmatprep.subr.mxu0 0.0
    %5309 = vmatpush1.msra.mxu0 0.0
    %5310 = vmatprep.mubr.f32.mxu0 0.0
    %5311 = vmatmul.mubr.f32.gmra.mrb[0].mxu0 %v5238
    %v5312 = vpop.f32.mrb[0].mxu0
    %v5313 = vadd.f32 0.0, %v5312
    %v5314 = vpop.f32.mrb[0].mxu0
    %5315 = vmatprep.mubr.f32.mxu0 0.0
    %5316 = vmatmul.mubr.f32.gmra.mrb[0].mxu0 %v5241
    %v5317 = vpop.f32.mrb[0].mxu0
    %v5318 = vadd.f32 0.0, %v5317
    %v5319 = vpop.f32.mrb[0].mxu0
    %5320 = vmatprep.mubr.f32.mxu0 0.0
    %5321 = vmatmul.mubr.f32.gmra.mrb[0].mxu0 %v5244
    %v5322 = vpop.f32.mrb[0].mxu0
    %v5323 = vadd.f32 0.0, %v5322
    %v5324 = vpop.f32.mrb[0].mxu0
    %5325 = vdwg.mxu0
    %s5326 = scalar_lea.vmem [#allocation20], 256
    %v5327 = vld [vmem:[%s5326] sm:$0xff]
    %v5328 = vld [vmem:[%s5326 + $0x8] sm:$0xff]
    %v5329 = vld [vmem:[%s5326 + $0x10] sm:$0xff]
    %v5330 = vld [vmem:[%s5326 + $0x18] sm:$0xff]
    %v5331 = vld [vmem:[%s5326 + $0x20] sm:$0xff]
    %v5332 = vld [vmem:[%s5326 + $0x28] sm:$0xff]
    %v5333 = vld [vmem:[%s5326 + $0x30] sm:$0xff]
    %v5334 = vld [vmem:[%s5326 + $0x38] sm:$0xff]
    %v5335 = vld [vmem:[%s5326 + $0x40] sm:$0xff]
    %v5336 = vld [vmem:[%s5326 + $0x48] sm:$0xff]
    %v5337 = vld [vmem:[%s5326 + $0x50] sm:$0xff]
    %v5338 = vld [vmem:[%s5326 + $0x58] sm:$0xff]
    %v5339 = vld [vmem:[%s5326 + $0x60] sm:$0xff]
    %v5340 = vld [vmem:[%s5326 + $0x68] sm:$0xff]
    %v5341 = vld [vmem:[%s5326 + $0x70] sm:$0xff]
    %v5342 = vld [vmem:[%s5326 + $0x78] sm:$0xff]
    %5343 = vmatprep.subr.mxu0 0.0
    %5344 = vmatpush1.msra.mxu0 %v5327
    %5345 = vmatprep.subr.mxu0 0.0
    %5346 = vmatpush1.msra.mxu0 %v5328
    %5347 = vmatprep.subr.mxu0 0.0
    %5348 = vmatpush1.msra.mxu0 %v5329
    %5349 = vmatprep.subr.mxu0 0.0
    %5350 = vmatpush1.msra.mxu0 %v5330
    %5351 = vmatprep.subr.mxu0 0.0
    %5352 = vmatpush1.msra.mxu0 %v5331
    %5353 = vmatprep.subr.mxu0 0.0
    %5354 = vmatpush1.msra.mxu0 %v5332
    %5355 = vmatprep.subr.mxu0 0.0
    %5356 = vmatpush1.msra.mxu0 %v5333
    %5357 = vmatprep.subr.mxu0 0.0
    %5358 = vmatpush1.msra.mxu0 %v5334
    %5359 = vmatprep.subr.mxu0 0.0
    %5360 = vmatpush1.msra.mxu0 %v5335
    %5361 = vmatprep.subr.mxu0 0.0
    %5362 = vmatpush1.msra.mxu0 %v5336
    %5363 = vmatprep.subr.mxu0 0.0
    %5364 = vmatpush1.msra.mxu0 %v5337
    %5365 = vmatprep.subr.mxu0 0.0
    %5366 = vmatpush1.msra.mxu0 %v5338
    %5367 = vmatprep.subr.mxu0 0.0
    %5368 = vmatpush1.msra.mxu0 %v5339
    %5369 = vmatprep.subr.mxu0 0.0
    %5370 = vmatpush1.msra.mxu0 %v5340
    %5371 = vmatprep.subr.mxu0 0.0
    %5372 = vmatpush1.msra.mxu0 %v5341
    %5373 = vmatprep.subr.mxu0 0.0
    %5374 = vmatpush1.msra.mxu0 %v5342
    %5375 = vmatprep.subr.mxu0 0.0
    %5376 = vmatpush1.msra.mxu0 0.0
    %5377 = vmatprep.subr.mxu0 0.0
    %5378 = vmatpush1.msra.mxu0 0.0
    %5379 = vmatprep.subr.mxu0 0.0
    %5380 = vmatpush1.msra.mxu0 0.0
    %5381 = vmatprep.subr.mxu0 0.0
    %5382 = vmatpush1.msra.mxu0 0.0
    %5383 = vmatprep.subr.mxu0 0.0
    %5384 = vmatpush1.msra.mxu0 0.0
    %5385 = vmatprep.subr.mxu0 0.0
    %5386 = vmatpush1.msra.mxu0 0.0
    %5387 = vmatprep.subr.mxu0 0.0
    %5388 = vmatpush1.msra.mxu0 0.0
    %5389 = vmatprep.subr.mxu0 0.0
    %5390 = vmatpush1.msra.mxu0 0.0
    %5391 = vmatprep.subr.mxu0 0.0
    %5392 = vmatpush1.msra.mxu0 0.0
    %5393 = vmatprep.subr.mxu0 0.0
    %5394 = vmatpush1.msra.mxu0 0.0
    %5395 = vmatprep.subr.mxu0 0.0
    %5396 = vmatpush1.msra.mxu0 0.0
    %5397 = vmatprep.subr.mxu0 0.0
    %5398 = vmatpush1.msra.mxu0 0.0
    %5399 = vmatprep.subr.mxu0 0.0
    %5400 = vmatpush1.msra.mxu0 0.0
    %5401 = vmatprep.subr.mxu0 0.0
    %5402 = vmatpush1.msra.mxu0 0.0
    %5403 = vmatprep.subr.mxu0 0.0
    %5404 = vmatpush1.msra.mxu0 0.0
    %5405 = vmatprep.subr.mxu0 0.0
    %5406 = vmatpush1.msra.mxu0 0.0
    %5407 = vmatprep.mubr.f32.mxu0 0.0
    %5408 = vmatmul.mubr.f32.gmra.mrb[0].mxu0 %v5313
    %v5409 = vpop.f32.mrb[0].mxu0
    %v5410 = vadd.f32 0.0, %v5409
    %v5411 = vpop.f32.mrb[0].mxu0
    %5412 = vmatprep.mubr.f32.mxu0 0.0
    %5413 = vmatmul.mubr.f32.gmra.mrb[0].mxu0 %v5318
    %v5414 = vpop.f32.mrb[0].mxu0
    %v5415 = vadd.f32 0.0, %v5414
    %v5416 = vpop.f32.mrb[0].mxu0
    %5417 = vmatprep.mubr.f32.mxu0 0.0
    %5418 = vmatmul.mubr.f32.gmra.mrb[0].mxu0 %v5323
    %v5419 = vpop.f32.mrb[0].mxu0
    %v5420 = vadd.f32 0.0, %v5419
    %v5421 = vpop.f32.mrb[0].mxu0
    %5422 = vdwg.mxu0
    %v5423 = vadd.f32 %v5231, %v5410
    %v5424 = vadd.f32 %v5232, %v5415
    %v5425 = vadd.f32 %v5233, %v5420
    %v5426 = vld [vmem:[%s2353] sm:$0xff]
    %v5427 = vld [vmem:[%s2353 + $0x8] sm:$0xff]
    %v5428 = vld [vmem:[%s2353 + $0x10] sm:$0x3]
    %v5430 = vsel %vm1775, %v5426, 0
    %v5433 = vsel %vm1775, %v5427, 0
    %v5436 = vsel %vm1775, %v5428, 0
    %5438 = vmatprep.subr.mxu0 0.0
    %5439 = vmatpush1.msra.mxu0 %v4827
    %5440 = vmatprep.subr.mxu0 0.0
    %5441 = vmatpush1.msra.mxu0 %v4832
    %5442 = vmatprep.subr.mxu0 0.0
    %5443 = vmatpush1.msra.mxu0 %v4861
    %5444 = vmatprep.subr.mxu0 0.0
    %5445 = vmatpush1.msra.mxu0 0.0
    %5446 = vmatprep.subr.mxu0 0.0
    %5447 = vmatpush1.msra.mxu0 0.0
    %5448 = vmatprep.subr.mxu0 0.0
    %5449 = vmatpush1.msra.mxu0 0.0
    %5450 = vmatprep.subr.mxu0 0.0
    %5451 = vmatpush1.msra.mxu0 0.0
    %5452 = vmatprep.subr.mxu0 0.0
    %5453 = vmatpush1.msra.mxu0 0.0
    %5454 = vmatprep.subr.mxu0 0.0
    %5455 = vmatpush1.msra.mxu0 0.0
    %5456 = vmatprep.subr.mxu0 0.0
    %5457 = vmatpush1.msra.mxu0 0.0
    %5458 = vmatprep.subr.mxu0 0.0
    %5459 = vmatpush1.msra.mxu0 0.0
    %5460 = vmatprep.subr.mxu0 0.0
    %5461 = vmatpush1.msra.mxu0 0.0
    %5462 = vmatprep.subr.mxu0 0.0
    %5463 = vmatpush1.msra.mxu0 0.0
    %5464 = vmatprep.subr.mxu0 0.0
    %5465 = vmatpush1.msra.mxu0 0.0
    %5466 = vmatprep.subr.mxu0 0.0
    %5467 = vmatpush1.msra.mxu0 0.0
    %5468 = vmatprep.subr.mxu0 0.0
    %5469 = vmatpush1.msra.mxu0 0.0
    %5470 = vmatprep.subr.mxu0 0.0
    %5471 = vmatpush1.msra.mxu0 0.0
    %5472 = vmatprep.subr.mxu0 0.0
    %5473 = vmatpush1.msra.mxu0 0.0
    %5474 = vmatprep.subr.mxu0 0.0
    %5475 = vmatpush1.msra.mxu0 0.0
    %5476 = vmatprep.subr.mxu0 0.0
    %5477 = vmatpush1.msra.mxu0 0.0
    %5478 = vmatprep.subr.mxu0 0.0
    %5479 = vmatpush1.msra.mxu0 0.0
    %5480 = vmatprep.subr.mxu0 0.0
    %5481 = vmatpush1.msra.mxu0 0.0
    %5482 = vmatprep.subr.mxu0 0.0
    %5483 = vmatpush1.msra.mxu0 0.0
    %5484 = vmatprep.subr.mxu0 0.0
    %5485 = vmatpush1.msra.mxu0 0.0
    %5486 = vmatprep.subr.mxu0 0.0
    %5487 = vmatpush1.msra.mxu0 0.0
    %5488 = vmatprep.subr.mxu0 0.0
    %5489 = vmatpush1.msra.mxu0 0.0
    %5490 = vmatprep.subr.mxu0 0.0
    %5491 = vmatpush1.msra.mxu0 0.0
    %5492 = vmatprep.subr.mxu0 0.0
    %5493 = vmatpush1.msra.mxu0 0.0
    %5494 = vmatprep.subr.mxu0 0.0
    %5495 = vmatpush1.msra.mxu0 0.0
    %5496 = vmatprep.subr.mxu0 0.0
    %5497 = vmatpush1.msra.mxu0 0.0
    %5498 = vmatprep.subr.mxu0 0.0
    %5499 = vmatpush1.msra.mxu0 0.0
    %5500 = vmatprep.subr.mxu0 0.0
    %5501 = vmatpush1.msra.mxu0 0.0
    %5502 = vmatprep.mubr.f32.mxu0 0.0
    %5503 = vmatmul.mubr.f32.gmra.mrb[0].mxu0 %v5430
    %v5504 = vpop.f32.mrb[0].mxu0
    %v5505 = vadd.f32 0.0, %v5504
    %v5506 = vpop.f32.mrb[0].mxu0
    %5507 = vmatprep.mubr.f32.mxu0 0.0
    %5508 = vmatmul.mubr.f32.gmra.mrb[0].mxu0 %v5433
    %v5509 = vpop.f32.mrb[0].mxu0
    %v5510 = vadd.f32 0.0, %v5509
    %v5511 = vpop.f32.mrb[0].mxu0
    %5512 = vmatprep.mubr.f32.mxu0 0.0
    %5513 = vmatmul.mubr.f32.gmra.mrb[0].mxu0 %v5436
    %v5514 = vpop.f32.mrb[0].mxu0
    %v5515 = vadd.f32 0.0, %v5514
    %v5516 = vpop.f32.mrb[0].mxu0
    %5517 = vdwg.mxu0
    %s5518 = scalar_lea.vmem [#allocation20], 384
    %v5519 = vld [vmem:[%s5518] sm:$0xff]
    %v5520 = vld [vmem:[%s5518 + $0x8] sm:$0xff]
    %v5521 = vld [vmem:[%s5518 + $0x10] sm:$0xff]
    %v5522 = vld [vmem:[%s5518 + $0x18] sm:$0xff]
    %v5523 = vld [vmem:[%s5518 + $0x20] sm:$0xff]
    %v5524 = vld [vmem:[%s5518 + $0x28] sm:$0xff]
    %v5525 = vld [vmem:[%s5518 + $0x30] sm:$0xff]
    %v5526 = vld [vmem:[%s5518 + $0x38] sm:$0xff]
    %v5527 = vld [vmem:[%s5518 + $0x40] sm:$0xff]
    %v5528 = vld [vmem:[%s5518 + $0x48] sm:$0xff]
    %v5529 = vld [vmem:[%s5518 + $0x50] sm:$0xff]
    %v5530 = vld [vmem:[%s5518 + $0x58] sm:$0xff]
    %v5531 = vld [vmem:[%s5518 + $0x60] sm:$0xff]
    %v5532 = vld [vmem:[%s5518 + $0x68] sm:$0xff]
    %v5533 = vld [vmem:[%s5518 + $0x70] sm:$0xff]
    %v5534 = vld [vmem:[%s5518 + $0x78] sm:$0xff]
    %5535 = vmatprep.subr.mxu0 0.0
    %5536 = vmatpush1.msra.mxu0 %v5519
    %5537 = vmatprep.subr.mxu0 0.0
    %5538 = vmatpush1.msra.mxu0 %v5520
    %5539 = vmatprep.subr.mxu0 0.0
    %5540 = vmatpush1.msra.mxu0 %v5521
    %5541 = vmatprep.subr.mxu0 0.0
    %5542 = vmatpush1.msra.mxu0 %v5522
    %5543 = vmatprep.subr.mxu0 0.0
    %5544 = vmatpush1.msra.mxu0 %v5523
    %5545 = vmatprep.subr.mxu0 0.0
    %5546 = vmatpush1.msra.mxu0 %v5524
    %5547 = vmatprep.subr.mxu0 0.0
    %5548 = vmatpush1.msra.mxu0 %v5525
    %5549 = vmatprep.subr.mxu0 0.0
    %5550 = vmatpush1.msra.mxu0 %v5526
    %5551 = vmatprep.subr.mxu0 0.0
    %5552 = vmatpush1.msra.mxu0 %v5527
    %5553 = vmatprep.subr.mxu0 0.0
    %5554 = vmatpush1.msra.mxu0 %v5528
    %5555 = vmatprep.subr.mxu0 0.0
    %5556 = vmatpush1.msra.mxu0 %v5529
    %5557 = vmatprep.subr.mxu0 0.0
    %5558 = vmatpush1.msra.mxu0 %v5530
    %5559 = vmatprep.subr.mxu0 0.0
    %5560 = vmatpush1.msra.mxu0 %v5531
    %5561 = vmatprep.subr.mxu0 0.0
    %5562 = vmatpush1.msra.mxu0 %v5532
    %5563 = vmatprep.subr.mxu0 0.0
    %5564 = vmatpush1.msra.mxu0 %v5533
    %5565 = vmatprep.subr.mxu0 0.0
    %5566 = vmatpush1.msra.mxu0 %v5534
    %5567 = vmatprep.subr.mxu0 0.0
    %5568 = vmatpush1.msra.mxu0 0.0
    %5569 = vmatprep.subr.mxu0 0.0
    %5570 = vmatpush1.msra.mxu0 0.0
    %5571 = vmatprep.subr.mxu0 0.0
    %5572 = vmatpush1.msra.mxu0 0.0
    %5573 = vmatprep.subr.mxu0 0.0
    %5574 = vmatpush1.msra.mxu0 0.0
    %5575 = vmatprep.subr.mxu0 0.0
    %5576 = vmatpush1.msra.mxu0 0.0
    %5577 = vmatprep.subr.mxu0 0.0
    %5578 = vmatpush1.msra.mxu0 0.0
    %5579 = vmatprep.subr.mxu0 0.0
    %5580 = vmatpush1.msra.mxu0 0.0
    %5581 = vmatprep.subr.mxu0 0.0
    %5582 = vmatpush1.msra.mxu0 0.0
    %5583 = vmatprep.subr.mxu0 0.0
    %5584 = vmatpush1.msra.mxu0 0.0
    %5585 = vmatprep.subr.mxu0 0.0
    %5586 = vmatpush1.msra.mxu0 0.0
    %5587 = vmatprep.subr.mxu0 0.0
    %5588 = vmatpush1.msra.mxu0 0.0
    %5589 = vmatprep.subr.mxu0 0.0
    %5590 = vmatpush1.msra.mxu0 0.0
    %5591 = vmatprep.subr.mxu0 0.0
    %5592 = vmatpush1.msra.mxu0 0.0
    %5593 = vmatprep.subr.mxu0 0.0
    %5594 = vmatpush1.msra.mxu0 0.0
    %5595 = vmatprep.subr.mxu0 0.0
    %5596 = vmatpush1.msra.mxu0 0.0
    %5597 = vmatprep.subr.mxu0 0.0
    %5598 = vmatpush1.msra.mxu0 0.0
    %5599 = vmatprep.mubr.f32.mxu0 0.0
    %5600 = vmatmul.mubr.f32.gmra.mrb[0].mxu0 %v5505
    %v5601 = vpop.f32.mrb[0].mxu0
    %v5602 = vadd.f32 0.0, %v5601
    %v5603 = vpop.f32.mrb[0].mxu0
    %5604 = vmatprep.mubr.f32.mxu0 0.0
    %5605 = vmatmul.mubr.f32.gmra.mrb[0].mxu0 %v5510
    %v5606 = vpop.f32.mrb[0].mxu0
    %v5607 = vadd.f32 0.0, %v5606
    %v5608 = vpop.f32.mrb[0].mxu0
    %5609 = vmatprep.mubr.f32.mxu0 0.0
    %5610 = vmatmul.mubr.f32.gmra.mrb[0].mxu0 %v5515
    %v5611 = vpop.f32.mrb[0].mxu0
    %v5612 = vadd.f32 0.0, %v5611
    %v5613 = vpop.f32.mrb[0].mxu0
    %5614 = vdwg.mxu0
    %v5615 = vadd.f32 %v5423, %v5602
    %v5616 = vadd.f32 %v5424, %v5607
    %v5617 = vadd.f32 %v5425, %v5612
    %v5618 = vld [vmem:[%s2546] sm:$0xff]
    %v5619 = vld [vmem:[%s2546 + $0x8] sm:$0xff]
    %v5620 = vld [vmem:[%s2546 + $0x10] sm:$0x3]
    %v5622 = vsel %vm1775, %v5618, 0
    %v5625 = vsel %vm1775, %v5619, 0
    %v5628 = vsel %vm1775, %v5620, 0
    %5630 = vmatprep.subr.mxu0 0.0
    %5631 = vmatpush1.msra.mxu0 %v4827
    %5632 = vmatprep.subr.mxu0 0.0
    %5633 = vmatpush1.msra.mxu0 %v4832
    %5634 = vmatprep.subr.mxu0 0.0
    %5635 = vmatpush1.msra.mxu0 %v4861
    %5636 = vmatprep.subr.mxu0 0.0
    %5637 = vmatpush1.msra.mxu0 0.0
    %5638 = vmatprep.subr.mxu0 0.0
    %5639 = vmatpush1.msra.mxu0 0.0
    %5640 = vmatprep.subr.mxu0 0.0
    %5641 = vmatpush1.msra.mxu0 0.0
    %5642 = vmatprep.subr.mxu0 0.0
    %5643 = vmatpush1.msra.mxu0 0.0
    %5644 = vmatprep.subr.mxu0 0.0
    %5645 = vmatpush1.msra.mxu0 0.0
    %5646 = vmatprep.subr.mxu0 0.0
    %5647 = vmatpush1.msra.mxu0 0.0
    %5648 = vmatprep.subr.mxu0 0.0
    %5649 = vmatpush1.msra.mxu0 0.0
    %5650 = vmatprep.subr.mxu0 0.0
    %5651 = vmatpush1.msra.mxu0 0.0
    %5652 = vmatprep.subr.mxu0 0.0
    %5653 = vmatpush1.msra.mxu0 0.0
    %5654 = vmatprep.subr.mxu0 0.0
    %5655 = vmatpush1.msra.mxu0 0.0
    %5656 = vmatprep.subr.mxu0 0.0
    %5657 = vmatpush1.msra.mxu0 0.0
    %5658 = vmatprep.subr.mxu0 0.0
    %5659 = vmatpush1.msra.mxu0 0.0
    %5660 = vmatprep.subr.mxu0 0.0
    %5661 = vmatpush1.msra.mxu0 0.0
    %5662 = vmatprep.subr.mxu0 0.0
    %5663 = vmatpush1.msra.mxu0 0.0
    %5664 = vmatprep.subr.mxu0 0.0
    %5665 = vmatpush1.msra.mxu0 0.0
    %5666 = vmatprep.subr.mxu0 0.0
    %5667 = vmatpush1.msra.mxu0 0.0
    %5668 = vmatprep.subr.mxu0 0.0
    %5669 = vmatpush1.msra.mxu0 0.0
    %5670 = vmatprep.subr.mxu0 0.0
    %5671 = vmatpush1.msra.mxu0 0.0
    %5672 = vmatprep.subr.mxu0 0.0
    %5673 = vmatpush1.msra.mxu0 0.0
    %5674 = vmatprep.subr.mxu0 0.0
    %5675 = vmatpush1.msra.mxu0 0.0
    %5676 = vmatprep.subr.mxu0 0.0
    %5677 = vmatpush1.msra.mxu0 0.0
    %5678 = vmatprep.subr.mxu0 0.0
    %5679 = vmatpush1.msra.mxu0 0.0
    %5680 = vmatprep.subr.mxu0 0.0
    %5681 = vmatpush1.msra.mxu0 0.0
    %5682 = vmatprep.subr.mxu0 0.0
    %5683 = vmatpush1.msra.mxu0 0.0
    %5684 = vmatprep.subr.mxu0 0.0
    %5685 = vmatpush1.msra.mxu0 0.0
    %5686 = vmatprep.subr.mxu0 0.0
    %5687 = vmatpush1.msra.mxu0 0.0
    %5688 = vmatprep.subr.mxu0 0.0
    %5689 = vmatpush1.msra.mxu0 0.0
    %5690 = vmatprep.subr.mxu0 0.0
    %5691 = vmatpush1.msra.mxu0 0.0
    %5692 = vmatprep.subr.mxu0 0.0
    %5693 = vmatpush1.msra.mxu0 0.0
    %5694 = vmatprep.mubr.f32.mxu0 0.0
    %5695 = vmatmul.mubr.f32.gmra.mrb[0].mxu0 %v5622
    %v5696 = vpop.f32.mrb[0].mxu0
    %v5697 = vadd.f32 0.0, %v5696
    %v5698 = vpop.f32.mrb[0].mxu0
    %5699 = vmatprep.mubr.f32.mxu0 0.0
    %5700 = vmatmul.mubr.f32.gmra.mrb[0].mxu0 %v5625
    %v5701 = vpop.f32.mrb[0].mxu0
    %v5702 = vadd.f32 0.0, %v5701
    %v5703 = vpop.f32.mrb[0].mxu0
    %5704 = vmatprep.mubr.f32.mxu0 0.0
    %5705 = vmatmul.mubr.f32.gmra.mrb[0].mxu0 %v5628
    %v5706 = vpop.f32.mrb[0].mxu0
    %v5707 = vadd.f32 0.0, %v5706
    %v5708 = vpop.f32.mrb[0].mxu0
    %5709 = vdwg.mxu0
    %s5710 = scalar_lea.vmem [#allocation20], 512
    %v5711 = vld [vmem:[%s5710] sm:$0xff]
    %v5712 = vld [vmem:[%s5710 + $0x8] sm:$0xff]
    %v5713 = vld [vmem:[%s5710 + $0x10] sm:$0xff]
    %v5714 = vld [vmem:[%s5710 + $0x18] sm:$0xff]
    %v5715 = vld [vmem:[%s5710 + $0x20] sm:$0xff]
    %v5716 = vld [vmem:[%s5710 + $0x28] sm:$0xff]
    %v5717 = vld [vmem:[%s5710 + $0x30] sm:$0xff]
    %v5718 = vld [vmem:[%s5710 + $0x38] sm:$0xff]
    %v5719 = vld [vmem:[%s5710 + $0x40] sm:$0xff]
    %v5720 = vld [vmem:[%s5710 + $0x48] sm:$0xff]
    %v5721 = vld [vmem:[%s5710 + $0x50] sm:$0xff]
    %v5722 = vld [vmem:[%s5710 + $0x58] sm:$0xff]
    %v5723 = vld [vmem:[%s5710 + $0x60] sm:$0xff]
    %v5724 = vld [vmem:[%s5710 + $0x68] sm:$0xff]
    %v5725 = vld [vmem:[%s5710 + $0x70] sm:$0xff]
    %v5726 = vld [vmem:[%s5710 + $0x78] sm:$0xff]
    %5727 = vmatprep.subr.mxu0 0.0
    %5728 = vmatpush1.msra.mxu0 %v5711
    %5729 = vmatprep.subr.mxu0 0.0
    %5730 = vmatpush1.msra.mxu0 %v5712
    %5731 = vmatprep.subr.mxu0 0.0
    %5732 = vmatpush1.msra.mxu0 %v5713
    %5733 = vmatprep.subr.mxu0 0.0
    %5734 = vmatpush1.msra.mxu0 %v5714
    %5735 = vmatprep.subr.mxu0 0.0
    %5736 = vmatpush1.msra.mxu0 %v5715
    %5737 = vmatprep.subr.mxu0 0.0
    %5738 = vmatpush1.msra.mxu0 %v5716
    %5739 = vmatprep.subr.mxu0 0.0
    %5740 = vmatpush1.msra.mxu0 %v5717
    %5741 = vmatprep.subr.mxu0 0.0
    %5742 = vmatpush1.msra.mxu0 %v5718
    %5743 = vmatprep.subr.mxu0 0.0
    %5744 = vmatpush1.msra.mxu0 %v5719
    %5745 = vmatprep.subr.mxu0 0.0
    %5746 = vmatpush1.msra.mxu0 %v5720
    %5747 = vmatprep.subr.mxu0 0.0
    %5748 = vmatpush1.msra.mxu0 %v5721
    %5749 = vmatprep.subr.mxu0 0.0
    %5750 = vmatpush1.msra.mxu0 %v5722
    %5751 = vmatprep.subr.mxu0 0.0
    %5752 = vmatpush1.msra.mxu0 %v5723
    %5753 = vmatprep.subr.mxu0 0.0
    %5754 = vmatpush1.msra.mxu0 %v5724
    %5755 = vmatprep.subr.mxu0 0.0
    %5756 = vmatpush1.msra.mxu0 %v5725
    %5757 = vmatprep.subr.mxu0 0.0
    %5758 = vmatpush1.msra.mxu0 %v5726
    %5759 = vmatprep.subr.mxu0 0.0
    %5760 = vmatpush1.msra.mxu0 0.0
    %5761 = vmatprep.subr.mxu0 0.0
    %5762 = vmatpush1.msra.mxu0 0.0
    %5763 = vmatprep.subr.mxu0 0.0
    %5764 = vmatpush1.msra.mxu0 0.0
    %5765 = vmatprep.subr.mxu0 0.0
    %5766 = vmatpush1.msra.mxu0 0.0
    %5767 = vmatprep.subr.mxu0 0.0
    %5768 = vmatpush1.msra.mxu0 0.0
    %5769 = vmatprep.subr.mxu0 0.0
    %5770 = vmatpush1.msra.mxu0 0.0
    %5771 = vmatprep.subr.mxu0 0.0
    %5772 = vmatpush1.msra.mxu0 0.0
    %5773 = vmatprep.subr.mxu0 0.0
    %5774 = vmatpush1.msra.mxu0 0.0
    %5775 = vmatprep.subr.mxu0 0.0
    %5776 = vmatpush1.msra.mxu0 0.0
    %5777 = vmatprep.subr.mxu0 0.0
    %5778 = vmatpush1.msra.mxu0 0.0
    %5779 = vmatprep.subr.mxu0 0.0
    %5780 = vmatpush1.msra.mxu0 0.0
    %5781 = vmatprep.subr.mxu0 0.0
    %5782 = vmatpush1.msra.mxu0 0.0
    %5783 = vmatprep.subr.mxu0 0.0
    %5784 = vmatpush1.msra.mxu0 0.0
    %5785 = vmatprep.subr.mxu0 0.0
    %5786 = vmatpush1.msra.mxu0 0.0
    %5787 = vmatprep.subr.mxu0 0.0
    %5788 = vmatpush1.msra.mxu0 0.0
    %5789 = vmatprep.subr.mxu0 0.0
    %5790 = vmatpush1.msra.mxu0 0.0
    %5791 = vmatprep.mubr.f32.mxu0 0.0
    %5792 = vmatmul.mubr.f32.gmra.mrb[0].mxu0 %v5697
    %v5793 = vpop.f32.mrb[0].mxu0
    %v5794 = vadd.f32 0.0, %v5793
    %v5795 = vpop.f32.mrb[0].mxu0
    %5796 = vmatprep.mubr.f32.mxu0 0.0
    %5797 = vmatmul.mubr.f32.gmra.mrb[0].mxu0 %v5702
    %v5798 = vpop.f32.mrb[0].mxu0
    %v5799 = vadd.f32 0.0, %v5798
    %v5800 = vpop.f32.mrb[0].mxu0
    %5801 = vmatprep.mubr.f32.mxu0 0.0
    %5802 = vmatmul.mubr.f32.gmra.mrb[0].mxu0 %v5707
    %v5803 = vpop.f32.mrb[0].mxu0
    %v5804 = vadd.f32 0.0, %v5803
    %v5805 = vpop.f32.mrb[0].mxu0
    %5806 = vdwg.mxu0
    %v5807 = vadd.f32 %v5615, %v5794
    %v5808 = vadd.f32 %v5616, %v5799
    %v5809 = vadd.f32 %v5617, %v5804
    %v5810 = vld [vmem:[%s2739] sm:$0xff]
    %v5811 = vld [vmem:[%s2739 + $0x8] sm:$0xff]
    %v5812 = vld [vmem:[%s2739 + $0x10] sm:$0x3]
    %v5814 = vsel %vm1775, %v5810, 0
    %v5817 = vsel %vm1775, %v5811, 0
    %v5820 = vsel %vm1775, %v5812, 0
    %5822 = vmatprep.subr.mxu0 0.0
    %5823 = vmatpush1.msra.mxu0 %v4827
    %5824 = vmatprep.subr.mxu0 0.0
    %5825 = vmatpush1.msra.mxu0 %v4832
    %5826 = vmatprep.subr.mxu0 0.0
    %5827 = vmatpush1.msra.mxu0 %v4861
    %5828 = vmatprep.subr.mxu0 0.0
    %5829 = vmatpush1.msra.mxu0 0.0
    %5830 = vmatprep.subr.mxu0 0.0
    %5831 = vmatpush1.msra.mxu0 0.0
    %5832 = vmatprep.subr.mxu0 0.0
    %5833 = vmatpush1.msra.mxu0 0.0
    %5834 = vmatprep.subr.mxu0 0.0
    %5835 = vmatpush1.msra.mxu0 0.0
    %5836 = vmatprep.subr.mxu0 0.0
    %5837 = vmatpush1.msra.mxu0 0.0
    %5838 = vmatprep.subr.mxu0 0.0
    %5839 = vmatpush1.msra.mxu0 0.0
    %5840 = vmatprep.subr.mxu0 0.0
    %5841 = vmatpush1.msra.mxu0 0.0
    %5842 = vmatprep.subr.mxu0 0.0
    %5843 = vmatpush1.msra.mxu0 0.0
    %5844 = vmatprep.subr.mxu0 0.0
    %5845 = vmatpush1.msra.mxu0 0.0
    %5846 = vmatprep.subr.mxu0 0.0
    %5847 = vmatpush1.msra.mxu0 0.0
    %5848 = vmatprep.subr.mxu0 0.0
    %5849 = vmatpush1.msra.mxu0 0.0
    %5850 = vmatprep.subr.mxu0 0.0
    %5851 = vmatpush1.msra.mxu0 0.0
    %5852 = vmatprep.subr.mxu0 0.0
    %5853 = vmatpush1.msra.mxu0 0.0
    %5854 = vmatprep.subr.mxu0 0.0
    %5855 = vmatpush1.msra.mxu0 0.0
    %5856 = vmatprep.subr.mxu0 0.0
    %5857 = vmatpush1.msra.mxu0 0.0
    %5858 = vmatprep.subr.mxu0 0.0
    %5859 = vmatpush1.msra.mxu0 0.0
    %5860 = vmatprep.subr.mxu0 0.0
    %5861 = vmatpush1.msra.mxu0 0.0
    %5862 = vmatprep.subr.mxu0 0.0
    %5863 = vmatpush1.msra.mxu0 0.0
    %5864 = vmatprep.subr.mxu0 0.0
    %5865 = vmatpush1.msra.mxu0 0.0
    %5866 = vmatprep.subr.mxu0 0.0
    %5867 = vmatpush1.msra.mxu0 0.0
    %5868 = vmatprep.subr.mxu0 0.0
    %5869 = vmatpush1.msra.mxu0 0.0
    %5870 = vmatprep.subr.mxu0 0.0
    %5871 = vmatpush1.msra.mxu0 0.0
    %5872 = vmatprep.subr.mxu0 0.0
    %5873 = vmatpush1.msra.mxu0 0.0
    %5874 = vmatprep.subr.mxu0 0.0
    %5875 = vmatpush1.msra.mxu0 0.0
    %5876 = vmatprep.subr.mxu0 0.0
    %5877 = vmatpush1.msra.mxu0 0.0
    %5878 = vmatprep.subr.mxu0 0.0
    %5879 = vmatpush1.msra.mxu0 0.0
    %5880 = vmatprep.subr.mxu0 0.0
    %5881 = vmatpush1.msra.mxu0 0.0
    %5882 = vmatprep.subr.mxu0 0.0
    %5883 = vmatpush1.msra.mxu0 0.0
    %5884 = vmatprep.subr.mxu0 0.0
    %5885 = vmatpush1.msra.mxu0 0.0
    %5886 = vmatprep.mubr.f32.mxu0 0.0
    %5887 = vmatmul.mubr.f32.gmra.mrb[0].mxu0 %v5814
    %v5888 = vpop.f32.mrb[0].mxu0
    %v5889 = vadd.f32 0.0, %v5888
    %v5890 = vpop.f32.mrb[0].mxu0
    %5891 = vmatprep.mubr.f32.mxu0 0.0
    %5892 = vmatmul.mubr.f32.gmra.mrb[0].mxu0 %v5817
    %v5893 = vpop.f32.mrb[0].mxu0
    %v5894 = vadd.f32 0.0, %v5893
    %v5895 = vpop.f32.mrb[0].mxu0
    %5896 = vmatprep.mubr.f32.mxu0 0.0
    %5897 = vmatmul.mubr.f32.gmra.mrb[0].mxu0 %v5820
    %v5898 = vpop.f32.mrb[0].mxu0
    %v5899 = vadd.f32 0.0, %v5898
    %v5900 = vpop.f32.mrb[0].mxu0
    %5901 = vdwg.mxu0
    %s5902 = scalar_lea.vmem [#allocation20], 640
    %v5903 = vld [vmem:[%s5902] sm:$0xff]
    %v5904 = vld [vmem:[%s5902 + $0x8] sm:$0xff]
    %v5905 = vld [vmem:[%s5902 + $0x10] sm:$0xff]
    %v5906 = vld [vmem:[%s5902 + $0x18] sm:$0xff]
    %v5907 = vld [vmem:[%s5902 + $0x20] sm:$0xff]
    %v5908 = vld [vmem:[%s5902 + $0x28] sm:$0xff]
    %v5909 = vld [vmem:[%s5902 + $0x30] sm:$0xff]
    %v5910 = vld [vmem:[%s5902 + $0x38] sm:$0xff]
    %v5911 = vld [vmem:[%s5902 + $0x40] sm:$0xff]
    %v5912 = vld [vmem:[%s5902 + $0x48] sm:$0xff]
    %v5913 = vld [vmem:[%s5902 + $0x50] sm:$0xff]
    %v5914 = vld [vmem:[%s5902 + $0x58] sm:$0xff]
    %v5915 = vld [vmem:[%s5902 + $0x60] sm:$0xff]
    %v5916 = vld [vmem:[%s5902 + $0x68] sm:$0xff]
    %v5917 = vld [vmem:[%s5902 + $0x70] sm:$0xff]
    %v5918 = vld [vmem:[%s5902 + $0x78] sm:$0xff]
    %5919 = vmatprep.subr.mxu0 0.0
    %5920 = vmatpush1.msra.mxu0 %v5903
    %5921 = vmatprep.subr.mxu0 0.0
    %5922 = vmatpush1.msra.mxu0 %v5904
    %5923 = vmatprep.subr.mxu0 0.0
    %5924 = vmatpush1.msra.mxu0 %v5905
    %5925 = vmatprep.subr.mxu0 0.0
    %5926 = vmatpush1.msra.mxu0 %v5906
    %5927 = vmatprep.subr.mxu0 0.0
    %5928 = vmatpush1.msra.mxu0 %v5907
    %5929 = vmatprep.subr.mxu0 0.0
    %5930 = vmatpush1.msra.mxu0 %v5908
    %5931 = vmatprep.subr.mxu0 0.0
    %5932 = vmatpush1.msra.mxu0 %v5909
    %5933 = vmatprep.subr.mxu0 0.0
    %5934 = vmatpush1.msra.mxu0 %v5910
    %5935 = vmatprep.subr.mxu0 0.0
    %5936 = vmatpush1.msra.mxu0 %v5911
    %5937 = vmatprep.subr.mxu0 0.0
    %5938 = vmatpush1.msra.mxu0 %v5912
    %5939 = vmatprep.subr.mxu0 0.0
    %5940 = vmatpush1.msra.mxu0 %v5913
    %5941 = vmatprep.subr.mxu0 0.0
    %5942 = vmatpush1.msra.mxu0 %v5914
    %5943 = vmatprep.subr.mxu0 0.0
    %5944 = vmatpush1.msra.mxu0 %v5915
    %5945 = vmatprep.subr.mxu0 0.0
    %5946 = vmatpush1.msra.mxu0 %v5916
    %5947 = vmatprep.subr.mxu0 0.0
    %5948 = vmatpush1.msra.mxu0 %v5917
    %5949 = vmatprep.subr.mxu0 0.0
    %5950 = vmatpush1.msra.mxu0 %v5918
    %5951 = vmatprep.subr.mxu0 0.0
    %5952 = vmatpush1.msra.mxu0 0.0
    %5953 = vmatprep.subr.mxu0 0.0
    %5954 = vmatpush1.msra.mxu0 0.0
    %5955 = vmatprep.subr.mxu0 0.0
    %5956 = vmatpush1.msra.mxu0 0.0
    %5957 = vmatprep.subr.mxu0 0.0
    %5958 = vmatpush1.msra.mxu0 0.0
    %5959 = vmatprep.subr.mxu0 0.0
    %5960 = vmatpush1.msra.mxu0 0.0
    %5961 = vmatprep.subr.mxu0 0.0
    %5962 = vmatpush1.msra.mxu0 0.0
    %5963 = vmatprep.subr.mxu0 0.0
    %5964 = vmatpush1.msra.mxu0 0.0
    %5965 = vmatprep.subr.mxu0 0.0
    %5966 = vmatpush1.msra.mxu0 0.0
    %5967 = vmatprep.subr.mxu0 0.0
    %5968 = vmatpush1.msra.mxu0 0.0
    %5969 = vmatprep.subr.mxu0 0.0
    %5970 = vmatpush1.msra.mxu0 0.0
    %5971 = vmatprep.subr.mxu0 0.0
    %5972 = vmatpush1.msra.mxu0 0.0
    %5973 = vmatprep.subr.mxu0 0.0
    %5974 = vmatpush1.msra.mxu0 0.0
    %5975 = vmatprep.subr.mxu0 0.0
    %5976 = vmatpush1.msra.mxu0 0.0
    %5977 = vmatprep.subr.mxu0 0.0
    %5978 = vmatpush1.msra.mxu0 0.0
    %5979 = vmatprep.subr.mxu0 0.0
    %5980 = vmatpush1.msra.mxu0 0.0
    %5981 = vmatprep.subr.mxu0 0.0
    %5982 = vmatpush1.msra.mxu0 0.0
    %5983 = vmatprep.mubr.f32.mxu0 0.0
    %5984 = vmatmul.mubr.f32.gmra.mrb[0].mxu0 %v5889
    %v5985 = vpop.f32.mrb[0].mxu0
    %v5986 = vadd.f32 0.0, %v5985
    %v5987 = vpop.f32.mrb[0].mxu0
    %5988 = vmatprep.mubr.f32.mxu0 0.0
    %5989 = vmatmul.mubr.f32.gmra.mrb[0].mxu0 %v5894
    %v5990 = vpop.f32.mrb[0].mxu0
    %v5991 = vadd.f32 0.0, %v5990
    %v5992 = vpop.f32.mrb[0].mxu0
    %5993 = vmatprep.mubr.f32.mxu0 0.0
    %5994 = vmatmul.mubr.f32.gmra.mrb[0].mxu0 %v5899
    %v5995 = vpop.f32.mrb[0].mxu0
    %v5996 = vadd.f32 0.0, %v5995
    %v5997 = vpop.f32.mrb[0].mxu0
    %5998 = vdwg.mxu0
    %v5999 = vadd.f32 %v5807, %v5986
    %v6000 = vadd.f32 %v5808, %v5991
    %v6001 = vadd.f32 %v5809, %v5996
    %vm6002 = vcmp.gt.f32.partialorder %v5999, 0.0
    %vm6003 = vcmp.gt.f32.partialorder %v6000, 0.0
    %vm6004 = vcmp.gt.f32.partialorder %v6001, 0.0
    %v6005 = vmin.f32 %v5999, 0.0
    %v6006 = vmin.f32 %v6000, 0.0
    %v6007 = vmin.f32 %v6001, 0.0
    %v6008 = vmul.f32 %v6005, 1.442695
    %v6009 = vpow.pop %v6008
    %v6010 = vmul.f32 %v6006, 1.442695
    %v6011 = vpow.pop %v6010
    %v6012 = vmul.f32 %v6007, 1.442695
    %v6013 = vpow.pop %v6012
    %v6014 = vsub.f32 %v6009, 1.0
    %v6015 = vsub.f32 %v6011, 1.0
    %v6016 = vsub.f32 %v6013, 1.0
    %v6017 = vsel %vm6002, %v5999, %v6014
    %v6018 = vsel %vm6003, %v6000, %v6015
    %v6019 = vsel %vm6004, %v6001, %v6016
    %v6020 = vld [vmem:[%s20] sm:$0xff]
    %v6021 = vld [vmem:[%s20 + $0x8] sm:$0xff]
    %v6022 = vld [vmem:[%s20 + $0x10] sm:$0xff]
    %v6023 = vld [vmem:[%s20 + $0x18] sm:$0xff]
    %v6024 = vld [vmem:[%s20 + $0x20] sm:$0x3]
    %v6026 = vsel %vm1775, %v6020, 0
    %v6029 = vsel %vm1775, %v6021, 0
    %v6032 = vsel %vm1775, %v6022, 0
    %v6035 = vsel %vm1775, %v6023, 0
    %v6038 = vsel %vm1775, %v6024, 0
    %v6041 = vsel %vm319, %v6019, 0
    %6043 = vmatprep.subr.mxu0 0.0
    %6044 = vmatpush1.msra.mxu0 %v6017
    %6045 = vmatprep.subr.mxu0 0.0
    %6046 = vmatpush1.msra.mxu0 %v6018
    %6047 = vmatprep.subr.mxu0 0.0
    %6048 = vmatpush1.msra.mxu0 %v6041
    %6049 = vmatprep.subr.mxu0 0.0
    %6050 = vmatpush1.msra.mxu0 0.0
    %6051 = vmatprep.subr.mxu0 0.0
    %6052 = vmatpush1.msra.mxu0 0.0
    %6053 = vmatprep.subr.mxu0 0.0
    %6054 = vmatpush1.msra.mxu0 0.0
    %6055 = vmatprep.subr.mxu0 0.0
    %6056 = vmatpush1.msra.mxu0 0.0
    %6057 = vmatprep.subr.mxu0 0.0
    %6058 = vmatpush1.msra.mxu0 0.0
    %6059 = vmatprep.subr.mxu0 0.0
    %6060 = vmatpush1.msra.mxu0 0.0
    %6061 = vmatprep.subr.mxu0 0.0
    %6062 = vmatpush1.msra.mxu0 0.0
    %6063 = vmatprep.subr.mxu0 0.0
    %6064 = vmatpush1.msra.mxu0 0.0
    %6065 = vmatprep.subr.mxu0 0.0
    %6066 = vmatpush1.msra.mxu0 0.0
    %6067 = vmatprep.subr.mxu0 0.0
    %6068 = vmatpush1.msra.mxu0 0.0
    %6069 = vmatprep.subr.mxu0 0.0
    %6070 = vmatpush1.msra.mxu0 0.0
    %6071 = vmatprep.subr.mxu0 0.0
    %6072 = vmatpush1.msra.mxu0 0.0
    %6073 = vmatprep.subr.mxu0 0.0
    %6074 = vmatpush1.msra.mxu0 0.0
    %6075 = vmatprep.subr.mxu0 0.0
    %6076 = vmatpush1.msra.mxu0 0.0
    %6077 = vmatprep.subr.mxu0 0.0
    %6078 = vmatpush1.msra.mxu0 0.0
    %6079 = vmatprep.subr.mxu0 0.0
    %6080 = vmatpush1.msra.mxu0 0.0
    %6081 = vmatprep.subr.mxu0 0.0
    %6082 = vmatpush1.msra.mxu0 0.0
    %6083 = vmatprep.subr.mxu0 0.0
    %6084 = vmatpush1.msra.mxu0 0.0
    %6085 = vmatprep.subr.mxu0 0.0
    %6086 = vmatpush1.msra.mxu0 0.0
    %6087 = vmatprep.subr.mxu0 0.0
    %6088 = vmatpush1.msra.mxu0 0.0
    %6089 = vmatprep.subr.mxu0 0.0
    %6090 = vmatpush1.msra.mxu0 0.0
    %6091 = vmatprep.subr.mxu0 0.0
    %6092 = vmatpush1.msra.mxu0 0.0
    %6093 = vmatprep.subr.mxu0 0.0
    %6094 = vmatpush1.msra.mxu0 0.0
    %6095 = vmatprep.subr.mxu0 0.0
    %6096 = vmatpush1.msra.mxu0 0.0
    %6097 = vmatprep.subr.mxu0 0.0
    %6098 = vmatpush1.msra.mxu0 0.0
    %6099 = vmatprep.subr.mxu0 0.0
    %6100 = vmatpush1.msra.mxu0 0.0
    %6101 = vmatprep.subr.mxu0 0.0
    %6102 = vmatpush1.msra.mxu0 0.0
    %6103 = vmatprep.subr.mxu0 0.0
    %6104 = vmatpush1.msra.mxu0 0.0
    %6105 = vmatprep.subr.mxu0 0.0
    %6106 = vmatpush1.msra.mxu0 0.0
    %6107 = vmatprep.mubr.f32.mxu0 0.0
    %6108 = vmatmul.mubr.f32.gmra.mrb[0].mxu0 %v6026
    %v6109 = vpop.f32.mrb[0].mxu0
    %v6110 = vadd.f32 0.0, %v6109
    %v6111 = vpop.f32.mrb[0].mxu0
    %6112 = vmatprep.mubr.f32.mxu0 0.0
    %6113 = vmatmul.mubr.f32.gmra.mrb[0].mxu0 %v6029
    %v6114 = vpop.f32.mrb[0].mxu0
    %v6115 = vadd.f32 0.0, %v6114
    %v6116 = vpop.f32.mrb[0].mxu0
    %6117 = vmatprep.mubr.f32.mxu0 0.0
    %6118 = vmatmul.mubr.f32.gmra.mrb[0].mxu0 %v6032
    %v6119 = vpop.f32.mrb[0].mxu0
    %v6120 = vadd.f32 0.0, %v6119
    %v6121 = vpop.f32.mrb[0].mxu0
    %6122 = vmatprep.mubr.f32.mxu0 0.0
    %6123 = vmatmul.mubr.f32.gmra.mrb[0].mxu0 %v6035
    %v6124 = vpop.f32.mrb[0].mxu0
    %v6125 = vadd.f32 0.0, %v6124
    %v6126 = vpop.f32.mrb[0].mxu0
    %6127 = vmatprep.mubr.f32.mxu0 0.0
    %6128 = vmatmul.mubr.f32.gmra.mrb[0].mxu0 %v6038
    %v6129 = vpop.f32.mrb[0].mxu0
    %v6130 = vadd.f32 0.0, %v6129
    %v6131 = vpop.f32.mrb[0].mxu0
    %6132 = vdwg.mxu0
    %v6133 = vld [vmem:[%s16] sm:$0x1]
    %v6135 = vlaneseq
    %v6136 = vshrl.u32 %v6135, 7
    %v6137 = vsub.s32 0, %v6136
    %v6138 = vrot.slane %v6133, %v6137
    %v6140 = vadd.f32 %v6138, 0.0
    %v6141 = vld [vmem:[#allocation2] sm:$0xff]
    %v6142 = vld [vmem:[#allocation2 + $0x8] sm:$0xff]
    %v6143 = vld [vmem:[#allocation2 + $0x10] sm:$0xff]
    %v6144 = vld [vmem:[#allocation2 + $0x18] sm:$0xff]
    %v6145 = vld [vmem:[#allocation2 + $0x20] sm:$0x3]
    %v6147 = vsel %vm303, %v6141, 0
    %v6150 = vsel %vm303, %v6142, 0
    %v6153 = vsel %vm303, %v6143, 0
    %v6156 = vsel %vm303, %v6144, 0
    %v6159 = vsel %vm303, %v6145, 0
    %v6162 = vsel %vm319, %v6130, 0
    %6164 = vmatprep.subr.mxu0 0.0
    %6165 = vmatpush1.msra.mxu0 %v6110
    %6166 = vmatprep.subr.mxu0 0.0
    %6167 = vmatpush1.msra.mxu0 %v6115
    %6168 = vmatprep.subr.mxu0 0.0
    %6169 = vmatpush1.msra.mxu0 %v6120
    %6170 = vmatprep.subr.mxu0 0.0
    %6171 = vmatpush1.msra.mxu0 %v6125
    %6172 = vmatprep.subr.mxu0 0.0
    %6173 = vmatpush1.msra.mxu0 %v6162
    %6174 = vmatprep.subr.mxu0 0.0
    %6175 = vmatpush1.msra.mxu0 0.0
    %6176 = vmatprep.subr.mxu0 0.0
    %6177 = vmatpush1.msra.mxu0 0.0
    %6178 = vmatprep.subr.mxu0 0.0
    %6179 = vmatpush1.msra.mxu0 0.0
    %6180 = vmatprep.subr.mxu0 0.0
    %6181 = vmatpush1.msra.mxu0 0.0
    %6182 = vmatprep.subr.mxu0 0.0
    %6183 = vmatpush1.msra.mxu0 0.0
    %6184 = vmatprep.subr.mxu0 0.0
    %6185 = vmatpush1.msra.mxu0 0.0
    %6186 = vmatprep.subr.mxu0 0.0
    %6187 = vmatpush1.msra.mxu0 0.0
    %6188 = vmatprep.subr.mxu0 0.0
    %6189 = vmatpush1.msra.mxu0 0.0
    %6190 = vmatprep.subr.mxu0 0.0
    %6191 = vmatpush1.msra.mxu0 0.0
    %6192 = vmatprep.subr.mxu0 0.0
    %6193 = vmatpush1.msra.mxu0 0.0
    %6194 = vmatprep.subr.mxu0 0.0
    %6195 = vmatpush1.msra.mxu0 0.0
    %6196 = vmatprep.subr.mxu0 0.0
    %6197 = vmatpush1.msra.mxu0 0.0
    %6198 = vmatprep.subr.mxu0 0.0
    %6199 = vmatpush1.msra.mxu0 0.0
    %6200 = vmatprep.subr.mxu0 0.0
    %6201 = vmatpush1.msra.mxu0 0.0
    %6202 = vmatprep.subr.mxu0 0.0
    %6203 = vmatpush1.msra.mxu0 0.0
    %6204 = vmatprep.subr.mxu0 0.0
    %6205 = vmatpush1.msra.mxu0 0.0
    %6206 = vmatprep.subr.mxu0 0.0
    %6207 = vmatpush1.msra.mxu0 0.0
    %6208 = vmatprep.subr.mxu0 0.0
    %6209 = vmatpush1.msra.mxu0 0.0
    %6210 = vmatprep.subr.mxu0 0.0
    %6211 = vmatpush1.msra.mxu0 0.0
    %6212 = vmatprep.subr.mxu0 0.0
    %6213 = vmatpush1.msra.mxu0 0.0
    %6214 = vmatprep.subr.mxu0 0.0
    %6215 = vmatpush1.msra.mxu0 0.0
    %6216 = vmatprep.subr.mxu0 0.0
    %6217 = vmatpush1.msra.mxu0 0.0
    %6218 = vmatprep.subr.mxu0 0.0
    %6219 = vmatpush1.msra.mxu0 0.0
    %6220 = vmatprep.subr.mxu0 0.0
    %6221 = vmatpush1.msra.mxu0 0.0
    %6222 = vmatprep.subr.mxu0 0.0
    %6223 = vmatpush1.msra.mxu0 0.0
    %6224 = vmatprep.subr.mxu0 0.0
    %6225 = vmatpush1.msra.mxu0 0.0
    %6226 = vmatprep.subr.mxu0 0.0
    %6227 = vmatpush1.msra.mxu0 0.0
    %6228 = vmatprep.mubr.f32.mxu0 0.0
    %6229 = vmatmul.mubr.f32.gmra.mrb[0].mxu0 %v6147
    %v6230 = vpop.f32.mrb[0].mxu0
    %v6231 = vadd.f32 0.0, %v6230
    %v6232 = vpop.f32.mrb[0].mxu0
    %6233 = vmatprep.mubr.f32.mxu0 0.0
    %6234 = vmatmul.mubr.f32.gmra.mrb[0].mxu0 %v6150
    %v6235 = vpop.f32.mrb[0].mxu0
    %v6236 = vadd.f32 0.0, %v6235
    %v6237 = vpop.f32.mrb[0].mxu0
    %6238 = vmatprep.mubr.f32.mxu0 0.0
    %6239 = vmatmul.mubr.f32.gmra.mrb[0].mxu0 %v6153
    %v6240 = vpop.f32.mrb[0].mxu0
    %v6241 = vadd.f32 0.0, %v6240
    %v6242 = vpop.f32.mrb[0].mxu0
    %6243 = vmatprep.mubr.f32.mxu0 0.0
    %6244 = vmatmul.mubr.f32.gmra.mrb[0].mxu0 %v6156
    %v6245 = vpop.f32.mrb[0].mxu0
    %v6246 = vadd.f32 0.0, %v6245
    %v6247 = vpop.f32.mrb[0].mxu0
    %6248 = vmatprep.mubr.f32.mxu0 0.0
    %6249 = vmatmul.mubr.f32.gmra.mrb[0].mxu0 %v6159
    %v6250 = vpop.f32.mrb[0].mxu0
    %v6251 = vadd.f32 0.0, %v6250
    %v6252 = vpop.f32.mrb[0].mxu0
    %6253 = vdwg.mxu0
    %v6254 = vld [vmem:[#allocation22] sm:$0xff]
    %v6255 = vld [vmem:[#allocation22 + $0x8] sm:$0xff]
    %v6256 = vld [vmem:[#allocation22 + $0x10] sm:$0xff]
    %v6257 = vld [vmem:[#allocation22 + $0x18] sm:$0xff]
    %v6258 = vld [vmem:[#allocation22 + $0x20] sm:$0xff]
    %v6259 = vld [vmem:[#allocation22 + $0x28] sm:$0xff]
    %v6260 = vld [vmem:[#allocation22 + $0x30] sm:$0xff]
    %v6261 = vld [vmem:[#allocation22 + $0x38] sm:$0xff]
    %v6262 = vld [vmem:[#allocation22 + $0x40] sm:$0xff]
    %v6263 = vld [vmem:[#allocation22 + $0x48] sm:$0xff]
    %v6264 = vld [vmem:[#allocation22 + $0x50] sm:$0xff]
    %v6265 = vld [vmem:[#allocation22 + $0x58] sm:$0xff]
    %v6266 = vld [vmem:[#allocation22 + $0x60] sm:$0xff]
    %v6267 = vld [vmem:[#allocation22 + $0x68] sm:$0xff]
    %v6268 = vld [vmem:[#allocation22 + $0x70] sm:$0xff]
    %v6269 = vld [vmem:[#allocation22 + $0x78] sm:$0xff]
    %6270 = vmatprep.subr.mxu0 0.0
    %6271 = vmatpush1.msra.mxu0 %v6254
    %6272 = vmatprep.subr.mxu0 0.0
    %6273 = vmatpush1.msra.mxu0 %v6255
    %6274 = vmatprep.subr.mxu0 0.0
    %6275 = vmatpush1.msra.mxu0 %v6256
    %6276 = vmatprep.subr.mxu0 0.0
    %6277 = vmatpush1.msra.mxu0 %v6257
    %6278 = vmatprep.subr.mxu0 0.0
    %6279 = vmatpush1.msra.mxu0 %v6258
    %6280 = vmatprep.subr.mxu0 0.0
    %6281 = vmatpush1.msra.mxu0 %v6259
    %6282 = vmatprep.subr.mxu0 0.0
    %6283 = vmatpush1.msra.mxu0 %v6260
    %6284 = vmatprep.subr.mxu0 0.0
    %6285 = vmatpush1.msra.mxu0 %v6261
    %6286 = vmatprep.subr.mxu0 0.0
    %6287 = vmatpush1.msra.mxu0 %v6262
    %6288 = vmatprep.subr.mxu0 0.0
    %6289 = vmatpush1.msra.mxu0 %v6263
    %6290 = vmatprep.subr.mxu0 0.0
    %6291 = vmatpush1.msra.mxu0 %v6264
    %6292 = vmatprep.subr.mxu0 0.0
    %6293 = vmatpush1.msra.mxu0 %v6265
    %6294 = vmatprep.subr.mxu0 0.0
    %6295 = vmatpush1.msra.mxu0 %v6266
    %6296 = vmatprep.subr.mxu0 0.0
    %6297 = vmatpush1.msra.mxu0 %v6267
    %6298 = vmatprep.subr.mxu0 0.0
    %6299 = vmatpush1.msra.mxu0 %v6268
    %6300 = vmatprep.subr.mxu0 0.0
    %6301 = vmatpush1.msra.mxu0 %v6269
    %6302 = vmatprep.subr.mxu0 0.0
    %6303 = vmatpush1.msra.mxu0 0.0
    %6304 = vmatprep.subr.mxu0 0.0
    %6305 = vmatpush1.msra.mxu0 0.0
    %6306 = vmatprep.subr.mxu0 0.0
    %6307 = vmatpush1.msra.mxu0 0.0
    %6308 = vmatprep.subr.mxu0 0.0
    %6309 = vmatpush1.msra.mxu0 0.0
    %6310 = vmatprep.subr.mxu0 0.0
    %6311 = vmatpush1.msra.mxu0 0.0
    %6312 = vmatprep.subr.mxu0 0.0
    %6313 = vmatpush1.msra.mxu0 0.0
    %6314 = vmatprep.subr.mxu0 0.0
    %6315 = vmatpush1.msra.mxu0 0.0
    %6316 = vmatprep.subr.mxu0 0.0
    %6317 = vmatpush1.msra.mxu0 0.0
    %6318 = vmatprep.subr.mxu0 0.0
    %6319 = vmatpush1.msra.mxu0 0.0
    %6320 = vmatprep.subr.mxu0 0.0
    %6321 = vmatpush1.msra.mxu0 0.0
    %6322 = vmatprep.subr.mxu0 0.0
    %6323 = vmatpush1.msra.mxu0 0.0
    %6324 = vmatprep.subr.mxu0 0.0
    %6325 = vmatpush1.msra.mxu0 0.0
    %6326 = vmatprep.subr.mxu0 0.0
    %6327 = vmatpush1.msra.mxu0 0.0
    %6328 = vmatprep.subr.mxu0 0.0
    %6329 = vmatpush1.msra.mxu0 0.0
    %6330 = vmatprep.subr.mxu0 0.0
    %6331 = vmatpush1.msra.mxu0 0.0
    %6332 = vmatprep.subr.mxu0 0.0
    %6333 = vmatpush1.msra.mxu0 0.0
    %6334 = vmatprep.mubr.f32.mxu0 0.0
    %6335 = vmatmul.mubr.f32.gmra.mrb[0].mxu0 %v6231
    %v6336 = vpop.f32.mrb[0].mxu0
    %v6337 = vadd.f32 0.0, %v6336
    %v6338 = vpop.f32.mrb[0].mxu0
    %6339 = vmatprep.mubr.f32.mxu0 0.0
    %6340 = vmatmul.mubr.f32.gmra.mrb[0].mxu0 %v6236
    %v6341 = vpop.f32.mrb[0].mxu0
    %v6342 = vadd.f32 0.0, %v6341
    %v6343 = vpop.f32.mrb[0].mxu0
    %6344 = vmatprep.mubr.f32.mxu0 0.0
    %6345 = vmatmul.mubr.f32.gmra.mrb[0].mxu0 %v6241
    %v6346 = vpop.f32.mrb[0].mxu0
    %v6347 = vadd.f32 0.0, %v6346
    %v6348 = vpop.f32.mrb[0].mxu0
    %6349 = vmatprep.mubr.f32.mxu0 0.0
    %6350 = vmatmul.mubr.f32.gmra.mrb[0].mxu0 %v6246
    %v6351 = vpop.f32.mrb[0].mxu0
    %v6352 = vadd.f32 0.0, %v6351
    %v6353 = vpop.f32.mrb[0].mxu0
    %6354 = vmatprep.mubr.f32.mxu0 0.0
    %6355 = vmatmul.mubr.f32.gmra.mrb[0].mxu0 %v6251
    %v6356 = vpop.f32.mrb[0].mxu0
    %v6357 = vadd.f32 0.0, %v6356
    %v6358 = vpop.f32.mrb[0].mxu0
    %6359 = vdwg.mxu0
    %v6360 = vadd.f32 %v6140, %v6337
    %v6361 = vadd.f32 %v6140, %v6342
    %v6362 = vadd.f32 %v6140, %v6347
    %v6363 = vadd.f32 %v6140, %v6352
    %v6364 = vadd.f32 %v6140, %v6357
    %v6365 = vld [vmem:[%s524] sm:$0xff]
    %v6366 = vld [vmem:[%s524 + $0x8] sm:$0xff]
    %v6367 = vld [vmem:[%s524 + $0x10] sm:$0xff]
    %v6368 = vld [vmem:[%s524 + $0x18] sm:$0xff]
    %v6369 = vld [vmem:[%s524 + $0x20] sm:$0x3]
    %v6371 = vsel %vm303, %v6365, 0
    %v6374 = vsel %vm303, %v6366, 0
    %v6377 = vsel %vm303, %v6367, 0
    %v6380 = vsel %vm303, %v6368, 0
    %v6383 = vsel %vm303, %v6369, 0
    %6385 = vmatprep.subr.mxu0 0.0
    %6386 = vmatpush1.msra.mxu0 %v6110
    %6387 = vmatprep.subr.mxu0 0.0
    %6388 = vmatpush1.msra.mxu0 %v6115
    %6389 = vmatprep.subr.mxu0 0.0
    %6390 = vmatpush1.msra.mxu0 %v6120
    %6391 = vmatprep.subr.mxu0 0.0
    %6392 = vmatpush1.msra.mxu0 %v6125
    %6393 = vmatprep.subr.mxu0 0.0
    %6394 = vmatpush1.msra.mxu0 %v6162
    %6395 = vmatprep.subr.mxu0 0.0
    %6396 = vmatpush1.msra.mxu0 0.0
    %6397 = vmatprep.subr.mxu0 0.0
    %6398 = vmatpush1.msra.mxu0 0.0
    %6399 = vmatprep.subr.mxu0 0.0
    %6400 = vmatpush1.msra.mxu0 0.0
    %6401 = vmatprep.subr.mxu0 0.0
    %6402 = vmatpush1.msra.mxu0 0.0
    %6403 = vmatprep.subr.mxu0 0.0
    %6404 = vmatpush1.msra.mxu0 0.0
    %6405 = vmatprep.subr.mxu0 0.0
    %6406 = vmatpush1.msra.mxu0 0.0
    %6407 = vmatprep.subr.mxu0 0.0
    %6408 = vmatpush1.msra.mxu0 0.0
    %6409 = vmatprep.subr.mxu0 0.0
    %6410 = vmatpush1.msra.mxu0 0.0
    %6411 = vmatprep.subr.mxu0 0.0
    %6412 = vmatpush1.msra.mxu0 0.0
    %6413 = vmatprep.subr.mxu0 0.0
    %6414 = vmatpush1.msra.mxu0 0.0
    %6415 = vmatprep.subr.mxu0 0.0
    %6416 = vmatpush1.msra.mxu0 0.0
    %6417 = vmatprep.subr.mxu0 0.0
    %6418 = vmatpush1.msra.mxu0 0.0
    %6419 = vmatprep.subr.mxu0 0.0
    %6420 = vmatpush1.msra.mxu0 0.0
    %6421 = vmatprep.subr.mxu0 0.0
    %6422 = vmatpush1.msra.mxu0 0.0
    %6423 = vmatprep.subr.mxu0 0.0
    %6424 = vmatpush1.msra.mxu0 0.0
    %6425 = vmatprep.subr.mxu0 0.0
    %6426 = vmatpush1.msra.mxu0 0.0
    %6427 = vmatprep.subr.mxu0 0.0
    %6428 = vmatpush1.msra.mxu0 0.0
    %6429 = vmatprep.subr.mxu0 0.0
    %6430 = vmatpush1.msra.mxu0 0.0
    %6431 = vmatprep.subr.mxu0 0.0
    %6432 = vmatpush1.msra.mxu0 0.0
    %6433 = vmatprep.subr.mxu0 0.0
    %6434 = vmatpush1.msra.mxu0 0.0
    %6435 = vmatprep.subr.mxu0 0.0
    %6436 = vmatpush1.msra.mxu0 0.0
    %6437 = vmatprep.subr.mxu0 0.0
    %6438 = vmatpush1.msra.mxu0 0.0
    %6439 = vmatprep.subr.mxu0 0.0
    %6440 = vmatpush1.msra.mxu0 0.0
    %6441 = vmatprep.subr.mxu0 0.0
    %6442 = vmatpush1.msra.mxu0 0.0
    %6443 = vmatprep.subr.mxu0 0.0
    %6444 = vmatpush1.msra.mxu0 0.0
    %6445 = vmatprep.subr.mxu0 0.0
    %6446 = vmatpush1.msra.mxu0 0.0
    %6447 = vmatprep.subr.mxu0 0.0
    %6448 = vmatpush1.msra.mxu0 0.0
    %6449 = vmatprep.mubr.f32.mxu0 0.0
    %6450 = vmatmul.mubr.f32.gmra.mrb[0].mxu0 %v6371
    %v6451 = vpop.f32.mrb[0].mxu0
    %v6452 = vadd.f32 0.0, %v6451
    %v6453 = vpop.f32.mrb[0].mxu0
    %6454 = vmatprep.mubr.f32.mxu0 0.0
    %6455 = vmatmul.mubr.f32.gmra.mrb[0].mxu0 %v6374
    %v6456 = vpop.f32.mrb[0].mxu0
    %v6457 = vadd.f32 0.0, %v6456
    %v6458 = vpop.f32.mrb[0].mxu0
    %6459 = vmatprep.mubr.f32.mxu0 0.0
    %6460 = vmatmul.mubr.f32.gmra.mrb[0].mxu0 %v6377
    %v6461 = vpop.f32.mrb[0].mxu0
    %v6462 = vadd.f32 0.0, %v6461
    %v6463 = vpop.f32.mrb[0].mxu0
    %6464 = vmatprep.mubr.f32.mxu0 0.0
    %6465 = vmatmul.mubr.f32.gmra.mrb[0].mxu0 %v6380
    %v6466 = vpop.f32.mrb[0].mxu0
    %v6467 = vadd.f32 0.0, %v6466
    %v6468 = vpop.f32.mrb[0].mxu0
    %6469 = vmatprep.mubr.f32.mxu0 0.0
    %6470 = vmatmul.mubr.f32.gmra.mrb[0].mxu0 %v6383
    %v6471 = vpop.f32.mrb[0].mxu0
    %v6472 = vadd.f32 0.0, %v6471
    %v6473 = vpop.f32.mrb[0].mxu0
    %6474 = vdwg.mxu0
    %s6475 = scalar_lea.vmem [#allocation22], 128
    %v6476 = vld [vmem:[%s6475] sm:$0xff]
    %v6477 = vld [vmem:[%s6475 + $0x8] sm:$0xff]
    %v6478 = vld [vmem:[%s6475 + $0x10] sm:$0xff]
    %v6479 = vld [vmem:[%s6475 + $0x18] sm:$0xff]
    %v6480 = vld [vmem:[%s6475 + $0x20] sm:$0xff]
    %v6481 = vld [vmem:[%s6475 + $0x28] sm:$0xff]
    %v6482 = vld [vmem:[%s6475 + $0x30] sm:$0xff]
    %v6483 = vld [vmem:[%s6475 + $0x38] sm:$0xff]
    %v6484 = vld [vmem:[%s6475 + $0x40] sm:$0xff]
    %v6485 = vld [vmem:[%s6475 + $0x48] sm:$0xff]
    %v6486 = vld [vmem:[%s6475 + $0x50] sm:$0xff]
    %v6487 = vld [vmem:[%s6475 + $0x58] sm:$0xff]
    %v6488 = vld [vmem:[%s6475 + $0x60] sm:$0xff]
    %v6489 = vld [vmem:[%s6475 + $0x68] sm:$0xff]
    %v6490 = vld [vmem:[%s6475 + $0x70] sm:$0xff]
    %v6491 = vld [vmem:[%s6475 + $0x78] sm:$0xff]
    %6492 = vmatprep.subr.mxu0 0.0
    %6493 = vmatpush1.msra.mxu0 %v6476
    %6494 = vmatprep.subr.mxu0 0.0
    %6495 = vmatpush1.msra.mxu0 %v6477
    %6496 = vmatprep.subr.mxu0 0.0
    %6497 = vmatpush1.msra.mxu0 %v6478
    %6498 = vmatprep.subr.mxu0 0.0
    %6499 = vmatpush1.msra.mxu0 %v6479
    %6500 = vmatprep.subr.mxu0 0.0
    %6501 = vmatpush1.msra.mxu0 %v6480
    %6502 = vmatprep.subr.mxu0 0.0
    %6503 = vmatpush1.msra.mxu0 %v6481
    %6504 = vmatprep.subr.mxu0 0.0
    %6505 = vmatpush1.msra.mxu0 %v6482
    %6506 = vmatprep.subr.mxu0 0.0
    %6507 = vmatpush1.msra.mxu0 %v6483
    %6508 = vmatprep.subr.mxu0 0.0
    %6509 = vmatpush1.msra.mxu0 %v6484
    %6510 = vmatprep.subr.mxu0 0.0
    %6511 = vmatpush1.msra.mxu0 %v6485
    %6512 = vmatprep.subr.mxu0 0.0
    %6513 = vmatpush1.msra.mxu0 %v6486
    %6514 = vmatprep.subr.mxu0 0.0
    %6515 = vmatpush1.msra.mxu0 %v6487
    %6516 = vmatprep.subr.mxu0 0.0
    %6517 = vmatpush1.msra.mxu0 %v6488
    %6518 = vmatprep.subr.mxu0 0.0
    %6519 = vmatpush1.msra.mxu0 %v6489
    %6520 = vmatprep.subr.mxu0 0.0
    %6521 = vmatpush1.msra.mxu0 %v6490
    %6522 = vmatprep.subr.mxu0 0.0
    %6523 = vmatpush1.msra.mxu0 %v6491
    %6524 = vmatprep.subr.mxu0 0.0
    %6525 = vmatpush1.msra.mxu0 0.0
    %6526 = vmatprep.subr.mxu0 0.0
    %6527 = vmatpush1.msra.mxu0 0.0
    %6528 = vmatprep.subr.mxu0 0.0
    %6529 = vmatpush1.msra.mxu0 0.0
    %6530 = vmatprep.subr.mxu0 0.0
    %6531 = vmatpush1.msra.mxu0 0.0
    %6532 = vmatprep.subr.mxu0 0.0
    %6533 = vmatpush1.msra.mxu0 0.0
    %6534 = vmatprep.subr.mxu0 0.0
    %6535 = vmatpush1.msra.mxu0 0.0
    %6536 = vmatprep.subr.mxu0 0.0
    %6537 = vmatpush1.msra.mxu0 0.0
    %6538 = vmatprep.subr.mxu0 0.0
    %6539 = vmatpush1.msra.mxu0 0.0
    %6540 = vmatprep.subr.mxu0 0.0
    %6541 = vmatpush1.msra.mxu0 0.0
    %6542 = vmatprep.subr.mxu0 0.0
    %6543 = vmatpush1.msra.mxu0 0.0
    %6544 = vmatprep.subr.mxu0 0.0
    %6545 = vmatpush1.msra.mxu0 0.0
    %6546 = vmatprep.subr.mxu0 0.0
    %6547 = vmatpush1.msra.mxu0 0.0
    %6548 = vmatprep.subr.mxu0 0.0
    %6549 = vmatpush1.msra.mxu0 0.0
    %6550 = vmatprep.subr.mxu0 0.0
    %6551 = vmatpush1.msra.mxu0 0.0
    %6552 = vmatprep.subr.mxu0 0.0
    %6553 = vmatpush1.msra.mxu0 0.0
    %6554 = vmatprep.subr.mxu0 0.0
    %6555 = vmatpush1.msra.mxu0 0.0
    %6556 = vmatprep.mubr.f32.mxu0 0.0
    %6557 = vmatmul.mubr.f32.gmra.mrb[0].mxu0 %v6452
    %v6558 = vpop.f32.mrb[0].mxu0
    %v6559 = vadd.f32 0.0, %v6558
    %v6560 = vpop.f32.mrb[0].mxu0
    %6561 = vmatprep.mubr.f32.mxu0 0.0
    %6562 = vmatmul.mubr.f32.gmra.mrb[0].mxu0 %v6457
    %v6563 = vpop.f32.mrb[0].mxu0
    %v6564 = vadd.f32 0.0, %v6563
    %v6565 = vpop.f32.mrb[0].mxu0
    %6566 = vmatprep.mubr.f32.mxu0 0.0
    %6567 = vmatmul.mubr.f32.gmra.mrb[0].mxu0 %v6462
    %v6568 = vpop.f32.mrb[0].mxu0
    %v6569 = vadd.f32 0.0, %v6568
    %v6570 = vpop.f32.mrb[0].mxu0
    %6571 = vmatprep.mubr.f32.mxu0 0.0
    %6572 = vmatmul.mubr.f32.gmra.mrb[0].mxu0 %v6467
    %v6573 = vpop.f32.mrb[0].mxu0
    %v6574 = vadd.f32 0.0, %v6573
    %v6575 = vpop.f32.mrb[0].mxu0
    %6576 = vmatprep.mubr.f32.mxu0 0.0
    %6577 = vmatmul.mubr.f32.gmra.mrb[0].mxu0 %v6472
    %v6578 = vpop.f32.mrb[0].mxu0
    %v6579 = vadd.f32 0.0, %v6578
    %v6580 = vpop.f32.mrb[0].mxu0
    %6581 = vdwg.mxu0
    %v6582 = vadd.f32 %v6360, %v6559
    %v6583 = vadd.f32 %v6361, %v6564
    %v6584 = vadd.f32 %v6362, %v6569
    %v6585 = vadd.f32 %v6363, %v6574
    %v6586 = vadd.f32 %v6364, %v6579
    %v6587 = vld [vmem:[%s747] sm:$0xff]
    %v6588 = vld [vmem:[%s747 + $0x8] sm:$0xff]
    %v6589 = vld [vmem:[%s747 + $0x10] sm:$0xff]
    %v6590 = vld [vmem:[%s747 + $0x18] sm:$0xff]
    %v6591 = vld [vmem:[%s747 + $0x20] sm:$0x3]
    %v6593 = vsel %vm303, %v6587, 0
    %v6596 = vsel %vm303, %v6588, 0
    %v6599 = vsel %vm303, %v6589, 0
    %v6602 = vsel %vm303, %v6590, 0
    %v6605 = vsel %vm303, %v6591, 0
    %6607 = vmatprep.subr.mxu0 0.0
    %6608 = vmatpush1.msra.mxu0 %v6110
    %6609 = vmatprep.subr.mxu0 0.0
    %6610 = vmatpush1.msra.mxu0 %v6115
    %6611 = vmatprep.subr.mxu0 0.0
    %6612 = vmatpush1.msra.mxu0 %v6120
    %6613 = vmatprep.subr.mxu0 0.0
    %6614 = vmatpush1.msra.mxu0 %v6125
    %6615 = vmatprep.subr.mxu0 0.0
    %6616 = vmatpush1.msra.mxu0 %v6162
    %6617 = vmatprep.subr.mxu0 0.0
    %6618 = vmatpush1.msra.mxu0 0.0
    %6619 = vmatprep.subr.mxu0 0.0
    %6620 = vmatpush1.msra.mxu0 0.0
    %6621 = vmatprep.subr.mxu0 0.0
    %6622 = vmatpush1.msra.mxu0 0.0
    %6623 = vmatprep.subr.mxu0 0.0
    %6624 = vmatpush1.msra.mxu0 0.0
    %6625 = vmatprep.subr.mxu0 0.0
    %6626 = vmatpush1.msra.mxu0 0.0
    %6627 = vmatprep.subr.mxu0 0.0
    %6628 = vmatpush1.msra.mxu0 0.0
    %6629 = vmatprep.subr.mxu0 0.0
    %6630 = vmatpush1.msra.mxu0 0.0
    %6631 = vmatprep.subr.mxu0 0.0
    %6632 = vmatpush1.msra.mxu0 0.0
    %6633 = vmatprep.subr.mxu0 0.0
    %6634 = vmatpush1.msra.mxu0 0.0
    %6635 = vmatprep.subr.mxu0 0.0
    %6636 = vmatpush1.msra.mxu0 0.0
    %6637 = vmatprep.subr.mxu0 0.0
    %6638 = vmatpush1.msra.mxu0 0.0
    %6639 = vmatprep.subr.mxu0 0.0
    %6640 = vmatpush1.msra.mxu0 0.0
    %6641 = vmatprep.subr.mxu0 0.0
    %6642 = vmatpush1.msra.mxu0 0.0
    %6643 = vmatprep.subr.mxu0 0.0
    %6644 = vmatpush1.msra.mxu0 0.0
    %6645 = vmatprep.subr.mxu0 0.0
    %6646 = vmatpush1.msra.mxu0 0.0
    %6647 = vmatprep.subr.mxu0 0.0
    %6648 = vmatpush1.msra.mxu0 0.0
    %6649 = vmatprep.subr.mxu0 0.0
    %6650 = vmatpush1.msra.mxu0 0.0
    %6651 = vmatprep.subr.mxu0 0.0
    %6652 = vmatpush1.msra.mxu0 0.0
    %6653 = vmatprep.subr.mxu0 0.0
    %6654 = vmatpush1.msra.mxu0 0.0
    %6655 = vmatprep.subr.mxu0 0.0
    %6656 = vmatpush1.msra.mxu0 0.0
    %6657 = vmatprep.subr.mxu0 0.0
    %6658 = vmatpush1.msra.mxu0 0.0
    %6659 = vmatprep.subr.mxu0 0.0
    %6660 = vmatpush1.msra.mxu0 0.0
    %6661 = vmatprep.subr.mxu0 0.0
    %6662 = vmatpush1.msra.mxu0 0.0
    %6663 = vmatprep.subr.mxu0 0.0
    %6664 = vmatpush1.msra.mxu0 0.0
    %6665 = vmatprep.subr.mxu0 0.0
    %6666 = vmatpush1.msra.mxu0 0.0
    %6667 = vmatprep.subr.mxu0 0.0
    %6668 = vmatpush1.msra.mxu0 0.0
    %6669 = vmatprep.subr.mxu0 0.0
    %6670 = vmatpush1.msra.mxu0 0.0
    %6671 = vmatprep.mubr.f32.mxu0 0.0
    %6672 = vmatmul.mubr.f32.gmra.mrb[0].mxu0 %v6593
    %v6673 = vpop.f32.mrb[0].mxu0
    %v6674 = vadd.f32 0.0, %v6673
    %v6675 = vpop.f32.mrb[0].mxu0
    %6676 = vmatprep.mubr.f32.mxu0 0.0
    %6677 = vmatmul.mubr.f32.gmra.mrb[0].mxu0 %v6596
    %v6678 = vpop.f32.mrb[0].mxu0
    %v6679 = vadd.f32 0.0, %v6678
    %v6680 = vpop.f32.mrb[0].mxu0
    %6681 = vmatprep.mubr.f32.mxu0 0.0
    %6682 = vmatmul.mubr.f32.gmra.mrb[0].mxu0 %v6599
    %v6683 = vpop.f32.mrb[0].mxu0
    %v6684 = vadd.f32 0.0, %v6683
    %v6685 = vpop.f32.mrb[0].mxu0
    %6686 = vmatprep.mubr.f32.mxu0 0.0
    %6687 = vmatmul.mubr.f32.gmra.mrb[0].mxu0 %v6602
    %v6688 = vpop.f32.mrb[0].mxu0
    %v6689 = vadd.f32 0.0, %v6688
    %v6690 = vpop.f32.mrb[0].mxu0
    %6691 = vmatprep.mubr.f32.mxu0 0.0
    %6692 = vmatmul.mubr.f32.gmra.mrb[0].mxu0 %v6605
    %v6693 = vpop.f32.mrb[0].mxu0
    %v6694 = vadd.f32 0.0, %v6693
    %v6695 = vpop.f32.mrb[0].mxu0
    %6696 = vdwg.mxu0
    %s6697 = scalar_lea.vmem [#allocation22], 256
    %v6698 = vld [vmem:[%s6697] sm:$0xff]
    %v6699 = vld [vmem:[%s6697 + $0x8] sm:$0xff]
    %v6700 = vld [vmem:[%s6697 + $0x10] sm:$0xff]
    %v6701 = vld [vmem:[%s6697 + $0x18] sm:$0xff]
    %v6702 = vld [vmem:[%s6697 + $0x20] sm:$0xff]
    %v6703 = vld [vmem:[%s6697 + $0x28] sm:$0xff]
    %v6704 = vld [vmem:[%s6697 + $0x30] sm:$0xff]
    %v6705 = vld [vmem:[%s6697 + $0x38] sm:$0xff]
    %v6706 = vld [vmem:[%s6697 + $0x40] sm:$0xff]
    %v6707 = vld [vmem:[%s6697 + $0x48] sm:$0xff]
    %v6708 = vld [vmem:[%s6697 + $0x50] sm:$0xff]
    %v6709 = vld [vmem:[%s6697 + $0x58] sm:$0xff]
    %v6710 = vld [vmem:[%s6697 + $0x60] sm:$0xff]
    %v6711 = vld [vmem:[%s6697 + $0x68] sm:$0xff]
    %v6712 = vld [vmem:[%s6697 + $0x70] sm:$0xff]
    %v6713 = vld [vmem:[%s6697 + $0x78] sm:$0xff]
    %6714 = vmatprep.subr.mxu0 0.0
    %6715 = vmatpush1.msra.mxu0 %v6698
    %6716 = vmatprep.subr.mxu0 0.0
    %6717 = vmatpush1.msra.mxu0 %v6699
    %6718 = vmatprep.subr.mxu0 0.0
    %6719 = vmatpush1.msra.mxu0 %v6700
    %6720 = vmatprep.subr.mxu0 0.0
    %6721 = vmatpush1.msra.mxu0 %v6701
    %6722 = vmatprep.subr.mxu0 0.0
    %6723 = vmatpush1.msra.mxu0 %v6702
    %6724 = vmatprep.subr.mxu0 0.0
    %6725 = vmatpush1.msra.mxu0 %v6703
    %6726 = vmatprep.subr.mxu0 0.0
    %6727 = vmatpush1.msra.mxu0 %v6704
    %6728 = vmatprep.subr.mxu0 0.0
    %6729 = vmatpush1.msra.mxu0 %v6705
    %6730 = vmatprep.subr.mxu0 0.0
    %6731 = vmatpush1.msra.mxu0 %v6706
    %6732 = vmatprep.subr.mxu0 0.0
    %6733 = vmatpush1.msra.mxu0 %v6707
    %6734 = vmatprep.subr.mxu0 0.0
    %6735 = vmatpush1.msra.mxu0 %v6708
    %6736 = vmatprep.subr.mxu0 0.0
    %6737 = vmatpush1.msra.mxu0 %v6709
    %6738 = vmatprep.subr.mxu0 0.0
    %6739 = vmatpush1.msra.mxu0 %v6710
    %6740 = vmatprep.subr.mxu0 0.0
    %6741 = vmatpush1.msra.mxu0 %v6711
    %6742 = vmatprep.subr.mxu0 0.0
    %6743 = vmatpush1.msra.mxu0 %v6712
    %6744 = vmatprep.subr.mxu0 0.0
    %6745 = vmatpush1.msra.mxu0 %v6713
    %6746 = vmatprep.subr.mxu0 0.0
    %6747 = vmatpush1.msra.mxu0 0.0
    %6748 = vmatprep.subr.mxu0 0.0
    %6749 = vmatpush1.msra.mxu0 0.0
    %6750 = vmatprep.subr.mxu0 0.0
    %6751 = vmatpush1.msra.mxu0 0.0
    %6752 = vmatprep.subr.mxu0 0.0
    %6753 = vmatpush1.msra.mxu0 0.0
    %6754 = vmatprep.subr.mxu0 0.0
    %6755 = vmatpush1.msra.mxu0 0.0
    %6756 = vmatprep.subr.mxu0 0.0
    %6757 = vmatpush1.msra.mxu0 0.0
    %6758 = vmatprep.subr.mxu0 0.0
    %6759 = vmatpush1.msra.mxu0 0.0
    %6760 = vmatprep.subr.mxu0 0.0
    %6761 = vmatpush1.msra.mxu0 0.0
    %6762 = vmatprep.subr.mxu0 0.0
    %6763 = vmatpush1.msra.mxu0 0.0
    %6764 = vmatprep.subr.mxu0 0.0
    %6765 = vmatpush1.msra.mxu0 0.0
    %6766 = vmatprep.subr.mxu0 0.0
    %6767 = vmatpush1.msra.mxu0 0.0
    %6768 = vmatprep.subr.mxu0 0.0
    %6769 = vmatpush1.msra.mxu0 0.0
    %6770 = vmatprep.subr.mxu0 0.0
    %6771 = vmatpush1.msra.mxu0 0.0
    %6772 = vmatprep.subr.mxu0 0.0
    %6773 = vmatpush1.msra.mxu0 0.0
    %6774 = vmatprep.subr.mxu0 0.0
    %6775 = vmatpush1.msra.mxu0 0.0
    %6776 = vmatprep.subr.mxu0 0.0
    %6777 = vmatpush1.msra.mxu0 0.0
    %6778 = vmatprep.mubr.f32.mxu0 0.0
    %6779 = vmatmul.mubr.f32.gmra.mrb[0].mxu0 %v6674
    %v6780 = vpop.f32.mrb[0].mxu0
    %v6781 = vadd.f32 0.0, %v6780
    %v6782 = vpop.f32.mrb[0].mxu0
    %6783 = vmatprep.mubr.f32.mxu0 0.0
    %6784 = vmatmul.mubr.f32.gmra.mrb[0].mxu0 %v6679
    %v6785 = vpop.f32.mrb[0].mxu0
    %v6786 = vadd.f32 0.0, %v6785
    %v6787 = vpop.f32.mrb[0].mxu0
    %6788 = vmatprep.mubr.f32.mxu0 0.0
    %6789 = vmatmul.mubr.f32.gmra.mrb[0].mxu0 %v6684
    %v6790 = vpop.f32.mrb[0].mxu0
    %v6791 = vadd.f32 0.0, %v6790
    %v6792 = vpop.f32.mrb[0].mxu0
    %6793 = vmatprep.mubr.f32.mxu0 0.0
    %6794 = vmatmul.mubr.f32.gmra.mrb[0].mxu0 %v6689
    %v6795 = vpop.f32.mrb[0].mxu0
    %v6796 = vadd.f32 0.0, %v6795
    %v6797 = vpop.f32.mrb[0].mxu0
    %6798 = vmatprep.mubr.f32.mxu0 0.0
    %6799 = vmatmul.mubr.f32.gmra.mrb[0].mxu0 %v6694
    %v6800 = vpop.f32.mrb[0].mxu0
    %v6801 = vadd.f32 0.0, %v6800
    %v6802 = vpop.f32.mrb[0].mxu0
    %6803 = vdwg.mxu0
    %v6804 = vadd.f32 %v6582, %v6781
    %v6805 = vadd.f32 %v6583, %v6786
    %v6806 = vadd.f32 %v6584, %v6791
    %v6807 = vadd.f32 %v6585, %v6796
    %v6808 = vadd.f32 %v6586, %v6801
    %v6809 = vld [vmem:[%s970] sm:$0xff]
    %v6810 = vld [vmem:[%s970 + $0x8] sm:$0xff]
    %v6811 = vld [vmem:[%s970 + $0x10] sm:$0xff]
    %v6812 = vld [vmem:[%s970 + $0x18] sm:$0xff]
    %v6813 = vld [vmem:[%s970 + $0x20] sm:$0x3]
    %v6815 = vsel %vm303, %v6809, 0
    %v6818 = vsel %vm303, %v6810, 0
    %v6821 = vsel %vm303, %v6811, 0
    %v6824 = vsel %vm303, %v6812, 0
    %v6827 = vsel %vm303, %v6813, 0
    %6829 = vmatprep.subr.mxu0 0.0
    %6830 = vmatpush1.msra.mxu0 %v6110
    %6831 = vmatprep.subr.mxu0 0.0
    %6832 = vmatpush1.msra.mxu0 %v6115
    %6833 = vmatprep.subr.mxu0 0.0
    %6834 = vmatpush1.msra.mxu0 %v6120
    %6835 = vmatprep.subr.mxu0 0.0
    %6836 = vmatpush1.msra.mxu0 %v6125
    %6837 = vmatprep.subr.mxu0 0.0
    %6838 = vmatpush1.msra.mxu0 %v6162
    %6839 = vmatprep.subr.mxu0 0.0
    %6840 = vmatpush1.msra.mxu0 0.0
    %6841 = vmatprep.subr.mxu0 0.0
    %6842 = vmatpush1.msra.mxu0 0.0
    %6843 = vmatprep.subr.mxu0 0.0
    %6844 = vmatpush1.msra.mxu0 0.0
    %6845 = vmatprep.subr.mxu0 0.0
    %6846 = vmatpush1.msra.mxu0 0.0
    %6847 = vmatprep.subr.mxu0 0.0
    %6848 = vmatpush1.msra.mxu0 0.0
    %6849 = vmatprep.subr.mxu0 0.0
    %6850 = vmatpush1.msra.mxu0 0.0
    %6851 = vmatprep.subr.mxu0 0.0
    %6852 = vmatpush1.msra.mxu0 0.0
    %6853 = vmatprep.subr.mxu0 0.0
    %6854 = vmatpush1.msra.mxu0 0.0
    %6855 = vmatprep.subr.mxu0 0.0
    %6856 = vmatpush1.msra.mxu0 0.0
    %6857 = vmatprep.subr.mxu0 0.0
    %6858 = vmatpush1.msra.mxu0 0.0
    %6859 = vmatprep.subr.mxu0 0.0
    %6860 = vmatpush1.msra.mxu0 0.0
    %6861 = vmatprep.subr.mxu0 0.0
    %6862 = vmatpush1.msra.mxu0 0.0
    %6863 = vmatprep.subr.mxu0 0.0
    %6864 = vmatpush1.msra.mxu0 0.0
    %6865 = vmatprep.subr.mxu0 0.0
    %6866 = vmatpush1.msra.mxu0 0.0
    %6867 = vmatprep.subr.mxu0 0.0
    %6868 = vmatpush1.msra.mxu0 0.0
    %6869 = vmatprep.subr.mxu0 0.0
    %6870 = vmatpush1.msra.mxu0 0.0
    %6871 = vmatprep.subr.mxu0 0.0
    %6872 = vmatpush1.msra.mxu0 0.0
    %6873 = vmatprep.subr.mxu0 0.0
    %6874 = vmatpush1.msra.mxu0 0.0
    %6875 = vmatprep.subr.mxu0 0.0
    %6876 = vmatpush1.msra.mxu0 0.0
    %6877 = vmatprep.subr.mxu0 0.0
    %6878 = vmatpush1.msra.mxu0 0.0
    %6879 = vmatprep.subr.mxu0 0.0
    %6880 = vmatpush1.msra.mxu0 0.0
    %6881 = vmatprep.subr.mxu0 0.0
    %6882 = vmatpush1.msra.mxu0 0.0
    %6883 = vmatprep.subr.mxu0 0.0
    %6884 = vmatpush1.msra.mxu0 0.0
    %6885 = vmatprep.subr.mxu0 0.0
    %6886 = vmatpush1.msra.mxu0 0.0
    %6887 = vmatprep.subr.mxu0 0.0
    %6888 = vmatpush1.msra.mxu0 0.0
    %6889 = vmatprep.subr.mxu0 0.0
    %6890 = vmatpush1.msra.mxu0 0.0
    %6891 = vmatprep.subr.mxu0 0.0
    %6892 = vmatpush1.msra.mxu0 0.0
    %6893 = vmatprep.mubr.f32.mxu0 0.0
    %6894 = vmatmul.mubr.f32.gmra.mrb[0].mxu0 %v6815
    %v6895 = vpop.f32.mrb[0].mxu0
    %v6896 = vadd.f32 0.0, %v6895
    %v6897 = vpop.f32.mrb[0].mxu0
    %6898 = vmatprep.mubr.f32.mxu0 0.0
    %6899 = vmatmul.mubr.f32.gmra.mrb[0].mxu0 %v6818
    %v6900 = vpop.f32.mrb[0].mxu0
    %v6901 = vadd.f32 0.0, %v6900
    %v6902 = vpop.f32.mrb[0].mxu0
    %6903 = vmatprep.mubr.f32.mxu0 0.0
    %6904 = vmatmul.mubr.f32.gmra.mrb[0].mxu0 %v6821
    %v6905 = vpop.f32.mrb[0].mxu0
    %v6906 = vadd.f32 0.0, %v6905
    %v6907 = vpop.f32.mrb[0].mxu0
    %6908 = vmatprep.mubr.f32.mxu0 0.0
    %6909 = vmatmul.mubr.f32.gmra.mrb[0].mxu0 %v6824
    %v6910 = vpop.f32.mrb[0].mxu0
    %v6911 = vadd.f32 0.0, %v6910
    %v6912 = vpop.f32.mrb[0].mxu0
    %6913 = vmatprep.mubr.f32.mxu0 0.0
    %6914 = vmatmul.mubr.f32.gmra.mrb[0].mxu0 %v6827
    %v6915 = vpop.f32.mrb[0].mxu0
    %v6916 = vadd.f32 0.0, %v6915
    %v6917 = vpop.f32.mrb[0].mxu0
    %6918 = vdwg.mxu0
    %s6919 = scalar_lea.vmem [#allocation22], 384
    %v6920 = vld [vmem:[%s6919] sm:$0xff]
    %v6921 = vld [vmem:[%s6919 + $0x8] sm:$0xff]
    %v6922 = vld [vmem:[%s6919 + $0x10] sm:$0xff]
    %v6923 = vld [vmem:[%s6919 + $0x18] sm:$0xff]
    %v6924 = vld [vmem:[%s6919 + $0x20] sm:$0xff]
    %v6925 = vld [vmem:[%s6919 + $0x28] sm:$0xff]
    %v6926 = vld [vmem:[%s6919 + $0x30] sm:$0xff]
    %v6927 = vld [vmem:[%s6919 + $0x38] sm:$0xff]
    %v6928 = vld [vmem:[%s6919 + $0x40] sm:$0xff]
    %v6929 = vld [vmem:[%s6919 + $0x48] sm:$0xff]
    %v6930 = vld [vmem:[%s6919 + $0x50] sm:$0xff]
    %v6931 = vld [vmem:[%s6919 + $0x58] sm:$0xff]
    %v6932 = vld [vmem:[%s6919 + $0x60] sm:$0xff]
    %v6933 = vld [vmem:[%s6919 + $0x68] sm:$0xff]
    %v6934 = vld [vmem:[%s6919 + $0x70] sm:$0xff]
    %v6935 = vld [vmem:[%s6919 + $0x78] sm:$0xff]
    %6936 = vmatprep.subr.mxu0 0.0
    %6937 = vmatpush1.msra.mxu0 %v6920
    %6938 = vmatprep.subr.mxu0 0.0
    %6939 = vmatpush1.msra.mxu0 %v6921
    %6940 = vmatprep.subr.mxu0 0.0
    %6941 = vmatpush1.msra.mxu0 %v6922
    %6942 = vmatprep.subr.mxu0 0.0
    %6943 = vmatpush1.msra.mxu0 %v6923
    %6944 = vmatprep.subr.mxu0 0.0
    %6945 = vmatpush1.msra.mxu0 %v6924
    %6946 = vmatprep.subr.mxu0 0.0
    %6947 = vmatpush1.msra.mxu0 %v6925
    %6948 = vmatprep.subr.mxu0 0.0
    %6949 = vmatpush1.msra.mxu0 %v6926
    %6950 = vmatprep.subr.mxu0 0.0
    %6951 = vmatpush1.msra.mxu0 %v6927
    %6952 = vmatprep.subr.mxu0 0.0
    %6953 = vmatpush1.msra.mxu0 %v6928
    %6954 = vmatprep.subr.mxu0 0.0
    %6955 = vmatpush1.msra.mxu0 %v6929
    %6956 = vmatprep.subr.mxu0 0.0
    %6957 = vmatpush1.msra.mxu0 %v6930
    %6958 = vmatprep.subr.mxu0 0.0
    %6959 = vmatpush1.msra.mxu0 %v6931
    %6960 = vmatprep.subr.mxu0 0.0
    %6961 = vmatpush1.msra.mxu0 %v6932
    %6962 = vmatprep.subr.mxu0 0.0
    %6963 = vmatpush1.msra.mxu0 %v6933
    %6964 = vmatprep.subr.mxu0 0.0
    %6965 = vmatpush1.msra.mxu0 %v6934
    %6966 = vmatprep.subr.mxu0 0.0
    %6967 = vmatpush1.msra.mxu0 %v6935
    %6968 = vmatprep.subr.mxu0 0.0
    %6969 = vmatpush1.msra.mxu0 0.0
    %6970 = vmatprep.subr.mxu0 0.0
    %6971 = vmatpush1.msra.mxu0 0.0
    %6972 = vmatprep.subr.mxu0 0.0
    %6973 = vmatpush1.msra.mxu0 0.0
    %6974 = vmatprep.subr.mxu0 0.0
    %6975 = vmatpush1.msra.mxu0 0.0
    %6976 = vmatprep.subr.mxu0 0.0
    %6977 = vmatpush1.msra.mxu0 0.0
    %6978 = vmatprep.subr.mxu0 0.0
    %6979 = vmatpush1.msra.mxu0 0.0
    %6980 = vmatprep.subr.mxu0 0.0
    %6981 = vmatpush1.msra.mxu0 0.0
    %6982 = vmatprep.subr.mxu0 0.0
    %6983 = vmatpush1.msra.mxu0 0.0
    %6984 = vmatprep.subr.mxu0 0.0
    %6985 = vmatpush1.msra.mxu0 0.0
    %6986 = vmatprep.subr.mxu0 0.0
    %6987 = vmatpush1.msra.mxu0 0.0
    %6988 = vmatprep.subr.mxu0 0.0
    %6989 = vmatpush1.msra.mxu0 0.0
    %6990 = vmatprep.subr.mxu0 0.0
    %6991 = vmatpush1.msra.mxu0 0.0
    %6992 = vmatprep.subr.mxu0 0.0
    %6993 = vmatpush1.msra.mxu0 0.0
    %6994 = vmatprep.subr.mxu0 0.0
    %6995 = vmatpush1.msra.mxu0 0.0
    %6996 = vmatprep.subr.mxu0 0.0
    %6997 = vmatpush1.msra.mxu0 0.0
    %6998 = vmatprep.subr.mxu0 0.0
    %6999 = vmatpush1.msra.mxu0 0.0
    %7000 = vmatprep.mubr.f32.mxu0 0.0
    %7001 = vmatmul.mubr.f32.gmra.mrb[0].mxu0 %v6896
    %v7002 = vpop.f32.mrb[0].mxu0
    %v7003 = vadd.f32 0.0, %v7002
    %v7004 = vpop.f32.mrb[0].mxu0
    %7005 = vmatprep.mubr.f32.mxu0 0.0
    %7006 = vmatmul.mubr.f32.gmra.mrb[0].mxu0 %v6901
    %v7007 = vpop.f32.mrb[0].mxu0
    %v7008 = vadd.f32 0.0, %v7007
    %v7009 = vpop.f32.mrb[0].mxu0
    %7010 = vmatprep.mubr.f32.mxu0 0.0
    %7011 = vmatmul.mubr.f32.gmra.mrb[0].mxu0 %v6906
    %v7012 = vpop.f32.mrb[0].mxu0
    %v7013 = vadd.f32 0.0, %v7012
    %v7014 = vpop.f32.mrb[0].mxu0
    %7015 = vmatprep.mubr.f32.mxu0 0.0
    %7016 = vmatmul.mubr.f32.gmra.mrb[0].mxu0 %v6911
    %v7017 = vpop.f32.mrb[0].mxu0
    %v7018 = vadd.f32 0.0, %v7017
    %v7019 = vpop.f32.mrb[0].mxu0
    %7020 = vmatprep.mubr.f32.mxu0 0.0
    %7021 = vmatmul.mubr.f32.gmra.mrb[0].mxu0 %v6916
    %v7022 = vpop.f32.mrb[0].mxu0
    %v7023 = vadd.f32 0.0, %v7022
    %v7024 = vpop.f32.mrb[0].mxu0
    %7025 = vdwg.mxu0
    %v7026 = vadd.f32 %v6804, %v7003
    %v7027 = vadd.f32 %v6805, %v7008
    %v7028 = vadd.f32 %v6806, %v7013
    %v7029 = vadd.f32 %v6807, %v7018
    %v7030 = vadd.f32 %v6808, %v7023
    %v7031 = vld [vmem:[%s1193] sm:$0xff]
    %v7032 = vld [vmem:[%s1193 + $0x8] sm:$0xff]
    %v7033 = vld [vmem:[%s1193 + $0x10] sm:$0xff]
    %v7034 = vld [vmem:[%s1193 + $0x18] sm:$0xff]
    %v7035 = vld [vmem:[%s1193 + $0x20] sm:$0x3]
    %v7037 = vsel %vm303, %v7031, 0
    %v7040 = vsel %vm303, %v7032, 0
    %v7043 = vsel %vm303, %v7033, 0
    %v7046 = vsel %vm303, %v7034, 0
    %v7049 = vsel %vm303, %v7035, 0
    %7051 = vmatprep.subr.mxu0 0.0
    %7052 = vmatpush1.msra.mxu0 %v6110
    %7053 = vmatprep.subr.mxu0 0.0
    %7054 = vmatpush1.msra.mxu0 %v6115
    %7055 = vmatprep.subr.mxu0 0.0
    %7056 = vmatpush1.msra.mxu0 %v6120
    %7057 = vmatprep.subr.mxu0 0.0
    %7058 = vmatpush1.msra.mxu0 %v6125
    %7059 = vmatprep.subr.mxu0 0.0
    %7060 = vmatpush1.msra.mxu0 %v6162
    %7061 = vmatprep.subr.mxu0 0.0
    %7062 = vmatpush1.msra.mxu0 0.0
    %7063 = vmatprep.subr.mxu0 0.0
    %7064 = vmatpush1.msra.mxu0 0.0
    %7065 = vmatprep.subr.mxu0 0.0
    %7066 = vmatpush1.msra.mxu0 0.0
    %7067 = vmatprep.subr.mxu0 0.0
    %7068 = vmatpush1.msra.mxu0 0.0
    %7069 = vmatprep.subr.mxu0 0.0
    %7070 = vmatpush1.msra.mxu0 0.0
    %7071 = vmatprep.subr.mxu0 0.0
    %7072 = vmatpush1.msra.mxu0 0.0
    %7073 = vmatprep.subr.mxu0 0.0
    %7074 = vmatpush1.msra.mxu0 0.0
    %7075 = vmatprep.subr.mxu0 0.0
    %7076 = vmatpush1.msra.mxu0 0.0
    %7077 = vmatprep.subr.mxu0 0.0
    %7078 = vmatpush1.msra.mxu0 0.0
    %7079 = vmatprep.subr.mxu0 0.0
    %7080 = vmatpush1.msra.mxu0 0.0
    %7081 = vmatprep.subr.mxu0 0.0
    %7082 = vmatpush1.msra.mxu0 0.0
    %7083 = vmatprep.subr.mxu0 0.0
    %7084 = vmatpush1.msra.mxu0 0.0
    %7085 = vmatprep.subr.mxu0 0.0
    %7086 = vmatpush1.msra.mxu0 0.0
    %7087 = vmatprep.subr.mxu0 0.0
    %7088 = vmatpush1.msra.mxu0 0.0
    %7089 = vmatprep.subr.mxu0 0.0
    %7090 = vmatpush1.msra.mxu0 0.0
    %7091 = vmatprep.subr.mxu0 0.0
    %7092 = vmatpush1.msra.mxu0 0.0
    %7093 = vmatprep.subr.mxu0 0.0
    %7094 = vmatpush1.msra.mxu0 0.0
    %7095 = vmatprep.subr.mxu0 0.0
    %7096 = vmatpush1.msra.mxu0 0.0
    %7097 = vmatprep.subr.mxu0 0.0
    %7098 = vmatpush1.msra.mxu0 0.0
    %7099 = vmatprep.subr.mxu0 0.0
    %7100 = vmatpush1.msra.mxu0 0.0
    %7101 = vmatprep.subr.mxu0 0.0
    %7102 = vmatpush1.msra.mxu0 0.0
    %7103 = vmatprep.subr.mxu0 0.0
    %7104 = vmatpush1.msra.mxu0 0.0
    %7105 = vmatprep.subr.mxu0 0.0
    %7106 = vmatpush1.msra.mxu0 0.0
    %7107 = vmatprep.subr.mxu0 0.0
    %7108 = vmatpush1.msra.mxu0 0.0
    %7109 = vmatprep.subr.mxu0 0.0
    %7110 = vmatpush1.msra.mxu0 0.0
    %7111 = vmatprep.subr.mxu0 0.0
    %7112 = vmatpush1.msra.mxu0 0.0
    %7113 = vmatprep.subr.mxu0 0.0
    %7114 = vmatpush1.msra.mxu0 0.0
    %7115 = vmatprep.mubr.f32.mxu0 0.0
    %7116 = vmatmul.mubr.f32.gmra.mrb[0].mxu0 %v7037
    %v7117 = vpop.f32.mrb[0].mxu0
    %v7118 = vadd.f32 0.0, %v7117
    %v7119 = vpop.f32.mrb[0].mxu0
    %7120 = vmatprep.mubr.f32.mxu0 0.0
    %7121 = vmatmul.mubr.f32.gmra.mrb[0].mxu0 %v7040
    %v7122 = vpop.f32.mrb[0].mxu0
    %v7123 = vadd.f32 0.0, %v7122
    %v7124 = vpop.f32.mrb[0].mxu0
    %7125 = vmatprep.mubr.f32.mxu0 0.0
    %7126 = vmatmul.mubr.f32.gmra.mrb[0].mxu0 %v7043
    %v7127 = vpop.f32.mrb[0].mxu0
    %v7128 = vadd.f32 0.0, %v7127
    %v7129 = vpop.f32.mrb[0].mxu0
    %7130 = vmatprep.mubr.f32.mxu0 0.0
    %7131 = vmatmul.mubr.f32.gmra.mrb[0].mxu0 %v7046
    %v7132 = vpop.f32.mrb[0].mxu0
    %v7133 = vadd.f32 0.0, %v7132
    %v7134 = vpop.f32.mrb[0].mxu0
    %7135 = vmatprep.mubr.f32.mxu0 0.0
    %7136 = vmatmul.mubr.f32.gmra.mrb[0].mxu0 %v7049
    %v7137 = vpop.f32.mrb[0].mxu0
    %v7138 = vadd.f32 0.0, %v7137
    %v7139 = vpop.f32.mrb[0].mxu0
    %7140 = vdwg.mxu0
    %s7141 = scalar_lea.vmem [#allocation22], 512
    %v7142 = vld [vmem:[%s7141] sm:$0xff]
    %v7143 = vld [vmem:[%s7141 + $0x8] sm:$0xff]
    %v7144 = vld [vmem:[%s7141 + $0x10] sm:$0xff]
    %v7145 = vld [vmem:[%s7141 + $0x18] sm:$0xff]
    %v7146 = vld [vmem:[%s7141 + $0x20] sm:$0xff]
    %v7147 = vld [vmem:[%s7141 + $0x28] sm:$0xff]
    %v7148 = vld [vmem:[%s7141 + $0x30] sm:$0xff]
    %v7149 = vld [vmem:[%s7141 + $0x38] sm:$0xff]
    %v7150 = vld [vmem:[%s7141 + $0x40] sm:$0xff]
    %v7151 = vld [vmem:[%s7141 + $0x48] sm:$0xff]
    %v7152 = vld [vmem:[%s7141 + $0x50] sm:$0xff]
    %v7153 = vld [vmem:[%s7141 + $0x58] sm:$0xff]
    %v7154 = vld [vmem:[%s7141 + $0x60] sm:$0xff]
    %v7155 = vld [vmem:[%s7141 + $0x68] sm:$0xff]
    %v7156 = vld [vmem:[%s7141 + $0x70] sm:$0xff]
    %v7157 = vld [vmem:[%s7141 + $0x78] sm:$0xff]
    %7158 = vmatprep.subr.mxu0 0.0
    %7159 = vmatpush1.msra.mxu0 %v7142
    %7160 = vmatprep.subr.mxu0 0.0
    %7161 = vmatpush1.msra.mxu0 %v7143
    %7162 = vmatprep.subr.mxu0 0.0
    %7163 = vmatpush1.msra.mxu0 %v7144
    %7164 = vmatprep.subr.mxu0 0.0
    %7165 = vmatpush1.msra.mxu0 %v7145
    %7166 = vmatprep.subr.mxu0 0.0
    %7167 = vmatpush1.msra.mxu0 %v7146
    %7168 = vmatprep.subr.mxu0 0.0
    %7169 = vmatpush1.msra.mxu0 %v7147
    %7170 = vmatprep.subr.mxu0 0.0
    %7171 = vmatpush1.msra.mxu0 %v7148
    %7172 = vmatprep.subr.mxu0 0.0
    %7173 = vmatpush1.msra.mxu0 %v7149
    %7174 = vmatprep.subr.mxu0 0.0
    %7175 = vmatpush1.msra.mxu0 %v7150
    %7176 = vmatprep.subr.mxu0 0.0
    %7177 = vmatpush1.msra.mxu0 %v7151
    %7178 = vmatprep.subr.mxu0 0.0
    %7179 = vmatpush1.msra.mxu0 %v7152
    %7180 = vmatprep.subr.mxu0 0.0
    %7181 = vmatpush1.msra.mxu0 %v7153
    %7182 = vmatprep.subr.mxu0 0.0
    %7183 = vmatpush1.msra.mxu0 %v7154
    %7184 = vmatprep.subr.mxu0 0.0
    %7185 = vmatpush1.msra.mxu0 %v7155
    %7186 = vmatprep.subr.mxu0 0.0
    %7187 = vmatpush1.msra.mxu0 %v7156
    %7188 = vmatprep.subr.mxu0 0.0
    %7189 = vmatpush1.msra.mxu0 %v7157
    %7190 = vmatprep.subr.mxu0 0.0
    %7191 = vmatpush1.msra.mxu0 0.0
    %7192 = vmatprep.subr.mxu0 0.0
    %7193 = vmatpush1.msra.mxu0 0.0
    %7194 = vmatprep.subr.mxu0 0.0
    %7195 = vmatpush1.msra.mxu0 0.0
    %7196 = vmatprep.subr.mxu0 0.0
    %7197 = vmatpush1.msra.mxu0 0.0
    %7198 = vmatprep.subr.mxu0 0.0
    %7199 = vmatpush1.msra.mxu0 0.0
    %7200 = vmatprep.subr.mxu0 0.0
    %7201 = vmatpush1.msra.mxu0 0.0
    %7202 = vmatprep.subr.mxu0 0.0
    %7203 = vmatpush1.msra.mxu0 0.0
    %7204 = vmatprep.subr.mxu0 0.0
    %7205 = vmatpush1.msra.mxu0 0.0
    %7206 = vmatprep.subr.mxu0 0.0
    %7207 = vmatpush1.msra.mxu0 0.0
    %7208 = vmatprep.subr.mxu0 0.0
    %7209 = vmatpush1.msra.mxu0 0.0
    %7210 = vmatprep.subr.mxu0 0.0
    %7211 = vmatpush1.msra.mxu0 0.0
    %7212 = vmatprep.subr.mxu0 0.0
    %7213 = vmatpush1.msra.mxu0 0.0
    %7214 = vmatprep.subr.mxu0 0.0
    %7215 = vmatpush1.msra.mxu0 0.0
    %7216 = vmatprep.subr.mxu0 0.0
    %7217 = vmatpush1.msra.mxu0 0.0
    %7218 = vmatprep.subr.mxu0 0.0
    %7219 = vmatpush1.msra.mxu0 0.0
    %7220 = vmatprep.subr.mxu0 0.0
    %7221 = vmatpush1.msra.mxu0 0.0
    %7222 = vmatprep.mubr.f32.mxu0 0.0
    %7223 = vmatmul.mubr.f32.gmra.mrb[0].mxu0 %v7118
    %v7224 = vpop.f32.mrb[0].mxu0
    %v7225 = vadd.f32 0.0, %v7224
    %v7226 = vpop.f32.mrb[0].mxu0
    %7227 = vmatprep.mubr.f32.mxu0 0.0
    %7228 = vmatmul.mubr.f32.gmra.mrb[0].mxu0 %v7123
    %v7229 = vpop.f32.mrb[0].mxu0
    %v7230 = vadd.f32 0.0, %v7229
    %v7231 = vpop.f32.mrb[0].mxu0
    %7232 = vmatprep.mubr.f32.mxu0 0.0
    %7233 = vmatmul.mubr.f32.gmra.mrb[0].mxu0 %v7128
    %v7234 = vpop.f32.mrb[0].mxu0
    %v7235 = vadd.f32 0.0, %v7234
    %v7236 = vpop.f32.mrb[0].mxu0
    %7237 = vmatprep.mubr.f32.mxu0 0.0
    %7238 = vmatmul.mubr.f32.gmra.mrb[0].mxu0 %v7133
    %v7239 = vpop.f32.mrb[0].mxu0
    %v7240 = vadd.f32 0.0, %v7239
    %v7241 = vpop.f32.mrb[0].mxu0
    %7242 = vmatprep.mubr.f32.mxu0 0.0
    %7243 = vmatmul.mubr.f32.gmra.mrb[0].mxu0 %v7138
    %v7244 = vpop.f32.mrb[0].mxu0
    %v7245 = vadd.f32 0.0, %v7244
    %v7246 = vpop.f32.mrb[0].mxu0
    %7247 = vdwg.mxu0
    %v7248 = vadd.f32 %v7026, %v7225
    %v7249 = vadd.f32 %v7027, %v7230
    %v7250 = vadd.f32 %v7028, %v7235
    %v7251 = vadd.f32 %v7029, %v7240
    %v7252 = vadd.f32 %v7030, %v7245
    %v7253 = vld [vmem:[%s1416] sm:$0xff]
    %v7254 = vld [vmem:[%s1416 + $0x8] sm:$0xff]
    %v7255 = vld [vmem:[%s1416 + $0x10] sm:$0xff]
    %v7256 = vld [vmem:[%s1416 + $0x18] sm:$0xff]
    %v7257 = vld [vmem:[%s1416 + $0x20] sm:$0x3]
    %v7259 = vsel %vm303, %v7253, 0
    %v7262 = vsel %vm303, %v7254, 0
    %v7265 = vsel %vm303, %v7255, 0
    %v7268 = vsel %vm303, %v7256, 0
    %v7271 = vsel %vm303, %v7257, 0
    %7273 = vmatprep.subr.mxu0 0.0
    %7274 = vmatpush1.msra.mxu0 %v6110
    %7275 = vmatprep.subr.mxu0 0.0
    %7276 = vmatpush1.msra.mxu0 %v6115
    %7277 = vmatprep.subr.mxu0 0.0
    %7278 = vmatpush1.msra.mxu0 %v6120
    %7279 = vmatprep.subr.mxu0 0.0
    %7280 = vmatpush1.msra.mxu0 %v6125
    %7281 = vmatprep.subr.mxu0 0.0
    %7282 = vmatpush1.msra.mxu0 %v6162
    %7283 = vmatprep.subr.mxu0 0.0
    %7284 = vmatpush1.msra.mxu0 0.0
    %7285 = vmatprep.subr.mxu0 0.0
    %7286 = vmatpush1.msra.mxu0 0.0
    %7287 = vmatprep.subr.mxu0 0.0
    %7288 = vmatpush1.msra.mxu0 0.0
    %7289 = vmatprep.subr.mxu0 0.0
    %7290 = vmatpush1.msra.mxu0 0.0
    %7291 = vmatprep.subr.mxu0 0.0
    %7292 = vmatpush1.msra.mxu0 0.0
    %7293 = vmatprep.subr.mxu0 0.0
    %7294 = vmatpush1.msra.mxu0 0.0
    %7295 = vmatprep.subr.mxu0 0.0
    %7296 = vmatpush1.msra.mxu0 0.0
    %7297 = vmatprep.subr.mxu0 0.0
    %7298 = vmatpush1.msra.mxu0 0.0
    %7299 = vmatprep.subr.mxu0 0.0
    %7300 = vmatpush1.msra.mxu0 0.0
    %7301 = vmatprep.subr.mxu0 0.0
    %7302 = vmatpush1.msra.mxu0 0.0
    %7303 = vmatprep.subr.mxu0 0.0
    %7304 = vmatpush1.msra.mxu0 0.0
    %7305 = vmatprep.subr.mxu0 0.0
    %7306 = vmatpush1.msra.mxu0 0.0
    %7307 = vmatprep.subr.mxu0 0.0
    %7308 = vmatpush1.msra.mxu0 0.0
    %7309 = vmatprep.subr.mxu0 0.0
    %7310 = vmatpush1.msra.mxu0 0.0
    %7311 = vmatprep.subr.mxu0 0.0
    %7312 = vmatpush1.msra.mxu0 0.0
    %7313 = vmatprep.subr.mxu0 0.0
    %7314 = vmatpush1.msra.mxu0 0.0
    %7315 = vmatprep.subr.mxu0 0.0
    %7316 = vmatpush1.msra.mxu0 0.0
    %7317 = vmatprep.subr.mxu0 0.0
    %7318 = vmatpush1.msra.mxu0 0.0
    %7319 = vmatprep.subr.mxu0 0.0
    %7320 = vmatpush1.msra.mxu0 0.0
    %7321 = vmatprep.subr.mxu0 0.0
    %7322 = vmatpush1.msra.mxu0 0.0
    %7323 = vmatprep.subr.mxu0 0.0
    %7324 = vmatpush1.msra.mxu0 0.0
    %7325 = vmatprep.subr.mxu0 0.0
    %7326 = vmatpush1.msra.mxu0 0.0
    %7327 = vmatprep.subr.mxu0 0.0
    %7328 = vmatpush1.msra.mxu0 0.0
    %7329 = vmatprep.subr.mxu0 0.0
    %7330 = vmatpush1.msra.mxu0 0.0
    %7331 = vmatprep.subr.mxu0 0.0
    %7332 = vmatpush1.msra.mxu0 0.0
    %7333 = vmatprep.subr.mxu0 0.0
    %7334 = vmatpush1.msra.mxu0 0.0
    %7335 = vmatprep.subr.mxu0 0.0
    %7336 = vmatpush1.msra.mxu0 0.0
    %7337 = vmatprep.mubr.f32.mxu0 0.0
    %7338 = vmatmul.mubr.f32.gmra.mrb[0].mxu0 %v7259
    %v7339 = vpop.f32.mrb[0].mxu0
    %v7340 = vadd.f32 0.0, %v7339
    %v7341 = vpop.f32.mrb[0].mxu0
    %7342 = vmatprep.mubr.f32.mxu0 0.0
    %7343 = vmatmul.mubr.f32.gmra.mrb[0].mxu0 %v7262
    %v7344 = vpop.f32.mrb[0].mxu0
    %v7345 = vadd.f32 0.0, %v7344
    %v7346 = vpop.f32.mrb[0].mxu0
    %7347 = vmatprep.mubr.f32.mxu0 0.0
    %7348 = vmatmul.mubr.f32.gmra.mrb[0].mxu0 %v7265
    %v7349 = vpop.f32.mrb[0].mxu0
    %v7350 = vadd.f32 0.0, %v7349
    %v7351 = vpop.f32.mrb[0].mxu0
    %7352 = vmatprep.mubr.f32.mxu0 0.0
    %7353 = vmatmul.mubr.f32.gmra.mrb[0].mxu0 %v7268
    %v7354 = vpop.f32.mrb[0].mxu0
    %v7355 = vadd.f32 0.0, %v7354
    %v7356 = vpop.f32.mrb[0].mxu0
    %7357 = vmatprep.mubr.f32.mxu0 0.0
    %7358 = vmatmul.mubr.f32.gmra.mrb[0].mxu0 %v7271
    %v7359 = vpop.f32.mrb[0].mxu0
    %v7360 = vadd.f32 0.0, %v7359
    %v7361 = vpop.f32.mrb[0].mxu0
    %7362 = vdwg.mxu0
    %s7363 = scalar_lea.vmem [#allocation22], 640
    %v7364 = vld [vmem:[%s7363] sm:$0xff]
    %v7365 = vld [vmem:[%s7363 + $0x8] sm:$0xff]
    %v7366 = vld [vmem:[%s7363 + $0x10] sm:$0xff]
    %v7367 = vld [vmem:[%s7363 + $0x18] sm:$0xff]
    %v7368 = vld [vmem:[%s7363 + $0x20] sm:$0xff]
    %v7369 = vld [vmem:[%s7363 + $0x28] sm:$0xff]
    %v7370 = vld [vmem:[%s7363 + $0x30] sm:$0xff]
    %v7371 = vld [vmem:[%s7363 + $0x38] sm:$0xff]
    %v7372 = vld [vmem:[%s7363 + $0x40] sm:$0xff]
    %v7373 = vld [vmem:[%s7363 + $0x48] sm:$0xff]
    %v7374 = vld [vmem:[%s7363 + $0x50] sm:$0xff]
    %v7375 = vld [vmem:[%s7363 + $0x58] sm:$0xff]
    %v7376 = vld [vmem:[%s7363 + $0x60] sm:$0xff]
    %v7377 = vld [vmem:[%s7363 + $0x68] sm:$0xff]
    %v7378 = vld [vmem:[%s7363 + $0x70] sm:$0xff]
    %v7379 = vld [vmem:[%s7363 + $0x78] sm:$0xff]
    %7380 = vmatprep.subr.mxu0 0.0
    %7381 = vmatpush1.msra.mxu0 %v7364
    %7382 = vmatprep.subr.mxu0 0.0
    %7383 = vmatpush1.msra.mxu0 %v7365
    %7384 = vmatprep.subr.mxu0 0.0
    %7385 = vmatpush1.msra.mxu0 %v7366
    %7386 = vmatprep.subr.mxu0 0.0
    %7387 = vmatpush1.msra.mxu0 %v7367
    %7388 = vmatprep.subr.mxu0 0.0
    %7389 = vmatpush1.msra.mxu0 %v7368
    %7390 = vmatprep.subr.mxu0 0.0
    %7391 = vmatpush1.msra.mxu0 %v7369
    %7392 = vmatprep.subr.mxu0 0.0
    %7393 = vmatpush1.msra.mxu0 %v7370
    %7394 = vmatprep.subr.mxu0 0.0
    %7395 = vmatpush1.msra.mxu0 %v7371
    %7396 = vmatprep.subr.mxu0 0.0
    %7397 = vmatpush1.msra.mxu0 %v7372
    %7398 = vmatprep.subr.mxu0 0.0
    %7399 = vmatpush1.msra.mxu0 %v7373
    %7400 = vmatprep.subr.mxu0 0.0
    %7401 = vmatpush1.msra.mxu0 %v7374
    %7402 = vmatprep.subr.mxu0 0.0
    %7403 = vmatpush1.msra.mxu0 %v7375
    %7404 = vmatprep.subr.mxu0 0.0
    %7405 = vmatpush1.msra.mxu0 %v7376
    %7406 = vmatprep.subr.mxu0 0.0
    %7407 = vmatpush1.msra.mxu0 %v7377
    %7408 = vmatprep.subr.mxu0 0.0
    %7409 = vmatpush1.msra.mxu0 %v7378
    %7410 = vmatprep.subr.mxu0 0.0
    %7411 = vmatpush1.msra.mxu0 %v7379
    %7412 = vmatprep.subr.mxu0 0.0
    %7413 = vmatpush1.msra.mxu0 0.0
    %7414 = vmatprep.subr.mxu0 0.0
    %7415 = vmatpush1.msra.mxu0 0.0
    %7416 = vmatprep.subr.mxu0 0.0
    %7417 = vmatpush1.msra.mxu0 0.0
    %7418 = vmatprep.subr.mxu0 0.0
    %7419 = vmatpush1.msra.mxu0 0.0
    %7420 = vmatprep.subr.mxu0 0.0
    %7421 = vmatpush1.msra.mxu0 0.0
    %7422 = vmatprep.subr.mxu0 0.0
    %7423 = vmatpush1.msra.mxu0 0.0
    %7424 = vmatprep.subr.mxu0 0.0
    %7425 = vmatpush1.msra.mxu0 0.0
    %7426 = vmatprep.subr.mxu0 0.0
    %7427 = vmatpush1.msra.mxu0 0.0
    %7428 = vmatprep.subr.mxu0 0.0
    %7429 = vmatpush1.msra.mxu0 0.0
    %7430 = vmatprep.subr.mxu0 0.0
    %7431 = vmatpush1.msra.mxu0 0.0
    %7432 = vmatprep.subr.mxu0 0.0
    %7433 = vmatpush1.msra.mxu0 0.0
    %7434 = vmatprep.subr.mxu0 0.0
    %7435 = vmatpush1.msra.mxu0 0.0
    %7436 = vmatprep.subr.mxu0 0.0
    %7437 = vmatpush1.msra.mxu0 0.0
    %7438 = vmatprep.subr.mxu0 0.0
    %7439 = vmatpush1.msra.mxu0 0.0
    %7440 = vmatprep.subr.mxu0 0.0
    %7441 = vmatpush1.msra.mxu0 0.0
    %7442 = vmatprep.subr.mxu0 0.0
    %7443 = vmatpush1.msra.mxu0 0.0
    %7444 = vmatprep.mubr.f32.mxu0 0.0
    %7445 = vmatmul.mubr.f32.gmra.mrb[0].mxu0 %v7340
    %v7446 = vpop.f32.mrb[0].mxu0
    %v7447 = vadd.f32 0.0, %v7446
    %v7448 = vpop.f32.mrb[0].mxu0
    %7449 = vmatprep.mubr.f32.mxu0 0.0
    %7450 = vmatmul.mubr.f32.gmra.mrb[0].mxu0 %v7345
    %v7451 = vpop.f32.mrb[0].mxu0
    %v7452 = vadd.f32 0.0, %v7451
    %v7453 = vpop.f32.mrb[0].mxu0
    %7454 = vmatprep.mubr.f32.mxu0 0.0
    %7455 = vmatmul.mubr.f32.gmra.mrb[0].mxu0 %v7350
    %v7456 = vpop.f32.mrb[0].mxu0
    %v7457 = vadd.f32 0.0, %v7456
    %v7458 = vpop.f32.mrb[0].mxu0
    %7459 = vmatprep.mubr.f32.mxu0 0.0
    %7460 = vmatmul.mubr.f32.gmra.mrb[0].mxu0 %v7355
    %v7461 = vpop.f32.mrb[0].mxu0
    %v7462 = vadd.f32 0.0, %v7461
    %v7463 = vpop.f32.mrb[0].mxu0
    %7464 = vmatprep.mubr.f32.mxu0 0.0
    %7465 = vmatmul.mubr.f32.gmra.mrb[0].mxu0 %v7360
    %v7466 = vpop.f32.mrb[0].mxu0
    %v7467 = vadd.f32 0.0, %v7466
    %v7468 = vpop.f32.mrb[0].mxu0
    %7469 = vdwg.mxu0
    %v7470 = vadd.f32 %v7248, %v7447
    %v7471 = vadd.f32 %v7249, %v7452
    %v7472 = vadd.f32 %v7250, %v7457
    %v7473 = vadd.f32 %v7251, %v7462
    %v7474 = vadd.f32 %v7252, %v7467
    %v7475 = vld [vmem:[%s21] sm:$0xff]
    %v7476 = vld [vmem:[%s21 + $0x8] sm:$0xff]
    %v7477 = vld [vmem:[%s21 + $0x10] sm:$0xff]
    %v7478 = vld [vmem:[%s21 + $0x18] sm:$0xff]
    %v7479 = vld [vmem:[%s21 + $0x20] sm:$0x3]
    %7481 = vset.pattern.permute.xlu0 0
    %7482 = vperm.xlu0 %7481, %v7475
    %v7483 = vpop.permute.xlu0 %7482
    %7486 = vset.pattern.permute.xlu0 0
    %7487 = vperm.xlu0 %7486, %v7476
    %v7488 = vpop.permute.xlu0 %7487
    %7491 = vset.pattern.permute.xlu0 0
    %7492 = vperm.xlu0 %7491, %v7477
    %v7493 = vpop.permute.xlu0 %7492
    %7496 = vset.pattern.permute.xlu0 0
    %7497 = vperm.xlu0 %7496, %v7478
    %v7498 = vpop.permute.xlu0 %7497
    %7501 = vset.pattern.permute.xlu0 0
    %7502 = vperm.xlu0 %7501, %v7479
    %v7503 = vpop.permute.xlu0 %7502
    %v7505 = vmul.f32 %v7470, %v7483
    %v7506 = vmul.f32 %v7471, %v7488
    %v7507 = vmul.f32 %v7472, %v7493
    %v7508 = vmul.f32 %v7473, %v7498
    %v7509 = vmul.f32 %v7474, %v7503
    %7510 = vst [vmem:[%s22] sm:$0xff] %v7505
    %7511 = vst [vmem:[%s22 + $0x8] sm:$0xff] %v7506
    %7512 = vst [vmem:[%s22 + $0x10] sm:$0xff] %v7507
    %7513 = vst [vmem:[%s22 + $0x18] sm:$0xff] %v7508
    %7514 = vst [vmem:[%s22 + $0x20] sm:$0x3] %v7509
    // Predicated region
    $region154: #{fwd.1} parent=1 // pred_check
      _
    $region155: #{fwd.1} parent=1 // pred_check_branch
      %7516 = sbr.rel (0) target = $region157
    $region156: #{fwd.1} parent=1 // pred_region
      _
    $region157: #{fwd.1} parent=1 // pred_fallthru
      _
    // Predicated region
    $region158: #{fwd.1} parent=1 // pred_check
      _
    $region159: #{fwd.1} parent=1 // pred_check_branch
      %7518 = sbr.rel (0) target = $region161
    $region160: #{fwd.1} parent=1 // pred_region
      %s7520 = ssub.s32 32, 32
      %7521 = vsyncadd [#allocation4], %s7520
      %s7523 = sshll.u32 [#allocation28], 4
      %s7524 = int_to_ptr.vmem [resolvable:$true] %s7523
      %7526 = dma.vmem_to_hbm [thread:$0]  %s7524, 32, %s23, [#allocation4]
    $region161: #{fwd.1} parent=1 // pred_fallthru
      _
    // Predicated region
    $region162: #{fwd.1} parent=1 // pred_check
      _
    $region163: #{fwd.1} parent=1 // pred_check_branch
      %7528 = sbr.rel (0) target = $region165
    $region164: #{fwd.1} parent=1 // pred_region
      _
    $region165: #{fwd.1} parent=1 // pred_fallthru
      _
    // Predicated region
    $region166: #{fwd.1} parent=1 // pred_check
      _
    $region167: #{fwd.1} parent=1 // pred_check_branch
      %7530 = sbr.rel (0) target = $region169
    $region168: #{fwd.1} parent=1 // pred_region
      %7531 = dma.done [#allocation4], 32
    $region169: #{fwd.1} parent=1 // pred_fallthru
      _
    %7532 = vsyncpa [#allocation3], 1
    %7533 = vsyncpa [#allocation6], 1
    %7534 = vsyncpa [#allocation9], 1
    %7535 = vsyncpa [#allocation12], 1
    %7536 = vsyncpa [#allocation15], 1
    %7537 = vsyncpa [#allocation18], 1
    %7538 = vsyncpa [#allocation21], 1
    %7539 = vsyncpa [#allocation24], 1
    %7540 = vsyncpa [#allocation27], 1
    %7541 = vsyncpa [#allocation4], 1

</llo_original>
